<compile_context>
chip_gen: v7x
topology: tpu7x:2x2x1
jax: 0.10.0
libtpu: 0.0.40
codegen_flags: <defaults>
</compile_context>

<pallas_src>
import numpy as np
import jax
import jax.numpy as jnp
from jax.experimental import pallas as pl
from jax.experimental.pallas import tpu as pltpu

B_TILE = 16  # images per grid step (multiple of 8 so all row slices stay tile-aligned)


# ------------------------------ fused kernel -------------------------------

def fused_net_kernel(x_ref,      # (28*bt, 28)   row = r*bt + image
                     w1_ref,     # (5, 28, 240)  conv1 banded weights (per kh)
                     b1_ref,     # (1, 230)      conv1 bias, channel-tiled
                     w2_ref,     # (5, 230, 160) conv2 banded weights (per kh)
                     b2_ref,     # (1, 140)      conv2 bias, channel-tiled
                     f1_ref,     # (4, 140, 50)  fc1 weights, per pooled spatial row
                     fb1_ref,    # (1, 50)
                     f2_ref,     # (50, 128)     fc2 weights, padded to 128 lanes
                     fb2_ref,    # (1, 128)      fc2 bias, pads = -1e30
                     o_ref,      # (bt, 128)     output block (lane-dense)
                     c1_ref,     # scratch (24*bt, 240)
                     p1_ref,     # scratch (12*bt, 230)
                     c2_ref,     # scratch (8*bt, 160)
                     p2_ref):    # scratch (4*bt, 140)
    f32 = jnp.float32
    bt = o_ref.shape[0]

    # ---- conv1: 5 banded matmuls, accumulate into VMEM scratch ----------------
    # c1[i*bt + b, j*10 + oc] = sum_kh,kw x[b, i+kh, j+kw] * w1[oc, 0, kh, kw]
    for kh in range(5):
        s = x_ref[kh * bt:(kh + 24) * bt, :]                            # (24*bt, 28)
        contrib = jnp.dot(s, w1_ref[kh], preferred_element_type=f32)    # (24*bt, 240)
        if kh == 0:
            c1_ref[...] = contrib
        else:
            c1_ref[...] += contrib

    # ---- 2x2 max-pool + bias + relu (fused; relu/bias commute with max) -------
    # p1[i*bt + b, 20*j + ic] = relu(maxpool(conv1)[b, ic, i, j])  (other lanes unused)
    for i in range(12):
        a = c1_ref[(2 * i) * bt:(2 * i + 1) * bt, :]                    # rows 2i
        b = c1_ref[(2 * i + 1) * bt:(2 * i + 2) * bt, :]                # rows 2i+1
        v = jnp.maximum(a, b)                                           # (bt, 240)
        h = jnp.maximum(v[:, :230], v[:, 10:240])                       # horiz. max
        p1_ref[i * bt:(i + 1) * bt, :] = jnp.maximum(h + b1_ref[...], 0.0)

    # ---- conv2: 5 banded matmuls over the (uncompacted) pool1 layout ----------
    # TODO(synk): Dropout2d is identity in eval mode; training-mode channel dropout not implemented.
    for kh in range(5):
        s = p1_ref[kh * bt:(kh + 8) * bt, :]                            # (8*bt, 230)
        contrib = jnp.dot(s, w2_ref[kh], preferred_element_type=f32)    # (8*bt, 160)
        if kh == 0:
            c2_ref[...] = contrib
        else:
            c2_ref[...] += contrib

    # ---- 2x2 max-pool + bias + relu --------------------------------------------
    # p2[i*bt + b, 40*j + oc] = relu(maxpool(conv2)[b, oc, i, j])
    for i in range(4):
        a = c2_ref[(2 * i) * bt:(2 * i + 1) * bt, :]
        b = c2_ref[(2 * i + 1) * bt:(2 * i + 2) * bt, :]
        v = jnp.maximum(a, b)                                           # (bt, 160)
        h = jnp.maximum(v[:, :140], v[:, 20:160])
        p2_ref[i * bt:(i + 1) * bt, :] = jnp.maximum(h + b2_ref[...], 0.0)

    # ---- fc1 + relu (torch .view(-1,320) flatten folded into the weights) -----
    z1 = fb1_ref[...]                                                   # (1, 50)
    for i in range(4):
        z1 = z1 + jnp.dot(p2_ref[i * bt:(i + 1) * bt, :], f1_ref[i],
                          preferred_element_type=f32)                   # (bt, 50)
    z1 = jnp.maximum(z1, 0.0)
    # TODO(synk): F.dropout is identity in eval mode; training-mode dropout not implemented.

    # ---- fc2 + log_softmax over 128 padded lanes (pads have bias -1e30) --------
    z2 = jnp.dot(z1, f2_ref[...], preferred_element_type=f32) + fb2_ref[...]
    m = jnp.max(z2, axis=-1, keepdims=True)
    lse = jnp.log(jnp.sum(jnp.exp(z2 - m), axis=-1, keepdims=True)) + m
    o_ref[...] = z2 - lse                                               # (bt, 128)


# ------------------------- host-side weight packing -------------------------

def prepare_params(params):
    """One-time repack of PyTorch-layout params into kernel layouts (off the hot path)."""
    w1, b1, w2, b2, fw1, fb1, fw2, fb2 = [np.asarray(p, np.float32) for p in params]

    # conv1 banded weights: W1[kh, c, j*10+oc] = w1[oc, 0, kh, c-j] for 0<=c-j<=4
    w1b = np.zeros((5, 28, 240), np.float32)
    for kh in range(5):
        for j in range(24):
            for kw in range(5):
                for oc in range(10):
                    w1b[kh, j + kw, j * 10 + oc] = w1[oc, 0, kh, kw]
    b1t = np.tile(b1, 24)[:230].reshape(1, 230)

    # conv2 banded weights reading pool1's uncompacted lane layout (lane 20*jc+ic valid)
    w2b = np.zeros((5, 230, 160), np.float32)
    for kh in range(5):
        for j in range(8):
            for kw in range(5):
                for ic in range(10):
                    for oc in range(20):
                        w2b[kh, 20 * (j + kw) + ic, j * 20 + oc] = w2[oc, ic, kh, kw]
    b2t = np.tile(b2, 8)[:140].reshape(1, 140)

    # fc1: per pooled spatial row i, lane 40*j+oc maps to torch flat index oc*16+i*4+j
    f1b = np.zeros((4, 140, 50), np.float32)
    for i in range(4):
        for j in range(4):
            for oc in range(20):
                f1b[i, 40 * j + oc, :] = fw1[:, oc * 16 + i * 4 + j]
    fb1r = fb1.reshape(1, 50)

    # fc2 padded to 128 output lanes; pad bias very negative so log_softmax ignores pads
    f2p = np.zeros((50, 128), np.float32)
    f2p[:, :10] = fw2.T
    fb2p = np.full((1, 128), -1e30, np.float32)
    fb2p[0, :10] = fb2

    return tuple(jnp.asarray(a) for a in (w1b, b1t, w2b, b2t, f1b, fb1r, f2p, fb2p))


# --------------------------------- forward ----------------------------------

def net_forward(x, prep, b_tile=B_TILE):
    """x: (B, 1, 28, 28) float32 -> (B, 10) log-probabilities."""
    w1b, b1t, w2b, b2t, f1b, fb1r, f2p, fb2p = prep
    B = x.shape[0]
    T = -(-B // b_tile)
    Bp = T * b_tile

    xi = x.reshape(B, 28, 28).astype(jnp.float32)
    if Bp != B:
        xi = jnp.pad(xi, ((0, Bp - B), (0, 0), (0, 0)))
    # spatial-row-major, image-minor layout: row = r*b_tile + image
    xt = xi.reshape(T, b_tile, 28, 28).transpose(0, 2, 1, 3).reshape(T, 28 * b_tile, 28)

    out = pl.pallas_call(
        fused_net_kernel,
        out_shape=jax.ShapeDtypeStruct((Bp, 128), jnp.float32),
        grid=(T,),
        in_specs=[
            pl.BlockSpec((None, 28 * b_tile, 28), lambda t: (t, 0, 0)),   # per-tile images
            pl.BlockSpec((5, 28, 240), lambda t: (0, 0, 0)),              # weights: resident
            pl.BlockSpec((1, 230), lambda t: (0, 0)),
            pl.BlockSpec((5, 230, 160), lambda t: (0, 0, 0)),
            pl.BlockSpec((1, 140), lambda t: (0, 0)),
            pl.BlockSpec((4, 140, 50), lambda t: (0, 0, 0)),
            pl.BlockSpec((1, 50), lambda t: (0, 0)),
            pl.BlockSpec((50, 128), lambda t: (0, 0)),
            pl.BlockSpec((1, 128), lambda t: (0, 0)),
        ],
        out_specs=pl.BlockSpec((b_tile, 128), lambda t: (t, 0)),
        scratch_shapes=[
            pltpu.VMEM((24 * b_tile, 240), jnp.float32),   # conv1 accumulator
            pltpu.VMEM((12 * b_tile, 230), jnp.float32),   # pool1 (relu'd)
            pltpu.VMEM((8 * b_tile, 160), jnp.float32),    # conv2 accumulator
            pltpu.VMEM((4 * b_tile, 140), jnp.float32),    # pool2 (relu'd)
        ],
        compiler_params=pltpu.CompilerParams(
            dimension_semantics=("parallel",)),            # batch tiles across TCs on v7x
    )(xt, w1b, b1t, w2b, b2t, f1b, fb1r, f2p, fb2p)
    return out[:B, :10]


# ------------------------------ pure-JAX reference ---------------------------

def net_forward_ref(x, params):
    w1, b1, w2, b2, fw1, fb1, fw2, fb2 = params
    hp = jax.lax.Precision.HIGHEST
    dn = ('NCHW', 'OIHW', 'NCHW')
    y = jax.lax.conv_general_dilated(x, w1, (1, 1), 'VALID',
                                     dimension_numbers=dn, precision=hp)
    y = y + b1[None, :, None, None]
    y = jax.lax.reduce_window(y, -jnp.inf, jax.lax.max, (1, 1, 2, 2), (1, 1, 2, 2), 'VALID')
    y = jnp.maximum(y, 0.0)
    y = jax.lax.conv_general_dilated(y, w2, (1, 1), 'VALID',
                                     dimension_numbers=dn, precision=hp)
    y = y + b2[None, :, None, None]
    y = jax.lax.reduce_window(y, -jnp.inf, jax.lax.max, (1, 1, 2, 2), (1, 1, 2, 2), 'VALID')
    y = jnp.maximum(y, 0.0)
    y = y.reshape(y.shape[0], 320)
    y = jnp.maximum(jnp.dot(y, fw1.T, precision=hp) + fb1, 0.0)
    y = jnp.dot(y, fw2.T, precision=hp) + fb2
    return jax.nn.log_softmax(y, axis=-1)


if __name__ == "__main__":
    key = jax.random.PRNGKey(0)
    ks = jax.random.split(key, 9)
    # Deterministic synthetic parameters, shapes as in the PyTorch module.
    w1 = 0.10 * jax.random.normal(ks[0], (10, 1, 5, 5), jnp.float32)
    b1 = 0.10 * jax.random.normal(ks[1], (10,), jnp.float32)
    w2 = 0.05 * jax.random.normal(ks[2], (20, 10, 5, 5), jnp.float32)
    b2 = 0.05 * jax.random.normal(ks[3], (20,), jnp.float32)
    fw1 = 0.05 * jax.random.normal(ks[4], (50, 320), jnp.float32)   # torch Linear: (out, in)
    fb1 = 0.05 * jax.random.normal(ks[5], (50,), jnp.float32)
    fw2 = 0.10 * jax.random.normal(ks[6], (10, 50), jnp.float32)
    fb2 = 0.10 * jax.random.normal(ks[7], (10,), jnp.float32)

    x = jax.random.normal(ks[8], (2, 1, 28, 28), jnp.float32)       # MNIST-shaped NCHW input

    params = (w1, b1, w2, b2, fw1, fb1, fw2, fb2)
    prep = prepare_params(params)           # one-time host-side weight repack

    fwd = jax.jit(net_forward)
    out = jax.block_until_ready(fwd(x, prep))

    assert out.shape == (2, 10), out.shape
    # log_softmax rows should (approximately) exponentiate-sum to 1
    assert jnp.allclose(jnp.sum(jnp.exp(out), axis=-1), 1.0, atol=1e-4)
    # match the pure-JAX reference (tolerance allows MXU pass-precision diffs)
    ref = net_forward_ref(x, params)
    assert jnp.allclose(out, ref, atol=3e-2)
    print("KERNEL_OK")
</pallas_src>

<mosaic_0001>
module attributes {stable_mosaic.version = 11 : i64} {
  func.func @fused_net_kernel(%arg0: i32, %arg1: memref<1x448x28xf32, #tpu.memory_space<vmem>>, %arg2: memref<5x28x240xf32, #tpu.memory_space<vmem>>, %arg3: memref<1x230xf32, #tpu.memory_space<vmem>>, %arg4: memref<5x230x160xf32, #tpu.memory_space<vmem>>, %arg5: memref<1x140xf32, #tpu.memory_space<vmem>>, %arg6: memref<4x140x50xf32, #tpu.memory_space<vmem>>, %arg7: memref<1x50xf32, #tpu.memory_space<vmem>>, %arg8: memref<50x128xf32, #tpu.memory_space<vmem>>, %arg9: memref<1x128xf32, #tpu.memory_space<vmem>>, %arg10: memref<16x128xf32, #tpu.memory_space<vmem>>, %arg11: memref<384x240xf32, #tpu.memory_space<vmem>>, %arg12: memref<192x230xf32, #tpu.memory_space<vmem>>, %arg13: memref<128x160xf32, #tpu.memory_space<vmem>>, %arg14: memref<64x140xf32, #tpu.memory_space<vmem>>) attributes {dimension_semantics = [#tpu.dimension_semantics<parallel>], iteration_bounds = array<i64: 1>, scalar_prefetch = 0 : i64, scratch_operands = 4 : i64, tpu.core_type = #tpu.core_type<tc>, window_params = [{transform_indices = @transform_0, window_bounds = array<i64: 1, 448, 28>}, {pipeline_mode = #tpu.pipeline_mode<synchronous>, transform_indices = @transform_1, window_bounds = array<i64: 5, 28, 240>}, {pipeline_mode = #tpu.pipeline_mode<synchronous>, transform_indices = @transform_2, window_bounds = array<i64: 1, 230>}, {pipeline_mode = #tpu.pipeline_mode<synchronous>, transform_indices = @transform_3, window_bounds = array<i64: 5, 230, 160>}, {pipeline_mode = #tpu.pipeline_mode<synchronous>, transform_indices = @transform_4, window_bounds = array<i64: 1, 140>}, {pipeline_mode = #tpu.pipeline_mode<synchronous>, transform_indices = @transform_5, window_bounds = array<i64: 4, 140, 50>}, {pipeline_mode = #tpu.pipeline_mode<synchronous>, transform_indices = @transform_6, window_bounds = array<i64: 1, 50>}, {pipeline_mode = #tpu.pipeline_mode<synchronous>, transform_indices = @transform_7, window_bounds = array<i64: 50, 128>}, {pipeline_mode = #tpu.pipeline_mode<synchronous>, transform_indices = @transform_8, window_bounds = array<i64: 1, 128>}, {transform_indices = @transform_9, window_bounds = array<i64: 16, 128>}]} {
    %c0 = arith.constant 0 : index
    %c0_0 = arith.constant 0 : index
    %c0_1 = arith.constant 0 : index
    %0 = vector.load %arg1[%c0, %c0_0, %c0_1] : memref<1x448x28xf32, #tpu.memory_space<vmem>>, vector<1x384x28xf32>
    %1 = vector.shape_cast %0 : vector<1x384x28xf32> to vector<384x28xf32>
    %c0_2 = arith.constant 0 : index
    %c0_3 = arith.constant 0 : index
    %c0_4 = arith.constant 0 : index
    %2 = vector.load %arg2[%c0_2, %c0_3, %c0_4] : memref<5x28x240xf32, #tpu.memory_space<vmem>>, vector<1x28x240xf32>
    %3 = vector.shape_cast %2 : vector<1x28x240xf32> to vector<28x240xf32>
    %cst = arith.constant dense<0.000000e+00> : vector<384x240xf32>
    %4 = tpu.matmul %1, %3, %cst {dimension_numbers = #tpu.dot_dimension_numbers<[1], [0], [0], [1], [0, 0, 1, 1], [], []>} : vector<384x28xf32>, vector<28x240xf32>, vector<384x240xf32> -> vector<384x240xf32>
    %c0_5 = arith.constant 0 : index
    %c0_6 = arith.constant 0 : index
    %5 = vector.load %arg11[%c0_5, %c0_6] : memref<384x240xf32, #tpu.memory_space<vmem>>, vector<384x240xf32>
    tpu.vector_store %arg11[%c0_5, %c0_6], %4 {strides = array<i32>} : memref<384x240xf32, #tpu.memory_space<vmem>>, vector<384x240xf32>,
    %c0_7 = arith.constant 0 : index
    %c16 = arith.constant 16 : index
    %c0_8 = arith.constant 0 : index
    %6 = vector.load %arg1[%c0_7, %c16, %c0_8] : memref<1x448x28xf32, #tpu.memory_space<vmem>>, vector<1x384x28xf32>
    %7 = vector.shape_cast %6 : vector<1x384x28xf32> to vector<384x28xf32>
    %c1 = arith.constant 1 : index
    %c0_9 = arith.constant 0 : index
    %c0_10 = arith.constant 0 : index
    %8 = vector.load %arg2[%c1, %c0_9, %c0_10] : memref<5x28x240xf32, #tpu.memory_space<vmem>>, vector<1x28x240xf32>
    %9 = vector.shape_cast %8 : vector<1x28x240xf32> to vector<28x240xf32>
    %cst_11 = arith.constant dense<0.000000e+00> : vector<384x240xf32>
    %10 = tpu.matmul %7, %9, %cst_11 {dimension_numbers = #tpu.dot_dimension_numbers<[1], [0], [0], [1], [0, 0, 1, 1], [], []>} : vector<384x28xf32>, vector<28x240xf32>, vector<384x240xf32> -> vector<384x240xf32>
    %c0_12 = arith.constant 0 : index
    %c0_13 = arith.constant 0 : index
    %11 = vector.load %arg11[%c0_12, %c0_13] : memref<384x240xf32, #tpu.memory_space<vmem>>, vector<384x240xf32>
    %12 = arith.addf %11, %10 : vector<384x240xf32>
    %c0_14 = arith.constant 0 : index
    %c0_15 = arith.constant 0 : index
    %13 = vector.load %arg11[%c0_14, %c0_15] : memref<384x240xf32, #tpu.memory_space<vmem>>, vector<384x240xf32>
    tpu.vector_store %arg11[%c0_14, %c0_15], %12 {strides = array<i32>} : memref<384x240xf32, #tpu.memory_space<vmem>>, vector<384x240xf32>,
    %c0_16 = arith.constant 0 : index
    %c32 = arith.constant 32 : index
    %c0_17 = arith.constant 0 : index
    %14 = vector.load %arg1[%c0_16, %c32, %c0_17] : memref<1x448x28xf32, #tpu.memory_space<vmem>>, vector<1x384x28xf32>
    %15 = vector.shape_cast %14 : vector<1x384x28xf32> to vector<384x28xf32>
    %c2 = arith.constant 2 : index
    %c0_18 = arith.constant 0 : index
    %c0_19 = arith.constant 0 : index
    %16 = vector.load %arg2[%c2, %c0_18, %c0_19] : memref<5x28x240xf32, #tpu.memory_space<vmem>>, vector<1x28x240xf32>
    %17 = vector.shape_cast %16 : vector<1x28x240xf32> to vector<28x240xf32>
    %cst_20 = arith.constant dense<0.000000e+00> : vector<384x240xf32>
    %18 = tpu.matmul %15, %17, %cst_20 {dimension_numbers = #tpu.dot_dimension_numbers<[1], [0], [0], [1], [0, 0, 1, 1], [], []>} : vector<384x28xf32>, vector<28x240xf32>, vector<384x240xf32> -> vector<384x240xf32>
    %c0_21 = arith.constant 0 : index
    %c0_22 = arith.constant 0 : index
    %19 = vector.load %arg11[%c0_21, %c0_22] : memref<384x240xf32, #tpu.memory_space<vmem>>, vector<384x240xf32>
    %20 = arith.addf %19, %18 : vector<384x240xf32>
    %c0_23 = arith.constant 0 : index
    %c0_24 = arith.constant 0 : index
    %21 = vector.load %arg11[%c0_23, %c0_24] : memref<384x240xf32, #tpu.memory_space<vmem>>, vector<384x240xf32>
    tpu.vector_store %arg11[%c0_23, %c0_24], %20 {strides = array<i32>} : memref<384x240xf32, #tpu.memory_space<vmem>>, vector<384x240xf32>,
    %c0_25 = arith.constant 0 : index
    %c48 = arith.constant 48 : index
    %c0_26 = arith.constant 0 : index
    %22 = vector.load %arg1[%c0_25, %c48, %c0_26] : memref<1x448x28xf32, #tpu.memory_space<vmem>>, vector<1x384x28xf32>
    %23 = vector.shape_cast %22 : vector<1x384x28xf32> to vector<384x28xf32>
    %c3 = arith.constant 3 : index
    %c0_27 = arith.constant 0 : index
    %c0_28 = arith.constant 0 : index
    %24 = vector.load %arg2[%c3, %c0_27, %c0_28] : memref<5x28x240xf32, #tpu.memory_space<vmem>>, vector<1x28x240xf32>
    %25 = vector.shape_cast %24 : vector<1x28x240xf32> to vector<28x240xf32>
    %cst_29 = arith.constant dense<0.000000e+00> : vector<384x240xf32>
    %26 = tpu.matmul %23, %25, %cst_29 {dimension_numbers = #tpu.dot_dimension_numbers<[1], [0], [0], [1], [0, 0, 1, 1], [], []>} : vector<384x28xf32>, vector<28x240xf32>, vector<384x240xf32> -> vector<384x240xf32>
    %c0_30 = arith.constant 0 : index
    %c0_31 = arith.constant 0 : index
    %27 = vector.load %arg11[%c0_30, %c0_31] : memref<384x240xf32, #tpu.memory_space<vmem>>, vector<384x240xf32>
    %28 = arith.addf %27, %26 : vector<384x240xf32>
    %c0_32 = arith.constant 0 : index
    %c0_33 = arith.constant 0 : index
    %29 = vector.load %arg11[%c0_32, %c0_33] : memref<384x240xf32, #tpu.memory_space<vmem>>, vector<384x240xf32>
    tpu.vector_store %arg11[%c0_32, %c0_33], %28 {strides = array<i32>} : memref<384x240xf32, #tpu.memory_space<vmem>>, vector<384x240xf32>,
    %c0_34 = arith.constant 0 : index
    %c64 = arith.constant 64 : index
    %c0_35 = arith.constant 0 : index
    %30 = vector.load %arg1[%c0_34, %c64, %c0_35] : memref<1x448x28xf32, #tpu.memory_space<vmem>>, vector<1x384x28xf32>
    %31 = vector.shape_cast %30 : vector<1x384x28xf32> to vector<384x28xf32>
    %c4 = arith.constant 4 : index
    %c0_36 = arith.constant 0 : index
    %c0_37 = arith.constant 0 : index
    %32 = vector.load %arg2[%c4, %c0_36, %c0_37] : memref<5x28x240xf32, #tpu.memory_space<vmem>>, vector<1x28x240xf32>
    %33 = vector.shape_cast %32 : vector<1x28x240xf32> to vector<28x240xf32>
    %cst_38 = arith.constant dense<0.000000e+00> : vector<384x240xf32>
    %34 = tpu.matmul %31, %33, %cst_38 {dimension_numbers = #tpu.dot_dimension_numbers<[1], [0], [0], [1], [0, 0, 1, 1], [], []>} : vector<384x28xf32>, vector<28x240xf32>, vector<384x240xf32> -> vector<384x240xf32>
    %c0_39 = arith.constant 0 : index
    %c0_40 = arith.constant 0 : index
    %35 = vector.load %arg11[%c0_39, %c0_40] : memref<384x240xf32, #tpu.memory_space<vmem>>, vector<384x240xf32>
    %36 = arith.addf %35, %34 : vector<384x240xf32>
    %c0_41 = arith.constant 0 : index
    %c0_42 = arith.constant 0 : index
    %37 = vector.load %arg11[%c0_41, %c0_42] : memref<384x240xf32, #tpu.memory_space<vmem>>, vector<384x240xf32>
    tpu.vector_store %arg11[%c0_41, %c0_42], %36 {strides = array<i32>} : memref<384x240xf32, #tpu.memory_space<vmem>>, vector<384x240xf32>,
    %c0_43 = arith.constant 0 : index
    %c0_44 = arith.constant 0 : index
    %38 = vector.load %arg11[%c0_43, %c0_44] : memref<384x240xf32, #tpu.memory_space<vmem>>, vector<16x240xf32>
    %c16_45 = arith.constant 16 : index
    %c0_46 = arith.constant 0 : index
    %39 = vector.load %arg11[%c16_45, %c0_46] : memref<384x240xf32, #tpu.memory_space<vmem>>, vector<16x240xf32>
    %40 = arith.maximumf %38, %39 : vector<16x240xf32>
    %41 = vector.extract_strided_slice %40 {offsets = [0, 0], sizes = [16, 230], strides = [1, 1]} : vector<16x240xf32> to vector<16x230xf32>
    %42 = vector.extract_strided_slice %40 {offsets = [0, 10], sizes = [16, 230], strides = [1, 1]} : vector<16x240xf32> to vector<16x230xf32>
    %43 = arith.maximumf %41, %42 : vector<16x230xf32>
    %c0_47 = arith.constant 0 : index
    %c0_48 = arith.constant 0 : index
    %44 = vector.load %arg3[%c0_47, %c0_48] : memref<1x230xf32, #tpu.memory_space<vmem>>, vector<1x230xf32>
    %45 = vector.broadcast %44 : vector<1x230xf32> to vector<16x230xf32>
    %46 = arith.addf %43, %45 : vector<16x230xf32>
    %cst_49 = arith.constant 0.000000e+00 : f32
    %47 = vector.broadcast %cst_49 : f32 to vector<16x230xf32>
    %48 = arith.maximumf %46, %47 : vector<16x230xf32>
    %c0_50 = arith.constant 0 : index
    %c0_51 = arith.constant 0 : index
    %49 = vector.load %arg12[%c0_50, %c0_51] : memref<192x230xf32, #tpu.memory_space<vmem>>, vector<16x230xf32>
    tpu.vector_store %arg12[%c0_50, %c0_51], %48 {strides = array<i32>} : memref<192x230xf32, #tpu.memory_space<vmem>>, vector<16x230xf32>,
    %c32_52 = arith.constant 32 : index
    %c0_53 = arith.constant 0 : index
    %50 = vector.load %arg11[%c32_52, %c0_53] : memref<384x240xf32, #tpu.memory_space<vmem>>, vector<16x240xf32>
    %c48_54 = arith.constant 48 : index
    %c0_55 = arith.constant 0 : index
    %51 = vector.load %arg11[%c48_54, %c0_55] : memref<384x240xf32, #tpu.memory_space<vmem>>, vector<16x240xf32>
    %52 = arith.maximumf %50, %51 : vector<16x240xf32>
    %53 = vector.extract_strided_slice %52 {offsets = [0, 0], sizes = [16, 230], strides = [1, 1]} : vector<16x240xf32> to vector<16x230xf32>
    %54 = vector.extract_strided_slice %52 {offsets = [0, 10], sizes = [16, 230], strides = [1, 1]} : vector<16x240xf32> to vector<16x230xf32>
    %55 = arith.maximumf %53, %54 : vector<16x230xf32>
    %c0_56 = arith.constant 0 : index
    %c0_57 = arith.constant 0 : index
    %56 = vector.load %arg3[%c0_56, %c0_57] : memref<1x230xf32, #tpu.memory_space<vmem>>, vector<1x230xf32>
    %57 = vector.broadcast %56 : vector<1x230xf32> to vector<16x230xf32>
    %58 = arith.addf %55, %57 : vector<16x230xf32>
    %cst_58 = arith.constant 0.000000e+00 : f32
    %59 = vector.broadcast %cst_58 : f32 to vector<16x230xf32>
    %60 = arith.maximumf %58, %59 : vector<16x230xf32>
    %c16_59 = arith.constant 16 : index
    %c0_60 = arith.constant 0 : index
    %61 = vector.load %arg12[%c16_59, %c0_60] : memref<192x230xf32, #tpu.memory_space<vmem>>, vector<16x230xf32>
    tpu.vector_store %arg12[%c16_59, %c0_60], %60 {strides = array<i32>} : memref<192x230xf32, #tpu.memory_space<vmem>>, vector<16x230xf32>,
    %c64_61 = arith.constant 64 : index
    %c0_62 = arith.constant 0 : index
    %62 = vector.load %arg11[%c64_61, %c0_62] : memref<384x240xf32, #tpu.memory_space<vmem>>, vector<16x240xf32>
    %c80 = arith.constant 80 : index
    %c0_63 = arith.constant 0 : index
    %63 = vector.load %arg11[%c80, %c0_63] : memref<384x240xf32, #tpu.memory_space<vmem>>, vector<16x240xf32>
    %64 = arith.maximumf %62, %63 : vector<16x240xf32>
    %65 = vector.extract_strided_slice %64 {offsets = [0, 0], sizes = [16, 230], strides = [1, 1]} : vector<16x240xf32> to vector<16x230xf32>
    %66 = vector.extract_strided_slice %64 {offsets = [0, 10], sizes = [16, 230], strides = [1, 1]} : vector<16x240xf32> to vector<16x230xf32>
    %67 = arith.maximumf %65, %66 : vector<16x230xf32>
    %c0_64 = arith.constant 0 : index
    %c0_65 = arith.constant 0 : index
    %68 = vector.load %arg3[%c0_64, %c0_65] : memref<1x230xf32, #tpu.memory_space<vmem>>, vector<1x230xf32>
    %69 = vector.broadcast %68 : vector<1x230xf32> to vector<16x230xf32>
    %70 = arith.addf %67, %69 : vector<16x230xf32>
    %cst_66 = arith.constant 0.000000e+00 : f32
    %71 = vector.broadcast %cst_66 : f32 to vector<16x230xf32>
    %72 = arith.maximumf %70, %71 : vector<16x230xf32>
    %c32_67 = arith.constant 32 : index
    %c0_68 = arith.constant 0 : index
    %73 = vector.load %arg12[%c32_67, %c0_68] : memref<192x230xf32, #tpu.memory_space<vmem>>, vector<16x230xf32>
    tpu.vector_store %arg12[%c32_67, %c0_68], %72 {strides = array<i32>} : memref<192x230xf32, #tpu.memory_space<vmem>>, vector<16x230xf32>,
    %c96 = arith.constant 96 : index
    %c0_69 = arith.constant 0 : index
    %74 = vector.load %arg11[%c96, %c0_69] : memref<384x240xf32, #tpu.memory_space<vmem>>, vector<16x240xf32>
    %c112 = arith.constant 112 : index
    %c0_70 = arith.constant 0 : index
    %75 = vector.load %arg11[%c112, %c0_70] : memref<384x240xf32, #tpu.memory_space<vmem>>, vector<16x240xf32>
    %76 = arith.maximumf %74, %75 : vector<16x240xf32>
    %77 = vector.extract_strided_slice %76 {offsets = [0, 0], sizes = [16, 230], strides = [1, 1]} : vector<16x240xf32> to vector<16x230xf32>
    %78 = vector.extract_strided_slice %76 {offsets = [0, 10], sizes = [16, 230], strides = [1, 1]} : vector<16x240xf32> to vector<16x230xf32>
    %79 = arith.maximumf %77, %78 : vector<16x230xf32>
    %c0_71 = arith.constant 0 : index
    %c0_72 = arith.constant 0 : index
    %80 = vector.load %arg3[%c0_71, %c0_72] : memref<1x230xf32, #tpu.memory_space<vmem>>, vector<1x230xf32>
    %81 = vector.broadcast %80 : vector<1x230xf32> to vector<16x230xf32>
    %82 = arith.addf %79, %81 : vector<16x230xf32>
    %cst_73 = arith.constant 0.000000e+00 : f32
    %83 = vector.broadcast %cst_73 : f32 to vector<16x230xf32>
    %84 = arith.maximumf %82, %83 : vector<16x230xf32>
    %c48_74 = arith.constant 48 : index
    %c0_75 = arith.constant 0 : index
    %85 = vector.load %arg12[%c48_74, %c0_75] : memref<192x230xf32, #tpu.memory_space<vmem>>, vector<16x230xf32>
    tpu.vector_store %arg12[%c48_74, %c0_75], %84 {strides = array<i32>} : memref<192x230xf32, #tpu.memory_space<vmem>>, vector<16x230xf32>,
    %c128 = arith.constant 128 : index
    %c0_76 = arith.constant 0 : index
    %86 = vector.load %arg11[%c128, %c0_76] : memref<384x240xf32, #tpu.memory_space<vmem>>, vector<16x240xf32>
    %c144 = arith.constant 144 : index
    %c0_77 = arith.constant 0 : index
    %87 = vector.load %arg11[%c144, %c0_77] : memref<384x240xf32, #tpu.memory_space<vmem>>, vector<16x240xf32>
    %88 = arith.maximumf %86, %87 : vector<16x240xf32>
    %89 = vector.extract_strided_slice %88 {offsets = [0, 0], sizes = [16, 230], strides = [1, 1]} : vector<16x240xf32> to vector<16x230xf32>
    %90 = vector.extract_strided_slice %88 {offsets = [0, 10], sizes = [16, 230], strides = [1, 1]} : vector<16x240xf32> to vector<16x230xf32>
    %91 = arith.maximumf %89, %90 : vector<16x230xf32>
    %c0_78 = arith.constant 0 : index
    %c0_79 = arith.constant 0 : index
    %92 = vector.load %arg3[%c0_78, %c0_79] : memref<1x230xf32, #tpu.memory_space<vmem>>, vector<1x230xf32>
    %93 = vector.broadcast %92 : vector<1x230xf32> to vector<16x230xf32>
    %94 = arith.addf %91, %93 : vector<16x230xf32>
    %cst_80 = arith.constant 0.000000e+00 : f32
    %95 = vector.broadcast %cst_80 : f32 to vector<16x230xf32>
    %96 = arith.maximumf %94, %95 : vector<16x230xf32>
    %c64_81 = arith.constant 64 : index
    %c0_82 = arith.constant 0 : index
    %97 = vector.load %arg12[%c64_81, %c0_82] : memref<192x230xf32, #tpu.memory_space<vmem>>, vector<16x230xf32>
    tpu.vector_store %arg12[%c64_81, %c0_82], %96 {strides = array<i32>} : memref<192x230xf32, #tpu.memory_space<vmem>>, vector<16x230xf32>,
    %c160 = arith.constant 160 : index
    %c0_83 = arith.constant 0 : index
    %98 = vector.load %arg11[%c160, %c0_83] : memref<384x240xf32, #tpu.memory_space<vmem>>, vector<16x240xf32>
    %c176 = arith.constant 176 : index
    %c0_84 = arith.constant 0 : index
    %99 = vector.load %arg11[%c176, %c0_84] : memref<384x240xf32, #tpu.memory_space<vmem>>, vector<16x240xf32>
    %100 = arith.maximumf %98, %99 : vector<16x240xf32>
    %101 = vector.extract_strided_slice %100 {offsets = [0, 0], sizes = [16, 230], strides = [1, 1]} : vector<16x240xf32> to vector<16x230xf32>
    %102 = vector.extract_strided_slice %100 {offsets = [0, 10], sizes = [16, 230], strides = [1, 1]} : vector<16x240xf32> to vector<16x230xf32>
    %103 = arith.maximumf %101, %102 : vector<16x230xf32>
    %c0_85 = arith.constant 0 : index
    %c0_86 = arith.constant 0 : index
    %104 = vector.load %arg3[%c0_85, %c0_86] : memref<1x230xf32, #tpu.memory_space<vmem>>, vector<1x230xf32>
    %105 = vector.broadcast %104 : vector<1x230xf32> to vector<16x230xf32>
    %106 = arith.addf %103, %105 : vector<16x230xf32>
    %cst_87 = arith.constant 0.000000e+00 : f32
    %107 = vector.broadcast %cst_87 : f32 to vector<16x230xf32>
    %108 = arith.maximumf %106, %107 : vector<16x230xf32>
    %c80_88 = arith.constant 80 : index
    %c0_89 = arith.constant 0 : index
    %109 = vector.load %arg12[%c80_88, %c0_89] : memref<192x230xf32, #tpu.memory_space<vmem>>, vector<16x230xf32>
    tpu.vector_store %arg12[%c80_88, %c0_89], %108 {strides = array<i32>} : memref<192x230xf32, #tpu.memory_space<vmem>>, vector<16x230xf32>,
    %c192 = arith.constant 192 : index
    %c0_90 = arith.constant 0 : index
    %110 = vector.load %arg11[%c192, %c0_90] : memref<384x240xf32, #tpu.memory_space<vmem>>, vector<16x240xf32>
    %c208 = arith.constant 208 : index
    %c0_91 = arith.constant 0 : index
    %111 = vector.load %arg11[%c208, %c0_91] : memref<384x240xf32, #tpu.memory_space<vmem>>, vector<16x240xf32>
    %112 = arith.maximumf %110, %111 : vector<16x240xf32>
    %113 = vector.extract_strided_slice %112 {offsets = [0, 0], sizes = [16, 230], strides = [1, 1]} : vector<16x240xf32> to vector<16x230xf32>
    %114 = vector.extract_strided_slice %112 {offsets = [0, 10], sizes = [16, 230], strides = [1, 1]} : vector<16x240xf32> to vector<16x230xf32>
    %115 = arith.maximumf %113, %114 : vector<16x230xf32>
    %c0_92 = arith.constant 0 : index
    %c0_93 = arith.constant 0 : index
    %116 = vector.load %arg3[%c0_92, %c0_93] : memref<1x230xf32, #tpu.memory_space<vmem>>, vector<1x230xf32>
    %117 = vector.broadcast %116 : vector<1x230xf32> to vector<16x230xf32>
    %118 = arith.addf %115, %117 : vector<16x230xf32>
    %cst_94 = arith.constant 0.000000e+00 : f32
    %119 = vector.broadcast %cst_94 : f32 to vector<16x230xf32>
    %120 = arith.maximumf %118, %119 : vector<16x230xf32>
    %c96_95 = arith.constant 96 : index
    %c0_96 = arith.constant 0 : index
    %121 = vector.load %arg12[%c96_95, %c0_96] : memref<192x230xf32, #tpu.memory_space<vmem>>, vector<16x230xf32>
    tpu.vector_store %arg12[%c96_95, %c0_96], %120 {strides = array<i32>} : memref<192x230xf32, #tpu.memory_space<vmem>>, vector<16x230xf32>,
    %c224 = arith.constant 224 : index
    %c0_97 = arith.constant 0 : index
    %122 = vector.load %arg11[%c224, %c0_97] : memref<384x240xf32, #tpu.memory_space<vmem>>, vector<16x240xf32>
    %c240 = arith.constant 240 : index
    %c0_98 = arith.constant 0 : index
    %123 = vector.load %arg11[%c240, %c0_98] : memref<384x240xf32, #tpu.memory_space<vmem>>, vector<16x240xf32>
    %124 = arith.maximumf %122, %123 : vector<16x240xf32>
    %125 = vector.extract_strided_slice %124 {offsets = [0, 0], sizes = [16, 230], strides = [1, 1]} : vector<16x240xf32> to vector<16x230xf32>
    %126 = vector.extract_strided_slice %124 {offsets = [0, 10], sizes = [16, 230], strides = [1, 1]} : vector<16x240xf32> to vector<16x230xf32>
    %127 = arith.maximumf %125, %126 : vector<16x230xf32>
    %c0_99 = arith.constant 0 : index
    %c0_100 = arith.constant 0 : index
    %128 = vector.load %arg3[%c0_99, %c0_100] : memref<1x230xf32, #tpu.memory_space<vmem>>, vector<1x230xf32>
    %129 = vector.broadcast %128 : vector<1x230xf32> to vector<16x230xf32>
    %130 = arith.addf %127, %129 : vector<16x230xf32>
    %cst_101 = arith.constant 0.000000e+00 : f32
    %131 = vector.broadcast %cst_101 : f32 to vector<16x230xf32>
    %132 = arith.maximumf %130, %131 : vector<16x230xf32>
    %c112_102 = arith.constant 112 : index
    %c0_103 = arith.constant 0 : index
    %133 = vector.load %arg12[%c112_102, %c0_103] : memref<192x230xf32, #tpu.memory_space<vmem>>, vector<16x230xf32>
    tpu.vector_store %arg12[%c112_102, %c0_103], %132 {strides = array<i32>} : memref<192x230xf32, #tpu.memory_space<vmem>>, vector<16x230xf32>,
    %c256 = arith.constant 256 : index
    %c0_104 = arith.constant 0 : index
    %134 = vector.load %arg11[%c256, %c0_104] : memref<384x240xf32, #tpu.memory_space<vmem>>, vector<16x240xf32>
    %c272 = arith.constant 272 : index
    %c0_105 = arith.constant 0 : index
    %135 = vector.load %arg11[%c272, %c0_105] : memref<384x240xf32, #tpu.memory_space<vmem>>, vector<16x240xf32>
    %136 = arith.maximumf %134, %135 : vector<16x240xf32>
    %137 = vector.extract_strided_slice %136 {offsets = [0, 0], sizes = [16, 230], strides = [1, 1]} : vector<16x240xf32> to vector<16x230xf32>
    %138 = vector.extract_strided_slice %136 {offsets = [0, 10], sizes = [16, 230], strides = [1, 1]} : vector<16x240xf32> to vector<16x230xf32>
    %139 = arith.maximumf %137, %138 : vector<16x230xf32>
    %c0_106 = arith.constant 0 : index
    %c0_107 = arith.constant 0 : index
    %140 = vector.load %arg3[%c0_106, %c0_107] : memref<1x230xf32, #tpu.memory_space<vmem>>, vector<1x230xf32>
    %141 = vector.broadcast %140 : vector<1x230xf32> to vector<16x230xf32>
    %142 = arith.addf %139, %141 : vector<16x230xf32>
    %cst_108 = arith.constant 0.000000e+00 : f32
    %143 = vector.broadcast %cst_108 : f32 to vector<16x230xf32>
    %144 = arith.maximumf %142, %143 : vector<16x230xf32>
    %c128_109 = arith.constant 128 : index
    %c0_110 = arith.constant 0 : index
    %145 = vector.load %arg12[%c128_109, %c0_110] : memref<192x230xf32, #tpu.memory_space<vmem>>, vector<16x230xf32>
    tpu.vector_store %arg12[%c128_109, %c0_110], %144 {strides = array<i32>} : memref<192x230xf32, #tpu.memory_space<vmem>>, vector<16x230xf32>,
    %c288 = arith.constant 288 : index
    %c0_111 = arith.constant 0 : index
    %146 = vector.load %arg11[%c288, %c0_111] : memref<384x240xf32, #tpu.memory_space<vmem>>, vector<16x240xf32>
    %c304 = arith.constant 304 : index
    %c0_112 = arith.constant 0 : index
    %147 = vector.load %arg11[%c304, %c0_112] : memref<384x240xf32, #tpu.memory_space<vmem>>, vector<16x240xf32>
    %148 = arith.maximumf %146, %147 : vector<16x240xf32>
    %149 = vector.extract_strided_slice %148 {offsets = [0, 0], sizes = [16, 230], strides = [1, 1]} : vector<16x240xf32> to vector<16x230xf32>
    %150 = vector.extract_strided_slice %148 {offsets = [0, 10], sizes = [16, 230], strides = [1, 1]} : vector<16x240xf32> to vector<16x230xf32>
    %151 = arith.maximumf %149, %150 : vector<16x230xf32>
    %c0_113 = arith.constant 0 : index
    %c0_114 = arith.constant 0 : index
    %152 = vector.load %arg3[%c0_113, %c0_114] : memref<1x230xf32, #tpu.memory_space<vmem>>, vector<1x230xf32>
    %153 = vector.broadcast %152 : vector<1x230xf32> to vector<16x230xf32>
    %154 = arith.addf %151, %153 : vector<16x230xf32>
    %cst_115 = arith.constant 0.000000e+00 : f32
    %155 = vector.broadcast %cst_115 : f32 to vector<16x230xf32>
    %156 = arith.maximumf %154, %155 : vector<16x230xf32>
    %c144_116 = arith.constant 144 : index
    %c0_117 = arith.constant 0 : index
    %157 = vector.load %arg12[%c144_116, %c0_117] : memref<192x230xf32, #tpu.memory_space<vmem>>, vector<16x230xf32>
    tpu.vector_store %arg12[%c144_116, %c0_117], %156 {strides = array<i32>} : memref<192x230xf32, #tpu.memory_space<vmem>>, vector<16x230xf32>,
    %c320 = arith.constant 320 : index
    %c0_118 = arith.constant 0 : index
    %158 = vector.load %arg11[%c320, %c0_118] : memref<384x240xf32, #tpu.memory_space<vmem>>, vector<16x240xf32>
    %c336 = arith.constant 336 : index
    %c0_119 = arith.constant 0 : index
    %159 = vector.load %arg11[%c336, %c0_119] : memref<384x240xf32, #tpu.memory_space<vmem>>, vector<16x240xf32>
    %160 = arith.maximumf %158, %159 : vector<16x240xf32>
    %161 = vector.extract_strided_slice %160 {offsets = [0, 0], sizes = [16, 230], strides = [1, 1]} : vector<16x240xf32> to vector<16x230xf32>
    %162 = vector.extract_strided_slice %160 {offsets = [0, 10], sizes = [16, 230], strides = [1, 1]} : vector<16x240xf32> to vector<16x230xf32>
    %163 = arith.maximumf %161, %162 : vector<16x230xf32>
    %c0_120 = arith.constant 0 : index
    %c0_121 = arith.constant 0 : index
    %164 = vector.load %arg3[%c0_120, %c0_121] : memref<1x230xf32, #tpu.memory_space<vmem>>, vector<1x230xf32>
    %165 = vector.broadcast %164 : vector<1x230xf32> to vector<16x230xf32>
    %166 = arith.addf %163, %165 : vector<16x230xf32>
    %cst_122 = arith.constant 0.000000e+00 : f32
    %167 = vector.broadcast %cst_122 : f32 to vector<16x230xf32>
    %168 = arith.maximumf %166, %167 : vector<16x230xf32>
    %c160_123 = arith.constant 160 : index
    %c0_124 = arith.constant 0 : index
    %169 = vector.load %arg12[%c160_123, %c0_124] : memref<192x230xf32, #tpu.memory_space<vmem>>, vector<16x230xf32>
    tpu.vector_store %arg12[%c160_123, %c0_124], %168 {strides = array<i32>} : memref<192x230xf32, #tpu.memory_space<vmem>>, vector<16x230xf32>,
    %c352 = arith.constant 352 : index
    %c0_125 = arith.constant 0 : index
    %170 = vector.load %arg11[%c352, %c0_125] : memref<384x240xf32, #tpu.memory_space<vmem>>, vector<16x240xf32>
    %c368 = arith.constant 368 : index
    %c0_126 = arith.constant 0 : index
    %171 = vector.load %arg11[%c368, %c0_126] : memref<384x240xf32, #tpu.memory_space<vmem>>, vector<16x240xf32>
    %172 = arith.maximumf %170, %171 : vector<16x240xf32>
    %173 = vector.extract_strided_slice %172 {offsets = [0, 0], sizes = [16, 230], strides = [1, 1]} : vector<16x240xf32> to vector<16x230xf32>
    %174 = vector.extract_strided_slice %172 {offsets = [0, 10], sizes = [16, 230], strides = [1, 1]} : vector<16x240xf32> to vector<16x230xf32>
    %175 = arith.maximumf %173, %174 : vector<16x230xf32>
    %c0_127 = arith.constant 0 : index
    %c0_128 = arith.constant 0 : index
    %176 = vector.load %arg3[%c0_127, %c0_128] : memref<1x230xf32, #tpu.memory_space<vmem>>, vector<1x230xf32>
    %177 = vector.broadcast %176 : vector<1x230xf32> to vector<16x230xf32>
    %178 = arith.addf %175, %177 : vector<16x230xf32>
    %cst_129 = arith.constant 0.000000e+00 : f32
    %179 = vector.broadcast %cst_129 : f32 to vector<16x230xf32>
    %180 = arith.maximumf %178, %179 : vector<16x230xf32>
    %c176_130 = arith.constant 176 : index
    %c0_131 = arith.constant 0 : index
    %181 = vector.load %arg12[%c176_130, %c0_131] : memref<192x230xf32, #tpu.memory_space<vmem>>, vector<16x230xf32>
    tpu.vector_store %arg12[%c176_130, %c0_131], %180 {strides = array<i32>} : memref<192x230xf32, #tpu.memory_space<vmem>>, vector<16x230xf32>,
    %c0_132 = arith.constant 0 : index
    %c0_133 = arith.constant 0 : index
    %182 = vector.load %arg12[%c0_132, %c0_133] : memref<192x230xf32, #tpu.memory_space<vmem>>, vector<128x230xf32>
    %c0_134 = arith.constant 0 : index
    %c0_135 = arith.constant 0 : index
    %c0_136 = arith.constant 0 : index
    %183 = vector.load %arg4[%c0_134, %c0_135, %c0_136] : memref<5x230x160xf32, #tpu.memory_space<vmem>>, vector<1x230x160xf32>
    %184 = vector.shape_cast %183 : vector<1x230x160xf32> to vector<230x160xf32>
    %cst_137 = arith.constant dense<0.000000e+00> : vector<128x160xf32>
    %185 = tpu.matmul %182, %184, %cst_137 {dimension_numbers = #tpu.dot_dimension_numbers<[1], [0], [0], [1], [0, 0, 1, 1], [], []>} : vector<128x230xf32>, vector<230x160xf32>, vector<128x160xf32> -> vector<128x160xf32>
    %c0_138 = arith.constant 0 : index
    %c0_139 = arith.constant 0 : index
    %186 = vector.load %arg13[%c0_138, %c0_139] : memref<128x160xf32, #tpu.memory_space<vmem>>, vector<128x160xf32>
    tpu.vector_store %arg13[%c0_138, %c0_139], %185 {strides = array<i32>} : memref<128x160xf32, #tpu.memory_space<vmem>>, vector<128x160xf32>,
    %c16_140 = arith.constant 16 : index
    %c0_141 = arith.constant 0 : index
    %187 = vector.load %arg12[%c16_140, %c0_141] : memref<192x230xf32, #tpu.memory_space<vmem>>, vector<128x230xf32>
    %c1_142 = arith.constant 1 : index
    %c0_143 = arith.constant 0 : index
    %c0_144 = arith.constant 0 : index
    %188 = vector.load %arg4[%c1_142, %c0_143, %c0_144] : memref<5x230x160xf32, #tpu.memory_space<vmem>>, vector<1x230x160xf32>
    %189 = vector.shape_cast %188 : vector<1x230x160xf32> to vector<230x160xf32>
    %cst_145 = arith.constant dense<0.000000e+00> : vector<128x160xf32>
    %190 = tpu.matmul %187, %189, %cst_145 {dimension_numbers = #tpu.dot_dimension_numbers<[1], [0], [0], [1], [0, 0, 1, 1], [], []>} : vector<128x230xf32>, vector<230x160xf32>, vector<128x160xf32> -> vector<128x160xf32>
    %c0_146 = arith.constant 0 : index
    %c0_147 = arith.constant 0 : index
    %191 = vector.load %arg13[%c0_146, %c0_147] : memref<128x160xf32, #tpu.memory_space<vmem>>, vector<128x160xf32>
    %192 = arith.addf %191, %190 : vector<128x160xf32>
    %c0_148 = arith.constant 0 : index
    %c0_149 = arith.constant 0 : index
    %193 = vector.load %arg13[%c0_148, %c0_149] : memref<128x160xf32, #tpu.memory_space<vmem>>, vector<128x160xf32>
    tpu.vector_store %arg13[%c0_148, %c0_149], %192 {strides = array<i32>} : memref<128x160xf32, #tpu.memory_space<vmem>>, vector<128x160xf32>,
    %c32_150 = arith.constant 32 : index
    %c0_151 = arith.constant 0 : index
    %194 = vector.load %arg12[%c32_150, %c0_151] : memref<192x230xf32, #tpu.memory_space<vmem>>, vector<128x230xf32>
    %c2_152 = arith.constant 2 : index
    %c0_153 = arith.constant 0 : index
    %c0_154 = arith.constant 0 : index
    %195 = vector.load %arg4[%c2_152, %c0_153, %c0_154] : memref<5x230x160xf32, #tpu.memory_space<vmem>>, vector<1x230x160xf32>
    %196 = vector.shape_cast %195 : vector<1x230x160xf32> to vector<230x160xf32>
    %cst_155 = arith.constant dense<0.000000e+00> : vector<128x160xf32>
    %197 = tpu.matmul %194, %196, %cst_155 {dimension_numbers = #tpu.dot_dimension_numbers<[1], [0], [0], [1], [0, 0, 1, 1], [], []>} : vector<128x230xf32>, vector<230x160xf32>, vector<128x160xf32> -> vector<128x160xf32>
    %c0_156 = arith.constant 0 : index
    %c0_157 = arith.constant 0 : index
    %198 = vector.load %arg13[%c0_156, %c0_157] : memref<128x160xf32, #tpu.memory_space<vmem>>, vector<128x160xf32>
    %199 = arith.addf %198, %197 : vector<128x160xf32>
    %c0_158 = arith.constant 0 : index
    %c0_159 = arith.constant 0 : index
    %200 = vector.load %arg13[%c0_158, %c0_159] : memref<128x160xf32, #tpu.memory_space<vmem>>, vector<128x160xf32>
    tpu.vector_store %arg13[%c0_158, %c0_159], %199 {strides = array<i32>} : memref<128x160xf32, #tpu.memory_space<vmem>>, vector<128x160xf32>,
    %c48_160 = arith.constant 48 : index
    %c0_161 = arith.constant 0 : index
    %201 = vector.load %arg12[%c48_160, %c0_161] : memref<192x230xf32, #tpu.memory_space<vmem>>, vector<128x230xf32>
    %c3_162 = arith.constant 3 : index
    %c0_163 = arith.constant 0 : index
    %c0_164 = arith.constant 0 : index
    %202 = vector.load %arg4[%c3_162, %c0_163, %c0_164] : memref<5x230x160xf32, #tpu.memory_space<vmem>>, vector<1x230x160xf32>
    %203 = vector.shape_cast %202 : vector<1x230x160xf32> to vector<230x160xf32>
    %cst_165 = arith.constant dense<0.000000e+00> : vector<128x160xf32>
    %204 = tpu.matmul %201, %203, %cst_165 {dimension_numbers = #tpu.dot_dimension_numbers<[1], [0], [0], [1], [0, 0, 1, 1], [], []>} : vector<128x230xf32>, vector<230x160xf32>, vector<128x160xf32> -> vector<128x160xf32>
    %c0_166 = arith.constant 0 : index
    %c0_167 = arith.constant 0 : index
    %205 = vector.load %arg13[%c0_166, %c0_167] : memref<128x160xf32, #tpu.memory_space<vmem>>, vector<128x160xf32>
    %206 = arith.addf %205, %204 : vector<128x160xf32>
    %c0_168 = arith.constant 0 : index
    %c0_169 = arith.constant 0 : index
    %207 = vector.load %arg13[%c0_168, %c0_169] : memref<128x160xf32, #tpu.memory_space<vmem>>, vector<128x160xf32>
    tpu.vector_store %arg13[%c0_168, %c0_169], %206 {strides = array<i32>} : memref<128x160xf32, #tpu.memory_space<vmem>>, vector<128x160xf32>,
    %c64_170 = arith.constant 64 : index
    %c0_171 = arith.constant 0 : index
    %208 = vector.load %arg12[%c64_170, %c0_171] : memref<192x230xf32, #tpu.memory_space<vmem>>, vector<128x230xf32>
    %c4_172 = arith.constant 4 : index
    %c0_173 = arith.constant 0 : index
    %c0_174 = arith.constant 0 : index
    %209 = vector.load %arg4[%c4_172, %c0_173, %c0_174] : memref<5x230x160xf32, #tpu.memory_space<vmem>>, vector<1x230x160xf32>
    %210 = vector.shape_cast %209 : vector<1x230x160xf32> to vector<230x160xf32>
    %cst_175 = arith.constant dense<0.000000e+00> : vector<128x160xf32>
    %211 = tpu.matmul %208, %210, %cst_175 {dimension_numbers = #tpu.dot_dimension_numbers<[1], [0], [0], [1], [0, 0, 1, 1], [], []>} : vector<128x230xf32>, vector<230x160xf32>, vector<128x160xf32> -> vector<128x160xf32>
    %c0_176 = arith.constant 0 : index
    %c0_177 = arith.constant 0 : index
    %212 = vector.load %arg13[%c0_176, %c0_177] : memref<128x160xf32, #tpu.memory_space<vmem>>, vector<128x160xf32>
    %213 = arith.addf %212, %211 : vector<128x160xf32>
    %c0_178 = arith.constant 0 : index
    %c0_179 = arith.constant 0 : index
    %214 = vector.load %arg13[%c0_178, %c0_179] : memref<128x160xf32, #tpu.memory_space<vmem>>, vector<128x160xf32>
    tpu.vector_store %arg13[%c0_178, %c0_179], %213 {strides = array<i32>} : memref<128x160xf32, #tpu.memory_space<vmem>>, vector<128x160xf32>,
    %c0_180 = arith.constant 0 : index
    %c0_181 = arith.constant 0 : index
    %215 = vector.load %arg13[%c0_180, %c0_181] : memref<128x160xf32, #tpu.memory_space<vmem>>, vector<16x160xf32>
    %c16_182 = arith.constant 16 : index
    %c0_183 = arith.constant 0 : index
    %216 = vector.load %arg13[%c16_182, %c0_183] : memref<128x160xf32, #tpu.memory_space<vmem>>, vector<16x160xf32>
    %217 = arith.maximumf %215, %216 : vector<16x160xf32>
    %218 = vector.extract_strided_slice %217 {offsets = [0, 0], sizes = [16, 140], strides = [1, 1]} : vector<16x160xf32> to vector<16x140xf32>
    %219 = vector.extract_strided_slice %217 {offsets = [0, 20], sizes = [16, 140], strides = [1, 1]} : vector<16x160xf32> to vector<16x140xf32>
    %220 = arith.maximumf %218, %219 : vector<16x140xf32>
    %c0_184 = arith.constant 0 : index
    %c0_185 = arith.constant 0 : index
    %221 = vector.load %arg5[%c0_184, %c0_185] : memref<1x140xf32, #tpu.memory_space<vmem>>, vector<1x140xf32>
    %222 = vector.broadcast %221 : vector<1x140xf32> to vector<16x140xf32>
    %223 = arith.addf %220, %222 : vector<16x140xf32>
    %cst_186 = arith.constant 0.000000e+00 : f32
    %224 = vector.broadcast %cst_186 : f32 to vector<16x140xf32>
    %225 = arith.maximumf %223, %224 : vector<16x140xf32>
    %c0_187 = arith.constant 0 : index
    %c0_188 = arith.constant 0 : index
    %226 = vector.load %arg14[%c0_187, %c0_188] : memref<64x140xf32, #tpu.memory_space<vmem>>, vector<16x140xf32>
    tpu.vector_store %arg14[%c0_187, %c0_188], %225 {strides = array<i32>} : memref<64x140xf32, #tpu.memory_space<vmem>>, vector<16x140xf32>,
    %c32_189 = arith.constant 32 : index
    %c0_190 = arith.constant 0 : index
    %227 = vector.load %arg13[%c32_189, %c0_190] : memref<128x160xf32, #tpu.memory_space<vmem>>, vector<16x160xf32>
    %c48_191 = arith.constant 48 : index
    %c0_192 = arith.constant 0 : index
    %228 = vector.load %arg13[%c48_191, %c0_192] : memref<128x160xf32, #tpu.memory_space<vmem>>, vector<16x160xf32>
    %229 = arith.maximumf %227, %228 : vector<16x160xf32>
    %230 = vector.extract_strided_slice %229 {offsets = [0, 0], sizes = [16, 140], strides = [1, 1]} : vector<16x160xf32> to vector<16x140xf32>
    %231 = vector.extract_strided_slice %229 {offsets = [0, 20], sizes = [16, 140], strides = [1, 1]} : vector<16x160xf32> to vector<16x140xf32>
    %232 = arith.maximumf %230, %231 : vector<16x140xf32>
    %c0_193 = arith.constant 0 : index
    %c0_194 = arith.constant 0 : index
    %233 = vector.load %arg5[%c0_193, %c0_194] : memref<1x140xf32, #tpu.memory_space<vmem>>, vector<1x140xf32>
    %234 = vector.broadcast %233 : vector<1x140xf32> to vector<16x140xf32>
    %235 = arith.addf %232, %234 : vector<16x140xf32>
    %cst_195 = arith.constant 0.000000e+00 : f32
    %236 = vector.broadcast %cst_195 : f32 to vector<16x140xf32>
    %237 = arith.maximumf %235, %236 : vector<16x140xf32>
    %c16_196 = arith.constant 16 : index
    %c0_197 = arith.constant 0 : index
    %238 = vector.load %arg14[%c16_196, %c0_197] : memref<64x140xf32, #tpu.memory_space<vmem>>, vector<16x140xf32>
    tpu.vector_store %arg14[%c16_196, %c0_197], %237 {strides = array<i32>} : memref<64x140xf32, #tpu.memory_space<vmem>>, vector<16x140xf32>,
    %c64_198 = arith.constant 64 : index
    %c0_199 = arith.constant 0 : index
    %239 = vector.load %arg13[%c64_198, %c0_199] : memref<128x160xf32, #tpu.memory_space<vmem>>, vector<16x160xf32>
    %c80_200 = arith.constant 80 : index
    %c0_201 = arith.constant 0 : index
    %240 = vector.load %arg13[%c80_200, %c0_201] : memref<128x160xf32, #tpu.memory_space<vmem>>, vector<16x160xf32>
    %241 = arith.maximumf %239, %240 : vector<16x160xf32>
    %242 = vector.extract_strided_slice %241 {offsets = [0, 0], sizes = [16, 140], strides = [1, 1]} : vector<16x160xf32> to vector<16x140xf32>
    %243 = vector.extract_strided_slice %241 {offsets = [0, 20], sizes = [16, 140], strides = [1, 1]} : vector<16x160xf32> to vector<16x140xf32>
    %244 = arith.maximumf %242, %243 : vector<16x140xf32>
    %c0_202 = arith.constant 0 : index
    %c0_203 = arith.constant 0 : index
    %245 = vector.load %arg5[%c0_202, %c0_203] : memref<1x140xf32, #tpu.memory_space<vmem>>, vector<1x140xf32>
    %246 = vector.broadcast %245 : vector<1x140xf32> to vector<16x140xf32>
    %247 = arith.addf %244, %246 : vector<16x140xf32>
    %cst_204 = arith.constant 0.000000e+00 : f32
    %248 = vector.broadcast %cst_204 : f32 to vector<16x140xf32>
    %249 = arith.maximumf %247, %248 : vector<16x140xf32>
    %c32_205 = arith.constant 32 : index
    %c0_206 = arith.constant 0 : index
    %250 = vector.load %arg14[%c32_205, %c0_206] : memref<64x140xf32, #tpu.memory_space<vmem>>, vector<16x140xf32>
    tpu.vector_store %arg14[%c32_205, %c0_206], %249 {strides = array<i32>} : memref<64x140xf32, #tpu.memory_space<vmem>>, vector<16x140xf32>,
    %c96_207 = arith.constant 96 : index
    %c0_208 = arith.constant 0 : index
    %251 = vector.load %arg13[%c96_207, %c0_208] : memref<128x160xf32, #tpu.memory_space<vmem>>, vector<16x160xf32>
    %c112_209 = arith.constant 112 : index
    %c0_210 = arith.constant 0 : index
    %252 = vector.load %arg13[%c112_209, %c0_210] : memref<128x160xf32, #tpu.memory_space<vmem>>, vector<16x160xf32>
    %253 = arith.maximumf %251, %252 : vector<16x160xf32>
    %254 = vector.extract_strided_slice %253 {offsets = [0, 0], sizes = [16, 140], strides = [1, 1]} : vector<16x160xf32> to vector<16x140xf32>
    %255 = vector.extract_strided_slice %253 {offsets = [0, 20], sizes = [16, 140], strides = [1, 1]} : vector<16x160xf32> to vector<16x140xf32>
    %256 = arith.maximumf %254, %255 : vector<16x140xf32>
    %c0_211 = arith.constant 0 : index
    %c0_212 = arith.constant 0 : index
    %257 = vector.load %arg5[%c0_211, %c0_212] : memref<1x140xf32, #tpu.memory_space<vmem>>, vector<1x140xf32>
    %258 = vector.broadcast %257 : vector<1x140xf32> to vector<16x140xf32>
    %259 = arith.addf %256, %258 : vector<16x140xf32>
    %cst_213 = arith.constant 0.000000e+00 : f32
    %260 = vector.broadcast %cst_213 : f32 to vector<16x140xf32>
    %261 = arith.maximumf %259, %260 : vector<16x140xf32>
    %c48_214 = arith.constant 48 : index
    %c0_215 = arith.constant 0 : index
    %262 = vector.load %arg14[%c48_214, %c0_215] : memref<64x140xf32, #tpu.memory_space<vmem>>, vector<16x140xf32>
    tpu.vector_store %arg14[%c48_214, %c0_215], %261 {strides = array<i32>} : memref<64x140xf32, #tpu.memory_space<vmem>>, vector<16x140xf32>,
    %c0_216 = arith.constant 0 : index
    %c0_217 = arith.constant 0 : index
    %263 = vector.load %arg7[%c0_216, %c0_217] : memref<1x50xf32, #tpu.memory_space<vmem>>, vector<1x50xf32>
    %c0_218 = arith.constant 0 : index
    %c0_219 = arith.constant 0 : index
    %264 = vector.load %arg14[%c0_218, %c0_219] : memref<64x140xf32, #tpu.memory_space<vmem>>, vector<16x140xf32>
    %c0_220 = arith.constant 0 : index
    %c0_221 = arith.constant 0 : index
    %c0_222 = arith.constant 0 : index
    %265 = vector.load %arg6[%c0_220, %c0_221, %c0_222] : memref<4x140x50xf32, #tpu.memory_space<vmem>>, vector<1x140x50xf32>
    %266 = vector.shape_cast %265 : vector<1x140x50xf32> to vector<140x50xf32>
    %cst_223 = arith.constant dense<0.000000e+00> : vector<16x50xf32>
    %267 = tpu.matmul %264, %266, %cst_223 {dimension_numbers = #tpu.dot_dimension_numbers<[1], [0], [0], [1], [0, 0, 1, 1], [], []>} : vector<16x140xf32>, vector<140x50xf32>, vector<16x50xf32> -> vector<16x50xf32>
    %268 = vector.broadcast %263 : vector<1x50xf32> to vector<16x50xf32>
    %269 = arith.addf %268, %267 : vector<16x50xf32>
    %c16_224 = arith.constant 16 : index
    %c0_225 = arith.constant 0 : index
    %270 = vector.load %arg14[%c16_224, %c0_225] : memref<64x140xf32, #tpu.memory_space<vmem>>, vector<16x140xf32>
    %c1_226 = arith.constant 1 : index
    %c0_227 = arith.constant 0 : index
    %c0_228 = arith.constant 0 : index
    %271 = vector.load %arg6[%c1_226, %c0_227, %c0_228] : memref<4x140x50xf32, #tpu.memory_space<vmem>>, vector<1x140x50xf32>
    %272 = vector.shape_cast %271 : vector<1x140x50xf32> to vector<140x50xf32>
    %cst_229 = arith.constant dense<0.000000e+00> : vector<16x50xf32>
    %273 = tpu.matmul %270, %272, %cst_229 {dimension_numbers = #tpu.dot_dimension_numbers<[1], [0], [0], [1], [0, 0, 1, 1], [], []>} : vector<16x140xf32>, vector<140x50xf32>, vector<16x50xf32> -> vector<16x50xf32>
    %274 = arith.addf %269, %273 : vector<16x50xf32>
    %c32_230 = arith.constant 32 : index
    %c0_231 = arith.constant 0 : index
    %275 = vector.load %arg14[%c32_230, %c0_231] : memref<64x140xf32, #tpu.memory_space<vmem>>, vector<16x140xf32>
    %c2_232 = arith.constant 2 : index
    %c0_233 = arith.constant 0 : index
    %c0_234 = arith.constant 0 : index
    %276 = vector.load %arg6[%c2_232, %c0_233, %c0_234] : memref<4x140x50xf32, #tpu.memory_space<vmem>>, vector<1x140x50xf32>
    %277 = vector.shape_cast %276 : vector<1x140x50xf32> to vector<140x50xf32>
    %cst_235 = arith.constant dense<0.000000e+00> : vector<16x50xf32>
    %278 = tpu.matmul %275, %277, %cst_235 {dimension_numbers = #tpu.dot_dimension_numbers<[1], [0], [0], [1], [0, 0, 1, 1], [], []>} : vector<16x140xf32>, vector<140x50xf32>, vector<16x50xf32> -> vector<16x50xf32>
    %279 = arith.addf %274, %278 : vector<16x50xf32>
    %c48_236 = arith.constant 48 : index
    %c0_237 = arith.constant 0 : index
    %280 = vector.load %arg14[%c48_236, %c0_237] : memref<64x140xf32, #tpu.memory_space<vmem>>, vector<16x140xf32>
    %c3_238 = arith.constant 3 : index
    %c0_239 = arith.constant 0 : index
    %c0_240 = arith.constant 0 : index
    %281 = vector.load %arg6[%c3_238, %c0_239, %c0_240] : memref<4x140x50xf32, #tpu.memory_space<vmem>>, vector<1x140x50xf32>
    %282 = vector.shape_cast %281 : vector<1x140x50xf32> to vector<140x50xf32>
    %cst_241 = arith.constant dense<0.000000e+00> : vector<16x50xf32>
    %283 = tpu.matmul %280, %282, %cst_241 {dimension_numbers = #tpu.dot_dimension_numbers<[1], [0], [0], [1], [0, 0, 1, 1], [], []>} : vector<16x140xf32>, vector<140x50xf32>, vector<16x50xf32> -> vector<16x50xf32>
    %284 = arith.addf %279, %283 : vector<16x50xf32>
    %cst_242 = arith.constant 0.000000e+00 : f32
    %285 = vector.broadcast %cst_242 : f32 to vector<16x50xf32>
    %286 = arith.maximumf %284, %285 : vector<16x50xf32>
    %c0_243 = arith.constant 0 : index
    %c0_244 = arith.constant 0 : index
    %287 = vector.load %arg8[%c0_243, %c0_244] : memref<50x128xf32, #tpu.memory_space<vmem>>, vector<50x128xf32>
    %cst_245 = arith.constant dense<0.000000e+00> : vector<16x128xf32>
    %288 = tpu.matmul %286, %287, %cst_245 {dimension_numbers = #tpu.dot_dimension_numbers<[1], [0], [0], [1], [0, 0, 1, 1], [], []>} : vector<16x50xf32>, vector<50x128xf32>, vector<16x128xf32> -> vector<16x128xf32>
    %c0_246 = arith.constant 0 : index
    %c0_247 = arith.constant 0 : index
    %289 = vector.load %arg9[%c0_246, %c0_247] : memref<1x128xf32, #tpu.memory_space<vmem>>, vector<1x128xf32>
    %290 = vector.broadcast %289 : vector<1x128xf32> to vector<16x128xf32>
    %291 = arith.addf %288, %290 : vector<16x128xf32>
    %cst_248 = arith.constant dense<0xFF800000> : vector<16xf32>
    %292 = vector.multi_reduction <maximumf>, %291, %cst_248 [1] : vector<16x128xf32> to vector<16xf32>
    %293 = vector.shape_cast %292 : vector<16xf32> to vector<16x1xf32>
    %294 = vector.broadcast %293 : vector<16x1xf32> to vector<16x128xf32>
    %295 = arith.subf %291, %294 : vector<16x128xf32>
    %296 = math.exp %295 : vector<16x128xf32>
    %cst_249 = arith.constant dense<0.000000e+00> : vector<16xf32>
    %297 = vector.multi_reduction <add>, %296, %cst_249 [1] : vector<16x128xf32> to vector<16xf32>
    %298 = vector.shape_cast %297 : vector<16xf32> to vector<16x1xf32>
    %299 = math.log %298 : vector<16x1xf32>
    %300 = arith.addf %299, %293 : vector<16x1xf32>
    %301 = vector.broadcast %300 : vector<16x1xf32> to vector<16x128xf32>
    %302 = arith.subf %291, %301 : vector<16x128xf32>
    %c0_250 = arith.constant 0 : index
    %c0_251 = arith.constant 0 : index
    %303 = vector.load %arg10[%c0_250, %c0_251] : memref<16x128xf32, #tpu.memory_space<vmem>>, vector<16x128xf32>
    tpu.vector_store %arg10[%c0_250, %c0_251], %302 {strides = array<i32>} : memref<16x128xf32, #tpu.memory_space<vmem>>, vector<16x128xf32>,
    return
  }
  func.func @transform_0(%arg0: i32) -> (i32, i32, i32) {
    %c0_i32 = arith.constant 0 : i32
    %c0_i32_0 = arith.constant 0 : i32
    %c0_i32_1 = arith.constant 0 : i32
    return %arg0, %c0_i32, %c0_i32_0 : i32, i32, i32
  }
  func.func @transform_1(%arg0: i32) -> (i32, i32, i32) {
    %c0_i32 = arith.constant 0 : i32
    %c0_i32_0 = arith.constant 0 : i32
    %c0_i32_1 = arith.constant 0 : i32
    %c0_i32_2 = arith.constant 0 : i32
    return %c0_i32, %c0_i32_0, %c0_i32_1 : i32, i32, i32
  }
  func.func @transform_2(%arg0: i32) -> (i32, i32) {
    %c0_i32 = arith.constant 0 : i32
    %c0_i32_0 = arith.constant 0 : i32
    %c0_i32_1 = arith.constant 0 : i32
    return %c0_i32, %c0_i32_0 : i32, i32
  }
  func.func @transform_3(%arg0: i32) -> (i32, i32, i32) {
    %c0_i32 = arith.constant 0 : i32
    %c0_i32_0 = arith.constant 0 : i32
    %c0_i32_1 = arith.constant 0 : i32
    %c0_i32_2 = arith.constant 0 : i32
    return %c0_i32, %c0_i32_0, %c0_i32_1 : i32, i32, i32
  }
  func.func @transform_4(%arg0: i32) -> (i32, i32) {
    %c0_i32 = arith.constant 0 : i32
    %c0_i32_0 = arith.constant 0 : i32
    %c0_i32_1 = arith.constant 0 : i32
    return %c0_i32, %c0_i32_0 : i32, i32
  }
  func.func @transform_5(%arg0: i32) -> (i32, i32, i32) {
    %c0_i32 = arith.constant 0 : i32
    %c0_i32_0 = arith.constant 0 : i32
    %c0_i32_1 = arith.constant 0 : i32
    %c0_i32_2 = arith.constant 0 : i32
    return %c0_i32, %c0_i32_0, %c0_i32_1 : i32, i32, i32
  }
  func.func @transform_6(%arg0: i32) -> (i32, i32) {
    %c0_i32 = arith.constant 0 : i32
    %c0_i32_0 = arith.constant 0 : i32
    %c0_i32_1 = arith.constant 0 : i32
    return %c0_i32, %c0_i32_0 : i32, i32
  }
  func.func @transform_7(%arg0: i32) -> (i32, i32) {
    %c0_i32 = arith.constant 0 : i32
    %c0_i32_0 = arith.constant 0 : i32
    %c0_i32_1 = arith.constant 0 : i32
    return %c0_i32, %c0_i32_0 : i32, i32
  }
  func.func @transform_8(%arg0: i32) -> (i32, i32) {
    %c0_i32 = arith.constant 0 : i32
    %c0_i32_0 = arith.constant 0 : i32
    %c0_i32_1 = arith.constant 0 : i32
    return %c0_i32, %c0_i32_0 : i32, i32
  }
  func.func @transform_9(%arg0: i32) -> (i32, i32) {
    %c0_i32 = arith.constant 0 : i32
    %c0_i32_0 = arith.constant 0 : i32
    return %arg0, %c0_i32 : i32, i32
  }
}

</mosaic_0001>

<llo_original>
// kernel: net_forward.1
$region0: #{net_forward.1}
  #allocation0 [shape = 'u32[]', space=smem, size = 0x4, offset = 0x4, fixed_abs, tag = 'smem constant byte address 0x4 - core index']
  #allocation1 [shape = 'u32[144,128]{1,0:T(1,128)}', space=vmem, size = 0x12000, scoped, tag = 'internal scratch']
  #allocation2 [shape = 'f32[384,240]{1,0:T(8,128)}', space=vmem, size = 0x60000, scoped, tag = 'scratch operand']
  #allocation3 [shape = 'f32[192,230]{1,0:T(8,128)}', space=vmem, size = 0x30000, scoped, tag = 'scratch operand']
  #allocation4 [shape = 'f32[128,160]{1,0:T(8,128)}', space=vmem, size = 0x20000, scoped, tag = 'scratch operand']
  #allocation5 [shape = 'f32[64,140]{1,0:T(8,128)}', space=vmem, size = 0x10000, scoped, tag = 'scratch operand']
  %s0 = inlined_call_operand.vmem [shape: f32[1,448,28], index: 0, kind: input, shape index: {}]
  %s1 = inlined_call_operand.vmem [shape: f32[5,28,240], index: 1, kind: input, shape index: {}]
  %s2 = inlined_call_operand.vmem [shape: f32[1,230], index: 2, kind: input, shape index: {}]
  %s3 = inlined_call_operand.vmem [shape: f32[5,230,160], index: 3, kind: input, shape index: {}]
  %s4 = inlined_call_operand.vmem [shape: f32[1,140], index: 4, kind: input, shape index: {}]
  %s5 = inlined_call_operand.vmem [shape: f32[4,140,50], index: 5, kind: input, shape index: {}]
  %s6 = inlined_call_operand.vmem [shape: f32[1,50], index: 6, kind: input, shape index: {}]
  %s7 = inlined_call_operand.vmem [shape: f32[50,128], index: 7, kind: input, shape index: {}]
  %s8 = inlined_call_operand.vmem [shape: f32[1,128], index: 8, kind: input, shape index: {}]
  %s9 = inlined_call_operand.vmem [shape: f32[16,128], index: 9, kind: output, shape index: {}]
  %s10 = sld [smem:[#allocation0]]
  $region46: #{net_forward.1} parent=0
    _
  %s12 = ssub.s32 1, %s10
  %s13 = scalar_select 0, %s12, %s10
  // Predicated region
  $region2: #{net_forward.1} parent=0 // pred_check
    _
  $region3: #{net_forward.1} parent=0 // pred_check_branch
    %15 = sbr.rel (0) target = $region5
  $region4: #{net_forward.1} parent=0 // pred_region
    _
  $region5: #{net_forward.1} parent=0 // pred_fallthru
    _
  // Predicated region
  $region6: #{net_forward.1} parent=0 // pred_check
    _
  $region7: #{net_forward.1} parent=0 // pred_check_branch
    %17 = sbr.rel (0) target = $region9
  $region8: #{net_forward.1} parent=0 // pred_region
    _
  $region9: #{net_forward.1} parent=0 // pred_fallthru
    _
  // Predicated region
  $region10: #{net_forward.1} parent=0 // pred_check
    _
  $region11: #{net_forward.1} parent=0 // pred_check_branch
    %19 = sbr.rel (0) target = $region13
  $region12: #{net_forward.1} parent=0 // pred_region
    _
  $region13: #{net_forward.1} parent=0 // pred_fallthru
    _
  // Predicated region
  $region14: #{net_forward.1} parent=0 // pred_check
    _
  $region15: #{net_forward.1} parent=0 // pred_check_branch
    %21 = sbr.rel (0) target = $region17
  $region16: #{net_forward.1} parent=0 // pred_region
    _
  $region17: #{net_forward.1} parent=0 // pred_fallthru
    _
  // Predicated region
  $region18: #{net_forward.1} parent=0 // pred_check
    _
  $region19: #{net_forward.1} parent=0 // pred_check_branch
    %23 = sbr.rel (0) target = $region21
  $region20: #{net_forward.1} parent=0 // pred_region
    _
  $region21: #{net_forward.1} parent=0 // pred_fallthru
    _
  // Predicated region
  $region22: #{net_forward.1} parent=0 // pred_check
    _
  $region23: #{net_forward.1} parent=0 // pred_check_branch
    %25 = sbr.rel (0) target = $region25
  $region24: #{net_forward.1} parent=0 // pred_region
    _
  $region25: #{net_forward.1} parent=0 // pred_fallthru
    _
  // Predicated region
  $region26: #{net_forward.1} parent=0 // pred_check
    _
  $region27: #{net_forward.1} parent=0 // pred_check_branch
    %27 = sbr.rel (0) target = $region29
  $region28: #{net_forward.1} parent=0 // pred_region
    _
  $region29: #{net_forward.1} parent=0 // pred_fallthru
    _
  // Predicated region
  $region30: #{net_forward.1} parent=0 // pred_check
    _
  $region31: #{net_forward.1} parent=0 // pred_check_branch
    %29 = sbr.rel (0) target = $region33
  $region32: #{net_forward.1} parent=0 // pred_region
    _
  $region33: #{net_forward.1} parent=0 // pred_fallthru
    _
  // Predicated region
  $region34: #{net_forward.1} parent=0 // pred_check
    _
  $region35: #{net_forward.1} parent=0 // pred_check_branch
    %31 = sbr.rel (0) target = $region37
  $region36: #{net_forward.1} parent=0 // pred_region
    _
  $region37: #{net_forward.1} parent=0 // pred_fallthru
    _
  %v32 = vld [vmem:[%s0] sm:$0xff]
  %v33 = vld [vmem:[%s0 + $0x8] sm:$0xff]
  %v34 = vld [vmem:[%s0 + $0x10] sm:$0xff]
  %v35 = vld [vmem:[%s0 + $0x18] sm:$0xff]
  %v36 = vld [vmem:[%s0 + $0x20] sm:$0xff]
  %v37 = vld [vmem:[%s0 + $0x28] sm:$0xff]
  %v38 = vld [vmem:[%s0 + $0x30] sm:$0xff]
  %v39 = vld [vmem:[%s0 + $0x38] sm:$0xff]
  %v40 = vld [vmem:[%s0 + $0x40] sm:$0xff]
  %v41 = vld [vmem:[%s0 + $0x48] sm:$0xff]
  %v42 = vld [vmem:[%s0 + $0x50] sm:$0xff]
  %v43 = vld [vmem:[%s0 + $0x58] sm:$0xff]
  %v44 = vld [vmem:[%s0 + $0x60] sm:$0xff]
  %v45 = vld [vmem:[%s0 + $0x68] sm:$0xff]
  %v46 = vld [vmem:[%s0 + $0x70] sm:$0xff]
  %v47 = vld [vmem:[%s0 + $0x78] sm:$0xff]
  %v48 = vld [vmem:[%s0 + $0x80] sm:$0xff]
  %v49 = vld [vmem:[%s0 + $0x88] sm:$0xff]
  %v50 = vld [vmem:[%s0 + $0x90] sm:$0xff]
  %v51 = vld [vmem:[%s0 + $0x98] sm:$0xff]
  %v52 = vld [vmem:[%s0 + $0xa0] sm:$0xff]
  %v53 = vld [vmem:[%s0 + $0xa8] sm:$0xff]
  %v54 = vld [vmem:[%s0 + $0xb0] sm:$0xff]
  %v55 = vld [vmem:[%s0 + $0xb8] sm:$0xff]
  %v56 = vld [vmem:[%s0 + $0xc0] sm:$0xff]
  %v57 = vld [vmem:[%s0 + $0xc8] sm:$0xff]
  %v58 = vld [vmem:[%s0 + $0xd0] sm:$0xff]
  %v59 = vld [vmem:[%s0 + $0xd8] sm:$0xff]
  %v60 = vld [vmem:[%s0 + $0xe0] sm:$0xff]
  %v61 = vld [vmem:[%s0 + $0xe8] sm:$0xff]
  %v62 = vld [vmem:[%s0 + $0xf0] sm:$0xff]
  %v63 = vld [vmem:[%s0 + $0xf8] sm:$0xff]
  %v64 = vld [vmem:[%s0 + $0x100] sm:$0xff]
  %v65 = vld [vmem:[%s0 + $0x108] sm:$0xff]
  %v66 = vld [vmem:[%s0 + $0x110] sm:$0xff]
  %v67 = vld [vmem:[%s0 + $0x118] sm:$0xff]
  %v68 = vld [vmem:[%s0 + $0x120] sm:$0xff]
  %v69 = vld [vmem:[%s0 + $0x128] sm:$0xff]
  %v70 = vld [vmem:[%s0 + $0x130] sm:$0xff]
  %v71 = vld [vmem:[%s0 + $0x138] sm:$0xff]
  %v72 = vld [vmem:[%s0 + $0x140] sm:$0xff]
  %v73 = vld [vmem:[%s0 + $0x148] sm:$0xff]
  %v74 = vld [vmem:[%s0 + $0x150] sm:$0xff]
  %v75 = vld [vmem:[%s0 + $0x158] sm:$0xff]
  %v76 = vld [vmem:[%s0 + $0x160] sm:$0xff]
  %v77 = vld [vmem:[%s0 + $0x168] sm:$0xff]
  %v78 = vld [vmem:[%s0 + $0x170] sm:$0xff]
  %v79 = vld [vmem:[%s0 + $0x178] sm:$0xff]
  %v80 = vld [vmem:[%s1] sm:$0xff]
  %v81 = vld [vmem:[%s1 + $0x8] sm:$0xff]
  %v82 = vld [vmem:[%s1 + $0x10] sm:$0xff]
  %v83 = vld [vmem:[%s1 + $0x18] sm:$0xff]
  %v84 = vld [vmem:[%s1 + $0x20] sm:$0xff]
  %v85 = vld [vmem:[%s1 + $0x28] sm:$0xff]
  %v86 = vld [vmem:[%s1 + $0x30] sm:$0xf]
  %v87 = vld [vmem:[%s1 + $0x38] sm:$0xf]
  %vm88 = vcmask 228352
  %v90 = vsel %vm88, %v32, 0
  %v93 = vsel %vm88, %v33, 0
  %v96 = vsel %vm88, %v34, 0
  %v99 = vsel %vm88, %v35, 0
  %v102 = vsel %vm88, %v36, 0
  %v105 = vsel %vm88, %v37, 0
  %v108 = vsel %vm88, %v38, 0
  %v111 = vsel %vm88, %v39, 0
  %v114 = vsel %vm88, %v40, 0
  %v117 = vsel %vm88, %v41, 0
  %v120 = vsel %vm88, %v42, 0
  %v123 = vsel %vm88, %v43, 0
  %v126 = vsel %vm88, %v44, 0
  %v129 = vsel %vm88, %v45, 0
  %v132 = vsel %vm88, %v46, 0
  %v135 = vsel %vm88, %v47, 0
  %v138 = vsel %vm88, %v48, 0
  %v141 = vsel %vm88, %v49, 0
  %v144 = vsel %vm88, %v50, 0
  %v147 = vsel %vm88, %v51, 0
  %v150 = vsel %vm88, %v52, 0
  %v153 = vsel %vm88, %v53, 0
  %v156 = vsel %vm88, %v54, 0
  %v159 = vsel %vm88, %v55, 0
  %v162 = vsel %vm88, %v56, 0
  %v165 = vsel %vm88, %v57, 0
  %v168 = vsel %vm88, %v58, 0
  %v171 = vsel %vm88, %v59, 0
  %v174 = vsel %vm88, %v60, 0
  %v177 = vsel %vm88, %v61, 0
  %v180 = vsel %vm88, %v62, 0
  %v183 = vsel %vm88, %v63, 0
  %v186 = vsel %vm88, %v64, 0
  %v189 = vsel %vm88, %v65, 0
  %v192 = vsel %vm88, %v66, 0
  %v195 = vsel %vm88, %v67, 0
  %v198 = vsel %vm88, %v68, 0
  %v201 = vsel %vm88, %v69, 0
  %v204 = vsel %vm88, %v70, 0
  %v207 = vsel %vm88, %v71, 0
  %v210 = vsel %vm88, %v72, 0
  %v213 = vsel %vm88, %v73, 0
  %v216 = vsel %vm88, %v74, 0
  %v219 = vsel %vm88, %v75, 0
  %v222 = vsel %vm88, %v76, 0
  %v225 = vsel %vm88, %v77, 0
  %v228 = vsel %vm88, %v78, 0
  %v231 = vsel %vm88, %v79, 0
  %vm233 = vcmask 1043456
  %v235 = vsel %vm233, %v86, 0
  %v238 = vsel %vm233, %v87, 0
  %240 = vmatprep.subr.mxu0 %v81
  %241 = vmatpush1.msra.mxu0 %v80
  %242 = vmatprep.subr.mxu0 %v83
  %243 = vmatpush1.msra.mxu0 %v82
  %244 = vmatprep.subr.mxu0 %v85
  %245 = vmatpush1.msra.mxu0 %v84
  %246 = vmatprep.subr.mxu0 %v238
  %247 = vmatpush1.msra.mxu0 %v235
  %248 = vmatprep.subr.mxu0 0.0
  %249 = vmatpush1.msra.mxu0 0.0
  %250 = vmatprep.subr.mxu0 0.0
  %251 = vmatpush1.msra.mxu0 0.0
  %252 = vmatprep.subr.mxu0 0.0
  %253 = vmatpush1.msra.mxu0 0.0
  %254 = vmatprep.subr.mxu0 0.0
  %255 = vmatpush1.msra.mxu0 0.0
  %256 = vmatprep.subr.mxu0 0.0
  %257 = vmatpush1.msra.mxu0 0.0
  %258 = vmatprep.subr.mxu0 0.0
  %259 = vmatpush1.msra.mxu0 0.0
  %260 = vmatprep.subr.mxu0 0.0
  %261 = vmatpush1.msra.mxu0 0.0
  %262 = vmatprep.subr.mxu0 0.0
  %263 = vmatpush1.msra.mxu0 0.0
  %264 = vmatprep.subr.mxu0 0.0
  %265 = vmatpush1.msra.mxu0 0.0
  %266 = vmatprep.subr.mxu0 0.0
  %267 = vmatpush1.msra.mxu0 0.0
  %268 = vmatprep.subr.mxu0 0.0
  %269 = vmatpush1.msra.mxu0 0.0
  %270 = vmatprep.subr.mxu0 0.0
  %271 = vmatpush1.msra.mxu0 0.0
  %272 = vmatprep.subr.mxu0 0.0
  %273 = vmatpush1.msra.mxu0 0.0
  %274 = vmatprep.subr.mxu0 0.0
  %275 = vmatpush1.msra.mxu0 0.0
  %276 = vmatprep.subr.mxu0 0.0
  %277 = vmatpush1.msra.mxu0 0.0
  %278 = vmatprep.subr.mxu0 0.0
  %279 = vmatpush1.msra.mxu0 0.0
  %280 = vmatprep.subr.mxu0 0.0
  %281 = vmatpush1.msra.mxu0 0.0
  %282 = vmatprep.subr.mxu0 0.0
  %283 = vmatpush1.msra.mxu0 0.0
  %284 = vmatprep.subr.mxu0 0.0
  %285 = vmatpush1.msra.mxu0 0.0
  %286 = vmatprep.subr.mxu0 0.0
  %287 = vmatpush1.msra.mxu0 0.0
  %288 = vmatprep.subr.mxu0 0.0
  %289 = vmatpush1.msra.mxu0 0.0
  %290 = vmatprep.subr.mxu0 0.0
  %291 = vmatpush1.msra.mxu0 0.0
  %292 = vmatprep.subr.mxu0 0.0
  %293 = vmatpush1.msra.mxu0 0.0
  %294 = vmatprep.subr.mxu0 0.0
  %295 = vmatpush1.msra.mxu0 0.0
  %296 = vmatprep.subr.mxu0 0.0
  %297 = vmatpush1.msra.mxu0 0.0
  %298 = vmatprep.subr.mxu0 0.0
  %299 = vmatpush1.msra.mxu0 0.0
  %300 = vmatprep.subr.mxu0 0.0
  %301 = vmatpush1.msra.mxu0 0.0
  %302 = vmatprep.subr.mxu0 0.0
  %303 = vmatpush1.msra.mxu0 0.0
  %304 = vmatprep.mubr.f32.mxu0 0.0
  %305 = vmatmul.mubr.f32.gmra.mrb[0].mxu0 %v90
  %v306 = vpop.f32.mrb[0].mxu0
  %v307 = vadd.f32 0.0, %v306
  %v308 = vpop.f32.mrb[0].mxu0
  %v309 = vadd.f32 0.0, %v308
  %310 = vmatprep.mubr.f32.mxu0 0.0
  %311 = vmatmul.mubr.f32.gmra.mrb[0].mxu0 %v93
  %v312 = vpop.f32.mrb[0].mxu0
  %v313 = vadd.f32 0.0, %v312
  %v314 = vpop.f32.mrb[0].mxu0
  %v315 = vadd.f32 0.0, %v314
  %316 = vmatprep.mubr.f32.mxu0 0.0
  %317 = vmatmul.mubr.f32.gmra.mrb[0].mxu0 %v96
  %v318 = vpop.f32.mrb[0].mxu0
  %v319 = vadd.f32 0.0, %v318
  %v320 = vpop.f32.mrb[0].mxu0
  %v321 = vadd.f32 0.0, %v320
  %322 = vmatprep.mubr.f32.mxu0 0.0
  %323 = vmatmul.mubr.f32.gmra.mrb[0].mxu0 %v99
  %v324 = vpop.f32.mrb[0].mxu0
  %v325 = vadd.f32 0.0, %v324
  %v326 = vpop.f32.mrb[0].mxu0
  %v327 = vadd.f32 0.0, %v326
  %328 = vmatprep.mubr.f32.mxu0 0.0
  %329 = vmatmul.mubr.f32.gmra.mrb[0].mxu0 %v102
  %v330 = vpop.f32.mrb[0].mxu0
  %v331 = vadd.f32 0.0, %v330
  %v332 = vpop.f32.mrb[0].mxu0
  %v333 = vadd.f32 0.0, %v332
  %334 = vmatprep.mubr.f32.mxu0 0.0
  %335 = vmatmul.mubr.f32.gmra.mrb[0].mxu0 %v105
  %v336 = vpop.f32.mrb[0].mxu0
  %v337 = vadd.f32 0.0, %v336
  %v338 = vpop.f32.mrb[0].mxu0
  %v339 = vadd.f32 0.0, %v338
  %340 = vmatprep.mubr.f32.mxu0 0.0
  %341 = vmatmul.mubr.f32.gmra.mrb[0].mxu0 %v108
  %v342 = vpop.f32.mrb[0].mxu0
  %v343 = vadd.f32 0.0, %v342
  %v344 = vpop.f32.mrb[0].mxu0
  %v345 = vadd.f32 0.0, %v344
  %346 = vmatprep.mubr.f32.mxu0 0.0
  %347 = vmatmul.mubr.f32.gmra.mrb[0].mxu0 %v111
  %v348 = vpop.f32.mrb[0].mxu0
  %v349 = vadd.f32 0.0, %v348
  %v350 = vpop.f32.mrb[0].mxu0
  %v351 = vadd.f32 0.0, %v350
  %352 = vmatprep.mubr.f32.mxu0 0.0
  %353 = vmatmul.mubr.f32.gmra.mrb[0].mxu0 %v114
  %v354 = vpop.f32.mrb[0].mxu0
  %v355 = vadd.f32 0.0, %v354
  %v356 = vpop.f32.mrb[0].mxu0
  %v357 = vadd.f32 0.0, %v356
  %358 = vmatprep.mubr.f32.mxu0 0.0
  %359 = vmatmul.mubr.f32.gmra.mrb[0].mxu0 %v117
  %v360 = vpop.f32.mrb[0].mxu0
  %v361 = vadd.f32 0.0, %v360
  %v362 = vpop.f32.mrb[0].mxu0
  %v363 = vadd.f32 0.0, %v362
  %364 = vmatprep.mubr.f32.mxu0 0.0
  %365 = vmatmul.mubr.f32.gmra.mrb[0].mxu0 %v120
  %v366 = vpop.f32.mrb[0].mxu0
  %v367 = vadd.f32 0.0, %v366
  %v368 = vpop.f32.mrb[0].mxu0
  %v369 = vadd.f32 0.0, %v368
  %370 = vmatprep.mubr.f32.mxu0 0.0
  %371 = vmatmul.mubr.f32.gmra.mrb[0].mxu0 %v123
  %v372 = vpop.f32.mrb[0].mxu0
  %v373 = vadd.f32 0.0, %v372
  %v374 = vpop.f32.mrb[0].mxu0
  %v375 = vadd.f32 0.0, %v374
  %376 = vmatprep.mubr.f32.mxu0 0.0
  %377 = vmatmul.mubr.f32.gmra.mrb[0].mxu0 %v126
  %v378 = vpop.f32.mrb[0].mxu0
  %v379 = vadd.f32 0.0, %v378
  %v380 = vpop.f32.mrb[0].mxu0
  %v381 = vadd.f32 0.0, %v380
  %382 = vmatprep.mubr.f32.mxu0 0.0
  %383 = vmatmul.mubr.f32.gmra.mrb[0].mxu0 %v129
  %v384 = vpop.f32.mrb[0].mxu0
  %v385 = vadd.f32 0.0, %v384
  %v386 = vpop.f32.mrb[0].mxu0
  %v387 = vadd.f32 0.0, %v386
  %388 = vmatprep.mubr.f32.mxu0 0.0
  %389 = vmatmul.mubr.f32.gmra.mrb[0].mxu0 %v132
  %v390 = vpop.f32.mrb[0].mxu0
  %v391 = vadd.f32 0.0, %v390
  %v392 = vpop.f32.mrb[0].mxu0
  %v393 = vadd.f32 0.0, %v392
  %394 = vmatprep.mubr.f32.mxu0 0.0
  %395 = vmatmul.mubr.f32.gmra.mrb[0].mxu0 %v135
  %v396 = vpop.f32.mrb[0].mxu0
  %v397 = vadd.f32 0.0, %v396
  %v398 = vpop.f32.mrb[0].mxu0
  %v399 = vadd.f32 0.0, %v398
  %400 = vmatprep.mubr.f32.mxu0 0.0
  %401 = vmatmul.mubr.f32.gmra.mrb[0].mxu0 %v138
  %v402 = vpop.f32.mrb[0].mxu0
  %v403 = vadd.f32 0.0, %v402
  %v404 = vpop.f32.mrb[0].mxu0
  %v405 = vadd.f32 0.0, %v404
  %406 = vmatprep.mubr.f32.mxu0 0.0
  %407 = vmatmul.mubr.f32.gmra.mrb[0].mxu0 %v141
  %v408 = vpop.f32.mrb[0].mxu0
  %v409 = vadd.f32 0.0, %v408
  %v410 = vpop.f32.mrb[0].mxu0
  %v411 = vadd.f32 0.0, %v410
  %412 = vmatprep.mubr.f32.mxu0 0.0
  %413 = vmatmul.mubr.f32.gmra.mrb[0].mxu0 %v144
  %v414 = vpop.f32.mrb[0].mxu0
  %v415 = vadd.f32 0.0, %v414
  %v416 = vpop.f32.mrb[0].mxu0
  %v417 = vadd.f32 0.0, %v416
  %418 = vmatprep.mubr.f32.mxu0 0.0
  %419 = vmatmul.mubr.f32.gmra.mrb[0].mxu0 %v147
  %v420 = vpop.f32.mrb[0].mxu0
  %v421 = vadd.f32 0.0, %v420
  %v422 = vpop.f32.mrb[0].mxu0
  %v423 = vadd.f32 0.0, %v422
  %424 = vmatprep.mubr.f32.mxu0 0.0
  %425 = vmatmul.mubr.f32.gmra.mrb[0].mxu0 %v150
  %v426 = vpop.f32.mrb[0].mxu0
  %v427 = vadd.f32 0.0, %v426
  %v428 = vpop.f32.mrb[0].mxu0
  %v429 = vadd.f32 0.0, %v428
  %430 = vmatprep.mubr.f32.mxu0 0.0
  %431 = vmatmul.mubr.f32.gmra.mrb[0].mxu0 %v153
  %v432 = vpop.f32.mrb[0].mxu0
  %v433 = vadd.f32 0.0, %v432
  %v434 = vpop.f32.mrb[0].mxu0
  %v435 = vadd.f32 0.0, %v434
  %436 = vmatprep.mubr.f32.mxu0 0.0
  %437 = vmatmul.mubr.f32.gmra.mrb[0].mxu0 %v156
  %v438 = vpop.f32.mrb[0].mxu0
  %v439 = vadd.f32 0.0, %v438
  %v440 = vpop.f32.mrb[0].mxu0
  %v441 = vadd.f32 0.0, %v440
  %442 = vmatprep.mubr.f32.mxu0 0.0
  %443 = vmatmul.mubr.f32.gmra.mrb[0].mxu0 %v159
  %v444 = vpop.f32.mrb[0].mxu0
  %v445 = vadd.f32 0.0, %v444
  %v446 = vpop.f32.mrb[0].mxu0
  %v447 = vadd.f32 0.0, %v446
  %448 = vmatprep.mubr.f32.mxu0 0.0
  %449 = vmatmul.mubr.f32.gmra.mrb[0].mxu0 %v162
  %v450 = vpop.f32.mrb[0].mxu0
  %v451 = vadd.f32 0.0, %v450
  %v452 = vpop.f32.mrb[0].mxu0
  %v453 = vadd.f32 0.0, %v452
  %454 = vmatprep.mubr.f32.mxu0 0.0
  %455 = vmatmul.mubr.f32.gmra.mrb[0].mxu0 %v165
  %v456 = vpop.f32.mrb[0].mxu0
  %v457 = vadd.f32 0.0, %v456
  %v458 = vpop.f32.mrb[0].mxu0
  %v459 = vadd.f32 0.0, %v458
  %460 = vmatprep.mubr.f32.mxu0 0.0
  %461 = vmatmul.mubr.f32.gmra.mrb[0].mxu0 %v168
  %v462 = vpop.f32.mrb[0].mxu0
  %v463 = vadd.f32 0.0, %v462
  %v464 = vpop.f32.mrb[0].mxu0
  %v465 = vadd.f32 0.0, %v464
  %466 = vmatprep.mubr.f32.mxu0 0.0
  %467 = vmatmul.mubr.f32.gmra.mrb[0].mxu0 %v171
  %v468 = vpop.f32.mrb[0].mxu0
  %v469 = vadd.f32 0.0, %v468
  %v470 = vpop.f32.mrb[0].mxu0
  %v471 = vadd.f32 0.0, %v470
  %472 = vmatprep.mubr.f32.mxu0 0.0
  %473 = vmatmul.mubr.f32.gmra.mrb[0].mxu0 %v174
  %v474 = vpop.f32.mrb[0].mxu0
  %v475 = vadd.f32 0.0, %v474
  %v476 = vpop.f32.mrb[0].mxu0
  %v477 = vadd.f32 0.0, %v476
  %478 = vmatprep.mubr.f32.mxu0 0.0
  %479 = vmatmul.mubr.f32.gmra.mrb[0].mxu0 %v177
  %v480 = vpop.f32.mrb[0].mxu0
  %v481 = vadd.f32 0.0, %v480
  %v482 = vpop.f32.mrb[0].mxu0
  %v483 = vadd.f32 0.0, %v482
  %484 = vmatprep.mubr.f32.mxu0 0.0
  %485 = vmatmul.mubr.f32.gmra.mrb[0].mxu0 %v180
  %v486 = vpop.f32.mrb[0].mxu0
  %v487 = vadd.f32 0.0, %v486
  %v488 = vpop.f32.mrb[0].mxu0
  %v489 = vadd.f32 0.0, %v488
  %490 = vmatprep.mubr.f32.mxu0 0.0
  %491 = vmatmul.mubr.f32.gmra.mrb[0].mxu0 %v183
  %v492 = vpop.f32.mrb[0].mxu0
  %v493 = vadd.f32 0.0, %v492
  %v494 = vpop.f32.mrb[0].mxu0
  %v495 = vadd.f32 0.0, %v494
  %496 = vmatprep.mubr.f32.mxu0 0.0
  %497 = vmatmul.mubr.f32.gmra.mrb[0].mxu0 %v186
  %v498 = vpop.f32.mrb[0].mxu0
  %v499 = vadd.f32 0.0, %v498
  %v500 = vpop.f32.mrb[0].mxu0
  %v501 = vadd.f32 0.0, %v500
  %502 = vmatprep.mubr.f32.mxu0 0.0
  %503 = vmatmul.mubr.f32.gmra.mrb[0].mxu0 %v189
  %v504 = vpop.f32.mrb[0].mxu0
  %v505 = vadd.f32 0.0, %v504
  %v506 = vpop.f32.mrb[0].mxu0
  %v507 = vadd.f32 0.0, %v506
  %508 = vmatprep.mubr.f32.mxu0 0.0
  %509 = vmatmul.mubr.f32.gmra.mrb[0].mxu0 %v192
  %v510 = vpop.f32.mrb[0].mxu0
  %v511 = vadd.f32 0.0, %v510
  %v512 = vpop.f32.mrb[0].mxu0
  %v513 = vadd.f32 0.0, %v512
  %514 = vmatprep.mubr.f32.mxu0 0.0
  %515 = vmatmul.mubr.f32.gmra.mrb[0].mxu0 %v195
  %v516 = vpop.f32.mrb[0].mxu0
  %v517 = vadd.f32 0.0, %v516
  %v518 = vpop.f32.mrb[0].mxu0
  %v519 = vadd.f32 0.0, %v518
  %520 = vmatprep.mubr.f32.mxu0 0.0
  %521 = vmatmul.mubr.f32.gmra.mrb[0].mxu0 %v198
  %v522 = vpop.f32.mrb[0].mxu0
  %v523 = vadd.f32 0.0, %v522
  %v524 = vpop.f32.mrb[0].mxu0
  %v525 = vadd.f32 0.0, %v524
  %526 = vmatprep.mubr.f32.mxu0 0.0
  %527 = vmatmul.mubr.f32.gmra.mrb[0].mxu0 %v201
  %v528 = vpop.f32.mrb[0].mxu0
  %v529 = vadd.f32 0.0, %v528
  %v530 = vpop.f32.mrb[0].mxu0
  %v531 = vadd.f32 0.0, %v530
  %532 = vmatprep.mubr.f32.mxu0 0.0
  %533 = vmatmul.mubr.f32.gmra.mrb[0].mxu0 %v204
  %v534 = vpop.f32.mrb[0].mxu0
  %v535 = vadd.f32 0.0, %v534
  %v536 = vpop.f32.mrb[0].mxu0
  %v537 = vadd.f32 0.0, %v536
  %538 = vmatprep.mubr.f32.mxu0 0.0
  %539 = vmatmul.mubr.f32.gmra.mrb[0].mxu0 %v207
  %v540 = vpop.f32.mrb[0].mxu0
  %v541 = vadd.f32 0.0, %v540
  %v542 = vpop.f32.mrb[0].mxu0
  %v543 = vadd.f32 0.0, %v542
  %544 = vmatprep.mubr.f32.mxu0 0.0
  %545 = vmatmul.mubr.f32.gmra.mrb[0].mxu0 %v210
  %v546 = vpop.f32.mrb[0].mxu0
  %v547 = vadd.f32 0.0, %v546
  %v548 = vpop.f32.mrb[0].mxu0
  %v549 = vadd.f32 0.0, %v548
  %550 = vmatprep.mubr.f32.mxu0 0.0
  %551 = vmatmul.mubr.f32.gmra.mrb[0].mxu0 %v213
  %v552 = vpop.f32.mrb[0].mxu0
  %v553 = vadd.f32 0.0, %v552
  %v554 = vpop.f32.mrb[0].mxu0
  %v555 = vadd.f32 0.0, %v554
  %556 = vmatprep.mubr.f32.mxu0 0.0
  %557 = vmatmul.mubr.f32.gmra.mrb[0].mxu0 %v216
  %v558 = vpop.f32.mrb[0].mxu0
  %v559 = vadd.f32 0.0, %v558
  %v560 = vpop.f32.mrb[0].mxu0
  %v561 = vadd.f32 0.0, %v560
  %562 = vmatprep.mubr.f32.mxu0 0.0
  %563 = vmatmul.mubr.f32.gmra.mrb[0].mxu0 %v219
  %v564 = vpop.f32.mrb[0].mxu0
  %v565 = vadd.f32 0.0, %v564
  %v566 = vpop.f32.mrb[0].mxu0
  %v567 = vadd.f32 0.0, %v566
  %568 = vmatprep.mubr.f32.mxu0 0.0
  %569 = vmatmul.mubr.f32.gmra.mrb[0].mxu0 %v222
  %v570 = vpop.f32.mrb[0].mxu0
  %v571 = vadd.f32 0.0, %v570
  %v572 = vpop.f32.mrb[0].mxu0
  %v573 = vadd.f32 0.0, %v572
  %574 = vmatprep.mubr.f32.mxu0 0.0
  %575 = vmatmul.mubr.f32.gmra.mrb[0].mxu0 %v225
  %v576 = vpop.f32.mrb[0].mxu0
  %v577 = vadd.f32 0.0, %v576
  %v578 = vpop.f32.mrb[0].mxu0
  %v579 = vadd.f32 0.0, %v578
  %580 = vmatprep.mubr.f32.mxu0 0.0
  %581 = vmatmul.mubr.f32.gmra.mrb[0].mxu0 %v228
  %v582 = vpop.f32.mrb[0].mxu0
  %v583 = vadd.f32 0.0, %v582
  %v584 = vpop.f32.mrb[0].mxu0
  %v585 = vadd.f32 0.0, %v584
  %586 = vmatprep.mubr.f32.mxu0 0.0
  %587 = vmatmul.mubr.f32.gmra.mrb[0].mxu0 %v231
  %v588 = vpop.f32.mrb[0].mxu0
  %v589 = vadd.f32 0.0, %v588
  %v590 = vpop.f32.mrb[0].mxu0
  %v591 = vadd.f32 0.0, %v590
  %592 = vdwg.mxu0
  %593 = vst [vmem:[#allocation2] sm:$0xff] %v307
  %vm594 = vcmask 916480
  %595 = vst.msk [vmem:[#allocation2 + $0x8] sm:$0xff] %vm594, %v309
  %596 = vst [vmem:[#allocation2 + $0x10] sm:$0xff] %v313
  %597 = vst.msk [vmem:[#allocation2 + $0x18] sm:$0xff] %vm594, %v315
  %598 = vst [vmem:[#allocation2 + $0x20] sm:$0xff] %v319
  %599 = vst.msk [vmem:[#allocation2 + $0x28] sm:$0xff] %vm594, %v321
  %600 = vst [vmem:[#allocation2 + $0x30] sm:$0xff] %v325
  %601 = vst.msk [vmem:[#allocation2 + $0x38] sm:$0xff] %vm594, %v327
  %602 = vst [vmem:[#allocation2 + $0x40] sm:$0xff] %v331
  %603 = vst.msk [vmem:[#allocation2 + $0x48] sm:$0xff] %vm594, %v333
  %604 = vst [vmem:[#allocation2 + $0x50] sm:$0xff] %v337
  %605 = vst.msk [vmem:[#allocation2 + $0x58] sm:$0xff] %vm594, %v339
  %606 = vst [vmem:[#allocation2 + $0x60] sm:$0xff] %v343
  %607 = vst.msk [vmem:[#allocation2 + $0x68] sm:$0xff] %vm594, %v345
  %608 = vst [vmem:[#allocation2 + $0x70] sm:$0xff] %v349
  %609 = vst.msk [vmem:[#allocation2 + $0x78] sm:$0xff] %vm594, %v351
  %610 = vst [vmem:[#allocation2 + $0x80] sm:$0xff] %v355
  %611 = vst.msk [vmem:[#allocation2 + $0x88] sm:$0xff] %vm594, %v357
  %612 = vst [vmem:[#allocation2 + $0x90] sm:$0xff] %v361
  %613 = vst.msk [vmem:[#allocation2 + $0x98] sm:$0xff] %vm594, %v363
  %614 = vst [vmem:[#allocation2 + $0xa0] sm:$0xff] %v367
  %615 = vst.msk [vmem:[#allocation2 + $0xa8] sm:$0xff] %vm594, %v369
  %616 = vst [vmem:[#allocation2 + $0xb0] sm:$0xff] %v373
  %617 = vst.msk [vmem:[#allocation2 + $0xb8] sm:$0xff] %vm594, %v375
  %618 = vst [vmem:[#allocation2 + $0xc0] sm:$0xff] %v379
  %619 = vst.msk [vmem:[#allocation2 + $0xc8] sm:$0xff] %vm594, %v381
  %620 = vst [vmem:[#allocation2 + $0xd0] sm:$0xff] %v385
  %621 = vst.msk [vmem:[#allocation2 + $0xd8] sm:$0xff] %vm594, %v387
  %622 = vst [vmem:[#allocation2 + $0xe0] sm:$0xff] %v391
  %623 = vst.msk [vmem:[#allocation2 + $0xe8] sm:$0xff] %vm594, %v393
  %624 = vst [vmem:[#allocation2 + $0xf0] sm:$0xff] %v397
  %625 = vst.msk [vmem:[#allocation2 + $0xf8] sm:$0xff] %vm594, %v399
  %626 = vst [vmem:[#allocation2 + $0x100] sm:$0xff] %v403
  %627 = vst.msk [vmem:[#allocation2 + $0x108] sm:$0xff] %vm594, %v405
  %628 = vst [vmem:[#allocation2 + $0x110] sm:$0xff] %v409
  %629 = vst.msk [vmem:[#allocation2 + $0x118] sm:$0xff] %vm594, %v411
  %630 = vst [vmem:[#allocation2 + $0x120] sm:$0xff] %v415
  %631 = vst.msk [vmem:[#allocation2 + $0x128] sm:$0xff] %vm594, %v417
  %632 = vst [vmem:[#allocation2 + $0x130] sm:$0xff] %v421
  %633 = vst.msk [vmem:[#allocation2 + $0x138] sm:$0xff] %vm594, %v423
  %634 = vst [vmem:[#allocation2 + $0x140] sm:$0xff] %v427
  %635 = vst.msk [vmem:[#allocation2 + $0x148] sm:$0xff] %vm594, %v429
  %636 = vst [vmem:[#allocation2 + $0x150] sm:$0xff] %v433
  %637 = vst.msk [vmem:[#allocation2 + $0x158] sm:$0xff] %vm594, %v435
  %638 = vst [vmem:[#allocation2 + $0x160] sm:$0xff] %v439
  %639 = vst.msk [vmem:[#allocation2 + $0x168] sm:$0xff] %vm594, %v441
  %640 = vst [vmem:[#allocation2 + $0x170] sm:$0xff] %v445
  %641 = vst.msk [vmem:[#allocation2 + $0x178] sm:$0xff] %vm594, %v447
  %642 = vst [vmem:[#allocation2 + $0x180] sm:$0xff] %v451
  %643 = vst.msk [vmem:[#allocation2 + $0x188] sm:$0xff] %vm594, %v453
  %644 = vst [vmem:[#allocation2 + $0x190] sm:$0xff] %v457
  %645 = vst.msk [vmem:[#allocation2 + $0x198] sm:$0xff] %vm594, %v459
  %646 = vst [vmem:[#allocation2 + $0x1a0] sm:$0xff] %v463
  %647 = vst.msk [vmem:[#allocation2 + $0x1a8] sm:$0xff] %vm594, %v465
  %648 = vst [vmem:[#allocation2 + $0x1b0] sm:$0xff] %v469
  %649 = vst.msk [vmem:[#allocation2 + $0x1b8] sm:$0xff] %vm594, %v471
  %650 = vst [vmem:[#allocation2 + $0x1c0] sm:$0xff] %v475
  %651 = vst.msk [vmem:[#allocation2 + $0x1c8] sm:$0xff] %vm594, %v477
  %652 = vst [vmem:[#allocation2 + $0x1d0] sm:$0xff] %v481
  %653 = vst.msk [vmem:[#allocation2 + $0x1d8] sm:$0xff] %vm594, %v483
  %654 = vst [vmem:[#allocation2 + $0x1e0] sm:$0xff] %v487
  %655 = vst.msk [vmem:[#allocation2 + $0x1e8] sm:$0xff] %vm594, %v489
  %656 = vst [vmem:[#allocation2 + $0x1f0] sm:$0xff] %v493
  %657 = vst.msk [vmem:[#allocation2 + $0x1f8] sm:$0xff] %vm594, %v495
  %658 = vst [vmem:[#allocation2 + $0x200] sm:$0xff] %v499
  %659 = vst.msk [vmem:[#allocation2 + $0x208] sm:$0xff] %vm594, %v501
  %660 = vst [vmem:[#allocation2 + $0x210] sm:$0xff] %v505
  %661 = vst.msk [vmem:[#allocation2 + $0x218] sm:$0xff] %vm594, %v507
  %662 = vst [vmem:[#allocation2 + $0x220] sm:$0xff] %v511
  %663 = vst.msk [vmem:[#allocation2 + $0x228] sm:$0xff] %vm594, %v513
  %664 = vst [vmem:[#allocation2 + $0x230] sm:$0xff] %v517
  %665 = vst.msk [vmem:[#allocation2 + $0x238] sm:$0xff] %vm594, %v519
  %666 = vst [vmem:[#allocation2 + $0x240] sm:$0xff] %v523
  %667 = vst.msk [vmem:[#allocation2 + $0x248] sm:$0xff] %vm594, %v525
  %668 = vst [vmem:[#allocation2 + $0x250] sm:$0xff] %v529
  %669 = vst.msk [vmem:[#allocation2 + $0x258] sm:$0xff] %vm594, %v531
  %670 = vst [vmem:[#allocation2 + $0x260] sm:$0xff] %v535
  %671 = vst.msk [vmem:[#allocation2 + $0x268] sm:$0xff] %vm594, %v537
  %672 = vst [vmem:[#allocation2 + $0x270] sm:$0xff] %v541
  %673 = vst.msk [vmem:[#allocation2 + $0x278] sm:$0xff] %vm594, %v543
  %674 = vst [vmem:[#allocation2 + $0x280] sm:$0xff] %v547
  %675 = vst.msk [vmem:[#allocation2 + $0x288] sm:$0xff] %vm594, %v549
  %676 = vst [vmem:[#allocation2 + $0x290] sm:$0xff] %v553
  %677 = vst.msk [vmem:[#allocation2 + $0x298] sm:$0xff] %vm594, %v555
  %678 = vst [vmem:[#allocation2 + $0x2a0] sm:$0xff] %v559
  %679 = vst.msk [vmem:[#allocation2 + $0x2a8] sm:$0xff] %vm594, %v561
  %680 = vst [vmem:[#allocation2 + $0x2b0] sm:$0xff] %v565
  %681 = vst.msk [vmem:[#allocation2 + $0x2b8] sm:$0xff] %vm594, %v567
  %682 = vst [vmem:[#allocation2 + $0x2c0] sm:$0xff] %v571
  %683 = vst.msk [vmem:[#allocation2 + $0x2c8] sm:$0xff] %vm594, %v573
  %684 = vst [vmem:[#allocation2 + $0x2d0] sm:$0xff] %v577
  %685 = vst.msk [vmem:[#allocation2 + $0x2d8] sm:$0xff] %vm594, %v579
  %686 = vst [vmem:[#allocation2 + $0x2e0] sm:$0xff] %v583
  %687 = vst.msk [vmem:[#allocation2 + $0x2e8] sm:$0xff] %vm594, %v585
  %688 = vst [vmem:[#allocation2 + $0x2f0] sm:$0xff] %v589
  %689 = vst.msk [vmem:[#allocation2 + $0x2f8] sm:$0xff] %vm594, %v591
  %v690 = vld [vmem:[%s0 + $0x10] sm:$0xff]
  %v691 = vld [vmem:[%s0 + $0x18] sm:$0xff]
  %v692 = vld [vmem:[%s0 + $0x20] sm:$0xff]
  %v693 = vld [vmem:[%s0 + $0x28] sm:$0xff]
  %v694 = vld [vmem:[%s0 + $0x30] sm:$0xff]
  %v695 = vld [vmem:[%s0 + $0x38] sm:$0xff]
  %v696 = vld [vmem:[%s0 + $0x40] sm:$0xff]
  %v697 = vld [vmem:[%s0 + $0x48] sm:$0xff]
  %v698 = vld [vmem:[%s0 + $0x50] sm:$0xff]
  %v699 = vld [vmem:[%s0 + $0x58] sm:$0xff]
  %v700 = vld [vmem:[%s0 + $0x60] sm:$0xff]
  %v701 = vld [vmem:[%s0 + $0x68] sm:$0xff]
  %v702 = vld [vmem:[%s0 + $0x70] sm:$0xff]
  %v703 = vld [vmem:[%s0 + $0x78] sm:$0xff]
  %v704 = vld [vmem:[%s0 + $0x80] sm:$0xff]
  %v705 = vld [vmem:[%s0 + $0x88] sm:$0xff]
  %v706 = vld [vmem:[%s0 + $0x90] sm:$0xff]
  %v707 = vld [vmem:[%s0 + $0x98] sm:$0xff]
  %v708 = vld [vmem:[%s0 + $0xa0] sm:$0xff]
  %v709 = vld [vmem:[%s0 + $0xa8] sm:$0xff]
  %v710 = vld [vmem:[%s0 + $0xb0] sm:$0xff]
  %v711 = vld [vmem:[%s0 + $0xb8] sm:$0xff]
  %v712 = vld [vmem:[%s0 + $0xc0] sm:$0xff]
  %v713 = vld [vmem:[%s0 + $0xc8] sm:$0xff]
  %v714 = vld [vmem:[%s0 + $0xd0] sm:$0xff]
  %v715 = vld [vmem:[%s0 + $0xd8] sm:$0xff]
  %v716 = vld [vmem:[%s0 + $0xe0] sm:$0xff]
  %v717 = vld [vmem:[%s0 + $0xe8] sm:$0xff]
  %v718 = vld [vmem:[%s0 + $0xf0] sm:$0xff]
  %v719 = vld [vmem:[%s0 + $0xf8] sm:$0xff]
  %v720 = vld [vmem:[%s0 + $0x100] sm:$0xff]
  %v721 = vld [vmem:[%s0 + $0x108] sm:$0xff]
  %v722 = vld [vmem:[%s0 + $0x110] sm:$0xff]
  %v723 = vld [vmem:[%s0 + $0x118] sm:$0xff]
  %v724 = vld [vmem:[%s0 + $0x120] sm:$0xff]
  %v725 = vld [vmem:[%s0 + $0x128] sm:$0xff]
  %v726 = vld [vmem:[%s0 + $0x130] sm:$0xff]
  %v727 = vld [vmem:[%s0 + $0x138] sm:$0xff]
  %v728 = vld [vmem:[%s0 + $0x140] sm:$0xff]
  %v729 = vld [vmem:[%s0 + $0x148] sm:$0xff]
  %v730 = vld [vmem:[%s0 + $0x150] sm:$0xff]
  %v731 = vld [vmem:[%s0 + $0x158] sm:$0xff]
  %v732 = vld [vmem:[%s0 + $0x160] sm:$0xff]
  %v733 = vld [vmem:[%s0 + $0x168] sm:$0xff]
  %v734 = vld [vmem:[%s0 + $0x170] sm:$0xff]
  %v735 = vld [vmem:[%s0 + $0x178] sm:$0xff]
  %v736 = vld [vmem:[%s0 + $0x180] sm:$0xff]
  %v737 = vld [vmem:[%s0 + $0x188] sm:$0xff]
  %s738 = scalar_lea.vmem %s1, 64
  %v739 = vld [vmem:[%s738] sm:$0xff]
  %v740 = vld [vmem:[%s738 + $0x8] sm:$0xff]
  %v741 = vld [vmem:[%s738 + $0x10] sm:$0xff]
  %v742 = vld [vmem:[%s738 + $0x18] sm:$0xff]
  %v743 = vld [vmem:[%s738 + $0x20] sm:$0xff]
  %v744 = vld [vmem:[%s738 + $0x28] sm:$0xff]
  %v745 = vld [vmem:[%s738 + $0x30] sm:$0xf]
  %v746 = vld [vmem:[%s738 + $0x38] sm:$0xf]
  %v748 = vsel %vm88, %v690, 0
  %v751 = vsel %vm88, %v691, 0
  %v754 = vsel %vm88, %v692, 0
  %v757 = vsel %vm88, %v693, 0
  %v760 = vsel %vm88, %v694, 0
  %v763 = vsel %vm88, %v695, 0
  %v766 = vsel %vm88, %v696, 0
  %v769 = vsel %vm88, %v697, 0
  %v772 = vsel %vm88, %v698, 0
  %v775 = vsel %vm88, %v699, 0
  %v778 = vsel %vm88, %v700, 0
  %v781 = vsel %vm88, %v701, 0
  %v784 = vsel %vm88, %v702, 0
  %v787 = vsel %vm88, %v703, 0
  %v790 = vsel %vm88, %v704, 0
  %v793 = vsel %vm88, %v705, 0
  %v796 = vsel %vm88, %v706, 0
  %v799 = vsel %vm88, %v707, 0
  %v802 = vsel %vm88, %v708, 0
  %v805 = vsel %vm88, %v709, 0
  %v808 = vsel %vm88, %v710, 0
  %v811 = vsel %vm88, %v711, 0
  %v814 = vsel %vm88, %v712, 0
  %v817 = vsel %vm88, %v713, 0
  %v820 = vsel %vm88, %v714, 0
  %v823 = vsel %vm88, %v715, 0
  %v826 = vsel %vm88, %v716, 0
  %v829 = vsel %vm88, %v717, 0
  %v832 = vsel %vm88, %v718, 0
  %v835 = vsel %vm88, %v719, 0
  %v838 = vsel %vm88, %v720, 0
  %v841 = vsel %vm88, %v721, 0
  %v844 = vsel %vm88, %v722, 0
  %v847 = vsel %vm88, %v723, 0
  %v850 = vsel %vm88, %v724, 0
  %v853 = vsel %vm88, %v725, 0
  %v856 = vsel %vm88, %v726, 0
  %v859 = vsel %vm88, %v727, 0
  %v862 = vsel %vm88, %v728, 0
  %v865 = vsel %vm88, %v729, 0
  %v868 = vsel %vm88, %v730, 0
  %v871 = vsel %vm88, %v731, 0
  %v874 = vsel %vm88, %v732, 0
  %v877 = vsel %vm88, %v733, 0
  %v880 = vsel %vm88, %v734, 0
  %v883 = vsel %vm88, %v735, 0
  %v886 = vsel %vm88, %v736, 0
  %v889 = vsel %vm88, %v737, 0
  %v892 = vsel %vm233, %v745, 0
  %v895 = vsel %vm233, %v746, 0
  %897 = vmatprep.subr.mxu0 %v740
  %898 = vmatpush1.msra.mxu0 %v739
  %899 = vmatprep.subr.mxu0 %v742
  %900 = vmatpush1.msra.mxu0 %v741
  %901 = vmatprep.subr.mxu0 %v744
  %902 = vmatpush1.msra.mxu0 %v743
  %903 = vmatprep.subr.mxu0 %v895
  %904 = vmatpush1.msra.mxu0 %v892
  %905 = vmatprep.subr.mxu0 0.0
  %906 = vmatpush1.msra.mxu0 0.0
  %907 = vmatprep.subr.mxu0 0.0
  %908 = vmatpush1.msra.mxu0 0.0
  %909 = vmatprep.subr.mxu0 0.0
  %910 = vmatpush1.msra.mxu0 0.0
  %911 = vmatprep.subr.mxu0 0.0
  %912 = vmatpush1.msra.mxu0 0.0
  %913 = vmatprep.subr.mxu0 0.0
  %914 = vmatpush1.msra.mxu0 0.0
  %915 = vmatprep.subr.mxu0 0.0
  %916 = vmatpush1.msra.mxu0 0.0
  %917 = vmatprep.subr.mxu0 0.0
  %918 = vmatpush1.msra.mxu0 0.0
  %919 = vmatprep.subr.mxu0 0.0
  %920 = vmatpush1.msra.mxu0 0.0
  %921 = vmatprep.subr.mxu0 0.0
  %922 = vmatpush1.msra.mxu0 0.0
  %923 = vmatprep.subr.mxu0 0.0
  %924 = vmatpush1.msra.mxu0 0.0
  %925 = vmatprep.subr.mxu0 0.0
  %926 = vmatpush1.msra.mxu0 0.0
  %927 = vmatprep.subr.mxu0 0.0
  %928 = vmatpush1.msra.mxu0 0.0
  %929 = vmatprep.subr.mxu0 0.0
  %930 = vmatpush1.msra.mxu0 0.0
  %931 = vmatprep.subr.mxu0 0.0
  %932 = vmatpush1.msra.mxu0 0.0
  %933 = vmatprep.subr.mxu0 0.0
  %934 = vmatpush1.msra.mxu0 0.0
  %935 = vmatprep.subr.mxu0 0.0
  %936 = vmatpush1.msra.mxu0 0.0
  %937 = vmatprep.subr.mxu0 0.0
  %938 = vmatpush1.msra.mxu0 0.0
  %939 = vmatprep.subr.mxu0 0.0
  %940 = vmatpush1.msra.mxu0 0.0
  %941 = vmatprep.subr.mxu0 0.0
  %942 = vmatpush1.msra.mxu0 0.0
  %943 = vmatprep.subr.mxu0 0.0
  %944 = vmatpush1.msra.mxu0 0.0
  %945 = vmatprep.subr.mxu0 0.0
  %946 = vmatpush1.msra.mxu0 0.0
  %947 = vmatprep.subr.mxu0 0.0
  %948 = vmatpush1.msra.mxu0 0.0
  %949 = vmatprep.subr.mxu0 0.0
  %950 = vmatpush1.msra.mxu0 0.0
  %951 = vmatprep.subr.mxu0 0.0
  %952 = vmatpush1.msra.mxu0 0.0
  %953 = vmatprep.subr.mxu0 0.0
  %954 = vmatpush1.msra.mxu0 0.0
  %955 = vmatprep.subr.mxu0 0.0
  %956 = vmatpush1.msra.mxu0 0.0
  %957 = vmatprep.subr.mxu0 0.0
  %958 = vmatpush1.msra.mxu0 0.0
  %959 = vmatprep.subr.mxu0 0.0
  %960 = vmatpush1.msra.mxu0 0.0
  %961 = vmatprep.mubr.f32.mxu0 0.0
  %962 = vmatmul.mubr.f32.gmra.mrb[0].mxu0 %v748
  %v963 = vpop.f32.mrb[0].mxu0
  %v964 = vadd.f32 0.0, %v963
  %v965 = vpop.f32.mrb[0].mxu0
  %v966 = vadd.f32 0.0, %v965
  %967 = vmatprep.mubr.f32.mxu0 0.0
  %968 = vmatmul.mubr.f32.gmra.mrb[0].mxu0 %v751
  %v969 = vpop.f32.mrb[0].mxu0
  %v970 = vadd.f32 0.0, %v969
  %v971 = vpop.f32.mrb[0].mxu0
  %v972 = vadd.f32 0.0, %v971
  %973 = vmatprep.mubr.f32.mxu0 0.0
  %974 = vmatmul.mubr.f32.gmra.mrb[0].mxu0 %v754
  %v975 = vpop.f32.mrb[0].mxu0
  %v976 = vadd.f32 0.0, %v975
  %v977 = vpop.f32.mrb[0].mxu0
  %v978 = vadd.f32 0.0, %v977
  %979 = vmatprep.mubr.f32.mxu0 0.0
  %980 = vmatmul.mubr.f32.gmra.mrb[0].mxu0 %v757
  %v981 = vpop.f32.mrb[0].mxu0
  %v982 = vadd.f32 0.0, %v981
  %v983 = vpop.f32.mrb[0].mxu0
  %v984 = vadd.f32 0.0, %v983
  %985 = vmatprep.mubr.f32.mxu0 0.0
  %986 = vmatmul.mubr.f32.gmra.mrb[0].mxu0 %v760
  %v987 = vpop.f32.mrb[0].mxu0
  %v988 = vadd.f32 0.0, %v987
  %v989 = vpop.f32.mrb[0].mxu0
  %v990 = vadd.f32 0.0, %v989
  %991 = vmatprep.mubr.f32.mxu0 0.0
  %992 = vmatmul.mubr.f32.gmra.mrb[0].mxu0 %v763
  %v993 = vpop.f32.mrb[0].mxu0
  %v994 = vadd.f32 0.0, %v993
  %v995 = vpop.f32.mrb[0].mxu0
  %v996 = vadd.f32 0.0, %v995
  %997 = vmatprep.mubr.f32.mxu0 0.0
  %998 = vmatmul.mubr.f32.gmra.mrb[0].mxu0 %v766
  %v999 = vpop.f32.mrb[0].mxu0
  %v1000 = vadd.f32 0.0, %v999
  %v1001 = vpop.f32.mrb[0].mxu0
  %v1002 = vadd.f32 0.0, %v1001
  %1003 = vmatprep.mubr.f32.mxu0 0.0
  %1004 = vmatmul.mubr.f32.gmra.mrb[0].mxu0 %v769
  %v1005 = vpop.f32.mrb[0].mxu0
  %v1006 = vadd.f32 0.0, %v1005
  %v1007 = vpop.f32.mrb[0].mxu0
  %v1008 = vadd.f32 0.0, %v1007
  %1009 = vmatprep.mubr.f32.mxu0 0.0
  %1010 = vmatmul.mubr.f32.gmra.mrb[0].mxu0 %v772
  %v1011 = vpop.f32.mrb[0].mxu0
  %v1012 = vadd.f32 0.0, %v1011
  %v1013 = vpop.f32.mrb[0].mxu0
  %v1014 = vadd.f32 0.0, %v1013
  %1015 = vmatprep.mubr.f32.mxu0 0.0
  %1016 = vmatmul.mubr.f32.gmra.mrb[0].mxu0 %v775
  %v1017 = vpop.f32.mrb[0].mxu0
  %v1018 = vadd.f32 0.0, %v1017
  %v1019 = vpop.f32.mrb[0].mxu0
  %v1020 = vadd.f32 0.0, %v1019
  %1021 = vmatprep.mubr.f32.mxu0 0.0
  %1022 = vmatmul.mubr.f32.gmra.mrb[0].mxu0 %v778
  %v1023 = vpop.f32.mrb[0].mxu0
  %v1024 = vadd.f32 0.0, %v1023
  %v1025 = vpop.f32.mrb[0].mxu0
  %v1026 = vadd.f32 0.0, %v1025
  %1027 = vmatprep.mubr.f32.mxu0 0.0
  %1028 = vmatmul.mubr.f32.gmra.mrb[0].mxu0 %v781
  %v1029 = vpop.f32.mrb[0].mxu0
  %v1030 = vadd.f32 0.0, %v1029
  %v1031 = vpop.f32.mrb[0].mxu0
  %v1032 = vadd.f32 0.0, %v1031
  %1033 = vmatprep.mubr.f32.mxu0 0.0
  %1034 = vmatmul.mubr.f32.gmra.mrb[0].mxu0 %v784
  %v1035 = vpop.f32.mrb[0].mxu0
  %v1036 = vadd.f32 0.0, %v1035
  %v1037 = vpop.f32.mrb[0].mxu0
  %v1038 = vadd.f32 0.0, %v1037
  %1039 = vmatprep.mubr.f32.mxu0 0.0
  %1040 = vmatmul.mubr.f32.gmra.mrb[0].mxu0 %v787
  %v1041 = vpop.f32.mrb[0].mxu0
  %v1042 = vadd.f32 0.0, %v1041
  %v1043 = vpop.f32.mrb[0].mxu0
  %v1044 = vadd.f32 0.0, %v1043
  %1045 = vmatprep.mubr.f32.mxu0 0.0
  %1046 = vmatmul.mubr.f32.gmra.mrb[0].mxu0 %v790
  %v1047 = vpop.f32.mrb[0].mxu0
  %v1048 = vadd.f32 0.0, %v1047
  %v1049 = vpop.f32.mrb[0].mxu0
  %v1050 = vadd.f32 0.0, %v1049
  %1051 = vmatprep.mubr.f32.mxu0 0.0
  %1052 = vmatmul.mubr.f32.gmra.mrb[0].mxu0 %v793
  %v1053 = vpop.f32.mrb[0].mxu0
  %v1054 = vadd.f32 0.0, %v1053
  %v1055 = vpop.f32.mrb[0].mxu0
  %v1056 = vadd.f32 0.0, %v1055
  %1057 = vmatprep.mubr.f32.mxu0 0.0
  %1058 = vmatmul.mubr.f32.gmra.mrb[0].mxu0 %v796
  %v1059 = vpop.f32.mrb[0].mxu0
  %v1060 = vadd.f32 0.0, %v1059
  %v1061 = vpop.f32.mrb[0].mxu0
  %v1062 = vadd.f32 0.0, %v1061
  %1063 = vmatprep.mubr.f32.mxu0 0.0
  %1064 = vmatmul.mubr.f32.gmra.mrb[0].mxu0 %v799
  %v1065 = vpop.f32.mrb[0].mxu0
  %v1066 = vadd.f32 0.0, %v1065
  %v1067 = vpop.f32.mrb[0].mxu0
  %v1068 = vadd.f32 0.0, %v1067
  %1069 = vmatprep.mubr.f32.mxu0 0.0
  %1070 = vmatmul.mubr.f32.gmra.mrb[0].mxu0 %v802
  %v1071 = vpop.f32.mrb[0].mxu0
  %v1072 = vadd.f32 0.0, %v1071
  %v1073 = vpop.f32.mrb[0].mxu0
  %v1074 = vadd.f32 0.0, %v1073
  %1075 = vmatprep.mubr.f32.mxu0 0.0
  %1076 = vmatmul.mubr.f32.gmra.mrb[0].mxu0 %v805
  %v1077 = vpop.f32.mrb[0].mxu0
  %v1078 = vadd.f32 0.0, %v1077
  %v1079 = vpop.f32.mrb[0].mxu0
  %v1080 = vadd.f32 0.0, %v1079
  %1081 = vmatprep.mubr.f32.mxu0 0.0
  %1082 = vmatmul.mubr.f32.gmra.mrb[0].mxu0 %v808
  %v1083 = vpop.f32.mrb[0].mxu0
  %v1084 = vadd.f32 0.0, %v1083
  %v1085 = vpop.f32.mrb[0].mxu0
  %v1086 = vadd.f32 0.0, %v1085
  %1087 = vmatprep.mubr.f32.mxu0 0.0
  %1088 = vmatmul.mubr.f32.gmra.mrb[0].mxu0 %v811
  %v1089 = vpop.f32.mrb[0].mxu0
  %v1090 = vadd.f32 0.0, %v1089
  %v1091 = vpop.f32.mrb[0].mxu0
  %v1092 = vadd.f32 0.0, %v1091
  %1093 = vmatprep.mubr.f32.mxu0 0.0
  %1094 = vmatmul.mubr.f32.gmra.mrb[0].mxu0 %v814
  %v1095 = vpop.f32.mrb[0].mxu0
  %v1096 = vadd.f32 0.0, %v1095
  %v1097 = vpop.f32.mrb[0].mxu0
  %v1098 = vadd.f32 0.0, %v1097
  %1099 = vmatprep.mubr.f32.mxu0 0.0
  %1100 = vmatmul.mubr.f32.gmra.mrb[0].mxu0 %v817
  %v1101 = vpop.f32.mrb[0].mxu0
  %v1102 = vadd.f32 0.0, %v1101
  %v1103 = vpop.f32.mrb[0].mxu0
  %v1104 = vadd.f32 0.0, %v1103
  %1105 = vmatprep.mubr.f32.mxu0 0.0
  %1106 = vmatmul.mubr.f32.gmra.mrb[0].mxu0 %v820
  %v1107 = vpop.f32.mrb[0].mxu0
  %v1108 = vadd.f32 0.0, %v1107
  %v1109 = vpop.f32.mrb[0].mxu0
  %v1110 = vadd.f32 0.0, %v1109
  %1111 = vmatprep.mubr.f32.mxu0 0.0
  %1112 = vmatmul.mubr.f32.gmra.mrb[0].mxu0 %v823
  %v1113 = vpop.f32.mrb[0].mxu0
  %v1114 = vadd.f32 0.0, %v1113
  %v1115 = vpop.f32.mrb[0].mxu0
  %v1116 = vadd.f32 0.0, %v1115
  %1117 = vmatprep.mubr.f32.mxu0 0.0
  %1118 = vmatmul.mubr.f32.gmra.mrb[0].mxu0 %v826
  %v1119 = vpop.f32.mrb[0].mxu0
  %v1120 = vadd.f32 0.0, %v1119
  %v1121 = vpop.f32.mrb[0].mxu0
  %v1122 = vadd.f32 0.0, %v1121
  %1123 = vmatprep.mubr.f32.mxu0 0.0
  %1124 = vmatmul.mubr.f32.gmra.mrb[0].mxu0 %v829
  %v1125 = vpop.f32.mrb[0].mxu0
  %v1126 = vadd.f32 0.0, %v1125
  %v1127 = vpop.f32.mrb[0].mxu0
  %v1128 = vadd.f32 0.0, %v1127
  %1129 = vmatprep.mubr.f32.mxu0 0.0
  %1130 = vmatmul.mubr.f32.gmra.mrb[0].mxu0 %v832
  %v1131 = vpop.f32.mrb[0].mxu0
  %v1132 = vadd.f32 0.0, %v1131
  %v1133 = vpop.f32.mrb[0].mxu0
  %v1134 = vadd.f32 0.0, %v1133
  %1135 = vmatprep.mubr.f32.mxu0 0.0
  %1136 = vmatmul.mubr.f32.gmra.mrb[0].mxu0 %v835
  %v1137 = vpop.f32.mrb[0].mxu0
  %v1138 = vadd.f32 0.0, %v1137
  %v1139 = vpop.f32.mrb[0].mxu0
  %v1140 = vadd.f32 0.0, %v1139
  %1141 = vmatprep.mubr.f32.mxu0 0.0
  %1142 = vmatmul.mubr.f32.gmra.mrb[0].mxu0 %v838
  %v1143 = vpop.f32.mrb[0].mxu0
  %v1144 = vadd.f32 0.0, %v1143
  %v1145 = vpop.f32.mrb[0].mxu0
  %v1146 = vadd.f32 0.0, %v1145
  %1147 = vmatprep.mubr.f32.mxu0 0.0
  %1148 = vmatmul.mubr.f32.gmra.mrb[0].mxu0 %v841
  %v1149 = vpop.f32.mrb[0].mxu0
  %v1150 = vadd.f32 0.0, %v1149
  %v1151 = vpop.f32.mrb[0].mxu0
  %v1152 = vadd.f32 0.0, %v1151
  %1153 = vmatprep.mubr.f32.mxu0 0.0
  %1154 = vmatmul.mubr.f32.gmra.mrb[0].mxu0 %v844
  %v1155 = vpop.f32.mrb[0].mxu0
  %v1156 = vadd.f32 0.0, %v1155
  %v1157 = vpop.f32.mrb[0].mxu0
  %v1158 = vadd.f32 0.0, %v1157
  %1159 = vmatprep.mubr.f32.mxu0 0.0
  %1160 = vmatmul.mubr.f32.gmra.mrb[0].mxu0 %v847
  %v1161 = vpop.f32.mrb[0].mxu0
  %v1162 = vadd.f32 0.0, %v1161
  %v1163 = vpop.f32.mrb[0].mxu0
  %v1164 = vadd.f32 0.0, %v1163
  %1165 = vmatprep.mubr.f32.mxu0 0.0
  %1166 = vmatmul.mubr.f32.gmra.mrb[0].mxu0 %v850
  %v1167 = vpop.f32.mrb[0].mxu0
  %v1168 = vadd.f32 0.0, %v1167
  %v1169 = vpop.f32.mrb[0].mxu0
  %v1170 = vadd.f32 0.0, %v1169
  %1171 = vmatprep.mubr.f32.mxu0 0.0
  %1172 = vmatmul.mubr.f32.gmra.mrb[0].mxu0 %v853
  %v1173 = vpop.f32.mrb[0].mxu0
  %v1174 = vadd.f32 0.0, %v1173
  %v1175 = vpop.f32.mrb[0].mxu0
  %v1176 = vadd.f32 0.0, %v1175
  %1177 = vmatprep.mubr.f32.mxu0 0.0
  %1178 = vmatmul.mubr.f32.gmra.mrb[0].mxu0 %v856
  %v1179 = vpop.f32.mrb[0].mxu0
  %v1180 = vadd.f32 0.0, %v1179
  %v1181 = vpop.f32.mrb[0].mxu0
  %v1182 = vadd.f32 0.0, %v1181
  %1183 = vmatprep.mubr.f32.mxu0 0.0
  %1184 = vmatmul.mubr.f32.gmra.mrb[0].mxu0 %v859
  %v1185 = vpop.f32.mrb[0].mxu0
  %v1186 = vadd.f32 0.0, %v1185
  %v1187 = vpop.f32.mrb[0].mxu0
  %v1188 = vadd.f32 0.0, %v1187
  %1189 = vmatprep.mubr.f32.mxu0 0.0
  %1190 = vmatmul.mubr.f32.gmra.mrb[0].mxu0 %v862
  %v1191 = vpop.f32.mrb[0].mxu0
  %v1192 = vadd.f32 0.0, %v1191
  %v1193 = vpop.f32.mrb[0].mxu0
  %v1194 = vadd.f32 0.0, %v1193
  %1195 = vmatprep.mubr.f32.mxu0 0.0
  %1196 = vmatmul.mubr.f32.gmra.mrb[0].mxu0 %v865
  %v1197 = vpop.f32.mrb[0].mxu0
  %v1198 = vadd.f32 0.0, %v1197
  %v1199 = vpop.f32.mrb[0].mxu0
  %v1200 = vadd.f32 0.0, %v1199
  %1201 = vmatprep.mubr.f32.mxu0 0.0
  %1202 = vmatmul.mubr.f32.gmra.mrb[0].mxu0 %v868
  %v1203 = vpop.f32.mrb[0].mxu0
  %v1204 = vadd.f32 0.0, %v1203
  %v1205 = vpop.f32.mrb[0].mxu0
  %v1206 = vadd.f32 0.0, %v1205
  %1207 = vmatprep.mubr.f32.mxu0 0.0
  %1208 = vmatmul.mubr.f32.gmra.mrb[0].mxu0 %v871
  %v1209 = vpop.f32.mrb[0].mxu0
  %v1210 = vadd.f32 0.0, %v1209
  %v1211 = vpop.f32.mrb[0].mxu0
  %v1212 = vadd.f32 0.0, %v1211
  %1213 = vmatprep.mubr.f32.mxu0 0.0
  %1214 = vmatmul.mubr.f32.gmra.mrb[0].mxu0 %v874
  %v1215 = vpop.f32.mrb[0].mxu0
  %v1216 = vadd.f32 0.0, %v1215
  %v1217 = vpop.f32.mrb[0].mxu0
  %v1218 = vadd.f32 0.0, %v1217
  %1219 = vmatprep.mubr.f32.mxu0 0.0
  %1220 = vmatmul.mubr.f32.gmra.mrb[0].mxu0 %v877
  %v1221 = vpop.f32.mrb[0].mxu0
  %v1222 = vadd.f32 0.0, %v1221
  %v1223 = vpop.f32.mrb[0].mxu0
  %v1224 = vadd.f32 0.0, %v1223
  %1225 = vmatprep.mubr.f32.mxu0 0.0
  %1226 = vmatmul.mubr.f32.gmra.mrb[0].mxu0 %v880
  %v1227 = vpop.f32.mrb[0].mxu0
  %v1228 = vadd.f32 0.0, %v1227
  %v1229 = vpop.f32.mrb[0].mxu0
  %v1230 = vadd.f32 0.0, %v1229
  %1231 = vmatprep.mubr.f32.mxu0 0.0
  %1232 = vmatmul.mubr.f32.gmra.mrb[0].mxu0 %v883
  %v1233 = vpop.f32.mrb[0].mxu0
  %v1234 = vadd.f32 0.0, %v1233
  %v1235 = vpop.f32.mrb[0].mxu0
  %v1236 = vadd.f32 0.0, %v1235
  %1237 = vmatprep.mubr.f32.mxu0 0.0
  %1238 = vmatmul.mubr.f32.gmra.mrb[0].mxu0 %v886
  %v1239 = vpop.f32.mrb[0].mxu0
  %v1240 = vadd.f32 0.0, %v1239
  %v1241 = vpop.f32.mrb[0].mxu0
  %v1242 = vadd.f32 0.0, %v1241
  %1243 = vmatprep.mubr.f32.mxu0 0.0
  %1244 = vmatmul.mubr.f32.gmra.mrb[0].mxu0 %v889
  %v1245 = vpop.f32.mrb[0].mxu0
  %v1246 = vadd.f32 0.0, %v1245
  %v1247 = vpop.f32.mrb[0].mxu0
  %v1248 = vadd.f32 0.0, %v1247
  %1249 = vdwg.mxu0
  %v1250 = vld [vmem:[#allocation2] sm:$0xff]
  %v1251 = vld [vmem:[#allocation2 + $0x8] sm:$0xff]
  %v1252 = vld [vmem:[#allocation2 + $0x10] sm:$0xff]
  %v1253 = vld [vmem:[#allocation2 + $0x18] sm:$0xff]
  %v1254 = vld [vmem:[#allocation2 + $0x20] sm:$0xff]
  %v1255 = vld [vmem:[#allocation2 + $0x28] sm:$0xff]
  %v1256 = vld [vmem:[#allocation2 + $0x30] sm:$0xff]
  %v1257 = vld [vmem:[#allocation2 + $0x38] sm:$0xff]
  %v1258 = vld [vmem:[#allocation2 + $0x40] sm:$0xff]
  %v1259 = vld [vmem:[#allocation2 + $0x48] sm:$0xff]
  %v1260 = vld [vmem:[#allocation2 + $0x50] sm:$0xff]
  %v1261 = vld [vmem:[#allocation2 + $0x58] sm:$0xff]
  %v1262 = vld [vmem:[#allocation2 + $0x60] sm:$0xff]
  %v1263 = vld [vmem:[#allocation2 + $0x68] sm:$0xff]
  %v1264 = vld [vmem:[#allocation2 + $0x70] sm:$0xff]
  %v1265 = vld [vmem:[#allocation2 + $0x78] sm:$0xff]
  %v1266 = vld [vmem:[#allocation2 + $0x80] sm:$0xff]
  %v1267 = vld [vmem:[#allocation2 + $0x88] sm:$0xff]
  %v1268 = vld [vmem:[#allocation2 + $0x90] sm:$0xff]
  %v1269 = vld [vmem:[#allocation2 + $0x98] sm:$0xff]
  %v1270 = vld [vmem:[#allocation2 + $0xa0] sm:$0xff]
  %v1271 = vld [vmem:[#allocation2 + $0xa8] sm:$0xff]
  %v1272 = vld [vmem:[#allocation2 + $0xb0] sm:$0xff]
  %v1273 = vld [vmem:[#allocation2 + $0xb8] sm:$0xff]
  %v1274 = vld [vmem:[#allocation2 + $0xc0] sm:$0xff]
  %v1275 = vld [vmem:[#allocation2 + $0xc8] sm:$0xff]
  %v1276 = vld [vmem:[#allocation2 + $0xd0] sm:$0xff]
  %v1277 = vld [vmem:[#allocation2 + $0xd8] sm:$0xff]
  %v1278 = vld [vmem:[#allocation2 + $0xe0] sm:$0xff]
  %v1279 = vld [vmem:[#allocation2 + $0xe8] sm:$0xff]
  %v1280 = vld [vmem:[#allocation2 + $0xf0] sm:$0xff]
  %v1281 = vld [vmem:[#allocation2 + $0xf8] sm:$0xff]
  %v1282 = vld [vmem:[#allocation2 + $0x100] sm:$0xff]
  %v1283 = vld [vmem:[#allocation2 + $0x108] sm:$0xff]
  %v1284 = vld [vmem:[#allocation2 + $0x110] sm:$0xff]
  %v1285 = vld [vmem:[#allocation2 + $0x118] sm:$0xff]
  %v1286 = vld [vmem:[#allocation2 + $0x120] sm:$0xff]
  %v1287 = vld [vmem:[#allocation2 + $0x128] sm:$0xff]
  %v1288 = vld [vmem:[#allocation2 + $0x130] sm:$0xff]
  %v1289 = vld [vmem:[#allocation2 + $0x138] sm:$0xff]
  %v1290 = vld [vmem:[#allocation2 + $0x140] sm:$0xff]
  %v1291 = vld [vmem:[#allocation2 + $0x148] sm:$0xff]
  %v1292 = vld [vmem:[#allocation2 + $0x150] sm:$0xff]
  %v1293 = vld [vmem:[#allocation2 + $0x158] sm:$0xff]
  %v1294 = vld [vmem:[#allocation2 + $0x160] sm:$0xff]
  %v1295 = vld [vmem:[#allocation2 + $0x168] sm:$0xff]
  %v1296 = vld [vmem:[#allocation2 + $0x170] sm:$0xff]
  %v1297 = vld [vmem:[#allocation2 + $0x178] sm:$0xff]
  %v1298 = vld [vmem:[#allocation2 + $0x180] sm:$0xff]
  %v1299 = vld [vmem:[#allocation2 + $0x188] sm:$0xff]
  %v1300 = vld [vmem:[#allocation2 + $0x190] sm:$0xff]
  %v1301 = vld [vmem:[#allocation2 + $0x198] sm:$0xff]
  %v1302 = vld [vmem:[#allocation2 + $0x1a0] sm:$0xff]
  %v1303 = vld [vmem:[#allocation2 + $0x1a8] sm:$0xff]
  %v1304 = vld [vmem:[#allocation2 + $0x1b0] sm:$0xff]
  %v1305 = vld [vmem:[#allocation2 + $0x1b8] sm:$0xff]
  %v1306 = vld [vmem:[#allocation2 + $0x1c0] sm:$0xff]
  %v1307 = vld [vmem:[#allocation2 + $0x1c8] sm:$0xff]
  %v1308 = vld [vmem:[#allocation2 + $0x1d0] sm:$0xff]
  %v1309 = vld [vmem:[#allocation2 + $0x1d8] sm:$0xff]
  %v1310 = vld [vmem:[#allocation2 + $0x1e0] sm:$0xff]
  %v1311 = vld [vmem:[#allocation2 + $0x1e8] sm:$0xff]
  %v1312 = vld [vmem:[#allocation2 + $0x1f0] sm:$0xff]
  %v1313 = vld [vmem:[#allocation2 + $0x1f8] sm:$0xff]
  %v1314 = vld [vmem:[#allocation2 + $0x200] sm:$0xff]
  %v1315 = vld [vmem:[#allocation2 + $0x208] sm:$0xff]
  %v1316 = vld [vmem:[#allocation2 + $0x210] sm:$0xff]
  %v1317 = vld [vmem:[#allocation2 + $0x218] sm:$0xff]
  %v1318 = vld [vmem:[#allocation2 + $0x220] sm:$0xff]
  %v1319 = vld [vmem:[#allocation2 + $0x228] sm:$0xff]
  %v1320 = vld [vmem:[#allocation2 + $0x230] sm:$0xff]
  %v1321 = vld [vmem:[#allocation2 + $0x238] sm:$0xff]
  %v1322 = vld [vmem:[#allocation2 + $0x240] sm:$0xff]
  %v1323 = vld [vmem:[#allocation2 + $0x248] sm:$0xff]
  %v1324 = vld [vmem:[#allocation2 + $0x250] sm:$0xff]
  %v1325 = vld [vmem:[#allocation2 + $0x258] sm:$0xff]
  %v1326 = vld [vmem:[#allocation2 + $0x260] sm:$0xff]
  %v1327 = vld [vmem:[#allocation2 + $0x268] sm:$0xff]
  %v1328 = vld [vmem:[#allocation2 + $0x270] sm:$0xff]
  %v1329 = vld [vmem:[#allocation2 + $0x278] sm:$0xff]
  %v1330 = vld [vmem:[#allocation2 + $0x280] sm:$0xff]
  %v1331 = vld [vmem:[#allocation2 + $0x288] sm:$0xff]
  %v1332 = vld [vmem:[#allocation2 + $0x290] sm:$0xff]
  %v1333 = vld [vmem:[#allocation2 + $0x298] sm:$0xff]
  %v1334 = vld [vmem:[#allocation2 + $0x2a0] sm:$0xff]
  %v1335 = vld [vmem:[#allocation2 + $0x2a8] sm:$0xff]
  %v1336 = vld [vmem:[#allocation2 + $0x2b0] sm:$0xff]
  %v1337 = vld [vmem:[#allocation2 + $0x2b8] sm:$0xff]
  %v1338 = vld [vmem:[#allocation2 + $0x2c0] sm:$0xff]
  %v1339 = vld [vmem:[#allocation2 + $0x2c8] sm:$0xff]
  %v1340 = vld [vmem:[#allocation2 + $0x2d0] sm:$0xff]
  %v1341 = vld [vmem:[#allocation2 + $0x2d8] sm:$0xff]
  %v1342 = vld [vmem:[#allocation2 + $0x2e0] sm:$0xff]
  %v1343 = vld [vmem:[#allocation2 + $0x2e8] sm:$0xff]
  %v1344 = vld [vmem:[#allocation2 + $0x2f0] sm:$0xff]
  %v1345 = vld [vmem:[#allocation2 + $0x2f8] sm:$0xff]
  %v1346 = vadd.f32 %v1250, %v964
  %v1347 = vadd.f32 %v1251, %v966
  %v1348 = vadd.f32 %v1252, %v970
  %v1349 = vadd.f32 %v1253, %v972
  %v1350 = vadd.f32 %v1254, %v976
  %v1351 = vadd.f32 %v1255, %v978
  %v1352 = vadd.f32 %v1256, %v982
  %v1353 = vadd.f32 %v1257, %v984
  %v1354 = vadd.f32 %v1258, %v988
  %v1355 = vadd.f32 %v1259, %v990
  %v1356 = vadd.f32 %v1260, %v994
  %v1357 = vadd.f32 %v1261, %v996
  %v1358 = vadd.f32 %v1262, %v1000
  %v1359 = vadd.f32 %v1263, %v1002
  %v1360 = vadd.f32 %v1264, %v1006
  %v1361 = vadd.f32 %v1265, %v1008
  %v1362 = vadd.f32 %v1266, %v1012
  %v1363 = vadd.f32 %v1267, %v1014
  %v1364 = vadd.f32 %v1268, %v1018
  %v1365 = vadd.f32 %v1269, %v1020
  %v1366 = vadd.f32 %v1270, %v1024
  %v1367 = vadd.f32 %v1271, %v1026
  %v1368 = vadd.f32 %v1272, %v1030
  %v1369 = vadd.f32 %v1273, %v1032
  %v1370 = vadd.f32 %v1274, %v1036
  %v1371 = vadd.f32 %v1275, %v1038
  %v1372 = vadd.f32 %v1276, %v1042
  %v1373 = vadd.f32 %v1277, %v1044
  %v1374 = vadd.f32 %v1278, %v1048
  %v1375 = vadd.f32 %v1279, %v1050
  %v1376 = vadd.f32 %v1280, %v1054
  %v1377 = vadd.f32 %v1281, %v1056
  %v1378 = vadd.f32 %v1282, %v1060
  %v1379 = vadd.f32 %v1283, %v1062
  %v1380 = vadd.f32 %v1284, %v1066
  %v1381 = vadd.f32 %v1285, %v1068
  %v1382 = vadd.f32 %v1286, %v1072
  %v1383 = vadd.f32 %v1287, %v1074
  %v1384 = vadd.f32 %v1288, %v1078
  %v1385 = vadd.f32 %v1289, %v1080
  %v1386 = vadd.f32 %v1290, %v1084
  %v1387 = vadd.f32 %v1291, %v1086
  %v1388 = vadd.f32 %v1292, %v1090
  %v1389 = vadd.f32 %v1293, %v1092
  %v1390 = vadd.f32 %v1294, %v1096
  %v1391 = vadd.f32 %v1295, %v1098
  %v1392 = vadd.f32 %v1296, %v1102
  %v1393 = vadd.f32 %v1297, %v1104
  %v1394 = vadd.f32 %v1298, %v1108
  %v1395 = vadd.f32 %v1299, %v1110
  %v1396 = vadd.f32 %v1300, %v1114
  %v1397 = vadd.f32 %v1301, %v1116
  %v1398 = vadd.f32 %v1302, %v1120
  %v1399 = vadd.f32 %v1303, %v1122
  %v1400 = vadd.f32 %v1304, %v1126
  %v1401 = vadd.f32 %v1305, %v1128
  %v1402 = vadd.f32 %v1306, %v1132
  %v1403 = vadd.f32 %v1307, %v1134
  %v1404 = vadd.f32 %v1308, %v1138
  %v1405 = vadd.f32 %v1309, %v1140
  %v1406 = vadd.f32 %v1310, %v1144
  %v1407 = vadd.f32 %v1311, %v1146
  %v1408 = vadd.f32 %v1312, %v1150
  %v1409 = vadd.f32 %v1313, %v1152
  %v1410 = vadd.f32 %v1314, %v1156
  %v1411 = vadd.f32 %v1315, %v1158
  %v1412 = vadd.f32 %v1316, %v1162
  %v1413 = vadd.f32 %v1317, %v1164
  %v1414 = vadd.f32 %v1318, %v1168
  %v1415 = vadd.f32 %v1319, %v1170
  %v1416 = vadd.f32 %v1320, %v1174
  %v1417 = vadd.f32 %v1321, %v1176
  %v1418 = vadd.f32 %v1322, %v1180
  %v1419 = vadd.f32 %v1323, %v1182
  %v1420 = vadd.f32 %v1324, %v1186
  %v1421 = vadd.f32 %v1325, %v1188
  %v1422 = vadd.f32 %v1326, %v1192
  %v1423 = vadd.f32 %v1327, %v1194
  %v1424 = vadd.f32 %v1328, %v1198
  %v1425 = vadd.f32 %v1329, %v1200
  %v1426 = vadd.f32 %v1330, %v1204
  %v1427 = vadd.f32 %v1331, %v1206
  %v1428 = vadd.f32 %v1332, %v1210
  %v1429 = vadd.f32 %v1333, %v1212
  %v1430 = vadd.f32 %v1334, %v1216
  %v1431 = vadd.f32 %v1335, %v1218
  %v1432 = vadd.f32 %v1336, %v1222
  %v1433 = vadd.f32 %v1337, %v1224
  %v1434 = vadd.f32 %v1338, %v1228
  %v1435 = vadd.f32 %v1339, %v1230
  %v1436 = vadd.f32 %v1340, %v1234
  %v1437 = vadd.f32 %v1341, %v1236
  %v1438 = vadd.f32 %v1342, %v1240
  %v1439 = vadd.f32 %v1343, %v1242
  %v1440 = vadd.f32 %v1344, %v1246
  %v1441 = vadd.f32 %v1345, %v1248
  %1442 = vst [vmem:[#allocation2] sm:$0xff] %v1346
  %1443 = vst.msk [vmem:[#allocation2 + $0x8] sm:$0xff] %vm594, %v1347
  %1444 = vst [vmem:[#allocation2 + $0x10] sm:$0xff] %v1348
  %1445 = vst.msk [vmem:[#allocation2 + $0x18] sm:$0xff] %vm594, %v1349
  %1446 = vst [vmem:[#allocation2 + $0x20] sm:$0xff] %v1350
  %1447 = vst.msk [vmem:[#allocation2 + $0x28] sm:$0xff] %vm594, %v1351
  %1448 = vst [vmem:[#allocation2 + $0x30] sm:$0xff] %v1352
  %1449 = vst.msk [vmem:[#allocation2 + $0x38] sm:$0xff] %vm594, %v1353
  %1450 = vst [vmem:[#allocation2 + $0x40] sm:$0xff] %v1354
  %1451 = vst.msk [vmem:[#allocation2 + $0x48] sm:$0xff] %vm594, %v1355
  %1452 = vst [vmem:[#allocation2 + $0x50] sm:$0xff] %v1356
  %1453 = vst.msk [vmem:[#allocation2 + $0x58] sm:$0xff] %vm594, %v1357
  %1454 = vst [vmem:[#allocation2 + $0x60] sm:$0xff] %v1358
  %1455 = vst.msk [vmem:[#allocation2 + $0x68] sm:$0xff] %vm594, %v1359
  %1456 = vst [vmem:[#allocation2 + $0x70] sm:$0xff] %v1360
  %1457 = vst.msk [vmem:[#allocation2 + $0x78] sm:$0xff] %vm594, %v1361
  %1458 = vst [vmem:[#allocation2 + $0x80] sm:$0xff] %v1362
  %1459 = vst.msk [vmem:[#allocation2 + $0x88] sm:$0xff] %vm594, %v1363
  %1460 = vst [vmem:[#allocation2 + $0x90] sm:$0xff] %v1364
  %1461 = vst.msk [vmem:[#allocation2 + $0x98] sm:$0xff] %vm594, %v1365
  %1462 = vst [vmem:[#allocation2 + $0xa0] sm:$0xff] %v1366
  %1463 = vst.msk [vmem:[#allocation2 + $0xa8] sm:$0xff] %vm594, %v1367
  %1464 = vst [vmem:[#allocation2 + $0xb0] sm:$0xff] %v1368
  %1465 = vst.msk [vmem:[#allocation2 + $0xb8] sm:$0xff] %vm594, %v1369
  %1466 = vst [vmem:[#allocation2 + $0xc0] sm:$0xff] %v1370
  %1467 = vst.msk [vmem:[#allocation2 + $0xc8] sm:$0xff] %vm594, %v1371
  %1468 = vst [vmem:[#allocation2 + $0xd0] sm:$0xff] %v1372
  %1469 = vst.msk [vmem:[#allocation2 + $0xd8] sm:$0xff] %vm594, %v1373
  %1470 = vst [vmem:[#allocation2 + $0xe0] sm:$0xff] %v1374
  %1471 = vst.msk [vmem:[#allocation2 + $0xe8] sm:$0xff] %vm594, %v1375
  %1472 = vst [vmem:[#allocation2 + $0xf0] sm:$0xff] %v1376
  %1473 = vst.msk [vmem:[#allocation2 + $0xf8] sm:$0xff] %vm594, %v1377
  %1474 = vst [vmem:[#allocation2 + $0x100] sm:$0xff] %v1378
  %1475 = vst.msk [vmem:[#allocation2 + $0x108] sm:$0xff] %vm594, %v1379
  %1476 = vst [vmem:[#allocation2 + $0x110] sm:$0xff] %v1380
  %1477 = vst.msk [vmem:[#allocation2 + $0x118] sm:$0xff] %vm594, %v1381
  %1478 = vst [vmem:[#allocation2 + $0x120] sm:$0xff] %v1382
  %1479 = vst.msk [vmem:[#allocation2 + $0x128] sm:$0xff] %vm594, %v1383
  %1480 = vst [vmem:[#allocation2 + $0x130] sm:$0xff] %v1384
  %1481 = vst.msk [vmem:[#allocation2 + $0x138] sm:$0xff] %vm594, %v1385
  %1482 = vst [vmem:[#allocation2 + $0x140] sm:$0xff] %v1386
  %1483 = vst.msk [vmem:[#allocation2 + $0x148] sm:$0xff] %vm594, %v1387
  %1484 = vst [vmem:[#allocation2 + $0x150] sm:$0xff] %v1388
  %1485 = vst.msk [vmem:[#allocation2 + $0x158] sm:$0xff] %vm594, %v1389
  %1486 = vst [vmem:[#allocation2 + $0x160] sm:$0xff] %v1390
  %1487 = vst.msk [vmem:[#allocation2 + $0x168] sm:$0xff] %vm594, %v1391
  %1488 = vst [vmem:[#allocation2 + $0x170] sm:$0xff] %v1392
  %1489 = vst.msk [vmem:[#allocation2 + $0x178] sm:$0xff] %vm594, %v1393
  %1490 = vst [vmem:[#allocation2 + $0x180] sm:$0xff] %v1394
  %1491 = vst.msk [vmem:[#allocation2 + $0x188] sm:$0xff] %vm594, %v1395
  %1492 = vst [vmem:[#allocation2 + $0x190] sm:$0xff] %v1396
  %1493 = vst.msk [vmem:[#allocation2 + $0x198] sm:$0xff] %vm594, %v1397
  %1494 = vst [vmem:[#allocation2 + $0x1a0] sm:$0xff] %v1398
  %1495 = vst.msk [vmem:[#allocation2 + $0x1a8] sm:$0xff] %vm594, %v1399
  %1496 = vst [vmem:[#allocation2 + $0x1b0] sm:$0xff] %v1400
  %1497 = vst.msk [vmem:[#allocation2 + $0x1b8] sm:$0xff] %vm594, %v1401
  %1498 = vst [vmem:[#allocation2 + $0x1c0] sm:$0xff] %v1402
  %1499 = vst.msk [vmem:[#allocation2 + $0x1c8] sm:$0xff] %vm594, %v1403
  %1500 = vst [vmem:[#allocation2 + $0x1d0] sm:$0xff] %v1404
  %1501 = vst.msk [vmem:[#allocation2 + $0x1d8] sm:$0xff] %vm594, %v1405
  %1502 = vst [vmem:[#allocation2 + $0x1e0] sm:$0xff] %v1406
  %1503 = vst.msk [vmem:[#allocation2 + $0x1e8] sm:$0xff] %vm594, %v1407
  %1504 = vst [vmem:[#allocation2 + $0x1f0] sm:$0xff] %v1408
  %1505 = vst.msk [vmem:[#allocation2 + $0x1f8] sm:$0xff] %vm594, %v1409
  %1506 = vst [vmem:[#allocation2 + $0x200] sm:$0xff] %v1410
  %1507 = vst.msk [vmem:[#allocation2 + $0x208] sm:$0xff] %vm594, %v1411
  %1508 = vst [vmem:[#allocation2 + $0x210] sm:$0xff] %v1412
  %1509 = vst.msk [vmem:[#allocation2 + $0x218] sm:$0xff] %vm594, %v1413
  %1510 = vst [vmem:[#allocation2 + $0x220] sm:$0xff] %v1414
  %1511 = vst.msk [vmem:[#allocation2 + $0x228] sm:$0xff] %vm594, %v1415
  %1512 = vst [vmem:[#allocation2 + $0x230] sm:$0xff] %v1416
  %1513 = vst.msk [vmem:[#allocation2 + $0x238] sm:$0xff] %vm594, %v1417
  %1514 = vst [vmem:[#allocation2 + $0x240] sm:$0xff] %v1418
  %1515 = vst.msk [vmem:[#allocation2 + $0x248] sm:$0xff] %vm594, %v1419
  %1516 = vst [vmem:[#allocation2 + $0x250] sm:$0xff] %v1420
  %1517 = vst.msk [vmem:[#allocation2 + $0x258] sm:$0xff] %vm594, %v1421
  %1518 = vst [vmem:[#allocation2 + $0x260] sm:$0xff] %v1422
  %1519 = vst.msk [vmem:[#allocation2 + $0x268] sm:$0xff] %vm594, %v1423
  %1520 = vst [vmem:[#allocation2 + $0x270] sm:$0xff] %v1424
  %1521 = vst.msk [vmem:[#allocation2 + $0x278] sm:$0xff] %vm594, %v1425
  %1522 = vst [vmem:[#allocation2 + $0x280] sm:$0xff] %v1426
  %1523 = vst.msk [vmem:[#allocation2 + $0x288] sm:$0xff] %vm594, %v1427
  %1524 = vst [vmem:[#allocation2 + $0x290] sm:$0xff] %v1428
  %1525 = vst.msk [vmem:[#allocation2 + $0x298] sm:$0xff] %vm594, %v1429
  %1526 = vst [vmem:[#allocation2 + $0x2a0] sm:$0xff] %v1430
  %1527 = vst.msk [vmem:[#allocation2 + $0x2a8] sm:$0xff] %vm594, %v1431
  %1528 = vst [vmem:[#allocation2 + $0x2b0] sm:$0xff] %v1432
  %1529 = vst.msk [vmem:[#allocation2 + $0x2b8] sm:$0xff] %vm594, %v1433
  %1530 = vst [vmem:[#allocation2 + $0x2c0] sm:$0xff] %v1434
  %1531 = vst.msk [vmem:[#allocation2 + $0x2c8] sm:$0xff] %vm594, %v1435
  %1532 = vst [vmem:[#allocation2 + $0x2d0] sm:$0xff] %v1436
  %1533 = vst.msk [vmem:[#allocation2 + $0x2d8] sm:$0xff] %vm594, %v1437
  %1534 = vst [vmem:[#allocation2 + $0x2e0] sm:$0xff] %v1438
  %1535 = vst.msk [vmem:[#allocation2 + $0x2e8] sm:$0xff] %vm594, %v1439
  %1536 = vst [vmem:[#allocation2 + $0x2f0] sm:$0xff] %v1440
  %1537 = vst.msk [vmem:[#allocation2 + $0x2f8] sm:$0xff] %vm594, %v1441
  %v1538 = vld [vmem:[%s0 + $0x20] sm:$0xff]
  %v1539 = vld [vmem:[%s0 + $0x28] sm:$0xff]
  %v1540 = vld [vmem:[%s0 + $0x30] sm:$0xff]
  %v1541 = vld [vmem:[%s0 + $0x38] sm:$0xff]
  %v1542 = vld [vmem:[%s0 + $0x40] sm:$0xff]
  %v1543 = vld [vmem:[%s0 + $0x48] sm:$0xff]
  %v1544 = vld [vmem:[%s0 + $0x50] sm:$0xff]
  %v1545 = vld [vmem:[%s0 + $0x58] sm:$0xff]
  %v1546 = vld [vmem:[%s0 + $0x60] sm:$0xff]
  %v1547 = vld [vmem:[%s0 + $0x68] sm:$0xff]
  %v1548 = vld [vmem:[%s0 + $0x70] sm:$0xff]
  %v1549 = vld [vmem:[%s0 + $0x78] sm:$0xff]
  %v1550 = vld [vmem:[%s0 + $0x80] sm:$0xff]
  %v1551 = vld [vmem:[%s0 + $0x88] sm:$0xff]
  %v1552 = vld [vmem:[%s0 + $0x90] sm:$0xff]
  %v1553 = vld [vmem:[%s0 + $0x98] sm:$0xff]
  %v1554 = vld [vmem:[%s0 + $0xa0] sm:$0xff]
  %v1555 = vld [vmem:[%s0 + $0xa8] sm:$0xff]
  %v1556 = vld [vmem:[%s0 + $0xb0] sm:$0xff]
  %v1557 = vld [vmem:[%s0 + $0xb8] sm:$0xff]
  %v1558 = vld [vmem:[%s0 + $0xc0] sm:$0xff]
  %v1559 = vld [vmem:[%s0 + $0xc8] sm:$0xff]
  %v1560 = vld [vmem:[%s0 + $0xd0] sm:$0xff]
  %v1561 = vld [vmem:[%s0 + $0xd8] sm:$0xff]
  %v1562 = vld [vmem:[%s0 + $0xe0] sm:$0xff]
  %v1563 = vld [vmem:[%s0 + $0xe8] sm:$0xff]
  %v1564 = vld [vmem:[%s0 + $0xf0] sm:$0xff]
  %v1565 = vld [vmem:[%s0 + $0xf8] sm:$0xff]
  %v1566 = vld [vmem:[%s0 + $0x100] sm:$0xff]
  %v1567 = vld [vmem:[%s0 + $0x108] sm:$0xff]
  %v1568 = vld [vmem:[%s0 + $0x110] sm:$0xff]
  %v1569 = vld [vmem:[%s0 + $0x118] sm:$0xff]
  %v1570 = vld [vmem:[%s0 + $0x120] sm:$0xff]
  %v1571 = vld [vmem:[%s0 + $0x128] sm:$0xff]
  %v1572 = vld [vmem:[%s0 + $0x130] sm:$0xff]
  %v1573 = vld [vmem:[%s0 + $0x138] sm:$0xff]
  %v1574 = vld [vmem:[%s0 + $0x140] sm:$0xff]
  %v1575 = vld [vmem:[%s0 + $0x148] sm:$0xff]
  %v1576 = vld [vmem:[%s0 + $0x150] sm:$0xff]
  %v1577 = vld [vmem:[%s0 + $0x158] sm:$0xff]
  %v1578 = vld [vmem:[%s0 + $0x160] sm:$0xff]
  %v1579 = vld [vmem:[%s0 + $0x168] sm:$0xff]
  %v1580 = vld [vmem:[%s0 + $0x170] sm:$0xff]
  %v1581 = vld [vmem:[%s0 + $0x178] sm:$0xff]
  %v1582 = vld [vmem:[%s0 + $0x180] sm:$0xff]
  %v1583 = vld [vmem:[%s0 + $0x188] sm:$0xff]
  %v1584 = vld [vmem:[%s0 + $0x190] sm:$0xff]
  %v1585 = vld [vmem:[%s0 + $0x198] sm:$0xff]
  %s1586 = scalar_lea.vmem %s1, 128
  %v1587 = vld [vmem:[%s1586] sm:$0xff]
  %v1588 = vld [vmem:[%s1586 + $0x8] sm:$0xff]
  %v1589 = vld [vmem:[%s1586 + $0x10] sm:$0xff]
  %v1590 = vld [vmem:[%s1586 + $0x18] sm:$0xff]
  %v1591 = vld [vmem:[%s1586 + $0x20] sm:$0xff]
  %v1592 = vld [vmem:[%s1586 + $0x28] sm:$0xff]
  %v1593 = vld [vmem:[%s1586 + $0x30] sm:$0xf]
  %v1594 = vld [vmem:[%s1586 + $0x38] sm:$0xf]
  %v1596 = vsel %vm88, %v1538, 0
  %v1599 = vsel %vm88, %v1539, 0
  %v1602 = vsel %vm88, %v1540, 0
  %v1605 = vsel %vm88, %v1541, 0
  %v1608 = vsel %vm88, %v1542, 0
  %v1611 = vsel %vm88, %v1543, 0
  %v1614 = vsel %vm88, %v1544, 0
  %v1617 = vsel %vm88, %v1545, 0
  %v1620 = vsel %vm88, %v1546, 0
  %v1623 = vsel %vm88, %v1547, 0
  %v1626 = vsel %vm88, %v1548, 0
  %v1629 = vsel %vm88, %v1549, 0
  %v1632 = vsel %vm88, %v1550, 0
  %v1635 = vsel %vm88, %v1551, 0
  %v1638 = vsel %vm88, %v1552, 0
  %v1641 = vsel %vm88, %v1553, 0
  %v1644 = vsel %vm88, %v1554, 0
  %v1647 = vsel %vm88, %v1555, 0
  %v1650 = vsel %vm88, %v1556, 0
  %v1653 = vsel %vm88, %v1557, 0
  %v1656 = vsel %vm88, %v1558, 0
  %v1659 = vsel %vm88, %v1559, 0
  %v1662 = vsel %vm88, %v1560, 0
  %v1665 = vsel %vm88, %v1561, 0
  %v1668 = vsel %vm88, %v1562, 0
  %v1671 = vsel %vm88, %v1563, 0
  %v1674 = vsel %vm88, %v1564, 0
  %v1677 = vsel %vm88, %v1565, 0
  %v1680 = vsel %vm88, %v1566, 0
  %v1683 = vsel %vm88, %v1567, 0
  %v1686 = vsel %vm88, %v1568, 0
  %v1689 = vsel %vm88, %v1569, 0
  %v1692 = vsel %vm88, %v1570, 0
  %v1695 = vsel %vm88, %v1571, 0
  %v1698 = vsel %vm88, %v1572, 0
  %v1701 = vsel %vm88, %v1573, 0
  %v1704 = vsel %vm88, %v1574, 0
  %v1707 = vsel %vm88, %v1575, 0
  %v1710 = vsel %vm88, %v1576, 0
  %v1713 = vsel %vm88, %v1577, 0
  %v1716 = vsel %vm88, %v1578, 0
  %v1719 = vsel %vm88, %v1579, 0
  %v1722 = vsel %vm88, %v1580, 0
  %v1725 = vsel %vm88, %v1581, 0
  %v1728 = vsel %vm88, %v1582, 0
  %v1731 = vsel %vm88, %v1583, 0
  %v1734 = vsel %vm88, %v1584, 0
  %v1737 = vsel %vm88, %v1585, 0
  %v1740 = vsel %vm233, %v1593, 0
  %v1743 = vsel %vm233, %v1594, 0
  %1745 = vmatprep.subr.mxu0 %v1588
  %1746 = vmatpush1.msra.mxu0 %v1587
  %1747 = vmatprep.subr.mxu0 %v1590
  %1748 = vmatpush1.msra.mxu0 %v1589
  %1749 = vmatprep.subr.mxu0 %v1592
  %1750 = vmatpush1.msra.mxu0 %v1591
  %1751 = vmatprep.subr.mxu0 %v1743
  %1752 = vmatpush1.msra.mxu0 %v1740
  %1753 = vmatprep.subr.mxu0 0.0
  %1754 = vmatpush1.msra.mxu0 0.0
  %1755 = vmatprep.subr.mxu0 0.0
  %1756 = vmatpush1.msra.mxu0 0.0
  %1757 = vmatprep.subr.mxu0 0.0
  %1758 = vmatpush1.msra.mxu0 0.0
  %1759 = vmatprep.subr.mxu0 0.0
  %1760 = vmatpush1.msra.mxu0 0.0
  %1761 = vmatprep.subr.mxu0 0.0
  %1762 = vmatpush1.msra.mxu0 0.0
  %1763 = vmatprep.subr.mxu0 0.0
  %1764 = vmatpush1.msra.mxu0 0.0
  %1765 = vmatprep.subr.mxu0 0.0
  %1766 = vmatpush1.msra.mxu0 0.0
  %1767 = vmatprep.subr.mxu0 0.0
  %1768 = vmatpush1.msra.mxu0 0.0
  %1769 = vmatprep.subr.mxu0 0.0
  %1770 = vmatpush1.msra.mxu0 0.0
  %1771 = vmatprep.subr.mxu0 0.0
  %1772 = vmatpush1.msra.mxu0 0.0
  %1773 = vmatprep.subr.mxu0 0.0
  %1774 = vmatpush1.msra.mxu0 0.0
  %1775 = vmatprep.subr.mxu0 0.0
  %1776 = vmatpush1.msra.mxu0 0.0
  %1777 = vmatprep.subr.mxu0 0.0
  %1778 = vmatpush1.msra.mxu0 0.0
  %1779 = vmatprep.subr.mxu0 0.0
  %1780 = vmatpush1.msra.mxu0 0.0
  %1781 = vmatprep.subr.mxu0 0.0
  %1782 = vmatpush1.msra.mxu0 0.0
  %1783 = vmatprep.subr.mxu0 0.0
  %1784 = vmatpush1.msra.mxu0 0.0
  %1785 = vmatprep.subr.mxu0 0.0
  %1786 = vmatpush1.msra.mxu0 0.0
  %1787 = vmatprep.subr.mxu0 0.0
  %1788 = vmatpush1.msra.mxu0 0.0
  %1789 = vmatprep.subr.mxu0 0.0
  %1790 = vmatpush1.msra.mxu0 0.0
  %1791 = vmatprep.subr.mxu0 0.0
  %1792 = vmatpush1.msra.mxu0 0.0
  %1793 = vmatprep.subr.mxu0 0.0
  %1794 = vmatpush1.msra.mxu0 0.0
  %1795 = vmatprep.subr.mxu0 0.0
  %1796 = vmatpush1.msra.mxu0 0.0
  %1797 = vmatprep.subr.mxu0 0.0
  %1798 = vmatpush1.msra.mxu0 0.0
  %1799 = vmatprep.subr.mxu0 0.0
  %1800 = vmatpush1.msra.mxu0 0.0
  %1801 = vmatprep.subr.mxu0 0.0
  %1802 = vmatpush1.msra.mxu0 0.0
  %1803 = vmatprep.subr.mxu0 0.0
  %1804 = vmatpush1.msra.mxu0 0.0
  %1805 = vmatprep.subr.mxu0 0.0
  %1806 = vmatpush1.msra.mxu0 0.0
  %1807 = vmatprep.subr.mxu0 0.0
  %1808 = vmatpush1.msra.mxu0 0.0
  %1809 = vmatprep.mubr.f32.mxu0 0.0
  %1810 = vmatmul.mubr.f32.gmra.mrb[0].mxu0 %v1596
  %v1811 = vpop.f32.mrb[0].mxu0
  %v1812 = vadd.f32 0.0, %v1811
  %v1813 = vpop.f32.mrb[0].mxu0
  %v1814 = vadd.f32 0.0, %v1813
  %1815 = vmatprep.mubr.f32.mxu0 0.0
  %1816 = vmatmul.mubr.f32.gmra.mrb[0].mxu0 %v1599
  %v1817 = vpop.f32.mrb[0].mxu0
  %v1818 = vadd.f32 0.0, %v1817
  %v1819 = vpop.f32.mrb[0].mxu0
  %v1820 = vadd.f32 0.0, %v1819
  %1821 = vmatprep.mubr.f32.mxu0 0.0
  %1822 = vmatmul.mubr.f32.gmra.mrb[0].mxu0 %v1602
  %v1823 = vpop.f32.mrb[0].mxu0
  %v1824 = vadd.f32 0.0, %v1823
  %v1825 = vpop.f32.mrb[0].mxu0
  %v1826 = vadd.f32 0.0, %v1825
  %1827 = vmatprep.mubr.f32.mxu0 0.0
  %1828 = vmatmul.mubr.f32.gmra.mrb[0].mxu0 %v1605
  %v1829 = vpop.f32.mrb[0].mxu0
  %v1830 = vadd.f32 0.0, %v1829
  %v1831 = vpop.f32.mrb[0].mxu0
  %v1832 = vadd.f32 0.0, %v1831
  %1833 = vmatprep.mubr.f32.mxu0 0.0
  %1834 = vmatmul.mubr.f32.gmra.mrb[0].mxu0 %v1608
  %v1835 = vpop.f32.mrb[0].mxu0
  %v1836 = vadd.f32 0.0, %v1835
  %v1837 = vpop.f32.mrb[0].mxu0
  %v1838 = vadd.f32 0.0, %v1837
  %1839 = vmatprep.mubr.f32.mxu0 0.0
  %1840 = vmatmul.mubr.f32.gmra.mrb[0].mxu0 %v1611
  %v1841 = vpop.f32.mrb[0].mxu0
  %v1842 = vadd.f32 0.0, %v1841
  %v1843 = vpop.f32.mrb[0].mxu0
  %v1844 = vadd.f32 0.0, %v1843
  %1845 = vmatprep.mubr.f32.mxu0 0.0
  %1846 = vmatmul.mubr.f32.gmra.mrb[0].mxu0 %v1614
  %v1847 = vpop.f32.mrb[0].mxu0
  %v1848 = vadd.f32 0.0, %v1847
  %v1849 = vpop.f32.mrb[0].mxu0
  %v1850 = vadd.f32 0.0, %v1849
  %1851 = vmatprep.mubr.f32.mxu0 0.0
  %1852 = vmatmul.mubr.f32.gmra.mrb[0].mxu0 %v1617
  %v1853 = vpop.f32.mrb[0].mxu0
  %v1854 = vadd.f32 0.0, %v1853
  %v1855 = vpop.f32.mrb[0].mxu0
  %v1856 = vadd.f32 0.0, %v1855
  %1857 = vmatprep.mubr.f32.mxu0 0.0
  %1858 = vmatmul.mubr.f32.gmra.mrb[0].mxu0 %v1620
  %v1859 = vpop.f32.mrb[0].mxu0
  %v1860 = vadd.f32 0.0, %v1859
  %v1861 = vpop.f32.mrb[0].mxu0
  %v1862 = vadd.f32 0.0, %v1861
  %1863 = vmatprep.mubr.f32.mxu0 0.0
  %1864 = vmatmul.mubr.f32.gmra.mrb[0].mxu0 %v1623
  %v1865 = vpop.f32.mrb[0].mxu0
  %v1866 = vadd.f32 0.0, %v1865
  %v1867 = vpop.f32.mrb[0].mxu0
  %v1868 = vadd.f32 0.0, %v1867
  %1869 = vmatprep.mubr.f32.mxu0 0.0
  %1870 = vmatmul.mubr.f32.gmra.mrb[0].mxu0 %v1626
  %v1871 = vpop.f32.mrb[0].mxu0
  %v1872 = vadd.f32 0.0, %v1871
  %v1873 = vpop.f32.mrb[0].mxu0
  %v1874 = vadd.f32 0.0, %v1873
  %1875 = vmatprep.mubr.f32.mxu0 0.0
  %1876 = vmatmul.mubr.f32.gmra.mrb[0].mxu0 %v1629
  %v1877 = vpop.f32.mrb[0].mxu0
  %v1878 = vadd.f32 0.0, %v1877
  %v1879 = vpop.f32.mrb[0].mxu0
  %v1880 = vadd.f32 0.0, %v1879
  %1881 = vmatprep.mubr.f32.mxu0 0.0
  %1882 = vmatmul.mubr.f32.gmra.mrb[0].mxu0 %v1632
  %v1883 = vpop.f32.mrb[0].mxu0
  %v1884 = vadd.f32 0.0, %v1883
  %v1885 = vpop.f32.mrb[0].mxu0
  %v1886 = vadd.f32 0.0, %v1885
  %1887 = vmatprep.mubr.f32.mxu0 0.0
  %1888 = vmatmul.mubr.f32.gmra.mrb[0].mxu0 %v1635
  %v1889 = vpop.f32.mrb[0].mxu0
  %v1890 = vadd.f32 0.0, %v1889
  %v1891 = vpop.f32.mrb[0].mxu0
  %v1892 = vadd.f32 0.0, %v1891
  %1893 = vmatprep.mubr.f32.mxu0 0.0
  %1894 = vmatmul.mubr.f32.gmra.mrb[0].mxu0 %v1638
  %v1895 = vpop.f32.mrb[0].mxu0
  %v1896 = vadd.f32 0.0, %v1895
  %v1897 = vpop.f32.mrb[0].mxu0
  %v1898 = vadd.f32 0.0, %v1897
  %1899 = vmatprep.mubr.f32.mxu0 0.0
  %1900 = vmatmul.mubr.f32.gmra.mrb[0].mxu0 %v1641
  %v1901 = vpop.f32.mrb[0].mxu0
  %v1902 = vadd.f32 0.0, %v1901
  %v1903 = vpop.f32.mrb[0].mxu0
  %v1904 = vadd.f32 0.0, %v1903
  %1905 = vmatprep.mubr.f32.mxu0 0.0
  %1906 = vmatmul.mubr.f32.gmra.mrb[0].mxu0 %v1644
  %v1907 = vpop.f32.mrb[0].mxu0
  %v1908 = vadd.f32 0.0, %v1907
  %v1909 = vpop.f32.mrb[0].mxu0
  %v1910 = vadd.f32 0.0, %v1909
  %1911 = vmatprep.mubr.f32.mxu0 0.0
  %1912 = vmatmul.mubr.f32.gmra.mrb[0].mxu0 %v1647
  %v1913 = vpop.f32.mrb[0].mxu0
  %v1914 = vadd.f32 0.0, %v1913
  %v1915 = vpop.f32.mrb[0].mxu0
  %v1916 = vadd.f32 0.0, %v1915
  %1917 = vmatprep.mubr.f32.mxu0 0.0
  %1918 = vmatmul.mubr.f32.gmra.mrb[0].mxu0 %v1650
  %v1919 = vpop.f32.mrb[0].mxu0
  %v1920 = vadd.f32 0.0, %v1919
  %v1921 = vpop.f32.mrb[0].mxu0
  %v1922 = vadd.f32 0.0, %v1921
  %1923 = vmatprep.mubr.f32.mxu0 0.0
  %1924 = vmatmul.mubr.f32.gmra.mrb[0].mxu0 %v1653
  %v1925 = vpop.f32.mrb[0].mxu0
  %v1926 = vadd.f32 0.0, %v1925
  %v1927 = vpop.f32.mrb[0].mxu0
  %v1928 = vadd.f32 0.0, %v1927
  %1929 = vmatprep.mubr.f32.mxu0 0.0
  %1930 = vmatmul.mubr.f32.gmra.mrb[0].mxu0 %v1656
  %v1931 = vpop.f32.mrb[0].mxu0
  %v1932 = vadd.f32 0.0, %v1931
  %v1933 = vpop.f32.mrb[0].mxu0
  %v1934 = vadd.f32 0.0, %v1933
  %1935 = vmatprep.mubr.f32.mxu0 0.0
  %1936 = vmatmul.mubr.f32.gmra.mrb[0].mxu0 %v1659
  %v1937 = vpop.f32.mrb[0].mxu0
  %v1938 = vadd.f32 0.0, %v1937
  %v1939 = vpop.f32.mrb[0].mxu0
  %v1940 = vadd.f32 0.0, %v1939
  %1941 = vmatprep.mubr.f32.mxu0 0.0
  %1942 = vmatmul.mubr.f32.gmra.mrb[0].mxu0 %v1662
  %v1943 = vpop.f32.mrb[0].mxu0
  %v1944 = vadd.f32 0.0, %v1943
  %v1945 = vpop.f32.mrb[0].mxu0
  %v1946 = vadd.f32 0.0, %v1945
  %1947 = vmatprep.mubr.f32.mxu0 0.0
  %1948 = vmatmul.mubr.f32.gmra.mrb[0].mxu0 %v1665
  %v1949 = vpop.f32.mrb[0].mxu0
  %v1950 = vadd.f32 0.0, %v1949
  %v1951 = vpop.f32.mrb[0].mxu0
  %v1952 = vadd.f32 0.0, %v1951
  %1953 = vmatprep.mubr.f32.mxu0 0.0
  %1954 = vmatmul.mubr.f32.gmra.mrb[0].mxu0 %v1668
  %v1955 = vpop.f32.mrb[0].mxu0
  %v1956 = vadd.f32 0.0, %v1955
  %v1957 = vpop.f32.mrb[0].mxu0
  %v1958 = vadd.f32 0.0, %v1957
  %1959 = vmatprep.mubr.f32.mxu0 0.0
  %1960 = vmatmul.mubr.f32.gmra.mrb[0].mxu0 %v1671
  %v1961 = vpop.f32.mrb[0].mxu0
  %v1962 = vadd.f32 0.0, %v1961
  %v1963 = vpop.f32.mrb[0].mxu0
  %v1964 = vadd.f32 0.0, %v1963
  %1965 = vmatprep.mubr.f32.mxu0 0.0
  %1966 = vmatmul.mubr.f32.gmra.mrb[0].mxu0 %v1674
  %v1967 = vpop.f32.mrb[0].mxu0
  %v1968 = vadd.f32 0.0, %v1967
  %v1969 = vpop.f32.mrb[0].mxu0
  %v1970 = vadd.f32 0.0, %v1969
  %1971 = vmatprep.mubr.f32.mxu0 0.0
  %1972 = vmatmul.mubr.f32.gmra.mrb[0].mxu0 %v1677
  %v1973 = vpop.f32.mrb[0].mxu0
  %v1974 = vadd.f32 0.0, %v1973
  %v1975 = vpop.f32.mrb[0].mxu0
  %v1976 = vadd.f32 0.0, %v1975
  %1977 = vmatprep.mubr.f32.mxu0 0.0
  %1978 = vmatmul.mubr.f32.gmra.mrb[0].mxu0 %v1680
  %v1979 = vpop.f32.mrb[0].mxu0
  %v1980 = vadd.f32 0.0, %v1979
  %v1981 = vpop.f32.mrb[0].mxu0
  %v1982 = vadd.f32 0.0, %v1981
  %1983 = vmatprep.mubr.f32.mxu0 0.0
  %1984 = vmatmul.mubr.f32.gmra.mrb[0].mxu0 %v1683
  %v1985 = vpop.f32.mrb[0].mxu0
  %v1986 = vadd.f32 0.0, %v1985
  %v1987 = vpop.f32.mrb[0].mxu0
  %v1988 = vadd.f32 0.0, %v1987
  %1989 = vmatprep.mubr.f32.mxu0 0.0
  %1990 = vmatmul.mubr.f32.gmra.mrb[0].mxu0 %v1686
  %v1991 = vpop.f32.mrb[0].mxu0
  %v1992 = vadd.f32 0.0, %v1991
  %v1993 = vpop.f32.mrb[0].mxu0
  %v1994 = vadd.f32 0.0, %v1993
  %1995 = vmatprep.mubr.f32.mxu0 0.0
  %1996 = vmatmul.mubr.f32.gmra.mrb[0].mxu0 %v1689
  %v1997 = vpop.f32.mrb[0].mxu0
  %v1998 = vadd.f32 0.0, %v1997
  %v1999 = vpop.f32.mrb[0].mxu0
  %v2000 = vadd.f32 0.0, %v1999
  %2001 = vmatprep.mubr.f32.mxu0 0.0
  %2002 = vmatmul.mubr.f32.gmra.mrb[0].mxu0 %v1692
  %v2003 = vpop.f32.mrb[0].mxu0
  %v2004 = vadd.f32 0.0, %v2003
  %v2005 = vpop.f32.mrb[0].mxu0
  %v2006 = vadd.f32 0.0, %v2005
  %2007 = vmatprep.mubr.f32.mxu0 0.0
  %2008 = vmatmul.mubr.f32.gmra.mrb[0].mxu0 %v1695
  %v2009 = vpop.f32.mrb[0].mxu0
  %v2010 = vadd.f32 0.0, %v2009
  %v2011 = vpop.f32.mrb[0].mxu0
  %v2012 = vadd.f32 0.0, %v2011
  %2013 = vmatprep.mubr.f32.mxu0 0.0
  %2014 = vmatmul.mubr.f32.gmra.mrb[0].mxu0 %v1698
  %v2015 = vpop.f32.mrb[0].mxu0
  %v2016 = vadd.f32 0.0, %v2015
  %v2017 = vpop.f32.mrb[0].mxu0
  %v2018 = vadd.f32 0.0, %v2017
  %2019 = vmatprep.mubr.f32.mxu0 0.0
  %2020 = vmatmul.mubr.f32.gmra.mrb[0].mxu0 %v1701
  %v2021 = vpop.f32.mrb[0].mxu0
  %v2022 = vadd.f32 0.0, %v2021
  %v2023 = vpop.f32.mrb[0].mxu0
  %v2024 = vadd.f32 0.0, %v2023
  %2025 = vmatprep.mubr.f32.mxu0 0.0
  %2026 = vmatmul.mubr.f32.gmra.mrb[0].mxu0 %v1704
  %v2027 = vpop.f32.mrb[0].mxu0
  %v2028 = vadd.f32 0.0, %v2027
  %v2029 = vpop.f32.mrb[0].mxu0
  %v2030 = vadd.f32 0.0, %v2029
  %2031 = vmatprep.mubr.f32.mxu0 0.0
  %2032 = vmatmul.mubr.f32.gmra.mrb[0].mxu0 %v1707
  %v2033 = vpop.f32.mrb[0].mxu0
  %v2034 = vadd.f32 0.0, %v2033
  %v2035 = vpop.f32.mrb[0].mxu0
  %v2036 = vadd.f32 0.0, %v2035
  %2037 = vmatprep.mubr.f32.mxu0 0.0
  %2038 = vmatmul.mubr.f32.gmra.mrb[0].mxu0 %v1710
  %v2039 = vpop.f32.mrb[0].mxu0
  %v2040 = vadd.f32 0.0, %v2039
  %v2041 = vpop.f32.mrb[0].mxu0
  %v2042 = vadd.f32 0.0, %v2041
  %2043 = vmatprep.mubr.f32.mxu0 0.0
  %2044 = vmatmul.mubr.f32.gmra.mrb[0].mxu0 %v1713
  %v2045 = vpop.f32.mrb[0].mxu0
  %v2046 = vadd.f32 0.0, %v2045
  %v2047 = vpop.f32.mrb[0].mxu0
  %v2048 = vadd.f32 0.0, %v2047
  %2049 = vmatprep.mubr.f32.mxu0 0.0
  %2050 = vmatmul.mubr.f32.gmra.mrb[0].mxu0 %v1716
  %v2051 = vpop.f32.mrb[0].mxu0
  %v2052 = vadd.f32 0.0, %v2051
  %v2053 = vpop.f32.mrb[0].mxu0
  %v2054 = vadd.f32 0.0, %v2053
  %2055 = vmatprep.mubr.f32.mxu0 0.0
  %2056 = vmatmul.mubr.f32.gmra.mrb[0].mxu0 %v1719
  %v2057 = vpop.f32.mrb[0].mxu0
  %v2058 = vadd.f32 0.0, %v2057
  %v2059 = vpop.f32.mrb[0].mxu0
  %v2060 = vadd.f32 0.0, %v2059
  %2061 = vmatprep.mubr.f32.mxu0 0.0
  %2062 = vmatmul.mubr.f32.gmra.mrb[0].mxu0 %v1722
  %v2063 = vpop.f32.mrb[0].mxu0
  %v2064 = vadd.f32 0.0, %v2063
  %v2065 = vpop.f32.mrb[0].mxu0
  %v2066 = vadd.f32 0.0, %v2065
  %2067 = vmatprep.mubr.f32.mxu0 0.0
  %2068 = vmatmul.mubr.f32.gmra.mrb[0].mxu0 %v1725
  %v2069 = vpop.f32.mrb[0].mxu0
  %v2070 = vadd.f32 0.0, %v2069
  %v2071 = vpop.f32.mrb[0].mxu0
  %v2072 = vadd.f32 0.0, %v2071
  %2073 = vmatprep.mubr.f32.mxu0 0.0
  %2074 = vmatmul.mubr.f32.gmra.mrb[0].mxu0 %v1728
  %v2075 = vpop.f32.mrb[0].mxu0
  %v2076 = vadd.f32 0.0, %v2075
  %v2077 = vpop.f32.mrb[0].mxu0
  %v2078 = vadd.f32 0.0, %v2077
  %2079 = vmatprep.mubr.f32.mxu0 0.0
  %2080 = vmatmul.mubr.f32.gmra.mrb[0].mxu0 %v1731
  %v2081 = vpop.f32.mrb[0].mxu0
  %v2082 = vadd.f32 0.0, %v2081
  %v2083 = vpop.f32.mrb[0].mxu0
  %v2084 = vadd.f32 0.0, %v2083
  %2085 = vmatprep.mubr.f32.mxu0 0.0
  %2086 = vmatmul.mubr.f32.gmra.mrb[0].mxu0 %v1734
  %v2087 = vpop.f32.mrb[0].mxu0
  %v2088 = vadd.f32 0.0, %v2087
  %v2089 = vpop.f32.mrb[0].mxu0
  %v2090 = vadd.f32 0.0, %v2089
  %2091 = vmatprep.mubr.f32.mxu0 0.0
  %2092 = vmatmul.mubr.f32.gmra.mrb[0].mxu0 %v1737
  %v2093 = vpop.f32.mrb[0].mxu0
  %v2094 = vadd.f32 0.0, %v2093
  %v2095 = vpop.f32.mrb[0].mxu0
  %v2096 = vadd.f32 0.0, %v2095
  %2097 = vdwg.mxu0
  %v2098 = vld [vmem:[#allocation2] sm:$0xff]
  %v2099 = vld [vmem:[#allocation2 + $0x8] sm:$0xff]
  %v2100 = vld [vmem:[#allocation2 + $0x10] sm:$0xff]
  %v2101 = vld [vmem:[#allocation2 + $0x18] sm:$0xff]
  %v2102 = vld [vmem:[#allocation2 + $0x20] sm:$0xff]
  %v2103 = vld [vmem:[#allocation2 + $0x28] sm:$0xff]
  %v2104 = vld [vmem:[#allocation2 + $0x30] sm:$0xff]
  %v2105 = vld [vmem:[#allocation2 + $0x38] sm:$0xff]
  %v2106 = vld [vmem:[#allocation2 + $0x40] sm:$0xff]
  %v2107 = vld [vmem:[#allocation2 + $0x48] sm:$0xff]
  %v2108 = vld [vmem:[#allocation2 + $0x50] sm:$0xff]
  %v2109 = vld [vmem:[#allocation2 + $0x58] sm:$0xff]
  %v2110 = vld [vmem:[#allocation2 + $0x60] sm:$0xff]
  %v2111 = vld [vmem:[#allocation2 + $0x68] sm:$0xff]
  %v2112 = vld [vmem:[#allocation2 + $0x70] sm:$0xff]
  %v2113 = vld [vmem:[#allocation2 + $0x78] sm:$0xff]
  %v2114 = vld [vmem:[#allocation2 + $0x80] sm:$0xff]
  %v2115 = vld [vmem:[#allocation2 + $0x88] sm:$0xff]
  %v2116 = vld [vmem:[#allocation2 + $0x90] sm:$0xff]
  %v2117 = vld [vmem:[#allocation2 + $0x98] sm:$0xff]
  %v2118 = vld [vmem:[#allocation2 + $0xa0] sm:$0xff]
  %v2119 = vld [vmem:[#allocation2 + $0xa8] sm:$0xff]
  %v2120 = vld [vmem:[#allocation2 + $0xb0] sm:$0xff]
  %v2121 = vld [vmem:[#allocation2 + $0xb8] sm:$0xff]
  %v2122 = vld [vmem:[#allocation2 + $0xc0] sm:$0xff]
  %v2123 = vld [vmem:[#allocation2 + $0xc8] sm:$0xff]
  %v2124 = vld [vmem:[#allocation2 + $0xd0] sm:$0xff]
  %v2125 = vld [vmem:[#allocation2 + $0xd8] sm:$0xff]
  %v2126 = vld [vmem:[#allocation2 + $0xe0] sm:$0xff]
  %v2127 = vld [vmem:[#allocation2 + $0xe8] sm:$0xff]
  %v2128 = vld [vmem:[#allocation2 + $0xf0] sm:$0xff]
  %v2129 = vld [vmem:[#allocation2 + $0xf8] sm:$0xff]
  %v2130 = vld [vmem:[#allocation2 + $0x100] sm:$0xff]
  %v2131 = vld [vmem:[#allocation2 + $0x108] sm:$0xff]
  %v2132 = vld [vmem:[#allocation2 + $0x110] sm:$0xff]
  %v2133 = vld [vmem:[#allocation2 + $0x118] sm:$0xff]
  %v2134 = vld [vmem:[#allocation2 + $0x120] sm:$0xff]
  %v2135 = vld [vmem:[#allocation2 + $0x128] sm:$0xff]
  %v2136 = vld [vmem:[#allocation2 + $0x130] sm:$0xff]
  %v2137 = vld [vmem:[#allocation2 + $0x138] sm:$0xff]
  %v2138 = vld [vmem:[#allocation2 + $0x140] sm:$0xff]
  %v2139 = vld [vmem:[#allocation2 + $0x148] sm:$0xff]
  %v2140 = vld [vmem:[#allocation2 + $0x150] sm:$0xff]
  %v2141 = vld [vmem:[#allocation2 + $0x158] sm:$0xff]
  %v2142 = vld [vmem:[#allocation2 + $0x160] sm:$0xff]
  %v2143 = vld [vmem:[#allocation2 + $0x168] sm:$0xff]
  %v2144 = vld [vmem:[#allocation2 + $0x170] sm:$0xff]
  %v2145 = vld [vmem:[#allocation2 + $0x178] sm:$0xff]
  %v2146 = vld [vmem:[#allocation2 + $0x180] sm:$0xff]
  %v2147 = vld [vmem:[#allocation2 + $0x188] sm:$0xff]
  %v2148 = vld [vmem:[#allocation2 + $0x190] sm:$0xff]
  %v2149 = vld [vmem:[#allocation2 + $0x198] sm:$0xff]
  %v2150 = vld [vmem:[#allocation2 + $0x1a0] sm:$0xff]
  %v2151 = vld [vmem:[#allocation2 + $0x1a8] sm:$0xff]
  %v2152 = vld [vmem:[#allocation2 + $0x1b0] sm:$0xff]
  %v2153 = vld [vmem:[#allocation2 + $0x1b8] sm:$0xff]
  %v2154 = vld [vmem:[#allocation2 + $0x1c0] sm:$0xff]
  %v2155 = vld [vmem:[#allocation2 + $0x1c8] sm:$0xff]
  %v2156 = vld [vmem:[#allocation2 + $0x1d0] sm:$0xff]
  %v2157 = vld [vmem:[#allocation2 + $0x1d8] sm:$0xff]
  %v2158 = vld [vmem:[#allocation2 + $0x1e0] sm:$0xff]
  %v2159 = vld [vmem:[#allocation2 + $0x1e8] sm:$0xff]
  %v2160 = vld [vmem:[#allocation2 + $0x1f0] sm:$0xff]
  %v2161 = vld [vmem:[#allocation2 + $0x1f8] sm:$0xff]
  %v2162 = vld [vmem:[#allocation2 + $0x200] sm:$0xff]
  %v2163 = vld [vmem:[#allocation2 + $0x208] sm:$0xff]
  %v2164 = vld [vmem:[#allocation2 + $0x210] sm:$0xff]
  %v2165 = vld [vmem:[#allocation2 + $0x218] sm:$0xff]
  %v2166 = vld [vmem:[#allocation2 + $0x220] sm:$0xff]
  %v2167 = vld [vmem:[#allocation2 + $0x228] sm:$0xff]
  %v2168 = vld [vmem:[#allocation2 + $0x230] sm:$0xff]
  %v2169 = vld [vmem:[#allocation2 + $0x238] sm:$0xff]
  %v2170 = vld [vmem:[#allocation2 + $0x240] sm:$0xff]
  %v2171 = vld [vmem:[#allocation2 + $0x248] sm:$0xff]
  %v2172 = vld [vmem:[#allocation2 + $0x250] sm:$0xff]
  %v2173 = vld [vmem:[#allocation2 + $0x258] sm:$0xff]
  %v2174 = vld [vmem:[#allocation2 + $0x260] sm:$0xff]
  %v2175 = vld [vmem:[#allocation2 + $0x268] sm:$0xff]
  %v2176 = vld [vmem:[#allocation2 + $0x270] sm:$0xff]
  %v2177 = vld [vmem:[#allocation2 + $0x278] sm:$0xff]
  %v2178 = vld [vmem:[#allocation2 + $0x280] sm:$0xff]
  %v2179 = vld [vmem:[#allocation2 + $0x288] sm:$0xff]
  %v2180 = vld [vmem:[#allocation2 + $0x290] sm:$0xff]
  %v2181 = vld [vmem:[#allocation2 + $0x298] sm:$0xff]
  %v2182 = vld [vmem:[#allocation2 + $0x2a0] sm:$0xff]
  %v2183 = vld [vmem:[#allocation2 + $0x2a8] sm:$0xff]
  %v2184 = vld [vmem:[#allocation2 + $0x2b0] sm:$0xff]
  %v2185 = vld [vmem:[#allocation2 + $0x2b8] sm:$0xff]
  %v2186 = vld [vmem:[#allocation2 + $0x2c0] sm:$0xff]
  %v2187 = vld [vmem:[#allocation2 + $0x2c8] sm:$0xff]
  %v2188 = vld [vmem:[#allocation2 + $0x2d0] sm:$0xff]
  %v2189 = vld [vmem:[#allocation2 + $0x2d8] sm:$0xff]
  %v2190 = vld [vmem:[#allocation2 + $0x2e0] sm:$0xff]
  %v2191 = vld [vmem:[#allocation2 + $0x2e8] sm:$0xff]
  %v2192 = vld [vmem:[#allocation2 + $0x2f0] sm:$0xff]
  %v2193 = vld [vmem:[#allocation2 + $0x2f8] sm:$0xff]
  %v2194 = vadd.f32 %v2098, %v1812
  %v2195 = vadd.f32 %v2099, %v1814
  %v2196 = vadd.f32 %v2100, %v1818
  %v2197 = vadd.f32 %v2101, %v1820
  %v2198 = vadd.f32 %v2102, %v1824
  %v2199 = vadd.f32 %v2103, %v1826
  %v2200 = vadd.f32 %v2104, %v1830
  %v2201 = vadd.f32 %v2105, %v1832
  %v2202 = vadd.f32 %v2106, %v1836
  %v2203 = vadd.f32 %v2107, %v1838
  %v2204 = vadd.f32 %v2108, %v1842
  %v2205 = vadd.f32 %v2109, %v1844
  %v2206 = vadd.f32 %v2110, %v1848
  %v2207 = vadd.f32 %v2111, %v1850
  %v2208 = vadd.f32 %v2112, %v1854
  %v2209 = vadd.f32 %v2113, %v1856
  %v2210 = vadd.f32 %v2114, %v1860
  %v2211 = vadd.f32 %v2115, %v1862
  %v2212 = vadd.f32 %v2116, %v1866
  %v2213 = vadd.f32 %v2117, %v1868
  %v2214 = vadd.f32 %v2118, %v1872
  %v2215 = vadd.f32 %v2119, %v1874
  %v2216 = vadd.f32 %v2120, %v1878
  %v2217 = vadd.f32 %v2121, %v1880
  %v2218 = vadd.f32 %v2122, %v1884
  %v2219 = vadd.f32 %v2123, %v1886
  %v2220 = vadd.f32 %v2124, %v1890
  %v2221 = vadd.f32 %v2125, %v1892
  %v2222 = vadd.f32 %v2126, %v1896
  %v2223 = vadd.f32 %v2127, %v1898
  %v2224 = vadd.f32 %v2128, %v1902
  %v2225 = vadd.f32 %v2129, %v1904
  %v2226 = vadd.f32 %v2130, %v1908
  %v2227 = vadd.f32 %v2131, %v1910
  %v2228 = vadd.f32 %v2132, %v1914
  %v2229 = vadd.f32 %v2133, %v1916
  %v2230 = vadd.f32 %v2134, %v1920
  %v2231 = vadd.f32 %v2135, %v1922
  %v2232 = vadd.f32 %v2136, %v1926
  %v2233 = vadd.f32 %v2137, %v1928
  %v2234 = vadd.f32 %v2138, %v1932
  %v2235 = vadd.f32 %v2139, %v1934
  %v2236 = vadd.f32 %v2140, %v1938
  %v2237 = vadd.f32 %v2141, %v1940
  %v2238 = vadd.f32 %v2142, %v1944
  %v2239 = vadd.f32 %v2143, %v1946
  %v2240 = vadd.f32 %v2144, %v1950
  %v2241 = vadd.f32 %v2145, %v1952
  %v2242 = vadd.f32 %v2146, %v1956
  %v2243 = vadd.f32 %v2147, %v1958
  %v2244 = vadd.f32 %v2148, %v1962
  %v2245 = vadd.f32 %v2149, %v1964
  %v2246 = vadd.f32 %v2150, %v1968
  %v2247 = vadd.f32 %v2151, %v1970
  %v2248 = vadd.f32 %v2152, %v1974
  %v2249 = vadd.f32 %v2153, %v1976
  %v2250 = vadd.f32 %v2154, %v1980
  %v2251 = vadd.f32 %v2155, %v1982
  %v2252 = vadd.f32 %v2156, %v1986
  %v2253 = vadd.f32 %v2157, %v1988
  %v2254 = vadd.f32 %v2158, %v1992
  %v2255 = vadd.f32 %v2159, %v1994
  %v2256 = vadd.f32 %v2160, %v1998
  %v2257 = vadd.f32 %v2161, %v2000
  %v2258 = vadd.f32 %v2162, %v2004
  %v2259 = vadd.f32 %v2163, %v2006
  %v2260 = vadd.f32 %v2164, %v2010
  %v2261 = vadd.f32 %v2165, %v2012
  %v2262 = vadd.f32 %v2166, %v2016
  %v2263 = vadd.f32 %v2167, %v2018
  %v2264 = vadd.f32 %v2168, %v2022
  %v2265 = vadd.f32 %v2169, %v2024
  %v2266 = vadd.f32 %v2170, %v2028
  %v2267 = vadd.f32 %v2171, %v2030
  %v2268 = vadd.f32 %v2172, %v2034
  %v2269 = vadd.f32 %v2173, %v2036
  %v2270 = vadd.f32 %v2174, %v2040
  %v2271 = vadd.f32 %v2175, %v2042
  %v2272 = vadd.f32 %v2176, %v2046
  %v2273 = vadd.f32 %v2177, %v2048
  %v2274 = vadd.f32 %v2178, %v2052
  %v2275 = vadd.f32 %v2179, %v2054
  %v2276 = vadd.f32 %v2180, %v2058
  %v2277 = vadd.f32 %v2181, %v2060
  %v2278 = vadd.f32 %v2182, %v2064
  %v2279 = vadd.f32 %v2183, %v2066
  %v2280 = vadd.f32 %v2184, %v2070
  %v2281 = vadd.f32 %v2185, %v2072
  %v2282 = vadd.f32 %v2186, %v2076
  %v2283 = vadd.f32 %v2187, %v2078
  %v2284 = vadd.f32 %v2188, %v2082
  %v2285 = vadd.f32 %v2189, %v2084
  %v2286 = vadd.f32 %v2190, %v2088
  %v2287 = vadd.f32 %v2191, %v2090
  %v2288 = vadd.f32 %v2192, %v2094
  %v2289 = vadd.f32 %v2193, %v2096
  %2290 = vst [vmem:[#allocation2] sm:$0xff] %v2194
  %2291 = vst.msk [vmem:[#allocation2 + $0x8] sm:$0xff] %vm594, %v2195
  %2292 = vst [vmem:[#allocation2 + $0x10] sm:$0xff] %v2196
  %2293 = vst.msk [vmem:[#allocation2 + $0x18] sm:$0xff] %vm594, %v2197
  %2294 = vst [vmem:[#allocation2 + $0x20] sm:$0xff] %v2198
  %2295 = vst.msk [vmem:[#allocation2 + $0x28] sm:$0xff] %vm594, %v2199
  %2296 = vst [vmem:[#allocation2 + $0x30] sm:$0xff] %v2200
  %2297 = vst.msk [vmem:[#allocation2 + $0x38] sm:$0xff] %vm594, %v2201
  %2298 = vst [vmem:[#allocation2 + $0x40] sm:$0xff] %v2202
  %2299 = vst.msk [vmem:[#allocation2 + $0x48] sm:$0xff] %vm594, %v2203
  %2300 = vst [vmem:[#allocation2 + $0x50] sm:$0xff] %v2204
  %2301 = vst.msk [vmem:[#allocation2 + $0x58] sm:$0xff] %vm594, %v2205
  %2302 = vst [vmem:[#allocation2 + $0x60] sm:$0xff] %v2206
  %2303 = vst.msk [vmem:[#allocation2 + $0x68] sm:$0xff] %vm594, %v2207
  %2304 = vst [vmem:[#allocation2 + $0x70] sm:$0xff] %v2208
  %2305 = vst.msk [vmem:[#allocation2 + $0x78] sm:$0xff] %vm594, %v2209
  %2306 = vst [vmem:[#allocation2 + $0x80] sm:$0xff] %v2210
  %2307 = vst.msk [vmem:[#allocation2 + $0x88] sm:$0xff] %vm594, %v2211
  %2308 = vst [vmem:[#allocation2 + $0x90] sm:$0xff] %v2212
  %2309 = vst.msk [vmem:[#allocation2 + $0x98] sm:$0xff] %vm594, %v2213
  %2310 = vst [vmem:[#allocation2 + $0xa0] sm:$0xff] %v2214
  %2311 = vst.msk [vmem:[#allocation2 + $0xa8] sm:$0xff] %vm594, %v2215
  %2312 = vst [vmem:[#allocation2 + $0xb0] sm:$0xff] %v2216
  %2313 = vst.msk [vmem:[#allocation2 + $0xb8] sm:$0xff] %vm594, %v2217
  %2314 = vst [vmem:[#allocation2 + $0xc0] sm:$0xff] %v2218
  %2315 = vst.msk [vmem:[#allocation2 + $0xc8] sm:$0xff] %vm594, %v2219
  %2316 = vst [vmem:[#allocation2 + $0xd0] sm:$0xff] %v2220
  %2317 = vst.msk [vmem:[#allocation2 + $0xd8] sm:$0xff] %vm594, %v2221
  %2318 = vst [vmem:[#allocation2 + $0xe0] sm:$0xff] %v2222
  %2319 = vst.msk [vmem:[#allocation2 + $0xe8] sm:$0xff] %vm594, %v2223
  %2320 = vst [vmem:[#allocation2 + $0xf0] sm:$0xff] %v2224
  %2321 = vst.msk [vmem:[#allocation2 + $0xf8] sm:$0xff] %vm594, %v2225
  %2322 = vst [vmem:[#allocation2 + $0x100] sm:$0xff] %v2226
  %2323 = vst.msk [vmem:[#allocation2 + $0x108] sm:$0xff] %vm594, %v2227
  %2324 = vst [vmem:[#allocation2 + $0x110] sm:$0xff] %v2228
  %2325 = vst.msk [vmem:[#allocation2 + $0x118] sm:$0xff] %vm594, %v2229
  %2326 = vst [vmem:[#allocation2 + $0x120] sm:$0xff] %v2230
  %2327 = vst.msk [vmem:[#allocation2 + $0x128] sm:$0xff] %vm594, %v2231
  %2328 = vst [vmem:[#allocation2 + $0x130] sm:$0xff] %v2232
  %2329 = vst.msk [vmem:[#allocation2 + $0x138] sm:$0xff] %vm594, %v2233
  %2330 = vst [vmem:[#allocation2 + $0x140] sm:$0xff] %v2234
  %2331 = vst.msk [vmem:[#allocation2 + $0x148] sm:$0xff] %vm594, %v2235
  %2332 = vst [vmem:[#allocation2 + $0x150] sm:$0xff] %v2236
  %2333 = vst.msk [vmem:[#allocation2 + $0x158] sm:$0xff] %vm594, %v2237
  %2334 = vst [vmem:[#allocation2 + $0x160] sm:$0xff] %v2238
  %2335 = vst.msk [vmem:[#allocation2 + $0x168] sm:$0xff] %vm594, %v2239
  %2336 = vst [vmem:[#allocation2 + $0x170] sm:$0xff] %v2240
  %2337 = vst.msk [vmem:[#allocation2 + $0x178] sm:$0xff] %vm594, %v2241
  %2338 = vst [vmem:[#allocation2 + $0x180] sm:$0xff] %v2242
  %2339 = vst.msk [vmem:[#allocation2 + $0x188] sm:$0xff] %vm594, %v2243
  %2340 = vst [vmem:[#allocation2 + $0x190] sm:$0xff] %v2244
  %2341 = vst.msk [vmem:[#allocation2 + $0x198] sm:$0xff] %vm594, %v2245
  %2342 = vst [vmem:[#allocation2 + $0x1a0] sm:$0xff] %v2246
  %2343 = vst.msk [vmem:[#allocation2 + $0x1a8] sm:$0xff] %vm594, %v2247
  %2344 = vst [vmem:[#allocation2 + $0x1b0] sm:$0xff] %v2248
  %2345 = vst.msk [vmem:[#allocation2 + $0x1b8] sm:$0xff] %vm594, %v2249
  %2346 = vst [vmem:[#allocation2 + $0x1c0] sm:$0xff] %v2250
  %2347 = vst.msk [vmem:[#allocation2 + $0x1c8] sm:$0xff] %vm594, %v2251
  %2348 = vst [vmem:[#allocation2 + $0x1d0] sm:$0xff] %v2252
  %2349 = vst.msk [vmem:[#allocation2 + $0x1d8] sm:$0xff] %vm594, %v2253
  %2350 = vst [vmem:[#allocation2 + $0x1e0] sm:$0xff] %v2254
  %2351 = vst.msk [vmem:[#allocation2 + $0x1e8] sm:$0xff] %vm594, %v2255
  %2352 = vst [vmem:[#allocation2 + $0x1f0] sm:$0xff] %v2256
  %2353 = vst.msk [vmem:[#allocation2 + $0x1f8] sm:$0xff] %vm594, %v2257
  %2354 = vst [vmem:[#allocation2 + $0x200] sm:$0xff] %v2258
  %2355 = vst.msk [vmem:[#allocation2 + $0x208] sm:$0xff] %vm594, %v2259
  %2356 = vst [vmem:[#allocation2 + $0x210] sm:$0xff] %v2260
  %2357 = vst.msk [vmem:[#allocation2 + $0x218] sm:$0xff] %vm594, %v2261
  %2358 = vst [vmem:[#allocation2 + $0x220] sm:$0xff] %v2262
  %2359 = vst.msk [vmem:[#allocation2 + $0x228] sm:$0xff] %vm594, %v2263
  %2360 = vst [vmem:[#allocation2 + $0x230] sm:$0xff] %v2264
  %2361 = vst.msk [vmem:[#allocation2 + $0x238] sm:$0xff] %vm594, %v2265
  %2362 = vst [vmem:[#allocation2 + $0x240] sm:$0xff] %v2266
  %2363 = vst.msk [vmem:[#allocation2 + $0x248] sm:$0xff] %vm594, %v2267
  %2364 = vst [vmem:[#allocation2 + $0x250] sm:$0xff] %v2268
  %2365 = vst.msk [vmem:[#allocation2 + $0x258] sm:$0xff] %vm594, %v2269
  %2366 = vst [vmem:[#allocation2 + $0x260] sm:$0xff] %v2270
  %2367 = vst.msk [vmem:[#allocation2 + $0x268] sm:$0xff] %vm594, %v2271
  %2368 = vst [vmem:[#allocation2 + $0x270] sm:$0xff] %v2272
  %2369 = vst.msk [vmem:[#allocation2 + $0x278] sm:$0xff] %vm594, %v2273
  %2370 = vst [vmem:[#allocation2 + $0x280] sm:$0xff] %v2274
  %2371 = vst.msk [vmem:[#allocation2 + $0x288] sm:$0xff] %vm594, %v2275
  %2372 = vst [vmem:[#allocation2 + $0x290] sm:$0xff] %v2276
  %2373 = vst.msk [vmem:[#allocation2 + $0x298] sm:$0xff] %vm594, %v2277
  %2374 = vst [vmem:[#allocation2 + $0x2a0] sm:$0xff] %v2278
  %2375 = vst.msk [vmem:[#allocation2 + $0x2a8] sm:$0xff] %vm594, %v2279
  %2376 = vst [vmem:[#allocation2 + $0x2b0] sm:$0xff] %v2280
  %2377 = vst.msk [vmem:[#allocation2 + $0x2b8] sm:$0xff] %vm594, %v2281
  %2378 = vst [vmem:[#allocation2 + $0x2c0] sm:$0xff] %v2282
  %2379 = vst.msk [vmem:[#allocation2 + $0x2c8] sm:$0xff] %vm594, %v2283
  %2380 = vst [vmem:[#allocation2 + $0x2d0] sm:$0xff] %v2284
  %2381 = vst.msk [vmem:[#allocation2 + $0x2d8] sm:$0xff] %vm594, %v2285
  %2382 = vst [vmem:[#allocation2 + $0x2e0] sm:$0xff] %v2286
  %2383 = vst.msk [vmem:[#allocation2 + $0x2e8] sm:$0xff] %vm594, %v2287
  %2384 = vst [vmem:[#allocation2 + $0x2f0] sm:$0xff] %v2288
  %2385 = vst.msk [vmem:[#allocation2 + $0x2f8] sm:$0xff] %vm594, %v2289
  %v2386 = vld [vmem:[%s0 + $0x30] sm:$0xff]
  %v2387 = vld [vmem:[%s0 + $0x38] sm:$0xff]
  %v2388 = vld [vmem:[%s0 + $0x40] sm:$0xff]
  %v2389 = vld [vmem:[%s0 + $0x48] sm:$0xff]
  %v2390 = vld [vmem:[%s0 + $0x50] sm:$0xff]
  %v2391 = vld [vmem:[%s0 + $0x58] sm:$0xff]
  %v2392 = vld [vmem:[%s0 + $0x60] sm:$0xff]
  %v2393 = vld [vmem:[%s0 + $0x68] sm:$0xff]
  %v2394 = vld [vmem:[%s0 + $0x70] sm:$0xff]
  %v2395 = vld [vmem:[%s0 + $0x78] sm:$0xff]
  %v2396 = vld [vmem:[%s0 + $0x80] sm:$0xff]
  %v2397 = vld [vmem:[%s0 + $0x88] sm:$0xff]
  %v2398 = vld [vmem:[%s0 + $0x90] sm:$0xff]
  %v2399 = vld [vmem:[%s0 + $0x98] sm:$0xff]
  %v2400 = vld [vmem:[%s0 + $0xa0] sm:$0xff]
  %v2401 = vld [vmem:[%s0 + $0xa8] sm:$0xff]
  %v2402 = vld [vmem:[%s0 + $0xb0] sm:$0xff]
  %v2403 = vld [vmem:[%s0 + $0xb8] sm:$0xff]
  %v2404 = vld [vmem:[%s0 + $0xc0] sm:$0xff]
  %v2405 = vld [vmem:[%s0 + $0xc8] sm:$0xff]
  %v2406 = vld [vmem:[%s0 + $0xd0] sm:$0xff]
  %v2407 = vld [vmem:[%s0 + $0xd8] sm:$0xff]
  %v2408 = vld [vmem:[%s0 + $0xe0] sm:$0xff]
  %v2409 = vld [vmem:[%s0 + $0xe8] sm:$0xff]
  %v2410 = vld [vmem:[%s0 + $0xf0] sm:$0xff]
  %v2411 = vld [vmem:[%s0 + $0xf8] sm:$0xff]
  %v2412 = vld [vmem:[%s0 + $0x100] sm:$0xff]
  %v2413 = vld [vmem:[%s0 + $0x108] sm:$0xff]
  %v2414 = vld [vmem:[%s0 + $0x110] sm:$0xff]
  %v2415 = vld [vmem:[%s0 + $0x118] sm:$0xff]
  %v2416 = vld [vmem:[%s0 + $0x120] sm:$0xff]
  %v2417 = vld [vmem:[%s0 + $0x128] sm:$0xff]
  %v2418 = vld [vmem:[%s0 + $0x130] sm:$0xff]
  %v2419 = vld [vmem:[%s0 + $0x138] sm:$0xff]
  %v2420 = vld [vmem:[%s0 + $0x140] sm:$0xff]
  %v2421 = vld [vmem:[%s0 + $0x148] sm:$0xff]
  %v2422 = vld [vmem:[%s0 + $0x150] sm:$0xff]
  %v2423 = vld [vmem:[%s0 + $0x158] sm:$0xff]
  %v2424 = vld [vmem:[%s0 + $0x160] sm:$0xff]
  %v2425 = vld [vmem:[%s0 + $0x168] sm:$0xff]
  %v2426 = vld [vmem:[%s0 + $0x170] sm:$0xff]
  %v2427 = vld [vmem:[%s0 + $0x178] sm:$0xff]
  %v2428 = vld [vmem:[%s0 + $0x180] sm:$0xff]
  %v2429 = vld [vmem:[%s0 + $0x188] sm:$0xff]
  %v2430 = vld [vmem:[%s0 + $0x190] sm:$0xff]
  %v2431 = vld [vmem:[%s0 + $0x198] sm:$0xff]
  %v2432 = vld [vmem:[%s0 + $0x1a0] sm:$0xff]
  %v2433 = vld [vmem:[%s0 + $0x1a8] sm:$0xff]
  %s2434 = scalar_lea.vmem %s1, 192
  %v2435 = vld [vmem:[%s2434] sm:$0xff]
  %v2436 = vld [vmem:[%s2434 + $0x8] sm:$0xff]
  %v2437 = vld [vmem:[%s2434 + $0x10] sm:$0xff]
  %v2438 = vld [vmem:[%s2434 + $0x18] sm:$0xff]
  %v2439 = vld [vmem:[%s2434 + $0x20] sm:$0xff]
  %v2440 = vld [vmem:[%s2434 + $0x28] sm:$0xff]
  %v2441 = vld [vmem:[%s2434 + $0x30] sm:$0xf]
  %v2442 = vld [vmem:[%s2434 + $0x38] sm:$0xf]
  %v2444 = vsel %vm88, %v2386, 0
  %v2447 = vsel %vm88, %v2387, 0
  %v2450 = vsel %vm88, %v2388, 0
  %v2453 = vsel %vm88, %v2389, 0
  %v2456 = vsel %vm88, %v2390, 0
  %v2459 = vsel %vm88, %v2391, 0
  %v2462 = vsel %vm88, %v2392, 0
  %v2465 = vsel %vm88, %v2393, 0
  %v2468 = vsel %vm88, %v2394, 0
  %v2471 = vsel %vm88, %v2395, 0
  %v2474 = vsel %vm88, %v2396, 0
  %v2477 = vsel %vm88, %v2397, 0
  %v2480 = vsel %vm88, %v2398, 0
  %v2483 = vsel %vm88, %v2399, 0
  %v2486 = vsel %vm88, %v2400, 0
  %v2489 = vsel %vm88, %v2401, 0
  %v2492 = vsel %vm88, %v2402, 0
  %v2495 = vsel %vm88, %v2403, 0
  %v2498 = vsel %vm88, %v2404, 0
  %v2501 = vsel %vm88, %v2405, 0
  %v2504 = vsel %vm88, %v2406, 0
  %v2507 = vsel %vm88, %v2407, 0
  %v2510 = vsel %vm88, %v2408, 0
  %v2513 = vsel %vm88, %v2409, 0
  %v2516 = vsel %vm88, %v2410, 0
  %v2519 = vsel %vm88, %v2411, 0
  %v2522 = vsel %vm88, %v2412, 0
  %v2525 = vsel %vm88, %v2413, 0
  %v2528 = vsel %vm88, %v2414, 0
  %v2531 = vsel %vm88, %v2415, 0
  %v2534 = vsel %vm88, %v2416, 0
  %v2537 = vsel %vm88, %v2417, 0
  %v2540 = vsel %vm88, %v2418, 0
  %v2543 = vsel %vm88, %v2419, 0
  %v2546 = vsel %vm88, %v2420, 0
  %v2549 = vsel %vm88, %v2421, 0
  %v2552 = vsel %vm88, %v2422, 0
  %v2555 = vsel %vm88, %v2423, 0
  %v2558 = vsel %vm88, %v2424, 0
  %v2561 = vsel %vm88, %v2425, 0
  %v2564 = vsel %vm88, %v2426, 0
  %v2567 = vsel %vm88, %v2427, 0
  %v2570 = vsel %vm88, %v2428, 0
  %v2573 = vsel %vm88, %v2429, 0
  %v2576 = vsel %vm88, %v2430, 0
  %v2579 = vsel %vm88, %v2431, 0
  %v2582 = vsel %vm88, %v2432, 0
  %v2585 = vsel %vm88, %v2433, 0
  %v2588 = vsel %vm233, %v2441, 0
  %v2591 = vsel %vm233, %v2442, 0
  %2593 = vmatprep.subr.mxu0 %v2436
  %2594 = vmatpush1.msra.mxu0 %v2435
  %2595 = vmatprep.subr.mxu0 %v2438
  %2596 = vmatpush1.msra.mxu0 %v2437
  %2597 = vmatprep.subr.mxu0 %v2440
  %2598 = vmatpush1.msra.mxu0 %v2439
  %2599 = vmatprep.subr.mxu0 %v2591
  %2600 = vmatpush1.msra.mxu0 %v2588
  %2601 = vmatprep.subr.mxu0 0.0
  %2602 = vmatpush1.msra.mxu0 0.0
  %2603 = vmatprep.subr.mxu0 0.0
  %2604 = vmatpush1.msra.mxu0 0.0
  %2605 = vmatprep.subr.mxu0 0.0
  %2606 = vmatpush1.msra.mxu0 0.0
  %2607 = vmatprep.subr.mxu0 0.0
  %2608 = vmatpush1.msra.mxu0 0.0
  %2609 = vmatprep.subr.mxu0 0.0
  %2610 = vmatpush1.msra.mxu0 0.0
  %2611 = vmatprep.subr.mxu0 0.0
  %2612 = vmatpush1.msra.mxu0 0.0
  %2613 = vmatprep.subr.mxu0 0.0
  %2614 = vmatpush1.msra.mxu0 0.0
  %2615 = vmatprep.subr.mxu0 0.0
  %2616 = vmatpush1.msra.mxu0 0.0
  %2617 = vmatprep.subr.mxu0 0.0
  %2618 = vmatpush1.msra.mxu0 0.0
  %2619 = vmatprep.subr.mxu0 0.0
  %2620 = vmatpush1.msra.mxu0 0.0
  %2621 = vmatprep.subr.mxu0 0.0
  %2622 = vmatpush1.msra.mxu0 0.0
  %2623 = vmatprep.subr.mxu0 0.0
  %2624 = vmatpush1.msra.mxu0 0.0
  %2625 = vmatprep.subr.mxu0 0.0
  %2626 = vmatpush1.msra.mxu0 0.0
  %2627 = vmatprep.subr.mxu0 0.0
  %2628 = vmatpush1.msra.mxu0 0.0
  %2629 = vmatprep.subr.mxu0 0.0
  %2630 = vmatpush1.msra.mxu0 0.0
  %2631 = vmatprep.subr.mxu0 0.0
  %2632 = vmatpush1.msra.mxu0 0.0
  %2633 = vmatprep.subr.mxu0 0.0
  %2634 = vmatpush1.msra.mxu0 0.0
  %2635 = vmatprep.subr.mxu0 0.0
  %2636 = vmatpush1.msra.mxu0 0.0
  %2637 = vmatprep.subr.mxu0 0.0
  %2638 = vmatpush1.msra.mxu0 0.0
  %2639 = vmatprep.subr.mxu0 0.0
  %2640 = vmatpush1.msra.mxu0 0.0
  %2641 = vmatprep.subr.mxu0 0.0
  %2642 = vmatpush1.msra.mxu0 0.0
  %2643 = vmatprep.subr.mxu0 0.0
  %2644 = vmatpush1.msra.mxu0 0.0
  %2645 = vmatprep.subr.mxu0 0.0
  %2646 = vmatpush1.msra.mxu0 0.0
  %2647 = vmatprep.subr.mxu0 0.0
  %2648 = vmatpush1.msra.mxu0 0.0
  %2649 = vmatprep.subr.mxu0 0.0
  %2650 = vmatpush1.msra.mxu0 0.0
  %2651 = vmatprep.subr.mxu0 0.0
  %2652 = vmatpush1.msra.mxu0 0.0
  %2653 = vmatprep.subr.mxu0 0.0
  %2654 = vmatpush1.msra.mxu0 0.0
  %2655 = vmatprep.subr.mxu0 0.0
  %2656 = vmatpush1.msra.mxu0 0.0
  %2657 = vmatprep.mubr.f32.mxu0 0.0
  %2658 = vmatmul.mubr.f32.gmra.mrb[0].mxu0 %v2444
  %v2659 = vpop.f32.mrb[0].mxu0
  %v2660 = vadd.f32 0.0, %v2659
  %v2661 = vpop.f32.mrb[0].mxu0
  %v2662 = vadd.f32 0.0, %v2661
  %2663 = vmatprep.mubr.f32.mxu0 0.0
  %2664 = vmatmul.mubr.f32.gmra.mrb[0].mxu0 %v2447
  %v2665 = vpop.f32.mrb[0].mxu0
  %v2666 = vadd.f32 0.0, %v2665
  %v2667 = vpop.f32.mrb[0].mxu0
  %v2668 = vadd.f32 0.0, %v2667
  %2669 = vmatprep.mubr.f32.mxu0 0.0
  %2670 = vmatmul.mubr.f32.gmra.mrb[0].mxu0 %v2450
  %v2671 = vpop.f32.mrb[0].mxu0
  %v2672 = vadd.f32 0.0, %v2671
  %v2673 = vpop.f32.mrb[0].mxu0
  %v2674 = vadd.f32 0.0, %v2673
  %2675 = vmatprep.mubr.f32.mxu0 0.0
  %2676 = vmatmul.mubr.f32.gmra.mrb[0].mxu0 %v2453
  %v2677 = vpop.f32.mrb[0].mxu0
  %v2678 = vadd.f32 0.0, %v2677
  %v2679 = vpop.f32.mrb[0].mxu0
  %v2680 = vadd.f32 0.0, %v2679
  %2681 = vmatprep.mubr.f32.mxu0 0.0
  %2682 = vmatmul.mubr.f32.gmra.mrb[0].mxu0 %v2456
  %v2683 = vpop.f32.mrb[0].mxu0
  %v2684 = vadd.f32 0.0, %v2683
  %v2685 = vpop.f32.mrb[0].mxu0
  %v2686 = vadd.f32 0.0, %v2685
  %2687 = vmatprep.mubr.f32.mxu0 0.0
  %2688 = vmatmul.mubr.f32.gmra.mrb[0].mxu0 %v2459
  %v2689 = vpop.f32.mrb[0].mxu0
  %v2690 = vadd.f32 0.0, %v2689
  %v2691 = vpop.f32.mrb[0].mxu0
  %v2692 = vadd.f32 0.0, %v2691
  %2693 = vmatprep.mubr.f32.mxu0 0.0
  %2694 = vmatmul.mubr.f32.gmra.mrb[0].mxu0 %v2462
  %v2695 = vpop.f32.mrb[0].mxu0
  %v2696 = vadd.f32 0.0, %v2695
  %v2697 = vpop.f32.mrb[0].mxu0
  %v2698 = vadd.f32 0.0, %v2697
  %2699 = vmatprep.mubr.f32.mxu0 0.0
  %2700 = vmatmul.mubr.f32.gmra.mrb[0].mxu0 %v2465
  %v2701 = vpop.f32.mrb[0].mxu0
  %v2702 = vadd.f32 0.0, %v2701
  %v2703 = vpop.f32.mrb[0].mxu0
  %v2704 = vadd.f32 0.0, %v2703
  %2705 = vmatprep.mubr.f32.mxu0 0.0
  %2706 = vmatmul.mubr.f32.gmra.mrb[0].mxu0 %v2468
  %v2707 = vpop.f32.mrb[0].mxu0
  %v2708 = vadd.f32 0.0, %v2707
  %v2709 = vpop.f32.mrb[0].mxu0
  %v2710 = vadd.f32 0.0, %v2709
  %2711 = vmatprep.mubr.f32.mxu0 0.0
  %2712 = vmatmul.mubr.f32.gmra.mrb[0].mxu0 %v2471
  %v2713 = vpop.f32.mrb[0].mxu0
  %v2714 = vadd.f32 0.0, %v2713
  %v2715 = vpop.f32.mrb[0].mxu0
  %v2716 = vadd.f32 0.0, %v2715
  %2717 = vmatprep.mubr.f32.mxu0 0.0
  %2718 = vmatmul.mubr.f32.gmra.mrb[0].mxu0 %v2474
  %v2719 = vpop.f32.mrb[0].mxu0
  %v2720 = vadd.f32 0.0, %v2719
  %v2721 = vpop.f32.mrb[0].mxu0
  %v2722 = vadd.f32 0.0, %v2721
  %2723 = vmatprep.mubr.f32.mxu0 0.0
  %2724 = vmatmul.mubr.f32.gmra.mrb[0].mxu0 %v2477
  %v2725 = vpop.f32.mrb[0].mxu0
  %v2726 = vadd.f32 0.0, %v2725
  %v2727 = vpop.f32.mrb[0].mxu0
  %v2728 = vadd.f32 0.0, %v2727
  %2729 = vmatprep.mubr.f32.mxu0 0.0
  %2730 = vmatmul.mubr.f32.gmra.mrb[0].mxu0 %v2480
  %v2731 = vpop.f32.mrb[0].mxu0
  %v2732 = vadd.f32 0.0, %v2731
  %v2733 = vpop.f32.mrb[0].mxu0
  %v2734 = vadd.f32 0.0, %v2733
  %2735 = vmatprep.mubr.f32.mxu0 0.0
  %2736 = vmatmul.mubr.f32.gmra.mrb[0].mxu0 %v2483
  %v2737 = vpop.f32.mrb[0].mxu0
  %v2738 = vadd.f32 0.0, %v2737
  %v2739 = vpop.f32.mrb[0].mxu0
  %v2740 = vadd.f32 0.0, %v2739
  %2741 = vmatprep.mubr.f32.mxu0 0.0
  %2742 = vmatmul.mubr.f32.gmra.mrb[0].mxu0 %v2486
  %v2743 = vpop.f32.mrb[0].mxu0
  %v2744 = vadd.f32 0.0, %v2743
  %v2745 = vpop.f32.mrb[0].mxu0
  %v2746 = vadd.f32 0.0, %v2745
  %2747 = vmatprep.mubr.f32.mxu0 0.0
  %2748 = vmatmul.mubr.f32.gmra.mrb[0].mxu0 %v2489
  %v2749 = vpop.f32.mrb[0].mxu0
  %v2750 = vadd.f32 0.0, %v2749
  %v2751 = vpop.f32.mrb[0].mxu0
  %v2752 = vadd.f32 0.0, %v2751
  %2753 = vmatprep.mubr.f32.mxu0 0.0
  %2754 = vmatmul.mubr.f32.gmra.mrb[0].mxu0 %v2492
  %v2755 = vpop.f32.mrb[0].mxu0
  %v2756 = vadd.f32 0.0, %v2755
  %v2757 = vpop.f32.mrb[0].mxu0
  %v2758 = vadd.f32 0.0, %v2757
  %2759 = vmatprep.mubr.f32.mxu0 0.0
  %2760 = vmatmul.mubr.f32.gmra.mrb[0].mxu0 %v2495
  %v2761 = vpop.f32.mrb[0].mxu0
  %v2762 = vadd.f32 0.0, %v2761
  %v2763 = vpop.f32.mrb[0].mxu0
  %v2764 = vadd.f32 0.0, %v2763
  %2765 = vmatprep.mubr.f32.mxu0 0.0
  %2766 = vmatmul.mubr.f32.gmra.mrb[0].mxu0 %v2498
  %v2767 = vpop.f32.mrb[0].mxu0
  %v2768 = vadd.f32 0.0, %v2767
  %v2769 = vpop.f32.mrb[0].mxu0
  %v2770 = vadd.f32 0.0, %v2769
  %2771 = vmatprep.mubr.f32.mxu0 0.0
  %2772 = vmatmul.mubr.f32.gmra.mrb[0].mxu0 %v2501
  %v2773 = vpop.f32.mrb[0].mxu0
  %v2774 = vadd.f32 0.0, %v2773
  %v2775 = vpop.f32.mrb[0].mxu0
  %v2776 = vadd.f32 0.0, %v2775
  %2777 = vmatprep.mubr.f32.mxu0 0.0
  %2778 = vmatmul.mubr.f32.gmra.mrb[0].mxu0 %v2504
  %v2779 = vpop.f32.mrb[0].mxu0
  %v2780 = vadd.f32 0.0, %v2779
  %v2781 = vpop.f32.mrb[0].mxu0
  %v2782 = vadd.f32 0.0, %v2781
  %2783 = vmatprep.mubr.f32.mxu0 0.0
  %2784 = vmatmul.mubr.f32.gmra.mrb[0].mxu0 %v2507
  %v2785 = vpop.f32.mrb[0].mxu0
  %v2786 = vadd.f32 0.0, %v2785
  %v2787 = vpop.f32.mrb[0].mxu0
  %v2788 = vadd.f32 0.0, %v2787
  %2789 = vmatprep.mubr.f32.mxu0 0.0
  %2790 = vmatmul.mubr.f32.gmra.mrb[0].mxu0 %v2510
  %v2791 = vpop.f32.mrb[0].mxu0
  %v2792 = vadd.f32 0.0, %v2791
  %v2793 = vpop.f32.mrb[0].mxu0
  %v2794 = vadd.f32 0.0, %v2793
  %2795 = vmatprep.mubr.f32.mxu0 0.0
  %2796 = vmatmul.mubr.f32.gmra.mrb[0].mxu0 %v2513
  %v2797 = vpop.f32.mrb[0].mxu0
  %v2798 = vadd.f32 0.0, %v2797
  %v2799 = vpop.f32.mrb[0].mxu0
  %v2800 = vadd.f32 0.0, %v2799
  %2801 = vmatprep.mubr.f32.mxu0 0.0
  %2802 = vmatmul.mubr.f32.gmra.mrb[0].mxu0 %v2516
  %v2803 = vpop.f32.mrb[0].mxu0
  %v2804 = vadd.f32 0.0, %v2803
  %v2805 = vpop.f32.mrb[0].mxu0
  %v2806 = vadd.f32 0.0, %v2805
  %2807 = vmatprep.mubr.f32.mxu0 0.0
  %2808 = vmatmul.mubr.f32.gmra.mrb[0].mxu0 %v2519
  %v2809 = vpop.f32.mrb[0].mxu0
  %v2810 = vadd.f32 0.0, %v2809
  %v2811 = vpop.f32.mrb[0].mxu0
  %v2812 = vadd.f32 0.0, %v2811
  %2813 = vmatprep.mubr.f32.mxu0 0.0
  %2814 = vmatmul.mubr.f32.gmra.mrb[0].mxu0 %v2522
  %v2815 = vpop.f32.mrb[0].mxu0
  %v2816 = vadd.f32 0.0, %v2815
  %v2817 = vpop.f32.mrb[0].mxu0
  %v2818 = vadd.f32 0.0, %v2817
  %2819 = vmatprep.mubr.f32.mxu0 0.0
  %2820 = vmatmul.mubr.f32.gmra.mrb[0].mxu0 %v2525
  %v2821 = vpop.f32.mrb[0].mxu0
  %v2822 = vadd.f32 0.0, %v2821
  %v2823 = vpop.f32.mrb[0].mxu0
  %v2824 = vadd.f32 0.0, %v2823
  %2825 = vmatprep.mubr.f32.mxu0 0.0
  %2826 = vmatmul.mubr.f32.gmra.mrb[0].mxu0 %v2528
  %v2827 = vpop.f32.mrb[0].mxu0
  %v2828 = vadd.f32 0.0, %v2827
  %v2829 = vpop.f32.mrb[0].mxu0
  %v2830 = vadd.f32 0.0, %v2829
  %2831 = vmatprep.mubr.f32.mxu0 0.0
  %2832 = vmatmul.mubr.f32.gmra.mrb[0].mxu0 %v2531
  %v2833 = vpop.f32.mrb[0].mxu0
  %v2834 = vadd.f32 0.0, %v2833
  %v2835 = vpop.f32.mrb[0].mxu0
  %v2836 = vadd.f32 0.0, %v2835
  %2837 = vmatprep.mubr.f32.mxu0 0.0
  %2838 = vmatmul.mubr.f32.gmra.mrb[0].mxu0 %v2534
  %v2839 = vpop.f32.mrb[0].mxu0
  %v2840 = vadd.f32 0.0, %v2839
  %v2841 = vpop.f32.mrb[0].mxu0
  %v2842 = vadd.f32 0.0, %v2841
  %2843 = vmatprep.mubr.f32.mxu0 0.0
  %2844 = vmatmul.mubr.f32.gmra.mrb[0].mxu0 %v2537
  %v2845 = vpop.f32.mrb[0].mxu0
  %v2846 = vadd.f32 0.0, %v2845
  %v2847 = vpop.f32.mrb[0].mxu0
  %v2848 = vadd.f32 0.0, %v2847
  %2849 = vmatprep.mubr.f32.mxu0 0.0
  %2850 = vmatmul.mubr.f32.gmra.mrb[0].mxu0 %v2540
  %v2851 = vpop.f32.mrb[0].mxu0
  %v2852 = vadd.f32 0.0, %v2851
  %v2853 = vpop.f32.mrb[0].mxu0
  %v2854 = vadd.f32 0.0, %v2853
  %2855 = vmatprep.mubr.f32.mxu0 0.0
  %2856 = vmatmul.mubr.f32.gmra.mrb[0].mxu0 %v2543
  %v2857 = vpop.f32.mrb[0].mxu0
  %v2858 = vadd.f32 0.0, %v2857
  %v2859 = vpop.f32.mrb[0].mxu0
  %v2860 = vadd.f32 0.0, %v2859
  %2861 = vmatprep.mubr.f32.mxu0 0.0
  %2862 = vmatmul.mubr.f32.gmra.mrb[0].mxu0 %v2546
  %v2863 = vpop.f32.mrb[0].mxu0
  %v2864 = vadd.f32 0.0, %v2863
  %v2865 = vpop.f32.mrb[0].mxu0
  %v2866 = vadd.f32 0.0, %v2865
  %2867 = vmatprep.mubr.f32.mxu0 0.0
  %2868 = vmatmul.mubr.f32.gmra.mrb[0].mxu0 %v2549
  %v2869 = vpop.f32.mrb[0].mxu0
  %v2870 = vadd.f32 0.0, %v2869
  %v2871 = vpop.f32.mrb[0].mxu0
  %v2872 = vadd.f32 0.0, %v2871
  %2873 = vmatprep.mubr.f32.mxu0 0.0
  %2874 = vmatmul.mubr.f32.gmra.mrb[0].mxu0 %v2552
  %v2875 = vpop.f32.mrb[0].mxu0
  %v2876 = vadd.f32 0.0, %v2875
  %v2877 = vpop.f32.mrb[0].mxu0
  %v2878 = vadd.f32 0.0, %v2877
  %2879 = vmatprep.mubr.f32.mxu0 0.0
  %2880 = vmatmul.mubr.f32.gmra.mrb[0].mxu0 %v2555
  %v2881 = vpop.f32.mrb[0].mxu0
  %v2882 = vadd.f32 0.0, %v2881
  %v2883 = vpop.f32.mrb[0].mxu0
  %v2884 = vadd.f32 0.0, %v2883
  %2885 = vmatprep.mubr.f32.mxu0 0.0
  %2886 = vmatmul.mubr.f32.gmra.mrb[0].mxu0 %v2558
  %v2887 = vpop.f32.mrb[0].mxu0
  %v2888 = vadd.f32 0.0, %v2887
  %v2889 = vpop.f32.mrb[0].mxu0
  %v2890 = vadd.f32 0.0, %v2889
  %2891 = vmatprep.mubr.f32.mxu0 0.0
  %2892 = vmatmul.mubr.f32.gmra.mrb[0].mxu0 %v2561
  %v2893 = vpop.f32.mrb[0].mxu0
  %v2894 = vadd.f32 0.0, %v2893
  %v2895 = vpop.f32.mrb[0].mxu0
  %v2896 = vadd.f32 0.0, %v2895
  %2897 = vmatprep.mubr.f32.mxu0 0.0
  %2898 = vmatmul.mubr.f32.gmra.mrb[0].mxu0 %v2564
  %v2899 = vpop.f32.mrb[0].mxu0
  %v2900 = vadd.f32 0.0, %v2899
  %v2901 = vpop.f32.mrb[0].mxu0
  %v2902 = vadd.f32 0.0, %v2901
  %2903 = vmatprep.mubr.f32.mxu0 0.0
  %2904 = vmatmul.mubr.f32.gmra.mrb[0].mxu0 %v2567
  %v2905 = vpop.f32.mrb[0].mxu0
  %v2906 = vadd.f32 0.0, %v2905
  %v2907 = vpop.f32.mrb[0].mxu0
  %v2908 = vadd.f32 0.0, %v2907
  %2909 = vmatprep.mubr.f32.mxu0 0.0
  %2910 = vmatmul.mubr.f32.gmra.mrb[0].mxu0 %v2570
  %v2911 = vpop.f32.mrb[0].mxu0
  %v2912 = vadd.f32 0.0, %v2911
  %v2913 = vpop.f32.mrb[0].mxu0
  %v2914 = vadd.f32 0.0, %v2913
  %2915 = vmatprep.mubr.f32.mxu0 0.0
  %2916 = vmatmul.mubr.f32.gmra.mrb[0].mxu0 %v2573
  %v2917 = vpop.f32.mrb[0].mxu0
  %v2918 = vadd.f32 0.0, %v2917
  %v2919 = vpop.f32.mrb[0].mxu0
  %v2920 = vadd.f32 0.0, %v2919
  %2921 = vmatprep.mubr.f32.mxu0 0.0
  %2922 = vmatmul.mubr.f32.gmra.mrb[0].mxu0 %v2576
  %v2923 = vpop.f32.mrb[0].mxu0
  %v2924 = vadd.f32 0.0, %v2923
  %v2925 = vpop.f32.mrb[0].mxu0
  %v2926 = vadd.f32 0.0, %v2925
  %2927 = vmatprep.mubr.f32.mxu0 0.0
  %2928 = vmatmul.mubr.f32.gmra.mrb[0].mxu0 %v2579
  %v2929 = vpop.f32.mrb[0].mxu0
  %v2930 = vadd.f32 0.0, %v2929
  %v2931 = vpop.f32.mrb[0].mxu0
  %v2932 = vadd.f32 0.0, %v2931
  %2933 = vmatprep.mubr.f32.mxu0 0.0
  %2934 = vmatmul.mubr.f32.gmra.mrb[0].mxu0 %v2582
  %v2935 = vpop.f32.mrb[0].mxu0
  %v2936 = vadd.f32 0.0, %v2935
  %v2937 = vpop.f32.mrb[0].mxu0
  %v2938 = vadd.f32 0.0, %v2937
  %2939 = vmatprep.mubr.f32.mxu0 0.0
  %2940 = vmatmul.mubr.f32.gmra.mrb[0].mxu0 %v2585
  %v2941 = vpop.f32.mrb[0].mxu0
  %v2942 = vadd.f32 0.0, %v2941
  %v2943 = vpop.f32.mrb[0].mxu0
  %v2944 = vadd.f32 0.0, %v2943
  %2945 = vdwg.mxu0
  %v2946 = vld [vmem:[#allocation2] sm:$0xff]
  %v2947 = vld [vmem:[#allocation2 + $0x8] sm:$0xff]
  %v2948 = vld [vmem:[#allocation2 + $0x10] sm:$0xff]
  %v2949 = vld [vmem:[#allocation2 + $0x18] sm:$0xff]
  %v2950 = vld [vmem:[#allocation2 + $0x20] sm:$0xff]
  %v2951 = vld [vmem:[#allocation2 + $0x28] sm:$0xff]
  %v2952 = vld [vmem:[#allocation2 + $0x30] sm:$0xff]
  %v2953 = vld [vmem:[#allocation2 + $0x38] sm:$0xff]
  %v2954 = vld [vmem:[#allocation2 + $0x40] sm:$0xff]
  %v2955 = vld [vmem:[#allocation2 + $0x48] sm:$0xff]
  %v2956 = vld [vmem:[#allocation2 + $0x50] sm:$0xff]
  %v2957 = vld [vmem:[#allocation2 + $0x58] sm:$0xff]
  %v2958 = vld [vmem:[#allocation2 + $0x60] sm:$0xff]
  %v2959 = vld [vmem:[#allocation2 + $0x68] sm:$0xff]
  %v2960 = vld [vmem:[#allocation2 + $0x70] sm:$0xff]
  %v2961 = vld [vmem:[#allocation2 + $0x78] sm:$0xff]
  %v2962 = vld [vmem:[#allocation2 + $0x80] sm:$0xff]
  %v2963 = vld [vmem:[#allocation2 + $0x88] sm:$0xff]
  %v2964 = vld [vmem:[#allocation2 + $0x90] sm:$0xff]
  %v2965 = vld [vmem:[#allocation2 + $0x98] sm:$0xff]
  %v2966 = vld [vmem:[#allocation2 + $0xa0] sm:$0xff]
  %v2967 = vld [vmem:[#allocation2 + $0xa8] sm:$0xff]
  %v2968 = vld [vmem:[#allocation2 + $0xb0] sm:$0xff]
  %v2969 = vld [vmem:[#allocation2 + $0xb8] sm:$0xff]
  %v2970 = vld [vmem:[#allocation2 + $0xc0] sm:$0xff]
  %v2971 = vld [vmem:[#allocation2 + $0xc8] sm:$0xff]
  %v2972 = vld [vmem:[#allocation2 + $0xd0] sm:$0xff]
  %v2973 = vld [vmem:[#allocation2 + $0xd8] sm:$0xff]
  %v2974 = vld [vmem:[#allocation2 + $0xe0] sm:$0xff]
  %v2975 = vld [vmem:[#allocation2 + $0xe8] sm:$0xff]
  %v2976 = vld [vmem:[#allocation2 + $0xf0] sm:$0xff]
  %v2977 = vld [vmem:[#allocation2 + $0xf8] sm:$0xff]
  %v2978 = vld [vmem:[#allocation2 + $0x100] sm:$0xff]
  %v2979 = vld [vmem:[#allocation2 + $0x108] sm:$0xff]
  %v2980 = vld [vmem:[#allocation2 + $0x110] sm:$0xff]
  %v2981 = vld [vmem:[#allocation2 + $0x118] sm:$0xff]
  %v2982 = vld [vmem:[#allocation2 + $0x120] sm:$0xff]
  %v2983 = vld [vmem:[#allocation2 + $0x128] sm:$0xff]
  %v2984 = vld [vmem:[#allocation2 + $0x130] sm:$0xff]
  %v2985 = vld [vmem:[#allocation2 + $0x138] sm:$0xff]
  %v2986 = vld [vmem:[#allocation2 + $0x140] sm:$0xff]
  %v2987 = vld [vmem:[#allocation2 + $0x148] sm:$0xff]
  %v2988 = vld [vmem:[#allocation2 + $0x150] sm:$0xff]
  %v2989 = vld [vmem:[#allocation2 + $0x158] sm:$0xff]
  %v2990 = vld [vmem:[#allocation2 + $0x160] sm:$0xff]
  %v2991 = vld [vmem:[#allocation2 + $0x168] sm:$0xff]
  %v2992 = vld [vmem:[#allocation2 + $0x170] sm:$0xff]
  %v2993 = vld [vmem:[#allocation2 + $0x178] sm:$0xff]
  %v2994 = vld [vmem:[#allocation2 + $0x180] sm:$0xff]
  %v2995 = vld [vmem:[#allocation2 + $0x188] sm:$0xff]
  %v2996 = vld [vmem:[#allocation2 + $0x190] sm:$0xff]
  %v2997 = vld [vmem:[#allocation2 + $0x198] sm:$0xff]
  %v2998 = vld [vmem:[#allocation2 + $0x1a0] sm:$0xff]
  %v2999 = vld [vmem:[#allocation2 + $0x1a8] sm:$0xff]
  %v3000 = vld [vmem:[#allocation2 + $0x1b0] sm:$0xff]
  %v3001 = vld [vmem:[#allocation2 + $0x1b8] sm:$0xff]
  %v3002 = vld [vmem:[#allocation2 + $0x1c0] sm:$0xff]
  %v3003 = vld [vmem:[#allocation2 + $0x1c8] sm:$0xff]
  %v3004 = vld [vmem:[#allocation2 + $0x1d0] sm:$0xff]
  %v3005 = vld [vmem:[#allocation2 + $0x1d8] sm:$0xff]
  %v3006 = vld [vmem:[#allocation2 + $0x1e0] sm:$0xff]
  %v3007 = vld [vmem:[#allocation2 + $0x1e8] sm:$0xff]
  %v3008 = vld [vmem:[#allocation2 + $0x1f0] sm:$0xff]
  %v3009 = vld [vmem:[#allocation2 + $0x1f8] sm:$0xff]
  %v3010 = vld [vmem:[#allocation2 + $0x200] sm:$0xff]
  %v3011 = vld [vmem:[#allocation2 + $0x208] sm:$0xff]
  %v3012 = vld [vmem:[#allocation2 + $0x210] sm:$0xff]
  %v3013 = vld [vmem:[#allocation2 + $0x218] sm:$0xff]
  %v3014 = vld [vmem:[#allocation2 + $0x220] sm:$0xff]
  %v3015 = vld [vmem:[#allocation2 + $0x228] sm:$0xff]
  %v3016 = vld [vmem:[#allocation2 + $0x230] sm:$0xff]
  %v3017 = vld [vmem:[#allocation2 + $0x238] sm:$0xff]
  %v3018 = vld [vmem:[#allocation2 + $0x240] sm:$0xff]
  %v3019 = vld [vmem:[#allocation2 + $0x248] sm:$0xff]
  %v3020 = vld [vmem:[#allocation2 + $0x250] sm:$0xff]
  %v3021 = vld [vmem:[#allocation2 + $0x258] sm:$0xff]
  %v3022 = vld [vmem:[#allocation2 + $0x260] sm:$0xff]
  %v3023 = vld [vmem:[#allocation2 + $0x268] sm:$0xff]
  %v3024 = vld [vmem:[#allocation2 + $0x270] sm:$0xff]
  %v3025 = vld [vmem:[#allocation2 + $0x278] sm:$0xff]
  %v3026 = vld [vmem:[#allocation2 + $0x280] sm:$0xff]
  %v3027 = vld [vmem:[#allocation2 + $0x288] sm:$0xff]
  %v3028 = vld [vmem:[#allocation2 + $0x290] sm:$0xff]
  %v3029 = vld [vmem:[#allocation2 + $0x298] sm:$0xff]
  %v3030 = vld [vmem:[#allocation2 + $0x2a0] sm:$0xff]
  %v3031 = vld [vmem:[#allocation2 + $0x2a8] sm:$0xff]
  %v3032 = vld [vmem:[#allocation2 + $0x2b0] sm:$0xff]
  %v3033 = vld [vmem:[#allocation2 + $0x2b8] sm:$0xff]
  %v3034 = vld [vmem:[#allocation2 + $0x2c0] sm:$0xff]
  %v3035 = vld [vmem:[#allocation2 + $0x2c8] sm:$0xff]
  %v3036 = vld [vmem:[#allocation2 + $0x2d0] sm:$0xff]
  %v3037 = vld [vmem:[#allocation2 + $0x2d8] sm:$0xff]
  %v3038 = vld [vmem:[#allocation2 + $0x2e0] sm:$0xff]
  %v3039 = vld [vmem:[#allocation2 + $0x2e8] sm:$0xff]
  %v3040 = vld [vmem:[#allocation2 + $0x2f0] sm:$0xff]
  %v3041 = vld [vmem:[#allocation2 + $0x2f8] sm:$0xff]
  %v3042 = vadd.f32 %v2946, %v2660
  %v3043 = vadd.f32 %v2947, %v2662
  %v3044 = vadd.f32 %v2948, %v2666
  %v3045 = vadd.f32 %v2949, %v2668
  %v3046 = vadd.f32 %v2950, %v2672
  %v3047 = vadd.f32 %v2951, %v2674
  %v3048 = vadd.f32 %v2952, %v2678
  %v3049 = vadd.f32 %v2953, %v2680
  %v3050 = vadd.f32 %v2954, %v2684
  %v3051 = vadd.f32 %v2955, %v2686
  %v3052 = vadd.f32 %v2956, %v2690
  %v3053 = vadd.f32 %v2957, %v2692
  %v3054 = vadd.f32 %v2958, %v2696
  %v3055 = vadd.f32 %v2959, %v2698
  %v3056 = vadd.f32 %v2960, %v2702
  %v3057 = vadd.f32 %v2961, %v2704
  %v3058 = vadd.f32 %v2962, %v2708
  %v3059 = vadd.f32 %v2963, %v2710
  %v3060 = vadd.f32 %v2964, %v2714
  %v3061 = vadd.f32 %v2965, %v2716
  %v3062 = vadd.f32 %v2966, %v2720
  %v3063 = vadd.f32 %v2967, %v2722
  %v3064 = vadd.f32 %v2968, %v2726
  %v3065 = vadd.f32 %v2969, %v2728
  %v3066 = vadd.f32 %v2970, %v2732
  %v3067 = vadd.f32 %v2971, %v2734
  %v3068 = vadd.f32 %v2972, %v2738
  %v3069 = vadd.f32 %v2973, %v2740
  %v3070 = vadd.f32 %v2974, %v2744
  %v3071 = vadd.f32 %v2975, %v2746
  %v3072 = vadd.f32 %v2976, %v2750
  %v3073 = vadd.f32 %v2977, %v2752
  %v3074 = vadd.f32 %v2978, %v2756
  %v3075 = vadd.f32 %v2979, %v2758
  %v3076 = vadd.f32 %v2980, %v2762
  %v3077 = vadd.f32 %v2981, %v2764
  %v3078 = vadd.f32 %v2982, %v2768
  %v3079 = vadd.f32 %v2983, %v2770
  %v3080 = vadd.f32 %v2984, %v2774
  %v3081 = vadd.f32 %v2985, %v2776
  %v3082 = vadd.f32 %v2986, %v2780
  %v3083 = vadd.f32 %v2987, %v2782
  %v3084 = vadd.f32 %v2988, %v2786
  %v3085 = vadd.f32 %v2989, %v2788
  %v3086 = vadd.f32 %v2990, %v2792
  %v3087 = vadd.f32 %v2991, %v2794
  %v3088 = vadd.f32 %v2992, %v2798
  %v3089 = vadd.f32 %v2993, %v2800
  %v3090 = vadd.f32 %v2994, %v2804
  %v3091 = vadd.f32 %v2995, %v2806
  %v3092 = vadd.f32 %v2996, %v2810
  %v3093 = vadd.f32 %v2997, %v2812
  %v3094 = vadd.f32 %v2998, %v2816
  %v3095 = vadd.f32 %v2999, %v2818
  %v3096 = vadd.f32 %v3000, %v2822
  %v3097 = vadd.f32 %v3001, %v2824
  %v3098 = vadd.f32 %v3002, %v2828
  %v3099 = vadd.f32 %v3003, %v2830
  %v3100 = vadd.f32 %v3004, %v2834
  %v3101 = vadd.f32 %v3005, %v2836
  %v3102 = vadd.f32 %v3006, %v2840
  %v3103 = vadd.f32 %v3007, %v2842
  %v3104 = vadd.f32 %v3008, %v2846
  %v3105 = vadd.f32 %v3009, %v2848
  %v3106 = vadd.f32 %v3010, %v2852
  %v3107 = vadd.f32 %v3011, %v2854
  %v3108 = vadd.f32 %v3012, %v2858
  %v3109 = vadd.f32 %v3013, %v2860
  %v3110 = vadd.f32 %v3014, %v2864
  %v3111 = vadd.f32 %v3015, %v2866
  %v3112 = vadd.f32 %v3016, %v2870
  %v3113 = vadd.f32 %v3017, %v2872
  %v3114 = vadd.f32 %v3018, %v2876
  %v3115 = vadd.f32 %v3019, %v2878
  %v3116 = vadd.f32 %v3020, %v2882
  %v3117 = vadd.f32 %v3021, %v2884
  %v3118 = vadd.f32 %v3022, %v2888
  %v3119 = vadd.f32 %v3023, %v2890
  %v3120 = vadd.f32 %v3024, %v2894
  %v3121 = vadd.f32 %v3025, %v2896
  %v3122 = vadd.f32 %v3026, %v2900
  %v3123 = vadd.f32 %v3027, %v2902
  %v3124 = vadd.f32 %v3028, %v2906
  %v3125 = vadd.f32 %v3029, %v2908
  %v3126 = vadd.f32 %v3030, %v2912
  %v3127 = vadd.f32 %v3031, %v2914
  %v3128 = vadd.f32 %v3032, %v2918
  %v3129 = vadd.f32 %v3033, %v2920
  %v3130 = vadd.f32 %v3034, %v2924
  %v3131 = vadd.f32 %v3035, %v2926
  %v3132 = vadd.f32 %v3036, %v2930
  %v3133 = vadd.f32 %v3037, %v2932
  %v3134 = vadd.f32 %v3038, %v2936
  %v3135 = vadd.f32 %v3039, %v2938
  %v3136 = vadd.f32 %v3040, %v2942
  %v3137 = vadd.f32 %v3041, %v2944
  %3138 = vst [vmem:[#allocation2] sm:$0xff] %v3042
  %3139 = vst.msk [vmem:[#allocation2 + $0x8] sm:$0xff] %vm594, %v3043
  %3140 = vst [vmem:[#allocation2 + $0x10] sm:$0xff] %v3044
  %3141 = vst.msk [vmem:[#allocation2 + $0x18] sm:$0xff] %vm594, %v3045
  %3142 = vst [vmem:[#allocation2 + $0x20] sm:$0xff] %v3046
  %3143 = vst.msk [vmem:[#allocation2 + $0x28] sm:$0xff] %vm594, %v3047
  %3144 = vst [vmem:[#allocation2 + $0x30] sm:$0xff] %v3048
  %3145 = vst.msk [vmem:[#allocation2 + $0x38] sm:$0xff] %vm594, %v3049
  %3146 = vst [vmem:[#allocation2 + $0x40] sm:$0xff] %v3050
  %3147 = vst.msk [vmem:[#allocation2 + $0x48] sm:$0xff] %vm594, %v3051
  %3148 = vst [vmem:[#allocation2 + $0x50] sm:$0xff] %v3052
  %3149 = vst.msk [vmem:[#allocation2 + $0x58] sm:$0xff] %vm594, %v3053
  %3150 = vst [vmem:[#allocation2 + $0x60] sm:$0xff] %v3054
  %3151 = vst.msk [vmem:[#allocation2 + $0x68] sm:$0xff] %vm594, %v3055
  %3152 = vst [vmem:[#allocation2 + $0x70] sm:$0xff] %v3056
  %3153 = vst.msk [vmem:[#allocation2 + $0x78] sm:$0xff] %vm594, %v3057
  %3154 = vst [vmem:[#allocation2 + $0x80] sm:$0xff] %v3058
  %3155 = vst.msk [vmem:[#allocation2 + $0x88] sm:$0xff] %vm594, %v3059
  %3156 = vst [vmem:[#allocation2 + $0x90] sm:$0xff] %v3060
  %3157 = vst.msk [vmem:[#allocation2 + $0x98] sm:$0xff] %vm594, %v3061
  %3158 = vst [vmem:[#allocation2 + $0xa0] sm:$0xff] %v3062
  %3159 = vst.msk [vmem:[#allocation2 + $0xa8] sm:$0xff] %vm594, %v3063
  %3160 = vst [vmem:[#allocation2 + $0xb0] sm:$0xff] %v3064
  %3161 = vst.msk [vmem:[#allocation2 + $0xb8] sm:$0xff] %vm594, %v3065
  %3162 = vst [vmem:[#allocation2 + $0xc0] sm:$0xff] %v3066
  %3163 = vst.msk [vmem:[#allocation2 + $0xc8] sm:$0xff] %vm594, %v3067
  %3164 = vst [vmem:[#allocation2 + $0xd0] sm:$0xff] %v3068
  %3165 = vst.msk [vmem:[#allocation2 + $0xd8] sm:$0xff] %vm594, %v3069
  %3166 = vst [vmem:[#allocation2 + $0xe0] sm:$0xff] %v3070
  %3167 = vst.msk [vmem:[#allocation2 + $0xe8] sm:$0xff] %vm594, %v3071
  %3168 = vst [vmem:[#allocation2 + $0xf0] sm:$0xff] %v3072
  %3169 = vst.msk [vmem:[#allocation2 + $0xf8] sm:$0xff] %vm594, %v3073
  %3170 = vst [vmem:[#allocation2 + $0x100] sm:$0xff] %v3074
  %3171 = vst.msk [vmem:[#allocation2 + $0x108] sm:$0xff] %vm594, %v3075
  %3172 = vst [vmem:[#allocation2 + $0x110] sm:$0xff] %v3076
  %3173 = vst.msk [vmem:[#allocation2 + $0x118] sm:$0xff] %vm594, %v3077
  %3174 = vst [vmem:[#allocation2 + $0x120] sm:$0xff] %v3078
  %3175 = vst.msk [vmem:[#allocation2 + $0x128] sm:$0xff] %vm594, %v3079
  %3176 = vst [vmem:[#allocation2 + $0x130] sm:$0xff] %v3080
  %3177 = vst.msk [vmem:[#allocation2 + $0x138] sm:$0xff] %vm594, %v3081
  %3178 = vst [vmem:[#allocation2 + $0x140] sm:$0xff] %v3082
  %3179 = vst.msk [vmem:[#allocation2 + $0x148] sm:$0xff] %vm594, %v3083
  %3180 = vst [vmem:[#allocation2 + $0x150] sm:$0xff] %v3084
  %3181 = vst.msk [vmem:[#allocation2 + $0x158] sm:$0xff] %vm594, %v3085
  %3182 = vst [vmem:[#allocation2 + $0x160] sm:$0xff] %v3086
  %3183 = vst.msk [vmem:[#allocation2 + $0x168] sm:$0xff] %vm594, %v3087
  %3184 = vst [vmem:[#allocation2 + $0x170] sm:$0xff] %v3088
  %3185 = vst.msk [vmem:[#allocation2 + $0x178] sm:$0xff] %vm594, %v3089
  %3186 = vst [vmem:[#allocation2 + $0x180] sm:$0xff] %v3090
  %3187 = vst.msk [vmem:[#allocation2 + $0x188] sm:$0xff] %vm594, %v3091
  %3188 = vst [vmem:[#allocation2 + $0x190] sm:$0xff] %v3092
  %3189 = vst.msk [vmem:[#allocation2 + $0x198] sm:$0xff] %vm594, %v3093
  %3190 = vst [vmem:[#allocation2 + $0x1a0] sm:$0xff] %v3094
  %3191 = vst.msk [vmem:[#allocation2 + $0x1a8] sm:$0xff] %vm594, %v3095
  %3192 = vst [vmem:[#allocation2 + $0x1b0] sm:$0xff] %v3096
  %3193 = vst.msk [vmem:[#allocation2 + $0x1b8] sm:$0xff] %vm594, %v3097
  %3194 = vst [vmem:[#allocation2 + $0x1c0] sm:$0xff] %v3098
  %3195 = vst.msk [vmem:[#allocation2 + $0x1c8] sm:$0xff] %vm594, %v3099
  %3196 = vst [vmem:[#allocation2 + $0x1d0] sm:$0xff] %v3100
  %3197 = vst.msk [vmem:[#allocation2 + $0x1d8] sm:$0xff] %vm594, %v3101
  %3198 = vst [vmem:[#allocation2 + $0x1e0] sm:$0xff] %v3102
  %3199 = vst.msk [vmem:[#allocation2 + $0x1e8] sm:$0xff] %vm594, %v3103
  %3200 = vst [vmem:[#allocation2 + $0x1f0] sm:$0xff] %v3104
  %3201 = vst.msk [vmem:[#allocation2 + $0x1f8] sm:$0xff] %vm594, %v3105
  %3202 = vst [vmem:[#allocation2 + $0x200] sm:$0xff] %v3106
  %3203 = vst.msk [vmem:[#allocation2 + $0x208] sm:$0xff] %vm594, %v3107
  %3204 = vst [vmem:[#allocation2 + $0x210] sm:$0xff] %v3108
  %3205 = vst.msk [vmem:[#allocation2 + $0x218] sm:$0xff] %vm594, %v3109
  %3206 = vst [vmem:[#allocation2 + $0x220] sm:$0xff] %v3110
  %3207 = vst.msk [vmem:[#allocation2 + $0x228] sm:$0xff] %vm594, %v3111
  %3208 = vst [vmem:[#allocation2 + $0x230] sm:$0xff] %v3112
  %3209 = vst.msk [vmem:[#allocation2 + $0x238] sm:$0xff] %vm594, %v3113
  %3210 = vst [vmem:[#allocation2 + $0x240] sm:$0xff] %v3114
  %3211 = vst.msk [vmem:[#allocation2 + $0x248] sm:$0xff] %vm594, %v3115
  %3212 = vst [vmem:[#allocation2 + $0x250] sm:$0xff] %v3116
  %3213 = vst.msk [vmem:[#allocation2 + $0x258] sm:$0xff] %vm594, %v3117
  %3214 = vst [vmem:[#allocation2 + $0x260] sm:$0xff] %v3118
  %3215 = vst.msk [vmem:[#allocation2 + $0x268] sm:$0xff] %vm594, %v3119
  %3216 = vst [vmem:[#allocation2 + $0x270] sm:$0xff] %v3120
  %3217 = vst.msk [vmem:[#allocation2 + $0x278] sm:$0xff] %vm594, %v3121
  %3218 = vst [vmem:[#allocation2 + $0x280] sm:$0xff] %v3122
  %3219 = vst.msk [vmem:[#allocation2 + $0x288] sm:$0xff] %vm594, %v3123
  %3220 = vst [vmem:[#allocation2 + $0x290] sm:$0xff] %v3124
  %3221 = vst.msk [vmem:[#allocation2 + $0x298] sm:$0xff] %vm594, %v3125
  %3222 = vst [vmem:[#allocation2 + $0x2a0] sm:$0xff] %v3126
  %3223 = vst.msk [vmem:[#allocation2 + $0x2a8] sm:$0xff] %vm594, %v3127
  %3224 = vst [vmem:[#allocation2 + $0x2b0] sm:$0xff] %v3128
  %3225 = vst.msk [vmem:[#allocation2 + $0x2b8] sm:$0xff] %vm594, %v3129
  %3226 = vst [vmem:[#allocation2 + $0x2c0] sm:$0xff] %v3130
  %3227 = vst.msk [vmem:[#allocation2 + $0x2c8] sm:$0xff] %vm594, %v3131
  %3228 = vst [vmem:[#allocation2 + $0x2d0] sm:$0xff] %v3132
  %3229 = vst.msk [vmem:[#allocation2 + $0x2d8] sm:$0xff] %vm594, %v3133
  %3230 = vst [vmem:[#allocation2 + $0x2e0] sm:$0xff] %v3134
  %3231 = vst.msk [vmem:[#allocation2 + $0x2e8] sm:$0xff] %vm594, %v3135
  %3232 = vst [vmem:[#allocation2 + $0x2f0] sm:$0xff] %v3136
  %3233 = vst.msk [vmem:[#allocation2 + $0x2f8] sm:$0xff] %vm594, %v3137
  %v3234 = vld [vmem:[%s0 + $0x40] sm:$0xff]
  %v3235 = vld [vmem:[%s0 + $0x48] sm:$0xff]
  %v3236 = vld [vmem:[%s0 + $0x50] sm:$0xff]
  %v3237 = vld [vmem:[%s0 + $0x58] sm:$0xff]
  %v3238 = vld [vmem:[%s0 + $0x60] sm:$0xff]
  %v3239 = vld [vmem:[%s0 + $0x68] sm:$0xff]
  %v3240 = vld [vmem:[%s0 + $0x70] sm:$0xff]
  %v3241 = vld [vmem:[%s0 + $0x78] sm:$0xff]
  %v3242 = vld [vmem:[%s0 + $0x80] sm:$0xff]
  %v3243 = vld [vmem:[%s0 + $0x88] sm:$0xff]
  %v3244 = vld [vmem:[%s0 + $0x90] sm:$0xff]
  %v3245 = vld [vmem:[%s0 + $0x98] sm:$0xff]
  %v3246 = vld [vmem:[%s0 + $0xa0] sm:$0xff]
  %v3247 = vld [vmem:[%s0 + $0xa8] sm:$0xff]
  %v3248 = vld [vmem:[%s0 + $0xb0] sm:$0xff]
  %v3249 = vld [vmem:[%s0 + $0xb8] sm:$0xff]
  %v3250 = vld [vmem:[%s0 + $0xc0] sm:$0xff]
  %v3251 = vld [vmem:[%s0 + $0xc8] sm:$0xff]
  %v3252 = vld [vmem:[%s0 + $0xd0] sm:$0xff]
  %v3253 = vld [vmem:[%s0 + $0xd8] sm:$0xff]
  %v3254 = vld [vmem:[%s0 + $0xe0] sm:$0xff]
  %v3255 = vld [vmem:[%s0 + $0xe8] sm:$0xff]
  %v3256 = vld [vmem:[%s0 + $0xf0] sm:$0xff]
  %v3257 = vld [vmem:[%s0 + $0xf8] sm:$0xff]
  %v3258 = vld [vmem:[%s0 + $0x100] sm:$0xff]
  %v3259 = vld [vmem:[%s0 + $0x108] sm:$0xff]
  %v3260 = vld [vmem:[%s0 + $0x110] sm:$0xff]
  %v3261 = vld [vmem:[%s0 + $0x118] sm:$0xff]
  %v3262 = vld [vmem:[%s0 + $0x120] sm:$0xff]
  %v3263 = vld [vmem:[%s0 + $0x128] sm:$0xff]
  %v3264 = vld [vmem:[%s0 + $0x130] sm:$0xff]
  %v3265 = vld [vmem:[%s0 + $0x138] sm:$0xff]
  %v3266 = vld [vmem:[%s0 + $0x140] sm:$0xff]
  %v3267 = vld [vmem:[%s0 + $0x148] sm:$0xff]
  %v3268 = vld [vmem:[%s0 + $0x150] sm:$0xff]
  %v3269 = vld [vmem:[%s0 + $0x158] sm:$0xff]
  %v3270 = vld [vmem:[%s0 + $0x160] sm:$0xff]
  %v3271 = vld [vmem:[%s0 + $0x168] sm:$0xff]
  %v3272 = vld [vmem:[%s0 + $0x170] sm:$0xff]
  %v3273 = vld [vmem:[%s0 + $0x178] sm:$0xff]
  %v3274 = vld [vmem:[%s0 + $0x180] sm:$0xff]
  %v3275 = vld [vmem:[%s0 + $0x188] sm:$0xff]
  %v3276 = vld [vmem:[%s0 + $0x190] sm:$0xff]
  %v3277 = vld [vmem:[%s0 + $0x198] sm:$0xff]
  %v3278 = vld [vmem:[%s0 + $0x1a0] sm:$0xff]
  %v3279 = vld [vmem:[%s0 + $0x1a8] sm:$0xff]
  %v3280 = vld [vmem:[%s0 + $0x1b0] sm:$0xff]
  %v3281 = vld [vmem:[%s0 + $0x1b8] sm:$0xff]
  %s3282 = scalar_lea.vmem %s1, 256
  %v3283 = vld [vmem:[%s3282] sm:$0xff]
  %v3284 = vld [vmem:[%s3282 + $0x8] sm:$0xff]
  %v3285 = vld [vmem:[%s3282 + $0x10] sm:$0xff]
  %v3286 = vld [vmem:[%s3282 + $0x18] sm:$0xff]
  %v3287 = vld [vmem:[%s3282 + $0x20] sm:$0xff]
  %v3288 = vld [vmem:[%s3282 + $0x28] sm:$0xff]
  %v3289 = vld [vmem:[%s3282 + $0x30] sm:$0xf]
  %v3290 = vld [vmem:[%s3282 + $0x38] sm:$0xf]
  %v3292 = vsel %vm88, %v3234, 0
  %v3295 = vsel %vm88, %v3235, 0
  %v3298 = vsel %vm88, %v3236, 0
  %v3301 = vsel %vm88, %v3237, 0
  %v3304 = vsel %vm88, %v3238, 0
  %v3307 = vsel %vm88, %v3239, 0
  %v3310 = vsel %vm88, %v3240, 0
  %v3313 = vsel %vm88, %v3241, 0
  %v3316 = vsel %vm88, %v3242, 0
  %v3319 = vsel %vm88, %v3243, 0
  %v3322 = vsel %vm88, %v3244, 0
  %v3325 = vsel %vm88, %v3245, 0
  %v3328 = vsel %vm88, %v3246, 0
  %v3331 = vsel %vm88, %v3247, 0
  %v3334 = vsel %vm88, %v3248, 0
  %v3337 = vsel %vm88, %v3249, 0
  %v3340 = vsel %vm88, %v3250, 0
  %v3343 = vsel %vm88, %v3251, 0
  %v3346 = vsel %vm88, %v3252, 0
  %v3349 = vsel %vm88, %v3253, 0
  %v3352 = vsel %vm88, %v3254, 0
  %v3355 = vsel %vm88, %v3255, 0
  %v3358 = vsel %vm88, %v3256, 0
  %v3361 = vsel %vm88, %v3257, 0
  %v3364 = vsel %vm88, %v3258, 0
  %v3367 = vsel %vm88, %v3259, 0
  %v3370 = vsel %vm88, %v3260, 0
  %v3373 = vsel %vm88, %v3261, 0
  %v3376 = vsel %vm88, %v3262, 0
  %v3379 = vsel %vm88, %v3263, 0
  %v3382 = vsel %vm88, %v3264, 0
  %v3385 = vsel %vm88, %v3265, 0
  %v3388 = vsel %vm88, %v3266, 0
  %v3391 = vsel %vm88, %v3267, 0
  %v3394 = vsel %vm88, %v3268, 0
  %v3397 = vsel %vm88, %v3269, 0
  %v3400 = vsel %vm88, %v3270, 0
  %v3403 = vsel %vm88, %v3271, 0
  %v3406 = vsel %vm88, %v3272, 0
  %v3409 = vsel %vm88, %v3273, 0
  %v3412 = vsel %vm88, %v3274, 0
  %v3415 = vsel %vm88, %v3275, 0
  %v3418 = vsel %vm88, %v3276, 0
  %v3421 = vsel %vm88, %v3277, 0
  %v3424 = vsel %vm88, %v3278, 0
  %v3427 = vsel %vm88, %v3279, 0
  %v3430 = vsel %vm88, %v3280, 0
  %v3433 = vsel %vm88, %v3281, 0
  %v3436 = vsel %vm233, %v3289, 0
  %v3439 = vsel %vm233, %v3290, 0
  %3441 = vmatprep.subr.mxu0 %v3284
  %3442 = vmatpush1.msra.mxu0 %v3283
  %3443 = vmatprep.subr.mxu0 %v3286
  %3444 = vmatpush1.msra.mxu0 %v3285
  %3445 = vmatprep.subr.mxu0 %v3288
  %3446 = vmatpush1.msra.mxu0 %v3287
  %3447 = vmatprep.subr.mxu0 %v3439
  %3448 = vmatpush1.msra.mxu0 %v3436
  %3449 = vmatprep.subr.mxu0 0.0
  %3450 = vmatpush1.msra.mxu0 0.0
  %3451 = vmatprep.subr.mxu0 0.0
  %3452 = vmatpush1.msra.mxu0 0.0
  %3453 = vmatprep.subr.mxu0 0.0
  %3454 = vmatpush1.msra.mxu0 0.0
  %3455 = vmatprep.subr.mxu0 0.0
  %3456 = vmatpush1.msra.mxu0 0.0
  %3457 = vmatprep.subr.mxu0 0.0
  %3458 = vmatpush1.msra.mxu0 0.0
  %3459 = vmatprep.subr.mxu0 0.0
  %3460 = vmatpush1.msra.mxu0 0.0
  %3461 = vmatprep.subr.mxu0 0.0
  %3462 = vmatpush1.msra.mxu0 0.0
  %3463 = vmatprep.subr.mxu0 0.0
  %3464 = vmatpush1.msra.mxu0 0.0
  %3465 = vmatprep.subr.mxu0 0.0
  %3466 = vmatpush1.msra.mxu0 0.0
  %3467 = vmatprep.subr.mxu0 0.0
  %3468 = vmatpush1.msra.mxu0 0.0
  %3469 = vmatprep.subr.mxu0 0.0
  %3470 = vmatpush1.msra.mxu0 0.0
  %3471 = vmatprep.subr.mxu0 0.0
  %3472 = vmatpush1.msra.mxu0 0.0
  %3473 = vmatprep.subr.mxu0 0.0
  %3474 = vmatpush1.msra.mxu0 0.0
  %3475 = vmatprep.subr.mxu0 0.0
  %3476 = vmatpush1.msra.mxu0 0.0
  %3477 = vmatprep.subr.mxu0 0.0
  %3478 = vmatpush1.msra.mxu0 0.0
  %3479 = vmatprep.subr.mxu0 0.0
  %3480 = vmatpush1.msra.mxu0 0.0
  %3481 = vmatprep.subr.mxu0 0.0
  %3482 = vmatpush1.msra.mxu0 0.0
  %3483 = vmatprep.subr.mxu0 0.0
  %3484 = vmatpush1.msra.mxu0 0.0
  %3485 = vmatprep.subr.mxu0 0.0
  %3486 = vmatpush1.msra.mxu0 0.0
  %3487 = vmatprep.subr.mxu0 0.0
  %3488 = vmatpush1.msra.mxu0 0.0
  %3489 = vmatprep.subr.mxu0 0.0
  %3490 = vmatpush1.msra.mxu0 0.0
  %3491 = vmatprep.subr.mxu0 0.0
  %3492 = vmatpush1.msra.mxu0 0.0
  %3493 = vmatprep.subr.mxu0 0.0
  %3494 = vmatpush1.msra.mxu0 0.0
  %3495 = vmatprep.subr.mxu0 0.0
  %3496 = vmatpush1.msra.mxu0 0.0
  %3497 = vmatprep.subr.mxu0 0.0
  %3498 = vmatpush1.msra.mxu0 0.0
  %3499 = vmatprep.subr.mxu0 0.0
  %3500 = vmatpush1.msra.mxu0 0.0
  %3501 = vmatprep.subr.mxu0 0.0
  %3502 = vmatpush1.msra.mxu0 0.0
  %3503 = vmatprep.subr.mxu0 0.0
  %3504 = vmatpush1.msra.mxu0 0.0
  %3505 = vmatprep.mubr.f32.mxu0 0.0
  %3506 = vmatmul.mubr.f32.gmra.mrb[0].mxu0 %v3292
  %v3507 = vpop.f32.mrb[0].mxu0
  %v3508 = vadd.f32 0.0, %v3507
  %v3509 = vpop.f32.mrb[0].mxu0
  %v3510 = vadd.f32 0.0, %v3509
  %3511 = vmatprep.mubr.f32.mxu0 0.0
  %3512 = vmatmul.mubr.f32.gmra.mrb[0].mxu0 %v3295
  %v3513 = vpop.f32.mrb[0].mxu0
  %v3514 = vadd.f32 0.0, %v3513
  %v3515 = vpop.f32.mrb[0].mxu0
  %v3516 = vadd.f32 0.0, %v3515
  %3517 = vmatprep.mubr.f32.mxu0 0.0
  %3518 = vmatmul.mubr.f32.gmra.mrb[0].mxu0 %v3298
  %v3519 = vpop.f32.mrb[0].mxu0
  %v3520 = vadd.f32 0.0, %v3519
  %v3521 = vpop.f32.mrb[0].mxu0
  %v3522 = vadd.f32 0.0, %v3521
  %3523 = vmatprep.mubr.f32.mxu0 0.0
  %3524 = vmatmul.mubr.f32.gmra.mrb[0].mxu0 %v3301
  %v3525 = vpop.f32.mrb[0].mxu0
  %v3526 = vadd.f32 0.0, %v3525
  %v3527 = vpop.f32.mrb[0].mxu0
  %v3528 = vadd.f32 0.0, %v3527
  %3529 = vmatprep.mubr.f32.mxu0 0.0
  %3530 = vmatmul.mubr.f32.gmra.mrb[0].mxu0 %v3304
  %v3531 = vpop.f32.mrb[0].mxu0
  %v3532 = vadd.f32 0.0, %v3531
  %v3533 = vpop.f32.mrb[0].mxu0
  %v3534 = vadd.f32 0.0, %v3533
  %3535 = vmatprep.mubr.f32.mxu0 0.0
  %3536 = vmatmul.mubr.f32.gmra.mrb[0].mxu0 %v3307
  %v3537 = vpop.f32.mrb[0].mxu0
  %v3538 = vadd.f32 0.0, %v3537
  %v3539 = vpop.f32.mrb[0].mxu0
  %v3540 = vadd.f32 0.0, %v3539
  %3541 = vmatprep.mubr.f32.mxu0 0.0
  %3542 = vmatmul.mubr.f32.gmra.mrb[0].mxu0 %v3310
  %v3543 = vpop.f32.mrb[0].mxu0
  %v3544 = vadd.f32 0.0, %v3543
  %v3545 = vpop.f32.mrb[0].mxu0
  %v3546 = vadd.f32 0.0, %v3545
  %3547 = vmatprep.mubr.f32.mxu0 0.0
  %3548 = vmatmul.mubr.f32.gmra.mrb[0].mxu0 %v3313
  %v3549 = vpop.f32.mrb[0].mxu0
  %v3550 = vadd.f32 0.0, %v3549
  %v3551 = vpop.f32.mrb[0].mxu0
  %v3552 = vadd.f32 0.0, %v3551
  %3553 = vmatprep.mubr.f32.mxu0 0.0
  %3554 = vmatmul.mubr.f32.gmra.mrb[0].mxu0 %v3316
  %v3555 = vpop.f32.mrb[0].mxu0
  %v3556 = vadd.f32 0.0, %v3555
  %v3557 = vpop.f32.mrb[0].mxu0
  %v3558 = vadd.f32 0.0, %v3557
  %3559 = vmatprep.mubr.f32.mxu0 0.0
  %3560 = vmatmul.mubr.f32.gmra.mrb[0].mxu0 %v3319
  %v3561 = vpop.f32.mrb[0].mxu0
  %v3562 = vadd.f32 0.0, %v3561
  %v3563 = vpop.f32.mrb[0].mxu0
  %v3564 = vadd.f32 0.0, %v3563
  %3565 = vmatprep.mubr.f32.mxu0 0.0
  %3566 = vmatmul.mubr.f32.gmra.mrb[0].mxu0 %v3322
  %v3567 = vpop.f32.mrb[0].mxu0
  %v3568 = vadd.f32 0.0, %v3567
  %v3569 = vpop.f32.mrb[0].mxu0
  %v3570 = vadd.f32 0.0, %v3569
  %3571 = vmatprep.mubr.f32.mxu0 0.0
  %3572 = vmatmul.mubr.f32.gmra.mrb[0].mxu0 %v3325
  %v3573 = vpop.f32.mrb[0].mxu0
  %v3574 = vadd.f32 0.0, %v3573
  %v3575 = vpop.f32.mrb[0].mxu0
  %v3576 = vadd.f32 0.0, %v3575
  %3577 = vmatprep.mubr.f32.mxu0 0.0
  %3578 = vmatmul.mubr.f32.gmra.mrb[0].mxu0 %v3328
  %v3579 = vpop.f32.mrb[0].mxu0
  %v3580 = vadd.f32 0.0, %v3579
  %v3581 = vpop.f32.mrb[0].mxu0
  %v3582 = vadd.f32 0.0, %v3581
  %3583 = vmatprep.mubr.f32.mxu0 0.0
  %3584 = vmatmul.mubr.f32.gmra.mrb[0].mxu0 %v3331
  %v3585 = vpop.f32.mrb[0].mxu0
  %v3586 = vadd.f32 0.0, %v3585
  %v3587 = vpop.f32.mrb[0].mxu0
  %v3588 = vadd.f32 0.0, %v3587
  %3589 = vmatprep.mubr.f32.mxu0 0.0
  %3590 = vmatmul.mubr.f32.gmra.mrb[0].mxu0 %v3334
  %v3591 = vpop.f32.mrb[0].mxu0
  %v3592 = vadd.f32 0.0, %v3591
  %v3593 = vpop.f32.mrb[0].mxu0
  %v3594 = vadd.f32 0.0, %v3593
  %3595 = vmatprep.mubr.f32.mxu0 0.0
  %3596 = vmatmul.mubr.f32.gmra.mrb[0].mxu0 %v3337
  %v3597 = vpop.f32.mrb[0].mxu0
  %v3598 = vadd.f32 0.0, %v3597
  %v3599 = vpop.f32.mrb[0].mxu0
  %v3600 = vadd.f32 0.0, %v3599
  %3601 = vmatprep.mubr.f32.mxu0 0.0
  %3602 = vmatmul.mubr.f32.gmra.mrb[0].mxu0 %v3340
  %v3603 = vpop.f32.mrb[0].mxu0
  %v3604 = vadd.f32 0.0, %v3603
  %v3605 = vpop.f32.mrb[0].mxu0
  %v3606 = vadd.f32 0.0, %v3605
  %3607 = vmatprep.mubr.f32.mxu0 0.0
  %3608 = vmatmul.mubr.f32.gmra.mrb[0].mxu0 %v3343
  %v3609 = vpop.f32.mrb[0].mxu0
  %v3610 = vadd.f32 0.0, %v3609
  %v3611 = vpop.f32.mrb[0].mxu0
  %v3612 = vadd.f32 0.0, %v3611
  %3613 = vmatprep.mubr.f32.mxu0 0.0
  %3614 = vmatmul.mubr.f32.gmra.mrb[0].mxu0 %v3346
  %v3615 = vpop.f32.mrb[0].mxu0
  %v3616 = vadd.f32 0.0, %v3615
  %v3617 = vpop.f32.mrb[0].mxu0
  %v3618 = vadd.f32 0.0, %v3617
  %3619 = vmatprep.mubr.f32.mxu0 0.0
  %3620 = vmatmul.mubr.f32.gmra.mrb[0].mxu0 %v3349
  %v3621 = vpop.f32.mrb[0].mxu0
  %v3622 = vadd.f32 0.0, %v3621
  %v3623 = vpop.f32.mrb[0].mxu0
  %v3624 = vadd.f32 0.0, %v3623
  %3625 = vmatprep.mubr.f32.mxu0 0.0
  %3626 = vmatmul.mubr.f32.gmra.mrb[0].mxu0 %v3352
  %v3627 = vpop.f32.mrb[0].mxu0
  %v3628 = vadd.f32 0.0, %v3627
  %v3629 = vpop.f32.mrb[0].mxu0
  %v3630 = vadd.f32 0.0, %v3629
  %3631 = vmatprep.mubr.f32.mxu0 0.0
  %3632 = vmatmul.mubr.f32.gmra.mrb[0].mxu0 %v3355
  %v3633 = vpop.f32.mrb[0].mxu0
  %v3634 = vadd.f32 0.0, %v3633
  %v3635 = vpop.f32.mrb[0].mxu0
  %v3636 = vadd.f32 0.0, %v3635
  %3637 = vmatprep.mubr.f32.mxu0 0.0
  %3638 = vmatmul.mubr.f32.gmra.mrb[0].mxu0 %v3358
  %v3639 = vpop.f32.mrb[0].mxu0
  %v3640 = vadd.f32 0.0, %v3639
  %v3641 = vpop.f32.mrb[0].mxu0
  %v3642 = vadd.f32 0.0, %v3641
  %3643 = vmatprep.mubr.f32.mxu0 0.0
  %3644 = vmatmul.mubr.f32.gmra.mrb[0].mxu0 %v3361
  %v3645 = vpop.f32.mrb[0].mxu0
  %v3646 = vadd.f32 0.0, %v3645
  %v3647 = vpop.f32.mrb[0].mxu0
  %v3648 = vadd.f32 0.0, %v3647
  %3649 = vmatprep.mubr.f32.mxu0 0.0
  %3650 = vmatmul.mubr.f32.gmra.mrb[0].mxu0 %v3364
  %v3651 = vpop.f32.mrb[0].mxu0
  %v3652 = vadd.f32 0.0, %v3651
  %v3653 = vpop.f32.mrb[0].mxu0
  %v3654 = vadd.f32 0.0, %v3653
  %3655 = vmatprep.mubr.f32.mxu0 0.0
  %3656 = vmatmul.mubr.f32.gmra.mrb[0].mxu0 %v3367
  %v3657 = vpop.f32.mrb[0].mxu0
  %v3658 = vadd.f32 0.0, %v3657
  %v3659 = vpop.f32.mrb[0].mxu0
  %v3660 = vadd.f32 0.0, %v3659
  %3661 = vmatprep.mubr.f32.mxu0 0.0
  %3662 = vmatmul.mubr.f32.gmra.mrb[0].mxu0 %v3370
  %v3663 = vpop.f32.mrb[0].mxu0
  %v3664 = vadd.f32 0.0, %v3663
  %v3665 = vpop.f32.mrb[0].mxu0
  %v3666 = vadd.f32 0.0, %v3665
  %3667 = vmatprep.mubr.f32.mxu0 0.0
  %3668 = vmatmul.mubr.f32.gmra.mrb[0].mxu0 %v3373
  %v3669 = vpop.f32.mrb[0].mxu0
  %v3670 = vadd.f32 0.0, %v3669
  %v3671 = vpop.f32.mrb[0].mxu0
  %v3672 = vadd.f32 0.0, %v3671
  %3673 = vmatprep.mubr.f32.mxu0 0.0
  %3674 = vmatmul.mubr.f32.gmra.mrb[0].mxu0 %v3376
  %v3675 = vpop.f32.mrb[0].mxu0
  %v3676 = vadd.f32 0.0, %v3675
  %v3677 = vpop.f32.mrb[0].mxu0
  %v3678 = vadd.f32 0.0, %v3677
  %3679 = vmatprep.mubr.f32.mxu0 0.0
  %3680 = vmatmul.mubr.f32.gmra.mrb[0].mxu0 %v3379
  %v3681 = vpop.f32.mrb[0].mxu0
  %v3682 = vadd.f32 0.0, %v3681
  %v3683 = vpop.f32.mrb[0].mxu0
  %v3684 = vadd.f32 0.0, %v3683
  %3685 = vmatprep.mubr.f32.mxu0 0.0
  %3686 = vmatmul.mubr.f32.gmra.mrb[0].mxu0 %v3382
  %v3687 = vpop.f32.mrb[0].mxu0
  %v3688 = vadd.f32 0.0, %v3687
  %v3689 = vpop.f32.mrb[0].mxu0
  %v3690 = vadd.f32 0.0, %v3689
  %3691 = vmatprep.mubr.f32.mxu0 0.0
  %3692 = vmatmul.mubr.f32.gmra.mrb[0].mxu0 %v3385
  %v3693 = vpop.f32.mrb[0].mxu0
  %v3694 = vadd.f32 0.0, %v3693
  %v3695 = vpop.f32.mrb[0].mxu0
  %v3696 = vadd.f32 0.0, %v3695
  %3697 = vmatprep.mubr.f32.mxu0 0.0
  %3698 = vmatmul.mubr.f32.gmra.mrb[0].mxu0 %v3388
  %v3699 = vpop.f32.mrb[0].mxu0
  %v3700 = vadd.f32 0.0, %v3699
  %v3701 = vpop.f32.mrb[0].mxu0
  %v3702 = vadd.f32 0.0, %v3701
  %3703 = vmatprep.mubr.f32.mxu0 0.0
  %3704 = vmatmul.mubr.f32.gmra.mrb[0].mxu0 %v3391
  %v3705 = vpop.f32.mrb[0].mxu0
  %v3706 = vadd.f32 0.0, %v3705
  %v3707 = vpop.f32.mrb[0].mxu0
  %v3708 = vadd.f32 0.0, %v3707
  %3709 = vmatprep.mubr.f32.mxu0 0.0
  %3710 = vmatmul.mubr.f32.gmra.mrb[0].mxu0 %v3394
  %v3711 = vpop.f32.mrb[0].mxu0
  %v3712 = vadd.f32 0.0, %v3711
  %v3713 = vpop.f32.mrb[0].mxu0
  %v3714 = vadd.f32 0.0, %v3713
  %3715 = vmatprep.mubr.f32.mxu0 0.0
  %3716 = vmatmul.mubr.f32.gmra.mrb[0].mxu0 %v3397
  %v3717 = vpop.f32.mrb[0].mxu0
  %v3718 = vadd.f32 0.0, %v3717
  %v3719 = vpop.f32.mrb[0].mxu0
  %v3720 = vadd.f32 0.0, %v3719
  %3721 = vmatprep.mubr.f32.mxu0 0.0
  %3722 = vmatmul.mubr.f32.gmra.mrb[0].mxu0 %v3400
  %v3723 = vpop.f32.mrb[0].mxu0
  %v3724 = vadd.f32 0.0, %v3723
  %v3725 = vpop.f32.mrb[0].mxu0
  %v3726 = vadd.f32 0.0, %v3725
  %3727 = vmatprep.mubr.f32.mxu0 0.0
  %3728 = vmatmul.mubr.f32.gmra.mrb[0].mxu0 %v3403
  %v3729 = vpop.f32.mrb[0].mxu0
  %v3730 = vadd.f32 0.0, %v3729
  %v3731 = vpop.f32.mrb[0].mxu0
  %v3732 = vadd.f32 0.0, %v3731
  %3733 = vmatprep.mubr.f32.mxu0 0.0
  %3734 = vmatmul.mubr.f32.gmra.mrb[0].mxu0 %v3406
  %v3735 = vpop.f32.mrb[0].mxu0
  %v3736 = vadd.f32 0.0, %v3735
  %v3737 = vpop.f32.mrb[0].mxu0
  %v3738 = vadd.f32 0.0, %v3737
  %3739 = vmatprep.mubr.f32.mxu0 0.0
  %3740 = vmatmul.mubr.f32.gmra.mrb[0].mxu0 %v3409
  %v3741 = vpop.f32.mrb[0].mxu0
  %v3742 = vadd.f32 0.0, %v3741
  %v3743 = vpop.f32.mrb[0].mxu0
  %v3744 = vadd.f32 0.0, %v3743
  %3745 = vmatprep.mubr.f32.mxu0 0.0
  %3746 = vmatmul.mubr.f32.gmra.mrb[0].mxu0 %v3412
  %v3747 = vpop.f32.mrb[0].mxu0
  %v3748 = vadd.f32 0.0, %v3747
  %v3749 = vpop.f32.mrb[0].mxu0
  %v3750 = vadd.f32 0.0, %v3749
  %3751 = vmatprep.mubr.f32.mxu0 0.0
  %3752 = vmatmul.mubr.f32.gmra.mrb[0].mxu0 %v3415
  %v3753 = vpop.f32.mrb[0].mxu0
  %v3754 = vadd.f32 0.0, %v3753
  %v3755 = vpop.f32.mrb[0].mxu0
  %v3756 = vadd.f32 0.0, %v3755
  %3757 = vmatprep.mubr.f32.mxu0 0.0
  %3758 = vmatmul.mubr.f32.gmra.mrb[0].mxu0 %v3418
  %v3759 = vpop.f32.mrb[0].mxu0
  %v3760 = vadd.f32 0.0, %v3759
  %v3761 = vpop.f32.mrb[0].mxu0
  %v3762 = vadd.f32 0.0, %v3761
  %3763 = vmatprep.mubr.f32.mxu0 0.0
  %3764 = vmatmul.mubr.f32.gmra.mrb[0].mxu0 %v3421
  %v3765 = vpop.f32.mrb[0].mxu0
  %v3766 = vadd.f32 0.0, %v3765
  %v3767 = vpop.f32.mrb[0].mxu0
  %v3768 = vadd.f32 0.0, %v3767
  %3769 = vmatprep.mubr.f32.mxu0 0.0
  %3770 = vmatmul.mubr.f32.gmra.mrb[0].mxu0 %v3424
  %v3771 = vpop.f32.mrb[0].mxu0
  %v3772 = vadd.f32 0.0, %v3771
  %v3773 = vpop.f32.mrb[0].mxu0
  %v3774 = vadd.f32 0.0, %v3773
  %3775 = vmatprep.mubr.f32.mxu0 0.0
  %3776 = vmatmul.mubr.f32.gmra.mrb[0].mxu0 %v3427
  %v3777 = vpop.f32.mrb[0].mxu0
  %v3778 = vadd.f32 0.0, %v3777
  %v3779 = vpop.f32.mrb[0].mxu0
  %v3780 = vadd.f32 0.0, %v3779
  %3781 = vmatprep.mubr.f32.mxu0 0.0
  %3782 = vmatmul.mubr.f32.gmra.mrb[0].mxu0 %v3430
  %v3783 = vpop.f32.mrb[0].mxu0
  %v3784 = vadd.f32 0.0, %v3783
  %v3785 = vpop.f32.mrb[0].mxu0
  %v3786 = vadd.f32 0.0, %v3785
  %3787 = vmatprep.mubr.f32.mxu0 0.0
  %3788 = vmatmul.mubr.f32.gmra.mrb[0].mxu0 %v3433
  %v3789 = vpop.f32.mrb[0].mxu0
  %v3790 = vadd.f32 0.0, %v3789
  %v3791 = vpop.f32.mrb[0].mxu0
  %v3792 = vadd.f32 0.0, %v3791
  %3793 = vdwg.mxu0
  %v3794 = vld [vmem:[#allocation2] sm:$0xff]
  %v3795 = vld [vmem:[#allocation2 + $0x8] sm:$0xff]
  %v3796 = vld [vmem:[#allocation2 + $0x10] sm:$0xff]
  %v3797 = vld [vmem:[#allocation2 + $0x18] sm:$0xff]
  %v3798 = vld [vmem:[#allocation2 + $0x20] sm:$0xff]
  %v3799 = vld [vmem:[#allocation2 + $0x28] sm:$0xff]
  %v3800 = vld [vmem:[#allocation2 + $0x30] sm:$0xff]
  %v3801 = vld [vmem:[#allocation2 + $0x38] sm:$0xff]
  %v3802 = vld [vmem:[#allocation2 + $0x40] sm:$0xff]
  %v3803 = vld [vmem:[#allocation2 + $0x48] sm:$0xff]
  %v3804 = vld [vmem:[#allocation2 + $0x50] sm:$0xff]
  %v3805 = vld [vmem:[#allocation2 + $0x58] sm:$0xff]
  %v3806 = vld [vmem:[#allocation2 + $0x60] sm:$0xff]
  %v3807 = vld [vmem:[#allocation2 + $0x68] sm:$0xff]
  %v3808 = vld [vmem:[#allocation2 + $0x70] sm:$0xff]
  %v3809 = vld [vmem:[#allocation2 + $0x78] sm:$0xff]
  %v3810 = vld [vmem:[#allocation2 + $0x80] sm:$0xff]
  %v3811 = vld [vmem:[#allocation2 + $0x88] sm:$0xff]
  %v3812 = vld [vmem:[#allocation2 + $0x90] sm:$0xff]
  %v3813 = vld [vmem:[#allocation2 + $0x98] sm:$0xff]
  %v3814 = vld [vmem:[#allocation2 + $0xa0] sm:$0xff]
  %v3815 = vld [vmem:[#allocation2 + $0xa8] sm:$0xff]
  %v3816 = vld [vmem:[#allocation2 + $0xb0] sm:$0xff]
  %v3817 = vld [vmem:[#allocation2 + $0xb8] sm:$0xff]
  %v3818 = vld [vmem:[#allocation2 + $0xc0] sm:$0xff]
  %v3819 = vld [vmem:[#allocation2 + $0xc8] sm:$0xff]
  %v3820 = vld [vmem:[#allocation2 + $0xd0] sm:$0xff]
  %v3821 = vld [vmem:[#allocation2 + $0xd8] sm:$0xff]
  %v3822 = vld [vmem:[#allocation2 + $0xe0] sm:$0xff]
  %v3823 = vld [vmem:[#allocation2 + $0xe8] sm:$0xff]
  %v3824 = vld [vmem:[#allocation2 + $0xf0] sm:$0xff]
  %v3825 = vld [vmem:[#allocation2 + $0xf8] sm:$0xff]
  %v3826 = vld [vmem:[#allocation2 + $0x100] sm:$0xff]
  %v3827 = vld [vmem:[#allocation2 + $0x108] sm:$0xff]
  %v3828 = vld [vmem:[#allocation2 + $0x110] sm:$0xff]
  %v3829 = vld [vmem:[#allocation2 + $0x118] sm:$0xff]
  %v3830 = vld [vmem:[#allocation2 + $0x120] sm:$0xff]
  %v3831 = vld [vmem:[#allocation2 + $0x128] sm:$0xff]
  %v3832 = vld [vmem:[#allocation2 + $0x130] sm:$0xff]
  %v3833 = vld [vmem:[#allocation2 + $0x138] sm:$0xff]
  %v3834 = vld [vmem:[#allocation2 + $0x140] sm:$0xff]
  %v3835 = vld [vmem:[#allocation2 + $0x148] sm:$0xff]
  %v3836 = vld [vmem:[#allocation2 + $0x150] sm:$0xff]
  %v3837 = vld [vmem:[#allocation2 + $0x158] sm:$0xff]
  %v3838 = vld [vmem:[#allocation2 + $0x160] sm:$0xff]
  %v3839 = vld [vmem:[#allocation2 + $0x168] sm:$0xff]
  %v3840 = vld [vmem:[#allocation2 + $0x170] sm:$0xff]
  %v3841 = vld [vmem:[#allocation2 + $0x178] sm:$0xff]
  %v3842 = vld [vmem:[#allocation2 + $0x180] sm:$0xff]
  %v3843 = vld [vmem:[#allocation2 + $0x188] sm:$0xff]
  %v3844 = vld [vmem:[#allocation2 + $0x190] sm:$0xff]
  %v3845 = vld [vmem:[#allocation2 + $0x198] sm:$0xff]
  %v3846 = vld [vmem:[#allocation2 + $0x1a0] sm:$0xff]
  %v3847 = vld [vmem:[#allocation2 + $0x1a8] sm:$0xff]
  %v3848 = vld [vmem:[#allocation2 + $0x1b0] sm:$0xff]
  %v3849 = vld [vmem:[#allocation2 + $0x1b8] sm:$0xff]
  %v3850 = vld [vmem:[#allocation2 + $0x1c0] sm:$0xff]
  %v3851 = vld [vmem:[#allocation2 + $0x1c8] sm:$0xff]
  %v3852 = vld [vmem:[#allocation2 + $0x1d0] sm:$0xff]
  %v3853 = vld [vmem:[#allocation2 + $0x1d8] sm:$0xff]
  %v3854 = vld [vmem:[#allocation2 + $0x1e0] sm:$0xff]
  %v3855 = vld [vmem:[#allocation2 + $0x1e8] sm:$0xff]
  %v3856 = vld [vmem:[#allocation2 + $0x1f0] sm:$0xff]
  %v3857 = vld [vmem:[#allocation2 + $0x1f8] sm:$0xff]
  %v3858 = vld [vmem:[#allocation2 + $0x200] sm:$0xff]
  %v3859 = vld [vmem:[#allocation2 + $0x208] sm:$0xff]
  %v3860 = vld [vmem:[#allocation2 + $0x210] sm:$0xff]
  %v3861 = vld [vmem:[#allocation2 + $0x218] sm:$0xff]
  %v3862 = vld [vmem:[#allocation2 + $0x220] sm:$0xff]
  %v3863 = vld [vmem:[#allocation2 + $0x228] sm:$0xff]
  %v3864 = vld [vmem:[#allocation2 + $0x230] sm:$0xff]
  %v3865 = vld [vmem:[#allocation2 + $0x238] sm:$0xff]
  %v3866 = vld [vmem:[#allocation2 + $0x240] sm:$0xff]
  %v3867 = vld [vmem:[#allocation2 + $0x248] sm:$0xff]
  %v3868 = vld [vmem:[#allocation2 + $0x250] sm:$0xff]
  %v3869 = vld [vmem:[#allocation2 + $0x258] sm:$0xff]
  %v3870 = vld [vmem:[#allocation2 + $0x260] sm:$0xff]
  %v3871 = vld [vmem:[#allocation2 + $0x268] sm:$0xff]
  %v3872 = vld [vmem:[#allocation2 + $0x270] sm:$0xff]
  %v3873 = vld [vmem:[#allocation2 + $0x278] sm:$0xff]
  %v3874 = vld [vmem:[#allocation2 + $0x280] sm:$0xff]
  %v3875 = vld [vmem:[#allocation2 + $0x288] sm:$0xff]
  %v3876 = vld [vmem:[#allocation2 + $0x290] sm:$0xff]
  %v3877 = vld [vmem:[#allocation2 + $0x298] sm:$0xff]
  %v3878 = vld [vmem:[#allocation2 + $0x2a0] sm:$0xff]
  %v3879 = vld [vmem:[#allocation2 + $0x2a8] sm:$0xff]
  %v3880 = vld [vmem:[#allocation2 + $0x2b0] sm:$0xff]
  %v3881 = vld [vmem:[#allocation2 + $0x2b8] sm:$0xff]
  %v3882 = vld [vmem:[#allocation2 + $0x2c0] sm:$0xff]
  %v3883 = vld [vmem:[#allocation2 + $0x2c8] sm:$0xff]
  %v3884 = vld [vmem:[#allocation2 + $0x2d0] sm:$0xff]
  %v3885 = vld [vmem:[#allocation2 + $0x2d8] sm:$0xff]
  %v3886 = vld [vmem:[#allocation2 + $0x2e0] sm:$0xff]
  %v3887 = vld [vmem:[#allocation2 + $0x2e8] sm:$0xff]
  %v3888 = vld [vmem:[#allocation2 + $0x2f0] sm:$0xff]
  %v3889 = vld [vmem:[#allocation2 + $0x2f8] sm:$0xff]
  %v3890 = vadd.f32 %v3794, %v3508
  %v3891 = vadd.f32 %v3795, %v3510
  %v3892 = vadd.f32 %v3796, %v3514
  %v3893 = vadd.f32 %v3797, %v3516
  %v3894 = vadd.f32 %v3798, %v3520
  %v3895 = vadd.f32 %v3799, %v3522
  %v3896 = vadd.f32 %v3800, %v3526
  %v3897 = vadd.f32 %v3801, %v3528
  %v3898 = vadd.f32 %v3802, %v3532
  %v3899 = vadd.f32 %v3803, %v3534
  %v3900 = vadd.f32 %v3804, %v3538
  %v3901 = vadd.f32 %v3805, %v3540
  %v3902 = vadd.f32 %v3806, %v3544
  %v3903 = vadd.f32 %v3807, %v3546
  %v3904 = vadd.f32 %v3808, %v3550
  %v3905 = vadd.f32 %v3809, %v3552
  %v3906 = vadd.f32 %v3810, %v3556
  %v3907 = vadd.f32 %v3811, %v3558
  %v3908 = vadd.f32 %v3812, %v3562
  %v3909 = vadd.f32 %v3813, %v3564
  %v3910 = vadd.f32 %v3814, %v3568
  %v3911 = vadd.f32 %v3815, %v3570
  %v3912 = vadd.f32 %v3816, %v3574
  %v3913 = vadd.f32 %v3817, %v3576
  %v3914 = vadd.f32 %v3818, %v3580
  %v3915 = vadd.f32 %v3819, %v3582
  %v3916 = vadd.f32 %v3820, %v3586
  %v3917 = vadd.f32 %v3821, %v3588
  %v3918 = vadd.f32 %v3822, %v3592
  %v3919 = vadd.f32 %v3823, %v3594
  %v3920 = vadd.f32 %v3824, %v3598
  %v3921 = vadd.f32 %v3825, %v3600
  %v3922 = vadd.f32 %v3826, %v3604
  %v3923 = vadd.f32 %v3827, %v3606
  %v3924 = vadd.f32 %v3828, %v3610
  %v3925 = vadd.f32 %v3829, %v3612
  %v3926 = vadd.f32 %v3830, %v3616
  %v3927 = vadd.f32 %v3831, %v3618
  %v3928 = vadd.f32 %v3832, %v3622
  %v3929 = vadd.f32 %v3833, %v3624
  %v3930 = vadd.f32 %v3834, %v3628
  %v3931 = vadd.f32 %v3835, %v3630
  %v3932 = vadd.f32 %v3836, %v3634
  %v3933 = vadd.f32 %v3837, %v3636
  %v3934 = vadd.f32 %v3838, %v3640
  %v3935 = vadd.f32 %v3839, %v3642
  %v3936 = vadd.f32 %v3840, %v3646
  %v3937 = vadd.f32 %v3841, %v3648
  %v3938 = vadd.f32 %v3842, %v3652
  %v3939 = vadd.f32 %v3843, %v3654
  %v3940 = vadd.f32 %v3844, %v3658
  %v3941 = vadd.f32 %v3845, %v3660
  %v3942 = vadd.f32 %v3846, %v3664
  %v3943 = vadd.f32 %v3847, %v3666
  %v3944 = vadd.f32 %v3848, %v3670
  %v3945 = vadd.f32 %v3849, %v3672
  %v3946 = vadd.f32 %v3850, %v3676
  %v3947 = vadd.f32 %v3851, %v3678
  %v3948 = vadd.f32 %v3852, %v3682
  %v3949 = vadd.f32 %v3853, %v3684
  %v3950 = vadd.f32 %v3854, %v3688
  %v3951 = vadd.f32 %v3855, %v3690
  %v3952 = vadd.f32 %v3856, %v3694
  %v3953 = vadd.f32 %v3857, %v3696
  %v3954 = vadd.f32 %v3858, %v3700
  %v3955 = vadd.f32 %v3859, %v3702
  %v3956 = vadd.f32 %v3860, %v3706
  %v3957 = vadd.f32 %v3861, %v3708
  %v3958 = vadd.f32 %v3862, %v3712
  %v3959 = vadd.f32 %v3863, %v3714
  %v3960 = vadd.f32 %v3864, %v3718
  %v3961 = vadd.f32 %v3865, %v3720
  %v3962 = vadd.f32 %v3866, %v3724
  %v3963 = vadd.f32 %v3867, %v3726
  %v3964 = vadd.f32 %v3868, %v3730
  %v3965 = vadd.f32 %v3869, %v3732
  %v3966 = vadd.f32 %v3870, %v3736
  %v3967 = vadd.f32 %v3871, %v3738
  %v3968 = vadd.f32 %v3872, %v3742
  %v3969 = vadd.f32 %v3873, %v3744
  %v3970 = vadd.f32 %v3874, %v3748
  %v3971 = vadd.f32 %v3875, %v3750
  %v3972 = vadd.f32 %v3876, %v3754
  %v3973 = vadd.f32 %v3877, %v3756
  %v3974 = vadd.f32 %v3878, %v3760
  %v3975 = vadd.f32 %v3879, %v3762
  %v3976 = vadd.f32 %v3880, %v3766
  %v3977 = vadd.f32 %v3881, %v3768
  %v3978 = vadd.f32 %v3882, %v3772
  %v3979 = vadd.f32 %v3883, %v3774
  %v3980 = vadd.f32 %v3884, %v3778
  %v3981 = vadd.f32 %v3885, %v3780
  %v3982 = vadd.f32 %v3886, %v3784
  %v3983 = vadd.f32 %v3887, %v3786
  %v3984 = vadd.f32 %v3888, %v3790
  %v3985 = vadd.f32 %v3889, %v3792
  %3986 = vst [vmem:[#allocation2] sm:$0xff] %v3890
  %3987 = vst.msk [vmem:[#allocation2 + $0x8] sm:$0xff] %vm594, %v3891
  %3988 = vst [vmem:[#allocation2 + $0x10] sm:$0xff] %v3892
  %3989 = vst.msk [vmem:[#allocation2 + $0x18] sm:$0xff] %vm594, %v3893
  %3990 = vst [vmem:[#allocation2 + $0x20] sm:$0xff] %v3894
  %3991 = vst.msk [vmem:[#allocation2 + $0x28] sm:$0xff] %vm594, %v3895
  %3992 = vst [vmem:[#allocation2 + $0x30] sm:$0xff] %v3896
  %3993 = vst.msk [vmem:[#allocation2 + $0x38] sm:$0xff] %vm594, %v3897
  %3994 = vst [vmem:[#allocation2 + $0x40] sm:$0xff] %v3898
  %3995 = vst.msk [vmem:[#allocation2 + $0x48] sm:$0xff] %vm594, %v3899
  %3996 = vst [vmem:[#allocation2 + $0x50] sm:$0xff] %v3900
  %3997 = vst.msk [vmem:[#allocation2 + $0x58] sm:$0xff] %vm594, %v3901
  %3998 = vst [vmem:[#allocation2 + $0x60] sm:$0xff] %v3902
  %3999 = vst.msk [vmem:[#allocation2 + $0x68] sm:$0xff] %vm594, %v3903
  %4000 = vst [vmem:[#allocation2 + $0x70] sm:$0xff] %v3904
  %4001 = vst.msk [vmem:[#allocation2 + $0x78] sm:$0xff] %vm594, %v3905
  %4002 = vst [vmem:[#allocation2 + $0x80] sm:$0xff] %v3906
  %4003 = vst.msk [vmem:[#allocation2 + $0x88] sm:$0xff] %vm594, %v3907
  %4004 = vst [vmem:[#allocation2 + $0x90] sm:$0xff] %v3908
  %4005 = vst.msk [vmem:[#allocation2 + $0x98] sm:$0xff] %vm594, %v3909
  %4006 = vst [vmem:[#allocation2 + $0xa0] sm:$0xff] %v3910
  %4007 = vst.msk [vmem:[#allocation2 + $0xa8] sm:$0xff] %vm594, %v3911
  %4008 = vst [vmem:[#allocation2 + $0xb0] sm:$0xff] %v3912
  %4009 = vst.msk [vmem:[#allocation2 + $0xb8] sm:$0xff] %vm594, %v3913
  %4010 = vst [vmem:[#allocation2 + $0xc0] sm:$0xff] %v3914
  %4011 = vst.msk [vmem:[#allocation2 + $0xc8] sm:$0xff] %vm594, %v3915
  %4012 = vst [vmem:[#allocation2 + $0xd0] sm:$0xff] %v3916
  %4013 = vst.msk [vmem:[#allocation2 + $0xd8] sm:$0xff] %vm594, %v3917
  %4014 = vst [vmem:[#allocation2 + $0xe0] sm:$0xff] %v3918
  %4015 = vst.msk [vmem:[#allocation2 + $0xe8] sm:$0xff] %vm594, %v3919
  %4016 = vst [vmem:[#allocation2 + $0xf0] sm:$0xff] %v3920
  %4017 = vst.msk [vmem:[#allocation2 + $0xf8] sm:$0xff] %vm594, %v3921
  %4018 = vst [vmem:[#allocation2 + $0x100] sm:$0xff] %v3922
  %4019 = vst.msk [vmem:[#allocation2 + $0x108] sm:$0xff] %vm594, %v3923
  %4020 = vst [vmem:[#allocation2 + $0x110] sm:$0xff] %v3924
  %4021 = vst.msk [vmem:[#allocation2 + $0x118] sm:$0xff] %vm594, %v3925
  %4022 = vst [vmem:[#allocation2 + $0x120] sm:$0xff] %v3926
  %4023 = vst.msk [vmem:[#allocation2 + $0x128] sm:$0xff] %vm594, %v3927
  %4024 = vst [vmem:[#allocation2 + $0x130] sm:$0xff] %v3928
  %4025 = vst.msk [vmem:[#allocation2 + $0x138] sm:$0xff] %vm594, %v3929
  %4026 = vst [vmem:[#allocation2 + $0x140] sm:$0xff] %v3930
  %4027 = vst.msk [vmem:[#allocation2 + $0x148] sm:$0xff] %vm594, %v3931
  %4028 = vst [vmem:[#allocation2 + $0x150] sm:$0xff] %v3932
  %4029 = vst.msk [vmem:[#allocation2 + $0x158] sm:$0xff] %vm594, %v3933
  %4030 = vst [vmem:[#allocation2 + $0x160] sm:$0xff] %v3934
  %4031 = vst.msk [vmem:[#allocation2 + $0x168] sm:$0xff] %vm594, %v3935
  %4032 = vst [vmem:[#allocation2 + $0x170] sm:$0xff] %v3936
  %4033 = vst.msk [vmem:[#allocation2 + $0x178] sm:$0xff] %vm594, %v3937
  %4034 = vst [vmem:[#allocation2 + $0x180] sm:$0xff] %v3938
  %4035 = vst.msk [vmem:[#allocation2 + $0x188] sm:$0xff] %vm594, %v3939
  %4036 = vst [vmem:[#allocation2 + $0x190] sm:$0xff] %v3940
  %4037 = vst.msk [vmem:[#allocation2 + $0x198] sm:$0xff] %vm594, %v3941
  %4038 = vst [vmem:[#allocation2 + $0x1a0] sm:$0xff] %v3942
  %4039 = vst.msk [vmem:[#allocation2 + $0x1a8] sm:$0xff] %vm594, %v3943
  %4040 = vst [vmem:[#allocation2 + $0x1b0] sm:$0xff] %v3944
  %4041 = vst.msk [vmem:[#allocation2 + $0x1b8] sm:$0xff] %vm594, %v3945
  %4042 = vst [vmem:[#allocation2 + $0x1c0] sm:$0xff] %v3946
  %4043 = vst.msk [vmem:[#allocation2 + $0x1c8] sm:$0xff] %vm594, %v3947
  %4044 = vst [vmem:[#allocation2 + $0x1d0] sm:$0xff] %v3948
  %4045 = vst.msk [vmem:[#allocation2 + $0x1d8] sm:$0xff] %vm594, %v3949
  %4046 = vst [vmem:[#allocation2 + $0x1e0] sm:$0xff] %v3950
  %4047 = vst.msk [vmem:[#allocation2 + $0x1e8] sm:$0xff] %vm594, %v3951
  %4048 = vst [vmem:[#allocation2 + $0x1f0] sm:$0xff] %v3952
  %4049 = vst.msk [vmem:[#allocation2 + $0x1f8] sm:$0xff] %vm594, %v3953
  %4050 = vst [vmem:[#allocation2 + $0x200] sm:$0xff] %v3954
  %4051 = vst.msk [vmem:[#allocation2 + $0x208] sm:$0xff] %vm594, %v3955
  %4052 = vst [vmem:[#allocation2 + $0x210] sm:$0xff] %v3956
  %4053 = vst.msk [vmem:[#allocation2 + $0x218] sm:$0xff] %vm594, %v3957
  %4054 = vst [vmem:[#allocation2 + $0x220] sm:$0xff] %v3958
  %4055 = vst.msk [vmem:[#allocation2 + $0x228] sm:$0xff] %vm594, %v3959
  %4056 = vst [vmem:[#allocation2 + $0x230] sm:$0xff] %v3960
  %4057 = vst.msk [vmem:[#allocation2 + $0x238] sm:$0xff] %vm594, %v3961
  %4058 = vst [vmem:[#allocation2 + $0x240] sm:$0xff] %v3962
  %4059 = vst.msk [vmem:[#allocation2 + $0x248] sm:$0xff] %vm594, %v3963
  %4060 = vst [vmem:[#allocation2 + $0x250] sm:$0xff] %v3964
  %4061 = vst.msk [vmem:[#allocation2 + $0x258] sm:$0xff] %vm594, %v3965
  %4062 = vst [vmem:[#allocation2 + $0x260] sm:$0xff] %v3966
  %4063 = vst.msk [vmem:[#allocation2 + $0x268] sm:$0xff] %vm594, %v3967
  %4064 = vst [vmem:[#allocation2 + $0x270] sm:$0xff] %v3968
  %4065 = vst.msk [vmem:[#allocation2 + $0x278] sm:$0xff] %vm594, %v3969
  %4066 = vst [vmem:[#allocation2 + $0x280] sm:$0xff] %v3970
  %4067 = vst.msk [vmem:[#allocation2 + $0x288] sm:$0xff] %vm594, %v3971
  %4068 = vst [vmem:[#allocation2 + $0x290] sm:$0xff] %v3972
  %4069 = vst.msk [vmem:[#allocation2 + $0x298] sm:$0xff] %vm594, %v3973
  %4070 = vst [vmem:[#allocation2 + $0x2a0] sm:$0xff] %v3974
  %4071 = vst.msk [vmem:[#allocation2 + $0x2a8] sm:$0xff] %vm594, %v3975
  %4072 = vst [vmem:[#allocation2 + $0x2b0] sm:$0xff] %v3976
  %4073 = vst.msk [vmem:[#allocation2 + $0x2b8] sm:$0xff] %vm594, %v3977
  %4074 = vst [vmem:[#allocation2 + $0x2c0] sm:$0xff] %v3978
  %4075 = vst.msk [vmem:[#allocation2 + $0x2c8] sm:$0xff] %vm594, %v3979
  %4076 = vst [vmem:[#allocation2 + $0x2d0] sm:$0xff] %v3980
  %4077 = vst.msk [vmem:[#allocation2 + $0x2d8] sm:$0xff] %vm594, %v3981
  %4078 = vst [vmem:[#allocation2 + $0x2e0] sm:$0xff] %v3982
  %4079 = vst.msk [vmem:[#allocation2 + $0x2e8] sm:$0xff] %vm594, %v3983
  %4080 = vst [vmem:[#allocation2 + $0x2f0] sm:$0xff] %v3984
  %4081 = vst.msk [vmem:[#allocation2 + $0x2f8] sm:$0xff] %vm594, %v3985
  %v4082 = vld [vmem:[#allocation2] sm:$0xff]
  %v4083 = vld [vmem:[#allocation2 + $0x8] sm:$0xff]
  %v4084 = vld [vmem:[#allocation2 + $0x10] sm:$0xff]
  %v4085 = vld [vmem:[#allocation2 + $0x18] sm:$0xff]
  %v4086 = vld [vmem:[#allocation2 + $0x20] sm:$0xff]
  %v4087 = vld [vmem:[#allocation2 + $0x28] sm:$0xff]
  %v4088 = vld [vmem:[#allocation2 + $0x30] sm:$0xff]
  %v4089 = vld [vmem:[#allocation2 + $0x38] sm:$0xff]
  %v4090 = vmax.f32 %v4082, %v4086
  %v4091 = vmax.f32 %v4083, %v4087
  %v4092 = vmax.f32 %v4084, %v4088
  %v4093 = vmax.f32 %v4085, %v4089
  %4098 = vrot.lane.b32.xlu0 %v4090, 118
  %v4099 = vpop.permute.xlu0 %4098
  %4100 = vrot.lane.b32.xlu0 %v4091, 118
  %v4101 = vpop.permute.xlu0 %4100
  %4102 = vrot.lane.b32.xlu0 %v4092, 118
  %v4103 = vpop.permute.xlu0 %4102
  %4104 = vrot.lane.b32.xlu0 %v4093, 118
  %v4105 = vpop.permute.xlu0 %4104
  %vm4106 = vcmask 965632
  %v4107 = vsel %vm4106, %v4099, %v4101
  %v4108 = vsel %vm4106, %v4103, %v4105
  %v4113 = vmax.f32 %v4090, %v4107
  %v4114 = vmax.f32 %v4091, %v4101
  %v4115 = vmax.f32 %v4092, %v4108
  %v4116 = vmax.f32 %v4093, %v4105
  %v4117 = vld [vmem:[%s2] sm:$0x3]
  %v4119 = vlaneseq
  %v4120 = vshrl.u32 %v4119, 7
  %v4121 = vsub.s32 0, %v4120
  %v4122 = vrot.slane %v4117, %v4121
  %v4123 = vlaneseq
  %v4124 = vshrl.u32 %v4123, 7
  %v4125 = vsub.s32 1, %v4124
  %v4126 = vrot.slane %v4117, %v4125
  %v4129 = vadd.f32 %v4113, %v4122
  %v4130 = vadd.f32 %v4114, %v4126
  %v4131 = vadd.f32 %v4115, %v4122
  %v4132 = vadd.f32 %v4116, %v4126
  %v4133 = vmax.f32 %v4129, 0.0
  %v4134 = vmax.f32 %v4130, 0.0
  %v4135 = vmax.f32 %v4131, 0.0
  %v4136 = vmax.f32 %v4132, 0.0
  %4137 = vst [vmem:[#allocation3] sm:$0xff] %v4133
  %vm4138 = vcmask 834560
  %4139 = vst.msk [vmem:[#allocation3 + $0x8] sm:$0xff] %vm4138, %v4134
  %4140 = vst [vmem:[#allocation3 + $0x10] sm:$0xff] %v4135
  %4141 = vst.msk [vmem:[#allocation3 + $0x18] sm:$0xff] %vm4138, %v4136
  %v4142 = vld [vmem:[#allocation2 + $0x40] sm:$0xff]
  %v4143 = vld [vmem:[#allocation2 + $0x48] sm:$0xff]
  %v4144 = vld [vmem:[#allocation2 + $0x50] sm:$0xff]
  %v4145 = vld [vmem:[#allocation2 + $0x58] sm:$0xff]
  %v4146 = vld [vmem:[#allocation2 + $0x60] sm:$0xff]
  %v4147 = vld [vmem:[#allocation2 + $0x68] sm:$0xff]
  %v4148 = vld [vmem:[#allocation2 + $0x70] sm:$0xff]
  %v4149 = vld [vmem:[#allocation2 + $0x78] sm:$0xff]
  %v4150 = vmax.f32 %v4142, %v4146
  %v4151 = vmax.f32 %v4143, %v4147
  %v4152 = vmax.f32 %v4144, %v4148
  %v4153 = vmax.f32 %v4145, %v4149
  %4158 = vrot.lane.b32.xlu0 %v4150, 118
  %v4159 = vpop.permute.xlu0 %4158
  %4160 = vrot.lane.b32.xlu0 %v4151, 118
  %v4161 = vpop.permute.xlu0 %4160
  %4162 = vrot.lane.b32.xlu0 %v4152, 118
  %v4163 = vpop.permute.xlu0 %4162
  %4164 = vrot.lane.b32.xlu0 %v4153, 118
  %v4165 = vpop.permute.xlu0 %4164
  %v4166 = vsel %vm4106, %v4159, %v4161
  %v4167 = vsel %vm4106, %v4163, %v4165
  %v4172 = vmax.f32 %v4150, %v4166
  %v4173 = vmax.f32 %v4151, %v4161
  %v4174 = vmax.f32 %v4152, %v4167
  %v4175 = vmax.f32 %v4153, %v4165
  %v4176 = vld [vmem:[%s2] sm:$0x3]
  %v4178 = vlaneseq
  %v4179 = vshrl.u32 %v4178, 7
  %v4180 = vsub.s32 0, %v4179
  %v4181 = vrot.slane %v4176, %v4180
  %v4182 = vlaneseq
  %v4183 = vshrl.u32 %v4182, 7
  %v4184 = vsub.s32 1, %v4183
  %v4185 = vrot.slane %v4176, %v4184
  %v4188 = vadd.f32 %v4172, %v4181
  %v4189 = vadd.f32 %v4173, %v4185
  %v4190 = vadd.f32 %v4174, %v4181
  %v4191 = vadd.f32 %v4175, %v4185
  %v4192 = vmax.f32 %v4188, 0.0
  %v4193 = vmax.f32 %v4189, 0.0
  %v4194 = vmax.f32 %v4190, 0.0
  %v4195 = vmax.f32 %v4191, 0.0
  %4196 = vst [vmem:[#allocation3 + $0x20] sm:$0xff] %v4192
  %4197 = vst.msk [vmem:[#allocation3 + $0x28] sm:$0xff] %vm4138, %v4193
  %4198 = vst [vmem:[#allocation3 + $0x30] sm:$0xff] %v4194
  %4199 = vst.msk [vmem:[#allocation3 + $0x38] sm:$0xff] %vm4138, %v4195
  %v4200 = vld [vmem:[#allocation2 + $0x80] sm:$0xff]
  %v4201 = vld [vmem:[#allocation2 + $0x88] sm:$0xff]
  %v4202 = vld [vmem:[#allocation2 + $0x90] sm:$0xff]
  %v4203 = vld [vmem:[#allocation2 + $0x98] sm:$0xff]
  %v4204 = vld [vmem:[#allocation2 + $0xa0] sm:$0xff]
  %v4205 = vld [vmem:[#allocation2 + $0xa8] sm:$0xff]
  %v4206 = vld [vmem:[#allocation2 + $0xb0] sm:$0xff]
  %v4207 = vld [vmem:[#allocation2 + $0xb8] sm:$0xff]
  %v4208 = vmax.f32 %v4200, %v4204
  %v4209 = vmax.f32 %v4201, %v4205
  %v4210 = vmax.f32 %v4202, %v4206
  %v4211 = vmax.f32 %v4203, %v4207
  %4216 = vrot.lane.b32.xlu0 %v4208, 118
  %v4217 = vpop.permute.xlu0 %4216
  %4218 = vrot.lane.b32.xlu0 %v4209, 118
  %v4219 = vpop.permute.xlu0 %4218
  %4220 = vrot.lane.b32.xlu0 %v4210, 118
  %v4221 = vpop.permute.xlu0 %4220
  %4222 = vrot.lane.b32.xlu0 %v4211, 118
  %v4223 = vpop.permute.xlu0 %4222
  %v4224 = vsel %vm4106, %v4217, %v4219
  %v4225 = vsel %vm4106, %v4221, %v4223
  %v4230 = vmax.f32 %v4208, %v4224
  %v4231 = vmax.f32 %v4209, %v4219
  %v4232 = vmax.f32 %v4210, %v4225
  %v4233 = vmax.f32 %v4211, %v4223
  %v4234 = vld [vmem:[%s2] sm:$0x3]
  %v4236 = vlaneseq
  %v4237 = vshrl.u32 %v4236, 7
  %v4238 = vsub.s32 0, %v4237
  %v4239 = vrot.slane %v4234, %v4238
  %v4240 = vlaneseq
  %v4241 = vshrl.u32 %v4240, 7
  %v4242 = vsub.s32 1, %v4241
  %v4243 = vrot.slane %v4234, %v4242
  %v4246 = vadd.f32 %v4230, %v4239
  %v4247 = vadd.f32 %v4231, %v4243
  %v4248 = vadd.f32 %v4232, %v4239
  %v4249 = vadd.f32 %v4233, %v4243
  %v4250 = vmax.f32 %v4246, 0.0
  %v4251 = vmax.f32 %v4247, 0.0
  %v4252 = vmax.f32 %v4248, 0.0
  %v4253 = vmax.f32 %v4249, 0.0
  %4254 = vst [vmem:[#allocation3 + $0x40] sm:$0xff] %v4250
  %4255 = vst.msk [vmem:[#allocation3 + $0x48] sm:$0xff] %vm4138, %v4251
  %4256 = vst [vmem:[#allocation3 + $0x50] sm:$0xff] %v4252
  %4257 = vst.msk [vmem:[#allocation3 + $0x58] sm:$0xff] %vm4138, %v4253
  %v4258 = vld [vmem:[#allocation2 + $0xc0] sm:$0xff]
  %v4259 = vld [vmem:[#allocation2 + $0xc8] sm:$0xff]
  %v4260 = vld [vmem:[#allocation2 + $0xd0] sm:$0xff]
  %v4261 = vld [vmem:[#allocation2 + $0xd8] sm:$0xff]
  %v4262 = vld [vmem:[#allocation2 + $0xe0] sm:$0xff]
  %v4263 = vld [vmem:[#allocation2 + $0xe8] sm:$0xff]
  %v4264 = vld [vmem:[#allocation2 + $0xf0] sm:$0xff]
  %v4265 = vld [vmem:[#allocation2 + $0xf8] sm:$0xff]
  %v4266 = vmax.f32 %v4258, %v4262
  %v4267 = vmax.f32 %v4259, %v4263
  %v4268 = vmax.f32 %v4260, %v4264
  %v4269 = vmax.f32 %v4261, %v4265
  %4274 = vrot.lane.b32.xlu0 %v4266, 118
  %v4275 = vpop.permute.xlu0 %4274
  %4276 = vrot.lane.b32.xlu0 %v4267, 118
  %v4277 = vpop.permute.xlu0 %4276
  %4278 = vrot.lane.b32.xlu0 %v4268, 118
  %v4279 = vpop.permute.xlu0 %4278
  %4280 = vrot.lane.b32.xlu0 %v4269, 118
  %v4281 = vpop.permute.xlu0 %4280
  %v4282 = vsel %vm4106, %v4275, %v4277
  %v4283 = vsel %vm4106, %v4279, %v4281
  %v4288 = vmax.f32 %v4266, %v4282
  %v4289 = vmax.f32 %v4267, %v4277
  %v4290 = vmax.f32 %v4268, %v4283
  %v4291 = vmax.f32 %v4269, %v4281
  %v4292 = vld [vmem:[%s2] sm:$0x3]
  %v4294 = vlaneseq
  %v4295 = vshrl.u32 %v4294, 7
  %v4296 = vsub.s32 0, %v4295
  %v4297 = vrot.slane %v4292, %v4296
  %v4298 = vlaneseq
  %v4299 = vshrl.u32 %v4298, 7
  %v4300 = vsub.s32 1, %v4299
  %v4301 = vrot.slane %v4292, %v4300
  %v4304 = vadd.f32 %v4288, %v4297
  %v4305 = vadd.f32 %v4289, %v4301
  %v4306 = vadd.f32 %v4290, %v4297
  %v4307 = vadd.f32 %v4291, %v4301
  %v4308 = vmax.f32 %v4304, 0.0
  %v4309 = vmax.f32 %v4305, 0.0
  %v4310 = vmax.f32 %v4306, 0.0
  %v4311 = vmax.f32 %v4307, 0.0
  %4312 = vst [vmem:[#allocation3 + $0x60] sm:$0xff] %v4308
  %4313 = vst.msk [vmem:[#allocation3 + $0x68] sm:$0xff] %vm4138, %v4309
  %4314 = vst [vmem:[#allocation3 + $0x70] sm:$0xff] %v4310
  %4315 = vst.msk [vmem:[#allocation3 + $0x78] sm:$0xff] %vm4138, %v4311
  %v4316 = vld [vmem:[#allocation2 + $0x100] sm:$0xff]
  %v4317 = vld [vmem:[#allocation2 + $0x108] sm:$0xff]
  %v4318 = vld [vmem:[#allocation2 + $0x110] sm:$0xff]
  %v4319 = vld [vmem:[#allocation2 + $0x118] sm:$0xff]
  %v4320 = vld [vmem:[#allocation2 + $0x120] sm:$0xff]
  %v4321 = vld [vmem:[#allocation2 + $0x128] sm:$0xff]
  %v4322 = vld [vmem:[#allocation2 + $0x130] sm:$0xff]
  %v4323 = vld [vmem:[#allocation2 + $0x138] sm:$0xff]
  %v4324 = vmax.f32 %v4316, %v4320
  %v4325 = vmax.f32 %v4317, %v4321
  %v4326 = vmax.f32 %v4318, %v4322
  %v4327 = vmax.f32 %v4319, %v4323
  %4332 = vrot.lane.b32.xlu0 %v4324, 118
  %v4333 = vpop.permute.xlu0 %4332
  %4334 = vrot.lane.b32.xlu0 %v4325, 118
  %v4335 = vpop.permute.xlu0 %4334
  %4336 = vrot.lane.b32.xlu0 %v4326, 118
  %v4337 = vpop.permute.xlu0 %4336
  %4338 = vrot.lane.b32.xlu0 %v4327, 118
  %v4339 = vpop.permute.xlu0 %4338
  %v4340 = vsel %vm4106, %v4333, %v4335
  %v4341 = vsel %vm4106, %v4337, %v4339
  %v4346 = vmax.f32 %v4324, %v4340
  %v4347 = vmax.f32 %v4325, %v4335
  %v4348 = vmax.f32 %v4326, %v4341
  %v4349 = vmax.f32 %v4327, %v4339
  %v4350 = vld [vmem:[%s2] sm:$0x3]
  %v4352 = vlaneseq
  %v4353 = vshrl.u32 %v4352, 7
  %v4354 = vsub.s32 0, %v4353
  %v4355 = vrot.slane %v4350, %v4354
  %v4356 = vlaneseq
  %v4357 = vshrl.u32 %v4356, 7
  %v4358 = vsub.s32 1, %v4357
  %v4359 = vrot.slane %v4350, %v4358
  %v4362 = vadd.f32 %v4346, %v4355
  %v4363 = vadd.f32 %v4347, %v4359
  %v4364 = vadd.f32 %v4348, %v4355
  %v4365 = vadd.f32 %v4349, %v4359
  %v4366 = vmax.f32 %v4362, 0.0
  %v4367 = vmax.f32 %v4363, 0.0
  %v4368 = vmax.f32 %v4364, 0.0
  %v4369 = vmax.f32 %v4365, 0.0
  %4370 = vst [vmem:[#allocation3 + $0x80] sm:$0xff] %v4366
  %4371 = vst.msk [vmem:[#allocation3 + $0x88] sm:$0xff] %vm4138, %v4367
  %4372 = vst [vmem:[#allocation3 + $0x90] sm:$0xff] %v4368
  %4373 = vst.msk [vmem:[#allocation3 + $0x98] sm:$0xff] %vm4138, %v4369
  %v4374 = vld [vmem:[#allocation2 + $0x140] sm:$0xff]
  %v4375 = vld [vmem:[#allocation2 + $0x148] sm:$0xff]
  %v4376 = vld [vmem:[#allocation2 + $0x150] sm:$0xff]
  %v4377 = vld [vmem:[#allocation2 + $0x158] sm:$0xff]
  %v4378 = vld [vmem:[#allocation2 + $0x160] sm:$0xff]
  %v4379 = vld [vmem:[#allocation2 + $0x168] sm:$0xff]
  %v4380 = vld [vmem:[#allocation2 + $0x170] sm:$0xff]
  %v4381 = vld [vmem:[#allocation2 + $0x178] sm:$0xff]
  %v4382 = vmax.f32 %v4374, %v4378
  %v4383 = vmax.f32 %v4375, %v4379
  %v4384 = vmax.f32 %v4376, %v4380
  %v4385 = vmax.f32 %v4377, %v4381
  %4390 = vrot.lane.b32.xlu0 %v4382, 118
  %v4391 = vpop.permute.xlu0 %4390
  %4392 = vrot.lane.b32.xlu0 %v4383, 118
  %v4393 = vpop.permute.xlu0 %4392
  %4394 = vrot.lane.b32.xlu0 %v4384, 118
  %v4395 = vpop.permute.xlu0 %4394
  %4396 = vrot.lane.b32.xlu0 %v4385, 118
  %v4397 = vpop.permute.xlu0 %4396
  %v4398 = vsel %vm4106, %v4391, %v4393
  %v4399 = vsel %vm4106, %v4395, %v4397
  %v4404 = vmax.f32 %v4382, %v4398
  %v4405 = vmax.f32 %v4383, %v4393
  %v4406 = vmax.f32 %v4384, %v4399
  %v4407 = vmax.f32 %v4385, %v4397
  %v4408 = vld [vmem:[%s2] sm:$0x3]
  %v4410 = vlaneseq
  %v4411 = vshrl.u32 %v4410, 7
  %v4412 = vsub.s32 0, %v4411
  %v4413 = vrot.slane %v4408, %v4412
  %v4414 = vlaneseq
  %v4415 = vshrl.u32 %v4414, 7
  %v4416 = vsub.s32 1, %v4415
  %v4417 = vrot.slane %v4408, %v4416
  %v4420 = vadd.f32 %v4404, %v4413
  %v4421 = vadd.f32 %v4405, %v4417
  %v4422 = vadd.f32 %v4406, %v4413
  %v4423 = vadd.f32 %v4407, %v4417
  %v4424 = vmax.f32 %v4420, 0.0
  %v4425 = vmax.f32 %v4421, 0.0
  %v4426 = vmax.f32 %v4422, 0.0
  %v4427 = vmax.f32 %v4423, 0.0
  %4428 = vst [vmem:[#allocation3 + $0xa0] sm:$0xff] %v4424
  %4429 = vst.msk [vmem:[#allocation3 + $0xa8] sm:$0xff] %vm4138, %v4425
  %4430 = vst [vmem:[#allocation3 + $0xb0] sm:$0xff] %v4426
  %4431 = vst.msk [vmem:[#allocation3 + $0xb8] sm:$0xff] %vm4138, %v4427
  %v4432 = vld [vmem:[#allocation2 + $0x180] sm:$0xff]
  %v4433 = vld [vmem:[#allocation2 + $0x188] sm:$0xff]
  %v4434 = vld [vmem:[#allocation2 + $0x190] sm:$0xff]
  %v4435 = vld [vmem:[#allocation2 + $0x198] sm:$0xff]
  %v4436 = vld [vmem:[#allocation2 + $0x1a0] sm:$0xff]
  %v4437 = vld [vmem:[#allocation2 + $0x1a8] sm:$0xff]
  %v4438 = vld [vmem:[#allocation2 + $0x1b0] sm:$0xff]
  %v4439 = vld [vmem:[#allocation2 + $0x1b8] sm:$0xff]
  %v4440 = vmax.f32 %v4432, %v4436
  %v4441 = vmax.f32 %v4433, %v4437
  %v4442 = vmax.f32 %v4434, %v4438
  %v4443 = vmax.f32 %v4435, %v4439
  %4448 = vrot.lane.b32.xlu0 %v4440, 118
  %v4449 = vpop.permute.xlu0 %4448
  %4450 = vrot.lane.b32.xlu0 %v4441, 118
  %v4451 = vpop.permute.xlu0 %4450
  %4452 = vrot.lane.b32.xlu0 %v4442, 118
  %v4453 = vpop.permute.xlu0 %4452
  %4454 = vrot.lane.b32.xlu0 %v4443, 118
  %v4455 = vpop.permute.xlu0 %4454
  %v4456 = vsel %vm4106, %v4449, %v4451
  %v4457 = vsel %vm4106, %v4453, %v4455
  %v4462 = vmax.f32 %v4440, %v4456
  %v4463 = vmax.f32 %v4441, %v4451
  %v4464 = vmax.f32 %v4442, %v4457
  %v4465 = vmax.f32 %v4443, %v4455
  %v4466 = vld [vmem:[%s2] sm:$0x3]
  %v4468 = vlaneseq
  %v4469 = vshrl.u32 %v4468, 7
  %v4470 = vsub.s32 0, %v4469
  %v4471 = vrot.slane %v4466, %v4470
  %v4472 = vlaneseq
  %v4473 = vshrl.u32 %v4472, 7
  %v4474 = vsub.s32 1, %v4473
  %v4475 = vrot.slane %v4466, %v4474
  %v4478 = vadd.f32 %v4462, %v4471
  %v4479 = vadd.f32 %v4463, %v4475
  %v4480 = vadd.f32 %v4464, %v4471
  %v4481 = vadd.f32 %v4465, %v4475
  %v4482 = vmax.f32 %v4478, 0.0
  %v4483 = vmax.f32 %v4479, 0.0
  %v4484 = vmax.f32 %v4480, 0.0
  %v4485 = vmax.f32 %v4481, 0.0
  %4486 = vst [vmem:[#allocation3 + $0xc0] sm:$0xff] %v4482
  %4487 = vst.msk [vmem:[#allocation3 + $0xc8] sm:$0xff] %vm4138, %v4483
  %4488 = vst [vmem:[#allocation3 + $0xd0] sm:$0xff] %v4484
  %4489 = vst.msk [vmem:[#allocation3 + $0xd8] sm:$0xff] %vm4138, %v4485
  %v4490 = vld [vmem:[#allocation2 + $0x1c0] sm:$0xff]
  %v4491 = vld [vmem:[#allocation2 + $0x1c8] sm:$0xff]
  %v4492 = vld [vmem:[#allocation2 + $0x1d0] sm:$0xff]
  %v4493 = vld [vmem:[#allocation2 + $0x1d8] sm:$0xff]
  %v4494 = vld [vmem:[#allocation2 + $0x1e0] sm:$0xff]
  %v4495 = vld [vmem:[#allocation2 + $0x1e8] sm:$0xff]
  %v4496 = vld [vmem:[#allocation2 + $0x1f0] sm:$0xff]
  %v4497 = vld [vmem:[#allocation2 + $0x1f8] sm:$0xff]
  %v4498 = vmax.f32 %v4490, %v4494
  %v4499 = vmax.f32 %v4491, %v4495
  %v4500 = vmax.f32 %v4492, %v4496
  %v4501 = vmax.f32 %v4493, %v4497
  %4506 = vrot.lane.b32.xlu0 %v4498, 118
  %v4507 = vpop.permute.xlu0 %4506
  %4508 = vrot.lane.b32.xlu0 %v4499, 118
  %v4509 = vpop.permute.xlu0 %4508
  %4510 = vrot.lane.b32.xlu0 %v4500, 118
  %v4511 = vpop.permute.xlu0 %4510
  %4512 = vrot.lane.b32.xlu0 %v4501, 118
  %v4513 = vpop.permute.xlu0 %4512
  %v4514 = vsel %vm4106, %v4507, %v4509
  %v4515 = vsel %vm4106, %v4511, %v4513
  %v4520 = vmax.f32 %v4498, %v4514
  %v4521 = vmax.f32 %v4499, %v4509
  %v4522 = vmax.f32 %v4500, %v4515
  %v4523 = vmax.f32 %v4501, %v4513
  %v4524 = vld [vmem:[%s2] sm:$0x3]
  %v4526 = vlaneseq
  %v4527 = vshrl.u32 %v4526, 7
  %v4528 = vsub.s32 0, %v4527
  %v4529 = vrot.slane %v4524, %v4528
  %v4530 = vlaneseq
  %v4531 = vshrl.u32 %v4530, 7
  %v4532 = vsub.s32 1, %v4531
  %v4533 = vrot.slane %v4524, %v4532
  %v4536 = vadd.f32 %v4520, %v4529
  %v4537 = vadd.f32 %v4521, %v4533
  %v4538 = vadd.f32 %v4522, %v4529
  %v4539 = vadd.f32 %v4523, %v4533
  %v4540 = vmax.f32 %v4536, 0.0
  %v4541 = vmax.f32 %v4537, 0.0
  %v4542 = vmax.f32 %v4538, 0.0
  %v4543 = vmax.f32 %v4539, 0.0
  %4544 = vst [vmem:[#allocation3 + $0xe0] sm:$0xff] %v4540
  %4545 = vst.msk [vmem:[#allocation3 + $0xe8] sm:$0xff] %vm4138, %v4541
  %4546 = vst [vmem:[#allocation3 + $0xf0] sm:$0xff] %v4542
  %4547 = vst.msk [vmem:[#allocation3 + $0xf8] sm:$0xff] %vm4138, %v4543
  %v4548 = vld [vmem:[#allocation2 + $0x200] sm:$0xff]
  %v4549 = vld [vmem:[#allocation2 + $0x208] sm:$0xff]
  %v4550 = vld [vmem:[#allocation2 + $0x210] sm:$0xff]
  %v4551 = vld [vmem:[#allocation2 + $0x218] sm:$0xff]
  %v4552 = vld [vmem:[#allocation2 + $0x220] sm:$0xff]
  %v4553 = vld [vmem:[#allocation2 + $0x228] sm:$0xff]
  %v4554 = vld [vmem:[#allocation2 + $0x230] sm:$0xff]
  %v4555 = vld [vmem:[#allocation2 + $0x238] sm:$0xff]
  %v4556 = vmax.f32 %v4548, %v4552
  %v4557 = vmax.f32 %v4549, %v4553
  %v4558 = vmax.f32 %v4550, %v4554
  %v4559 = vmax.f32 %v4551, %v4555
  %4564 = vrot.lane.b32.xlu0 %v4556, 118
  %v4565 = vpop.permute.xlu0 %4564
  %4566 = vrot.lane.b32.xlu0 %v4557, 118
  %v4567 = vpop.permute.xlu0 %4566
  %4568 = vrot.lane.b32.xlu0 %v4558, 118
  %v4569 = vpop.permute.xlu0 %4568
  %4570 = vrot.lane.b32.xlu0 %v4559, 118
  %v4571 = vpop.permute.xlu0 %4570
  %v4572 = vsel %vm4106, %v4565, %v4567
  %v4573 = vsel %vm4106, %v4569, %v4571
  %v4578 = vmax.f32 %v4556, %v4572
  %v4579 = vmax.f32 %v4557, %v4567
  %v4580 = vmax.f32 %v4558, %v4573
  %v4581 = vmax.f32 %v4559, %v4571
  %v4582 = vld [vmem:[%s2] sm:$0x3]
  %v4584 = vlaneseq
  %v4585 = vshrl.u32 %v4584, 7
  %v4586 = vsub.s32 0, %v4585
  %v4587 = vrot.slane %v4582, %v4586
  %v4588 = vlaneseq
  %v4589 = vshrl.u32 %v4588, 7
  %v4590 = vsub.s32 1, %v4589
  %v4591 = vrot.slane %v4582, %v4590
  %v4594 = vadd.f32 %v4578, %v4587
  %v4595 = vadd.f32 %v4579, %v4591
  %v4596 = vadd.f32 %v4580, %v4587
  %v4597 = vadd.f32 %v4581, %v4591
  %v4598 = vmax.f32 %v4594, 0.0
  %v4599 = vmax.f32 %v4595, 0.0
  %v4600 = vmax.f32 %v4596, 0.0
  %v4601 = vmax.f32 %v4597, 0.0
  %4602 = vst [vmem:[#allocation3 + $0x100] sm:$0xff] %v4598
  %4603 = vst.msk [vmem:[#allocation3 + $0x108] sm:$0xff] %vm4138, %v4599
  %4604 = vst [vmem:[#allocation3 + $0x110] sm:$0xff] %v4600
  %4605 = vst.msk [vmem:[#allocation3 + $0x118] sm:$0xff] %vm4138, %v4601
  %v4606 = vld [vmem:[#allocation2 + $0x240] sm:$0xff]
  %v4607 = vld [vmem:[#allocation2 + $0x248] sm:$0xff]
  %v4608 = vld [vmem:[#allocation2 + $0x250] sm:$0xff]
  %v4609 = vld [vmem:[#allocation2 + $0x258] sm:$0xff]
  %v4610 = vld [vmem:[#allocation2 + $0x260] sm:$0xff]
  %v4611 = vld [vmem:[#allocation2 + $0x268] sm:$0xff]
  %v4612 = vld [vmem:[#allocation2 + $0x270] sm:$0xff]
  %v4613 = vld [vmem:[#allocation2 + $0x278] sm:$0xff]
  %v4614 = vmax.f32 %v4606, %v4610
  %v4615 = vmax.f32 %v4607, %v4611
  %v4616 = vmax.f32 %v4608, %v4612
  %v4617 = vmax.f32 %v4609, %v4613
  %4622 = vrot.lane.b32.xlu0 %v4614, 118
  %v4623 = vpop.permute.xlu0 %4622
  %4624 = vrot.lane.b32.xlu0 %v4615, 118
  %v4625 = vpop.permute.xlu0 %4624
  %4626 = vrot.lane.b32.xlu0 %v4616, 118
  %v4627 = vpop.permute.xlu0 %4626
  %4628 = vrot.lane.b32.xlu0 %v4617, 118
  %v4629 = vpop.permute.xlu0 %4628
  %v4630 = vsel %vm4106, %v4623, %v4625
  %v4631 = vsel %vm4106, %v4627, %v4629
  %v4636 = vmax.f32 %v4614, %v4630
  %v4637 = vmax.f32 %v4615, %v4625
  %v4638 = vmax.f32 %v4616, %v4631
  %v4639 = vmax.f32 %v4617, %v4629
  %v4640 = vld [vmem:[%s2] sm:$0x3]
  %v4642 = vlaneseq
  %v4643 = vshrl.u32 %v4642, 7
  %v4644 = vsub.s32 0, %v4643
  %v4645 = vrot.slane %v4640, %v4644
  %v4646 = vlaneseq
  %v4647 = vshrl.u32 %v4646, 7
  %v4648 = vsub.s32 1, %v4647
  %v4649 = vrot.slane %v4640, %v4648
  %v4652 = vadd.f32 %v4636, %v4645
  %v4653 = vadd.f32 %v4637, %v4649
  %v4654 = vadd.f32 %v4638, %v4645
  %v4655 = vadd.f32 %v4639, %v4649
  %v4656 = vmax.f32 %v4652, 0.0
  %v4657 = vmax.f32 %v4653, 0.0
  %v4658 = vmax.f32 %v4654, 0.0
  %v4659 = vmax.f32 %v4655, 0.0
  %4660 = vst [vmem:[#allocation3 + $0x120] sm:$0xff] %v4656
  %4661 = vst.msk [vmem:[#allocation3 + $0x128] sm:$0xff] %vm4138, %v4657
  %4662 = vst [vmem:[#allocation3 + $0x130] sm:$0xff] %v4658
  %4663 = vst.msk [vmem:[#allocation3 + $0x138] sm:$0xff] %vm4138, %v4659
  %v4664 = vld [vmem:[#allocation2 + $0x280] sm:$0xff]
  %v4665 = vld [vmem:[#allocation2 + $0x288] sm:$0xff]
  %v4666 = vld [vmem:[#allocation2 + $0x290] sm:$0xff]
  %v4667 = vld [vmem:[#allocation2 + $0x298] sm:$0xff]
  %v4668 = vld [vmem:[#allocation2 + $0x2a0] sm:$0xff]
  %v4669 = vld [vmem:[#allocation2 + $0x2a8] sm:$0xff]
  %v4670 = vld [vmem:[#allocation2 + $0x2b0] sm:$0xff]
  %v4671 = vld [vmem:[#allocation2 + $0x2b8] sm:$0xff]
  %v4672 = vmax.f32 %v4664, %v4668
  %v4673 = vmax.f32 %v4665, %v4669
  %v4674 = vmax.f32 %v4666, %v4670
  %v4675 = vmax.f32 %v4667, %v4671
  %4680 = vrot.lane.b32.xlu0 %v4672, 118
  %v4681 = vpop.permute.xlu0 %4680
  %4682 = vrot.lane.b32.xlu0 %v4673, 118
  %v4683 = vpop.permute.xlu0 %4682
  %4684 = vrot.lane.b32.xlu0 %v4674, 118
  %v4685 = vpop.permute.xlu0 %4684
  %4686 = vrot.lane.b32.xlu0 %v4675, 118
  %v4687 = vpop.permute.xlu0 %4686
  %v4688 = vsel %vm4106, %v4681, %v4683
  %v4689 = vsel %vm4106, %v4685, %v4687
  %v4694 = vmax.f32 %v4672, %v4688
  %v4695 = vmax.f32 %v4673, %v4683
  %v4696 = vmax.f32 %v4674, %v4689
  %v4697 = vmax.f32 %v4675, %v4687
  %v4698 = vld [vmem:[%s2] sm:$0x3]
  %v4700 = vlaneseq
  %v4701 = vshrl.u32 %v4700, 7
  %v4702 = vsub.s32 0, %v4701
  %v4703 = vrot.slane %v4698, %v4702
  %v4704 = vlaneseq
  %v4705 = vshrl.u32 %v4704, 7
  %v4706 = vsub.s32 1, %v4705
  %v4707 = vrot.slane %v4698, %v4706
  %v4710 = vadd.f32 %v4694, %v4703
  %v4711 = vadd.f32 %v4695, %v4707
  %v4712 = vadd.f32 %v4696, %v4703
  %v4713 = vadd.f32 %v4697, %v4707
  %v4714 = vmax.f32 %v4710, 0.0
  %v4715 = vmax.f32 %v4711, 0.0
  %v4716 = vmax.f32 %v4712, 0.0
  %v4717 = vmax.f32 %v4713, 0.0
  %4718 = vst [vmem:[#allocation3 + $0x140] sm:$0xff] %v4714
  %4719 = vst.msk [vmem:[#allocation3 + $0x148] sm:$0xff] %vm4138, %v4715
  %4720 = vst [vmem:[#allocation3 + $0x150] sm:$0xff] %v4716
  %4721 = vst.msk [vmem:[#allocation3 + $0x158] sm:$0xff] %vm4138, %v4717
  %v4722 = vld [vmem:[#allocation2 + $0x2c0] sm:$0xff]
  %v4723 = vld [vmem:[#allocation2 + $0x2c8] sm:$0xff]
  %v4724 = vld [vmem:[#allocation2 + $0x2d0] sm:$0xff]
  %v4725 = vld [vmem:[#allocation2 + $0x2d8] sm:$0xff]
  %v4726 = vld [vmem:[#allocation2 + $0x2e0] sm:$0xff]
  %v4727 = vld [vmem:[#allocation2 + $0x2e8] sm:$0xff]
  %v4728 = vld [vmem:[#allocation2 + $0x2f0] sm:$0xff]
  %v4729 = vld [vmem:[#allocation2 + $0x2f8] sm:$0xff]
  %v4730 = vmax.f32 %v4722, %v4726
  %v4731 = vmax.f32 %v4723, %v4727
  %v4732 = vmax.f32 %v4724, %v4728
  %v4733 = vmax.f32 %v4725, %v4729
  %4738 = vrot.lane.b32.xlu0 %v4730, 118
  %v4739 = vpop.permute.xlu0 %4738
  %4740 = vrot.lane.b32.xlu0 %v4731, 118
  %v4741 = vpop.permute.xlu0 %4740
  %4742 = vrot.lane.b32.xlu0 %v4732, 118
  %v4743 = vpop.permute.xlu0 %4742
  %4744 = vrot.lane.b32.xlu0 %v4733, 118
  %v4745 = vpop.permute.xlu0 %4744
  %v4746 = vsel %vm4106, %v4739, %v4741
  %v4747 = vsel %vm4106, %v4743, %v4745
  %v4752 = vmax.f32 %v4730, %v4746
  %v4753 = vmax.f32 %v4731, %v4741
  %v4754 = vmax.f32 %v4732, %v4747
  %v4755 = vmax.f32 %v4733, %v4745
  %v4756 = vld [vmem:[%s2] sm:$0x3]
  %v4758 = vlaneseq
  %v4759 = vshrl.u32 %v4758, 7
  %v4760 = vsub.s32 0, %v4759
  %v4761 = vrot.slane %v4756, %v4760
  %v4762 = vlaneseq
  %v4763 = vshrl.u32 %v4762, 7
  %v4764 = vsub.s32 1, %v4763
  %v4765 = vrot.slane %v4756, %v4764
  %v4768 = vadd.f32 %v4752, %v4761
  %v4769 = vadd.f32 %v4753, %v4765
  %v4770 = vadd.f32 %v4754, %v4761
  %v4771 = vadd.f32 %v4755, %v4765
  %v4772 = vmax.f32 %v4768, 0.0
  %v4773 = vmax.f32 %v4769, 0.0
  %v4774 = vmax.f32 %v4770, 0.0
  %v4775 = vmax.f32 %v4771, 0.0
  %4776 = vst [vmem:[#allocation3 + $0x160] sm:$0xff] %v4772
  %4777 = vst.msk [vmem:[#allocation3 + $0x168] sm:$0xff] %vm4138, %v4773
  %4778 = vst [vmem:[#allocation3 + $0x170] sm:$0xff] %v4774
  %4779 = vst.msk [vmem:[#allocation3 + $0x178] sm:$0xff] %vm4138, %v4775
  %v4780 = vld [vmem:[#allocation3] sm:$0xff]
  %v4781 = vld [vmem:[#allocation3 + $0x8] sm:$0xff]
  %v4782 = vld [vmem:[#allocation3 + $0x10] sm:$0xff]
  %v4783 = vld [vmem:[#allocation3 + $0x18] sm:$0xff]
  %v4784 = vld [vmem:[#allocation3 + $0x20] sm:$0xff]
  %v4785 = vld [vmem:[#allocation3 + $0x28] sm:$0xff]
  %v4786 = vld [vmem:[#allocation3 + $0x30] sm:$0xff]
  %v4787 = vld [vmem:[#allocation3 + $0x38] sm:$0xff]
  %v4788 = vld [vmem:[#allocation3 + $0x40] sm:$0xff]
  %v4789 = vld [vmem:[#allocation3 + $0x48] sm:$0xff]
  %v4790 = vld [vmem:[#allocation3 + $0x50] sm:$0xff]
  %v4791 = vld [vmem:[#allocation3 + $0x58] sm:$0xff]
  %v4792 = vld [vmem:[#allocation3 + $0x60] sm:$0xff]
  %v4793 = vld [vmem:[#allocation3 + $0x68] sm:$0xff]
  %v4794 = vld [vmem:[#allocation3 + $0x70] sm:$0xff]
  %v4795 = vld [vmem:[#allocation3 + $0x78] sm:$0xff]
  %v4796 = vld [vmem:[#allocation3 + $0x80] sm:$0xff]
  %v4797 = vld [vmem:[#allocation3 + $0x88] sm:$0xff]
  %v4798 = vld [vmem:[#allocation3 + $0x90] sm:$0xff]
  %v4799 = vld [vmem:[#allocation3 + $0x98] sm:$0xff]
  %v4800 = vld [vmem:[#allocation3 + $0xa0] sm:$0xff]
  %v4801 = vld [vmem:[#allocation3 + $0xa8] sm:$0xff]
  %v4802 = vld [vmem:[#allocation3 + $0xb0] sm:$0xff]
  %v4803 = vld [vmem:[#allocation3 + $0xb8] sm:$0xff]
  %v4804 = vld [vmem:[#allocation3 + $0xc0] sm:$0xff]
  %v4805 = vld [vmem:[#allocation3 + $0xc8] sm:$0xff]
  %v4806 = vld [vmem:[#allocation3 + $0xd0] sm:$0xff]
  %v4807 = vld [vmem:[#allocation3 + $0xd8] sm:$0xff]
  %v4808 = vld [vmem:[#allocation3 + $0xe0] sm:$0xff]
  %v4809 = vld [vmem:[#allocation3 + $0xe8] sm:$0xff]
  %v4810 = vld [vmem:[#allocation3 + $0xf0] sm:$0xff]
  %v4811 = vld [vmem:[#allocation3 + $0xf8] sm:$0xff]
  %v4812 = vld [vmem:[%s3] sm:$0xff]
  %v4813 = vld [vmem:[%s3 + $0x8] sm:$0xff]
  %v4814 = vld [vmem:[%s3 + $0x10] sm:$0xff]
  %v4815 = vld [vmem:[%s3 + $0x18] sm:$0xff]
  %v4816 = vld [vmem:[%s3 + $0x20] sm:$0xff]
  %v4817 = vld [vmem:[%s3 + $0x28] sm:$0xff]
  %v4818 = vld [vmem:[%s3 + $0x30] sm:$0xff]
  %v4819 = vld [vmem:[%s3 + $0x38] sm:$0xff]
  %v4820 = vld [vmem:[%s3 + $0x40] sm:$0xff]
  %v4821 = vld [vmem:[%s3 + $0x48] sm:$0xff]
  %v4822 = vld [vmem:[%s3 + $0x50] sm:$0xff]
  %v4823 = vld [vmem:[%s3 + $0x58] sm:$0xff]
  %v4824 = vld [vmem:[%s3 + $0x60] sm:$0xff]
  %v4825 = vld [vmem:[%s3 + $0x68] sm:$0xff]
  %v4826 = vld [vmem:[%s3 + $0x70] sm:$0xff]
  %v4827 = vld [vmem:[%s3 + $0x78] sm:$0xff]
  %v4828 = vld [vmem:[%s3 + $0x80] sm:$0xff]
  %v4829 = vld [vmem:[%s3 + $0x88] sm:$0xff]
  %v4830 = vld [vmem:[%s3 + $0x90] sm:$0xff]
  %v4831 = vld [vmem:[%s3 + $0x98] sm:$0xff]
  %v4832 = vld [vmem:[%s3 + $0xa0] sm:$0xff]
  %v4833 = vld [vmem:[%s3 + $0xa8] sm:$0xff]
  %v4834 = vld [vmem:[%s3 + $0xb0] sm:$0xff]
  %v4835 = vld [vmem:[%s3 + $0xb8] sm:$0xff]
  %v4836 = vld [vmem:[%s3 + $0xc0] sm:$0xff]
  %v4837 = vld [vmem:[%s3 + $0xc8] sm:$0xff]
  %v4838 = vld [vmem:[%s3 + $0xd0] sm:$0xff]
  %v4839 = vld [vmem:[%s3 + $0xd8] sm:$0xff]
  %v4840 = vld [vmem:[%s3 + $0xe0] sm:$0xff]
  %v4841 = vld [vmem:[%s3 + $0xe8] sm:$0xff]
  %v4842 = vld [vmem:[%s3 + $0xf0] sm:$0xff]
  %v4843 = vld [vmem:[%s3 + $0xf8] sm:$0xff]
  %v4844 = vld [vmem:[%s3 + $0x100] sm:$0xff]
  %v4845 = vld [vmem:[%s3 + $0x108] sm:$0xff]
  %v4846 = vld [vmem:[%s3 + $0x110] sm:$0xff]
  %v4847 = vld [vmem:[%s3 + $0x118] sm:$0xff]
  %v4848 = vld [vmem:[%s3 + $0x120] sm:$0xff]
  %v4849 = vld [vmem:[%s3 + $0x128] sm:$0xff]
  %v4850 = vld [vmem:[%s3 + $0x130] sm:$0xff]
  %v4851 = vld [vmem:[%s3 + $0x138] sm:$0xff]
  %v4852 = vld [vmem:[%s3 + $0x140] sm:$0xff]
  %v4853 = vld [vmem:[%s3 + $0x148] sm:$0xff]
  %v4854 = vld [vmem:[%s3 + $0x150] sm:$0xff]
  %v4855 = vld [vmem:[%s3 + $0x158] sm:$0xff]
  %v4856 = vld [vmem:[%s3 + $0x160] sm:$0xff]
  %v4857 = vld [vmem:[%s3 + $0x168] sm:$0xff]
  %v4858 = vld [vmem:[%s3 + $0x170] sm:$0xff]
  %v4859 = vld [vmem:[%s3 + $0x178] sm:$0xff]
  %v4860 = vld [vmem:[%s3 + $0x180] sm:$0xff]
  %v4861 = vld [vmem:[%s3 + $0x188] sm:$0xff]
  %v4862 = vld [vmem:[%s3 + $0x190] sm:$0xff]
  %v4863 = vld [vmem:[%s3 + $0x198] sm:$0xff]
  %v4864 = vld [vmem:[%s3 + $0x1a0] sm:$0xff]
  %v4865 = vld [vmem:[%s3 + $0x1a8] sm:$0xff]
  %v4866 = vld [vmem:[%s3 + $0x1b0] sm:$0xff]
  %v4867 = vld [vmem:[%s3 + $0x1b8] sm:$0xff]
  %v4868 = vld [vmem:[%s3 + $0x1c0] sm:$0x3f]
  %v4869 = vld [vmem:[%s3 + $0x1c8] sm:$0x3f]
  %v4871 = vsel %vm4138, %v4781, 0
  %v4874 = vsel %vm4138, %v4783, 0
  %v4877 = vsel %vm4138, %v4785, 0
  %v4880 = vsel %vm4138, %v4787, 0
  %v4883 = vsel %vm4138, %v4789, 0
  %v4886 = vsel %vm4138, %v4791, 0
  %v4889 = vsel %vm4138, %v4793, 0
  %v4892 = vsel %vm4138, %v4795, 0
  %v4895 = vsel %vm4138, %v4797, 0
  %v4898 = vsel %vm4138, %v4799, 0
  %v4901 = vsel %vm4138, %v4801, 0
  %v4904 = vsel %vm4138, %v4803, 0
  %v4907 = vsel %vm4138, %v4805, 0
  %v4910 = vsel %vm4138, %v4807, 0
  %v4913 = vsel %vm4138, %v4809, 0
  %v4916 = vsel %vm4138, %v4811, 0
  %vm4918 = vcmask 1045504
  %v4920 = vsel %vm4918, %v4868, 0
  %v4923 = vsel %vm4918, %v4869, 0
  %4925 = vmatprep.subr.mxu0 %v4813
  %4926 = vmatpush1.msra.mxu0 %v4812
  %4927 = vmatprep.subr.mxu0 %v4815
  %4928 = vmatpush1.msra.mxu0 %v4814
  %4929 = vmatprep.subr.mxu0 %v4817
  %4930 = vmatpush1.msra.mxu0 %v4816
  %4931 = vmatprep.subr.mxu0 %v4819
  %4932 = vmatpush1.msra.mxu0 %v4818
  %4933 = vmatprep.subr.mxu0 %v4821
  %4934 = vmatpush1.msra.mxu0 %v4820
  %4935 = vmatprep.subr.mxu0 %v4823
  %4936 = vmatpush1.msra.mxu0 %v4822
  %4937 = vmatprep.subr.mxu0 %v4825
  %4938 = vmatpush1.msra.mxu0 %v4824
  %4939 = vmatprep.subr.mxu0 %v4827
  %4940 = vmatpush1.msra.mxu0 %v4826
  %4941 = vmatprep.subr.mxu0 %v4829
  %4942 = vmatpush1.msra.mxu0 %v4828
  %4943 = vmatprep.subr.mxu0 %v4831
  %4944 = vmatpush1.msra.mxu0 %v4830
  %4945 = vmatprep.subr.mxu0 %v4833
  %4946 = vmatpush1.msra.mxu0 %v4832
  %4947 = vmatprep.subr.mxu0 %v4835
  %4948 = vmatpush1.msra.mxu0 %v4834
  %4949 = vmatprep.subr.mxu0 %v4837
  %4950 = vmatpush1.msra.mxu0 %v4836
  %4951 = vmatprep.subr.mxu0 %v4839
  %4952 = vmatpush1.msra.mxu0 %v4838
  %4953 = vmatprep.subr.mxu0 %v4841
  %4954 = vmatpush1.msra.mxu0 %v4840
  %4955 = vmatprep.subr.mxu0 %v4843
  %4956 = vmatpush1.msra.mxu0 %v4842
  %4957 = vmatprep.subr.mxu0 %v4845
  %4958 = vmatpush1.msra.mxu0 %v4844
  %4959 = vmatprep.subr.mxu0 %v4847
  %4960 = vmatpush1.msra.mxu0 %v4846
  %4961 = vmatprep.subr.mxu0 %v4849
  %4962 = vmatpush1.msra.mxu0 %v4848
  %4963 = vmatprep.subr.mxu0 %v4851
  %4964 = vmatpush1.msra.mxu0 %v4850
  %4965 = vmatprep.subr.mxu0 %v4853
  %4966 = vmatpush1.msra.mxu0 %v4852
  %4967 = vmatprep.subr.mxu0 %v4855
  %4968 = vmatpush1.msra.mxu0 %v4854
  %4969 = vmatprep.subr.mxu0 %v4857
  %4970 = vmatpush1.msra.mxu0 %v4856
  %4971 = vmatprep.subr.mxu0 %v4859
  %4972 = vmatpush1.msra.mxu0 %v4858
  %4973 = vmatprep.subr.mxu0 %v4861
  %4974 = vmatpush1.msra.mxu0 %v4860
  %4975 = vmatprep.subr.mxu0 %v4863
  %4976 = vmatpush1.msra.mxu0 %v4862
  %4977 = vmatprep.subr.mxu0 %v4865
  %4978 = vmatpush1.msra.mxu0 %v4864
  %4979 = vmatprep.subr.mxu0 %v4867
  %4980 = vmatpush1.msra.mxu0 %v4866
  %4981 = vmatprep.subr.mxu0 %v4923
  %4982 = vmatpush1.msra.mxu0 %v4920
  %4983 = vmatprep.subr.mxu0 0.0
  %4984 = vmatpush1.msra.mxu0 0.0
  %4985 = vmatprep.subr.mxu0 0.0
  %4986 = vmatpush1.msra.mxu0 0.0
  %4987 = vmatprep.subr.mxu0 0.0
  %4988 = vmatpush1.msra.mxu0 0.0
  %4989 = vmatprep.mubr.f32.mxu0 %v4871
  %4990 = vmatmul.mubr.f32.gmra.mrb[0].mxu0 %v4780
  %v4991 = vpop.f32.mrb[0].mxu0
  %v4992 = vadd.f32 0.0, %v4991
  %v4993 = vpop.f32.mrb[0].mxu0
  %v4994 = vadd.f32 0.0, %v4993
  %4995 = vmatprep.mubr.f32.mxu0 %v4874
  %4996 = vmatmul.mubr.f32.gmra.mrb[0].mxu0 %v4782
  %v4997 = vpop.f32.mrb[0].mxu0
  %v4998 = vadd.f32 0.0, %v4997
  %v4999 = vpop.f32.mrb[0].mxu0
  %v5000 = vadd.f32 0.0, %v4999
  %5001 = vmatprep.mubr.f32.mxu0 %v4877
  %5002 = vmatmul.mubr.f32.gmra.mrb[0].mxu0 %v4784
  %v5003 = vpop.f32.mrb[0].mxu0
  %v5004 = vadd.f32 0.0, %v5003
  %v5005 = vpop.f32.mrb[0].mxu0
  %v5006 = vadd.f32 0.0, %v5005
  %5007 = vmatprep.mubr.f32.mxu0 %v4880
  %5008 = vmatmul.mubr.f32.gmra.mrb[0].mxu0 %v4786
  %v5009 = vpop.f32.mrb[0].mxu0
  %v5010 = vadd.f32 0.0, %v5009
  %v5011 = vpop.f32.mrb[0].mxu0
  %v5012 = vadd.f32 0.0, %v5011
  %5013 = vmatprep.mubr.f32.mxu0 %v4883
  %5014 = vmatmul.mubr.f32.gmra.mrb[0].mxu0 %v4788
  %v5015 = vpop.f32.mrb[0].mxu0
  %v5016 = vadd.f32 0.0, %v5015
  %v5017 = vpop.f32.mrb[0].mxu0
  %v5018 = vadd.f32 0.0, %v5017
  %5019 = vmatprep.mubr.f32.mxu0 %v4886
  %5020 = vmatmul.mubr.f32.gmra.mrb[0].mxu0 %v4790
  %v5021 = vpop.f32.mrb[0].mxu0
  %v5022 = vadd.f32 0.0, %v5021
  %v5023 = vpop.f32.mrb[0].mxu0
  %v5024 = vadd.f32 0.0, %v5023
  %5025 = vmatprep.mubr.f32.mxu0 %v4889
  %5026 = vmatmul.mubr.f32.gmra.mrb[0].mxu0 %v4792
  %v5027 = vpop.f32.mrb[0].mxu0
  %v5028 = vadd.f32 0.0, %v5027
  %v5029 = vpop.f32.mrb[0].mxu0
  %v5030 = vadd.f32 0.0, %v5029
  %5031 = vmatprep.mubr.f32.mxu0 %v4892
  %5032 = vmatmul.mubr.f32.gmra.mrb[0].mxu0 %v4794
  %v5033 = vpop.f32.mrb[0].mxu0
  %v5034 = vadd.f32 0.0, %v5033
  %v5035 = vpop.f32.mrb[0].mxu0
  %v5036 = vadd.f32 0.0, %v5035
  %5037 = vmatprep.mubr.f32.mxu0 %v4895
  %5038 = vmatmul.mubr.f32.gmra.mrb[0].mxu0 %v4796
  %v5039 = vpop.f32.mrb[0].mxu0
  %v5040 = vadd.f32 0.0, %v5039
  %v5041 = vpop.f32.mrb[0].mxu0
  %v5042 = vadd.f32 0.0, %v5041
  %5043 = vmatprep.mubr.f32.mxu0 %v4898
  %5044 = vmatmul.mubr.f32.gmra.mrb[0].mxu0 %v4798
  %v5045 = vpop.f32.mrb[0].mxu0
  %v5046 = vadd.f32 0.0, %v5045
  %v5047 = vpop.f32.mrb[0].mxu0
  %v5048 = vadd.f32 0.0, %v5047
  %5049 = vmatprep.mubr.f32.mxu0 %v4901
  %5050 = vmatmul.mubr.f32.gmra.mrb[0].mxu0 %v4800
  %v5051 = vpop.f32.mrb[0].mxu0
  %v5052 = vadd.f32 0.0, %v5051
  %v5053 = vpop.f32.mrb[0].mxu0
  %v5054 = vadd.f32 0.0, %v5053
  %5055 = vmatprep.mubr.f32.mxu0 %v4904
  %5056 = vmatmul.mubr.f32.gmra.mrb[0].mxu0 %v4802
  %v5057 = vpop.f32.mrb[0].mxu0
  %v5058 = vadd.f32 0.0, %v5057
  %v5059 = vpop.f32.mrb[0].mxu0
  %v5060 = vadd.f32 0.0, %v5059
  %5061 = vmatprep.mubr.f32.mxu0 %v4907
  %5062 = vmatmul.mubr.f32.gmra.mrb[0].mxu0 %v4804
  %v5063 = vpop.f32.mrb[0].mxu0
  %v5064 = vadd.f32 0.0, %v5063
  %v5065 = vpop.f32.mrb[0].mxu0
  %v5066 = vadd.f32 0.0, %v5065
  %5067 = vmatprep.mubr.f32.mxu0 %v4910
  %5068 = vmatmul.mubr.f32.gmra.mrb[0].mxu0 %v4806
  %v5069 = vpop.f32.mrb[0].mxu0
  %v5070 = vadd.f32 0.0, %v5069
  %v5071 = vpop.f32.mrb[0].mxu0
  %v5072 = vadd.f32 0.0, %v5071
  %5073 = vmatprep.mubr.f32.mxu0 %v4913
  %5074 = vmatmul.mubr.f32.gmra.mrb[0].mxu0 %v4808
  %v5075 = vpop.f32.mrb[0].mxu0
  %v5076 = vadd.f32 0.0, %v5075
  %v5077 = vpop.f32.mrb[0].mxu0
  %v5078 = vadd.f32 0.0, %v5077
  %5079 = vmatprep.mubr.f32.mxu0 %v4916
  %5080 = vmatmul.mubr.f32.gmra.mrb[0].mxu0 %v4810
  %v5081 = vpop.f32.mrb[0].mxu0
  %v5082 = vadd.f32 0.0, %v5081
  %v5083 = vpop.f32.mrb[0].mxu0
  %v5084 = vadd.f32 0.0, %v5083
  %5085 = vdwg.mxu0
  %5086 = vst [vmem:[#allocation4] sm:$0xff] %v4992
  %vm5087 = vcmask 261120
  %5088 = vst.msk [vmem:[#allocation4 + $0x8] sm:$0xff] %vm5087, %v4994
  %5089 = vst [vmem:[#allocation4 + $0x10] sm:$0xff] %v4998
  %5090 = vst.msk [vmem:[#allocation4 + $0x18] sm:$0xff] %vm5087, %v5000
  %5091 = vst [vmem:[#allocation4 + $0x20] sm:$0xff] %v5004
  %5092 = vst.msk [vmem:[#allocation4 + $0x28] sm:$0xff] %vm5087, %v5006
  %5093 = vst [vmem:[#allocation4 + $0x30] sm:$0xff] %v5010
  %5094 = vst.msk [vmem:[#allocation4 + $0x38] sm:$0xff] %vm5087, %v5012
  %5095 = vst [vmem:[#allocation4 + $0x40] sm:$0xff] %v5016
  %5096 = vst.msk [vmem:[#allocation4 + $0x48] sm:$0xff] %vm5087, %v5018
  %5097 = vst [vmem:[#allocation4 + $0x50] sm:$0xff] %v5022
  %5098 = vst.msk [vmem:[#allocation4 + $0x58] sm:$0xff] %vm5087, %v5024
  %5099 = vst [vmem:[#allocation4 + $0x60] sm:$0xff] %v5028
  %5100 = vst.msk [vmem:[#allocation4 + $0x68] sm:$0xff] %vm5087, %v5030
  %5101 = vst [vmem:[#allocation4 + $0x70] sm:$0xff] %v5034
  %5102 = vst.msk [vmem:[#allocation4 + $0x78] sm:$0xff] %vm5087, %v5036
  %5103 = vst [vmem:[#allocation4 + $0x80] sm:$0xff] %v5040
  %5104 = vst.msk [vmem:[#allocation4 + $0x88] sm:$0xff] %vm5087, %v5042
  %5105 = vst [vmem:[#allocation4 + $0x90] sm:$0xff] %v5046
  %5106 = vst.msk [vmem:[#allocation4 + $0x98] sm:$0xff] %vm5087, %v5048
  %5107 = vst [vmem:[#allocation4 + $0xa0] sm:$0xff] %v5052
  %5108 = vst.msk [vmem:[#allocation4 + $0xa8] sm:$0xff] %vm5087, %v5054
  %5109 = vst [vmem:[#allocation4 + $0xb0] sm:$0xff] %v5058
  %5110 = vst.msk [vmem:[#allocation4 + $0xb8] sm:$0xff] %vm5087, %v5060
  %5111 = vst [vmem:[#allocation4 + $0xc0] sm:$0xff] %v5064
  %5112 = vst.msk [vmem:[#allocation4 + $0xc8] sm:$0xff] %vm5087, %v5066
  %5113 = vst [vmem:[#allocation4 + $0xd0] sm:$0xff] %v5070
  %5114 = vst.msk [vmem:[#allocation4 + $0xd8] sm:$0xff] %vm5087, %v5072
  %5115 = vst [vmem:[#allocation4 + $0xe0] sm:$0xff] %v5076
  %5116 = vst.msk [vmem:[#allocation4 + $0xe8] sm:$0xff] %vm5087, %v5078
  %5117 = vst [vmem:[#allocation4 + $0xf0] sm:$0xff] %v5082
  %5118 = vst.msk [vmem:[#allocation4 + $0xf8] sm:$0xff] %vm5087, %v5084
  %v5119 = vld [vmem:[#allocation3 + $0x20] sm:$0xff]
  %v5120 = vld [vmem:[#allocation3 + $0x28] sm:$0xff]
  %v5121 = vld [vmem:[#allocation3 + $0x30] sm:$0xff]
  %v5122 = vld [vmem:[#allocation3 + $0x38] sm:$0xff]
  %v5123 = vld [vmem:[#allocation3 + $0x40] sm:$0xff]
  %v5124 = vld [vmem:[#allocation3 + $0x48] sm:$0xff]
  %v5125 = vld [vmem:[#allocation3 + $0x50] sm:$0xff]
  %v5126 = vld [vmem:[#allocation3 + $0x58] sm:$0xff]
  %v5127 = vld [vmem:[#allocation3 + $0x60] sm:$0xff]
  %v5128 = vld [vmem:[#allocation3 + $0x68] sm:$0xff]
  %v5129 = vld [vmem:[#allocation3 + $0x70] sm:$0xff]
  %v5130 = vld [vmem:[#allocation3 + $0x78] sm:$0xff]
  %v5131 = vld [vmem:[#allocation3 + $0x80] sm:$0xff]
  %v5132 = vld [vmem:[#allocation3 + $0x88] sm:$0xff]
  %v5133 = vld [vmem:[#allocation3 + $0x90] sm:$0xff]
  %v5134 = vld [vmem:[#allocation3 + $0x98] sm:$0xff]
  %v5135 = vld [vmem:[#allocation3 + $0xa0] sm:$0xff]
  %v5136 = vld [vmem:[#allocation3 + $0xa8] sm:$0xff]
  %v5137 = vld [vmem:[#allocation3 + $0xb0] sm:$0xff]
  %v5138 = vld [vmem:[#allocation3 + $0xb8] sm:$0xff]
  %v5139 = vld [vmem:[#allocation3 + $0xc0] sm:$0xff]
  %v5140 = vld [vmem:[#allocation3 + $0xc8] sm:$0xff]
  %v5141 = vld [vmem:[#allocation3 + $0xd0] sm:$0xff]
  %v5142 = vld [vmem:[#allocation3 + $0xd8] sm:$0xff]
  %v5143 = vld [vmem:[#allocation3 + $0xe0] sm:$0xff]
  %v5144 = vld [vmem:[#allocation3 + $0xe8] sm:$0xff]
  %v5145 = vld [vmem:[#allocation3 + $0xf0] sm:$0xff]
  %v5146 = vld [vmem:[#allocation3 + $0xf8] sm:$0xff]
  %v5147 = vld [vmem:[#allocation3 + $0x100] sm:$0xff]
  %v5148 = vld [vmem:[#allocation3 + $0x108] sm:$0xff]
  %v5149 = vld [vmem:[#allocation3 + $0x110] sm:$0xff]
  %v5150 = vld [vmem:[#allocation3 + $0x118] sm:$0xff]
  %s5151 = scalar_lea.vmem %s3, 464
  %v5152 = vld [vmem:[%s5151] sm:$0xff]
  %v5153 = vld [vmem:[%s5151 + $0x8] sm:$0xff]
  %v5154 = vld [vmem:[%s5151 + $0x10] sm:$0xff]
  %v5155 = vld [vmem:[%s5151 + $0x18] sm:$0xff]
  %v5156 = vld [vmem:[%s5151 + $0x20] sm:$0xff]
  %v5157 = vld [vmem:[%s5151 + $0x28] sm:$0xff]
  %v5158 = vld [vmem:[%s5151 + $0x30] sm:$0xff]
  %v5159 = vld [vmem:[%s5151 + $0x38] sm:$0xff]
  %v5160 = vld [vmem:[%s5151 + $0x40] sm:$0xff]
  %v5161 = vld [vmem:[%s5151 + $0x48] sm:$0xff]
  %v5162 = vld [vmem:[%s5151 + $0x50] sm:$0xff]
  %v5163 = vld [vmem:[%s5151 + $0x58] sm:$0xff]
  %v5164 = vld [vmem:[%s5151 + $0x60] sm:$0xff]
  %v5165 = vld [vmem:[%s5151 + $0x68] sm:$0xff]
  %v5166 = vld [vmem:[%s5151 + $0x70] sm:$0xff]
  %v5167 = vld [vmem:[%s5151 + $0x78] sm:$0xff]
  %v5168 = vld [vmem:[%s5151 + $0x80] sm:$0xff]
  %v5169 = vld [vmem:[%s5151 + $0x88] sm:$0xff]
  %v5170 = vld [vmem:[%s5151 + $0x90] sm:$0xff]
  %v5171 = vld [vmem:[%s5151 + $0x98] sm:$0xff]
  %v5172 = vld [vmem:[%s5151 + $0xa0] sm:$0xff]
  %v5173 = vld [vmem:[%s5151 + $0xa8] sm:$0xff]
  %v5174 = vld [vmem:[%s5151 + $0xb0] sm:$0xff]
  %v5175 = vld [vmem:[%s5151 + $0xb8] sm:$0xff]
  %v5176 = vld [vmem:[%s5151 + $0xc0] sm:$0xff]
  %v5177 = vld [vmem:[%s5151 + $0xc8] sm:$0xff]
  %v5178 = vld [vmem:[%s5151 + $0xd0] sm:$0xff]
  %v5179 = vld [vmem:[%s5151 + $0xd8] sm:$0xff]
  %v5180 = vld [vmem:[%s5151 + $0xe0] sm:$0xff]
  %v5181 = vld [vmem:[%s5151 + $0xe8] sm:$0xff]
  %v5182 = vld [vmem:[%s5151 + $0xf0] sm:$0xff]
  %v5183 = vld [vmem:[%s5151 + $0xf8] sm:$0xff]
  %v5184 = vld [vmem:[%s5151 + $0x100] sm:$0xff]
  %v5185 = vld [vmem:[%s5151 + $0x108] sm:$0xff]
  %v5186 = vld [vmem:[%s5151 + $0x110] sm:$0xff]
  %v5187 = vld [vmem:[%s5151 + $0x118] sm:$0xff]
  %v5188 = vld [vmem:[%s5151 + $0x120] sm:$0xff]
  %v5189 = vld [vmem:[%s5151 + $0x128] sm:$0xff]
  %v5190 = vld [vmem:[%s5151 + $0x130] sm:$0xff]
  %v5191 = vld [vmem:[%s5151 + $0x138] sm:$0xff]
  %v5192 = vld [vmem:[%s5151 + $0x140] sm:$0xff]
  %v5193 = vld [vmem:[%s5151 + $0x148] sm:$0xff]
  %v5194 = vld [vmem:[%s5151 + $0x150] sm:$0xff]
  %v5195 = vld [vmem:[%s5151 + $0x158] sm:$0xff]
  %v5196 = vld [vmem:[%s5151 + $0x160] sm:$0xff]
  %v5197 = vld [vmem:[%s5151 + $0x168] sm:$0xff]
  %v5198 = vld [vmem:[%s5151 + $0x170] sm:$0xff]
  %v5199 = vld [vmem:[%s5151 + $0x178] sm:$0xff]
  %v5200 = vld [vmem:[%s5151 + $0x180] sm:$0xff]
  %v5201 = vld [vmem:[%s5151 + $0x188] sm:$0xff]
  %v5202 = vld [vmem:[%s5151 + $0x190] sm:$0xff]
  %v5203 = vld [vmem:[%s5151 + $0x198] sm:$0xff]
  %v5204 = vld [vmem:[%s5151 + $0x1a0] sm:$0xff]
  %v5205 = vld [vmem:[%s5151 + $0x1a8] sm:$0xff]
  %v5206 = vld [vmem:[%s5151 + $0x1b0] sm:$0xff]
  %v5207 = vld [vmem:[%s5151 + $0x1b8] sm:$0xff]
  %v5208 = vld [vmem:[%s5151 + $0x1c0] sm:$0x3f]
  %v5209 = vld [vmem:[%s5151 + $0x1c8] sm:$0x3f]
  %v5211 = vsel %vm4138, %v5120, 0
  %v5214 = vsel %vm4138, %v5122, 0
  %v5217 = vsel %vm4138, %v5124, 0
  %v5220 = vsel %vm4138, %v5126, 0
  %v5223 = vsel %vm4138, %v5128, 0
  %v5226 = vsel %vm4138, %v5130, 0
  %v5229 = vsel %vm4138, %v5132, 0
  %v5232 = vsel %vm4138, %v5134, 0
  %v5235 = vsel %vm4138, %v5136, 0
  %v5238 = vsel %vm4138, %v5138, 0
  %v5241 = vsel %vm4138, %v5140, 0
  %v5244 = vsel %vm4138, %v5142, 0
  %v5247 = vsel %vm4138, %v5144, 0
  %v5250 = vsel %vm4138, %v5146, 0
  %v5253 = vsel %vm4138, %v5148, 0
  %v5256 = vsel %vm4138, %v5150, 0
  %v5259 = vsel %vm4918, %v5208, 0
  %v5262 = vsel %vm4918, %v5209, 0
  %5264 = vmatprep.subr.mxu0 %v5153
  %5265 = vmatpush1.msra.mxu0 %v5152
  %5266 = vmatprep.subr.mxu0 %v5155
  %5267 = vmatpush1.msra.mxu0 %v5154
  %5268 = vmatprep.subr.mxu0 %v5157
  %5269 = vmatpush1.msra.mxu0 %v5156
  %5270 = vmatprep.subr.mxu0 %v5159
  %5271 = vmatpush1.msra.mxu0 %v5158
  %5272 = vmatprep.subr.mxu0 %v5161
  %5273 = vmatpush1.msra.mxu0 %v5160
  %5274 = vmatprep.subr.mxu0 %v5163
  %5275 = vmatpush1.msra.mxu0 %v5162
  %5276 = vmatprep.subr.mxu0 %v5165
  %5277 = vmatpush1.msra.mxu0 %v5164
  %5278 = vmatprep.subr.mxu0 %v5167
  %5279 = vmatpush1.msra.mxu0 %v5166
  %5280 = vmatprep.subr.mxu0 %v5169
  %5281 = vmatpush1.msra.mxu0 %v5168
  %5282 = vmatprep.subr.mxu0 %v5171
  %5283 = vmatpush1.msra.mxu0 %v5170
  %5284 = vmatprep.subr.mxu0 %v5173
  %5285 = vmatpush1.msra.mxu0 %v5172
  %5286 = vmatprep.subr.mxu0 %v5175
  %5287 = vmatpush1.msra.mxu0 %v5174
  %5288 = vmatprep.subr.mxu0 %v5177
  %5289 = vmatpush1.msra.mxu0 %v5176
  %5290 = vmatprep.subr.mxu0 %v5179
  %5291 = vmatpush1.msra.mxu0 %v5178
  %5292 = vmatprep.subr.mxu0 %v5181
  %5293 = vmatpush1.msra.mxu0 %v5180
  %5294 = vmatprep.subr.mxu0 %v5183
  %5295 = vmatpush1.msra.mxu0 %v5182
  %5296 = vmatprep.subr.mxu0 %v5185
  %5297 = vmatpush1.msra.mxu0 %v5184
  %5298 = vmatprep.subr.mxu0 %v5187
  %5299 = vmatpush1.msra.mxu0 %v5186
  %5300 = vmatprep.subr.mxu0 %v5189
  %5301 = vmatpush1.msra.mxu0 %v5188
  %5302 = vmatprep.subr.mxu0 %v5191
  %5303 = vmatpush1.msra.mxu0 %v5190
  %5304 = vmatprep.subr.mxu0 %v5193
  %5305 = vmatpush1.msra.mxu0 %v5192
  %5306 = vmatprep.subr.mxu0 %v5195
  %5307 = vmatpush1.msra.mxu0 %v5194
  %5308 = vmatprep.subr.mxu0 %v5197
  %5309 = vmatpush1.msra.mxu0 %v5196
  %5310 = vmatprep.subr.mxu0 %v5199
  %5311 = vmatpush1.msra.mxu0 %v5198
  %5312 = vmatprep.subr.mxu0 %v5201
  %5313 = vmatpush1.msra.mxu0 %v5200
  %5314 = vmatprep.subr.mxu0 %v5203
  %5315 = vmatpush1.msra.mxu0 %v5202
  %5316 = vmatprep.subr.mxu0 %v5205
  %5317 = vmatpush1.msra.mxu0 %v5204
  %5318 = vmatprep.subr.mxu0 %v5207
  %5319 = vmatpush1.msra.mxu0 %v5206
  %5320 = vmatprep.subr.mxu0 %v5262
  %5321 = vmatpush1.msra.mxu0 %v5259
  %5322 = vmatprep.subr.mxu0 0.0
  %5323 = vmatpush1.msra.mxu0 0.0
  %5324 = vmatprep.subr.mxu0 0.0
  %5325 = vmatpush1.msra.mxu0 0.0
  %5326 = vmatprep.subr.mxu0 0.0
  %5327 = vmatpush1.msra.mxu0 0.0
  %5328 = vmatprep.mubr.f32.mxu0 %v5211
  %5329 = vmatmul.mubr.f32.gmra.mrb[0].mxu0 %v5119
  %v5330 = vpop.f32.mrb[0].mxu0
  %v5331 = vadd.f32 0.0, %v5330
  %v5332 = vpop.f32.mrb[0].mxu0
  %v5333 = vadd.f32 0.0, %v5332
  %5334 = vmatprep.mubr.f32.mxu0 %v5214
  %5335 = vmatmul.mubr.f32.gmra.mrb[0].mxu0 %v5121
  %v5336 = vpop.f32.mrb[0].mxu0
  %v5337 = vadd.f32 0.0, %v5336
  %v5338 = vpop.f32.mrb[0].mxu0
  %v5339 = vadd.f32 0.0, %v5338
  %5340 = vmatprep.mubr.f32.mxu0 %v5217
  %5341 = vmatmul.mubr.f32.gmra.mrb[0].mxu0 %v5123
  %v5342 = vpop.f32.mrb[0].mxu0
  %v5343 = vadd.f32 0.0, %v5342
  %v5344 = vpop.f32.mrb[0].mxu0
  %v5345 = vadd.f32 0.0, %v5344
  %5346 = vmatprep.mubr.f32.mxu0 %v5220
  %5347 = vmatmul.mubr.f32.gmra.mrb[0].mxu0 %v5125
  %v5348 = vpop.f32.mrb[0].mxu0
  %v5349 = vadd.f32 0.0, %v5348
  %v5350 = vpop.f32.mrb[0].mxu0
  %v5351 = vadd.f32 0.0, %v5350
  %5352 = vmatprep.mubr.f32.mxu0 %v5223
  %5353 = vmatmul.mubr.f32.gmra.mrb[0].mxu0 %v5127
  %v5354 = vpop.f32.mrb[0].mxu0
  %v5355 = vadd.f32 0.0, %v5354
  %v5356 = vpop.f32.mrb[0].mxu0
  %v5357 = vadd.f32 0.0, %v5356
  %5358 = vmatprep.mubr.f32.mxu0 %v5226
  %5359 = vmatmul.mubr.f32.gmra.mrb[0].mxu0 %v5129
  %v5360 = vpop.f32.mrb[0].mxu0
  %v5361 = vadd.f32 0.0, %v5360
  %v5362 = vpop.f32.mrb[0].mxu0
  %v5363 = vadd.f32 0.0, %v5362
  %5364 = vmatprep.mubr.f32.mxu0 %v5229
  %5365 = vmatmul.mubr.f32.gmra.mrb[0].mxu0 %v5131
  %v5366 = vpop.f32.mrb[0].mxu0
  %v5367 = vadd.f32 0.0, %v5366
  %v5368 = vpop.f32.mrb[0].mxu0
  %v5369 = vadd.f32 0.0, %v5368
  %5370 = vmatprep.mubr.f32.mxu0 %v5232
  %5371 = vmatmul.mubr.f32.gmra.mrb[0].mxu0 %v5133
  %v5372 = vpop.f32.mrb[0].mxu0
  %v5373 = vadd.f32 0.0, %v5372
  %v5374 = vpop.f32.mrb[0].mxu0
  %v5375 = vadd.f32 0.0, %v5374
  %5376 = vmatprep.mubr.f32.mxu0 %v5235
  %5377 = vmatmul.mubr.f32.gmra.mrb[0].mxu0 %v5135
  %v5378 = vpop.f32.mrb[0].mxu0
  %v5379 = vadd.f32 0.0, %v5378
  %v5380 = vpop.f32.mrb[0].mxu0
  %v5381 = vadd.f32 0.0, %v5380
  %5382 = vmatprep.mubr.f32.mxu0 %v5238
  %5383 = vmatmul.mubr.f32.gmra.mrb[0].mxu0 %v5137
  %v5384 = vpop.f32.mrb[0].mxu0
  %v5385 = vadd.f32 0.0, %v5384
  %v5386 = vpop.f32.mrb[0].mxu0
  %v5387 = vadd.f32 0.0, %v5386
  %5388 = vmatprep.mubr.f32.mxu0 %v5241
  %5389 = vmatmul.mubr.f32.gmra.mrb[0].mxu0 %v5139
  %v5390 = vpop.f32.mrb[0].mxu0
  %v5391 = vadd.f32 0.0, %v5390
  %v5392 = vpop.f32.mrb[0].mxu0
  %v5393 = vadd.f32 0.0, %v5392
  %5394 = vmatprep.mubr.f32.mxu0 %v5244
  %5395 = vmatmul.mubr.f32.gmra.mrb[0].mxu0 %v5141
  %v5396 = vpop.f32.mrb[0].mxu0
  %v5397 = vadd.f32 0.0, %v5396
  %v5398 = vpop.f32.mrb[0].mxu0
  %v5399 = vadd.f32 0.0, %v5398
  %5400 = vmatprep.mubr.f32.mxu0 %v5247
  %5401 = vmatmul.mubr.f32.gmra.mrb[0].mxu0 %v5143
  %v5402 = vpop.f32.mrb[0].mxu0
  %v5403 = vadd.f32 0.0, %v5402
  %v5404 = vpop.f32.mrb[0].mxu0
  %v5405 = vadd.f32 0.0, %v5404
  %5406 = vmatprep.mubr.f32.mxu0 %v5250
  %5407 = vmatmul.mubr.f32.gmra.mrb[0].mxu0 %v5145
  %v5408 = vpop.f32.mrb[0].mxu0
  %v5409 = vadd.f32 0.0, %v5408
  %v5410 = vpop.f32.mrb[0].mxu0
  %v5411 = vadd.f32 0.0, %v5410
  %5412 = vmatprep.mubr.f32.mxu0 %v5253
  %5413 = vmatmul.mubr.f32.gmra.mrb[0].mxu0 %v5147
  %v5414 = vpop.f32.mrb[0].mxu0
  %v5415 = vadd.f32 0.0, %v5414
  %v5416 = vpop.f32.mrb[0].mxu0
  %v5417 = vadd.f32 0.0, %v5416
  %5418 = vmatprep.mubr.f32.mxu0 %v5256
  %5419 = vmatmul.mubr.f32.gmra.mrb[0].mxu0 %v5149
  %v5420 = vpop.f32.mrb[0].mxu0
  %v5421 = vadd.f32 0.0, %v5420
  %v5422 = vpop.f32.mrb[0].mxu0
  %v5423 = vadd.f32 0.0, %v5422
  %5424 = vdwg.mxu0
  %v5425 = vld [vmem:[#allocation4] sm:$0xff]
  %v5426 = vld [vmem:[#allocation4 + $0x8] sm:$0xff]
  %v5427 = vld [vmem:[#allocation4 + $0x10] sm:$0xff]
  %v5428 = vld [vmem:[#allocation4 + $0x18] sm:$0xff]
  %v5429 = vld [vmem:[#allocation4 + $0x20] sm:$0xff]
  %v5430 = vld [vmem:[#allocation4 + $0x28] sm:$0xff]
  %v5431 = vld [vmem:[#allocation4 + $0x30] sm:$0xff]
  %v5432 = vld [vmem:[#allocation4 + $0x38] sm:$0xff]
  %v5433 = vld [vmem:[#allocation4 + $0x40] sm:$0xff]
  %v5434 = vld [vmem:[#allocation4 + $0x48] sm:$0xff]
  %v5435 = vld [vmem:[#allocation4 + $0x50] sm:$0xff]
  %v5436 = vld [vmem:[#allocation4 + $0x58] sm:$0xff]
  %v5437 = vld [vmem:[#allocation4 + $0x60] sm:$0xff]
  %v5438 = vld [vmem:[#allocation4 + $0x68] sm:$0xff]
  %v5439 = vld [vmem:[#allocation4 + $0x70] sm:$0xff]
  %v5440 = vld [vmem:[#allocation4 + $0x78] sm:$0xff]
  %v5441 = vld [vmem:[#allocation4 + $0x80] sm:$0xff]
  %v5442 = vld [vmem:[#allocation4 + $0x88] sm:$0xff]
  %v5443 = vld [vmem:[#allocation4 + $0x90] sm:$0xff]
  %v5444 = vld [vmem:[#allocation4 + $0x98] sm:$0xff]
  %v5445 = vld [vmem:[#allocation4 + $0xa0] sm:$0xff]
  %v5446 = vld [vmem:[#allocation4 + $0xa8] sm:$0xff]
  %v5447 = vld [vmem:[#allocation4 + $0xb0] sm:$0xff]
  %v5448 = vld [vmem:[#allocation4 + $0xb8] sm:$0xff]
  %v5449 = vld [vmem:[#allocation4 + $0xc0] sm:$0xff]
  %v5450 = vld [vmem:[#allocation4 + $0xc8] sm:$0xff]
  %v5451 = vld [vmem:[#allocation4 + $0xd0] sm:$0xff]
  %v5452 = vld [vmem:[#allocation4 + $0xd8] sm:$0xff]
  %v5453 = vld [vmem:[#allocation4 + $0xe0] sm:$0xff]
  %v5454 = vld [vmem:[#allocation4 + $0xe8] sm:$0xff]
  %v5455 = vld [vmem:[#allocation4 + $0xf0] sm:$0xff]
  %v5456 = vld [vmem:[#allocation4 + $0xf8] sm:$0xff]
  %v5457 = vadd.f32 %v5425, %v5331
  %v5458 = vadd.f32 %v5426, %v5333
  %v5459 = vadd.f32 %v5427, %v5337
  %v5460 = vadd.f32 %v5428, %v5339
  %v5461 = vadd.f32 %v5429, %v5343
  %v5462 = vadd.f32 %v5430, %v5345
  %v5463 = vadd.f32 %v5431, %v5349
  %v5464 = vadd.f32 %v5432, %v5351
  %v5465 = vadd.f32 %v5433, %v5355
  %v5466 = vadd.f32 %v5434, %v5357
  %v5467 = vadd.f32 %v5435, %v5361
  %v5468 = vadd.f32 %v5436, %v5363
  %v5469 = vadd.f32 %v5437, %v5367
  %v5470 = vadd.f32 %v5438, %v5369
  %v5471 = vadd.f32 %v5439, %v5373
  %v5472 = vadd.f32 %v5440, %v5375
  %v5473 = vadd.f32 %v5441, %v5379
  %v5474 = vadd.f32 %v5442, %v5381
  %v5475 = vadd.f32 %v5443, %v5385
  %v5476 = vadd.f32 %v5444, %v5387
  %v5477 = vadd.f32 %v5445, %v5391
  %v5478 = vadd.f32 %v5446, %v5393
  %v5479 = vadd.f32 %v5447, %v5397
  %v5480 = vadd.f32 %v5448, %v5399
  %v5481 = vadd.f32 %v5449, %v5403
  %v5482 = vadd.f32 %v5450, %v5405
  %v5483 = vadd.f32 %v5451, %v5409
  %v5484 = vadd.f32 %v5452, %v5411
  %v5485 = vadd.f32 %v5453, %v5415
  %v5486 = vadd.f32 %v5454, %v5417
  %v5487 = vadd.f32 %v5455, %v5421
  %v5488 = vadd.f32 %v5456, %v5423
  %5489 = vst [vmem:[#allocation4] sm:$0xff] %v5457
  %5490 = vst.msk [vmem:[#allocation4 + $0x8] sm:$0xff] %vm5087, %v5458
  %5491 = vst [vmem:[#allocation4 + $0x10] sm:$0xff] %v5459
  %5492 = vst.msk [vmem:[#allocation4 + $0x18] sm:$0xff] %vm5087, %v5460
  %5493 = vst [vmem:[#allocation4 + $0x20] sm:$0xff] %v5461
  %5494 = vst.msk [vmem:[#allocation4 + $0x28] sm:$0xff] %vm5087, %v5462
  %5495 = vst [vmem:[#allocation4 + $0x30] sm:$0xff] %v5463
  %5496 = vst.msk [vmem:[#allocation4 + $0x38] sm:$0xff] %vm5087, %v5464
  %5497 = vst [vmem:[#allocation4 + $0x40] sm:$0xff] %v5465
  %5498 = vst.msk [vmem:[#allocation4 + $0x48] sm:$0xff] %vm5087, %v5466
  %5499 = vst [vmem:[#allocation4 + $0x50] sm:$0xff] %v5467
  %5500 = vst.msk [vmem:[#allocation4 + $0x58] sm:$0xff] %vm5087, %v5468
  %5501 = vst [vmem:[#allocation4 + $0x60] sm:$0xff] %v5469
  %5502 = vst.msk [vmem:[#allocation4 + $0x68] sm:$0xff] %vm5087, %v5470
  %5503 = vst [vmem:[#allocation4 + $0x70] sm:$0xff] %v5471
  %5504 = vst.msk [vmem:[#allocation4 + $0x78] sm:$0xff] %vm5087, %v5472
  %5505 = vst [vmem:[#allocation4 + $0x80] sm:$0xff] %v5473
  %5506 = vst.msk [vmem:[#allocation4 + $0x88] sm:$0xff] %vm5087, %v5474
  %5507 = vst [vmem:[#allocation4 + $0x90] sm:$0xff] %v5475
  %5508 = vst.msk [vmem:[#allocation4 + $0x98] sm:$0xff] %vm5087, %v5476
  %5509 = vst [vmem:[#allocation4 + $0xa0] sm:$0xff] %v5477
  %5510 = vst.msk [vmem:[#allocation4 + $0xa8] sm:$0xff] %vm5087, %v5478
  %5511 = vst [vmem:[#allocation4 + $0xb0] sm:$0xff] %v5479
  %5512 = vst.msk [vmem:[#allocation4 + $0xb8] sm:$0xff] %vm5087, %v5480
  %5513 = vst [vmem:[#allocation4 + $0xc0] sm:$0xff] %v5481
  %5514 = vst.msk [vmem:[#allocation4 + $0xc8] sm:$0xff] %vm5087, %v5482
  %5515 = vst [vmem:[#allocation4 + $0xd0] sm:$0xff] %v5483
  %5516 = vst.msk [vmem:[#allocation4 + $0xd8] sm:$0xff] %vm5087, %v5484
  %5517 = vst [vmem:[#allocation4 + $0xe0] sm:$0xff] %v5485
  %5518 = vst.msk [vmem:[#allocation4 + $0xe8] sm:$0xff] %vm5087, %v5486
  %5519 = vst [vmem:[#allocation4 + $0xf0] sm:$0xff] %v5487
  %5520 = vst.msk [vmem:[#allocation4 + $0xf8] sm:$0xff] %vm5087, %v5488
  %v5521 = vld [vmem:[#allocation3 + $0x40] sm:$0xff]
  %v5522 = vld [vmem:[#allocation3 + $0x48] sm:$0xff]
  %v5523 = vld [vmem:[#allocation3 + $0x50] sm:$0xff]
  %v5524 = vld [vmem:[#allocation3 + $0x58] sm:$0xff]
  %v5525 = vld [vmem:[#allocation3 + $0x60] sm:$0xff]
  %v5526 = vld [vmem:[#allocation3 + $0x68] sm:$0xff]
  %v5527 = vld [vmem:[#allocation3 + $0x70] sm:$0xff]
  %v5528 = vld [vmem:[#allocation3 + $0x78] sm:$0xff]
  %v5529 = vld [vmem:[#allocation3 + $0x80] sm:$0xff]
  %v5530 = vld [vmem:[#allocation3 + $0x88] sm:$0xff]
  %v5531 = vld [vmem:[#allocation3 + $0x90] sm:$0xff]
  %v5532 = vld [vmem:[#allocation3 + $0x98] sm:$0xff]
  %v5533 = vld [vmem:[#allocation3 + $0xa0] sm:$0xff]
  %v5534 = vld [vmem:[#allocation3 + $0xa8] sm:$0xff]
  %v5535 = vld [vmem:[#allocation3 + $0xb0] sm:$0xff]
  %v5536 = vld [vmem:[#allocation3 + $0xb8] sm:$0xff]
  %v5537 = vld [vmem:[#allocation3 + $0xc0] sm:$0xff]
  %v5538 = vld [vmem:[#allocation3 + $0xc8] sm:$0xff]
  %v5539 = vld [vmem:[#allocation3 + $0xd0] sm:$0xff]
  %v5540 = vld [vmem:[#allocation3 + $0xd8] sm:$0xff]
  %v5541 = vld [vmem:[#allocation3 + $0xe0] sm:$0xff]
  %v5542 = vld [vmem:[#allocation3 + $0xe8] sm:$0xff]
  %v5543 = vld [vmem:[#allocation3 + $0xf0] sm:$0xff]
  %v5544 = vld [vmem:[#allocation3 + $0xf8] sm:$0xff]
  %v5545 = vld [vmem:[#allocation3 + $0x100] sm:$0xff]
  %v5546 = vld [vmem:[#allocation3 + $0x108] sm:$0xff]
  %v5547 = vld [vmem:[#allocation3 + $0x110] sm:$0xff]
  %v5548 = vld [vmem:[#allocation3 + $0x118] sm:$0xff]
  %v5549 = vld [vmem:[#allocation3 + $0x120] sm:$0xff]
  %v5550 = vld [vmem:[#allocation3 + $0x128] sm:$0xff]
  %v5551 = vld [vmem:[#allocation3 + $0x130] sm:$0xff]
  %v5552 = vld [vmem:[#allocation3 + $0x138] sm:$0xff]
  %s5553 = scalar_lea.vmem %s3, 928
  %v5554 = vld [vmem:[%s5553] sm:$0xff]
  %v5555 = vld [vmem:[%s5553 + $0x8] sm:$0xff]
  %v5556 = vld [vmem:[%s5553 + $0x10] sm:$0xff]
  %v5557 = vld [vmem:[%s5553 + $0x18] sm:$0xff]
  %v5558 = vld [vmem:[%s5553 + $0x20] sm:$0xff]
  %v5559 = vld [vmem:[%s5553 + $0x28] sm:$0xff]
  %v5560 = vld [vmem:[%s5553 + $0x30] sm:$0xff]
  %v5561 = vld [vmem:[%s5553 + $0x38] sm:$0xff]
  %v5562 = vld [vmem:[%s5553 + $0x40] sm:$0xff]
  %v5563 = vld [vmem:[%s5553 + $0x48] sm:$0xff]
  %v5564 = vld [vmem:[%s5553 + $0x50] sm:$0xff]
  %v5565 = vld [vmem:[%s5553 + $0x58] sm:$0xff]
  %v5566 = vld [vmem:[%s5553 + $0x60] sm:$0xff]
  %v5567 = vld [vmem:[%s5553 + $0x68] sm:$0xff]
  %v5568 = vld [vmem:[%s5553 + $0x70] sm:$0xff]
  %v5569 = vld [vmem:[%s5553 + $0x78] sm:$0xff]
  %v5570 = vld [vmem:[%s5553 + $0x80] sm:$0xff]
  %v5571 = vld [vmem:[%s5553 + $0x88] sm:$0xff]
  %v5572 = vld [vmem:[%s5553 + $0x90] sm:$0xff]
  %v5573 = vld [vmem:[%s5553 + $0x98] sm:$0xff]
  %v5574 = vld [vmem:[%s5553 + $0xa0] sm:$0xff]
  %v5575 = vld [vmem:[%s5553 + $0xa8] sm:$0xff]
  %v5576 = vld [vmem:[%s5553 + $0xb0] sm:$0xff]
  %v5577 = vld [vmem:[%s5553 + $0xb8] sm:$0xff]
  %v5578 = vld [vmem:[%s5553 + $0xc0] sm:$0xff]
  %v5579 = vld [vmem:[%s5553 + $0xc8] sm:$0xff]
  %v5580 = vld [vmem:[%s5553 + $0xd0] sm:$0xff]
  %v5581 = vld [vmem:[%s5553 + $0xd8] sm:$0xff]
  %v5582 = vld [vmem:[%s5553 + $0xe0] sm:$0xff]
  %v5583 = vld [vmem:[%s5553 + $0xe8] sm:$0xff]
  %v5584 = vld [vmem:[%s5553 + $0xf0] sm:$0xff]
  %v5585 = vld [vmem:[%s5553 + $0xf8] sm:$0xff]
  %v5586 = vld [vmem:[%s5553 + $0x100] sm:$0xff]
  %v5587 = vld [vmem:[%s5553 + $0x108] sm:$0xff]
  %v5588 = vld [vmem:[%s5553 + $0x110] sm:$0xff]
  %v5589 = vld [vmem:[%s5553 + $0x118] sm:$0xff]
  %v5590 = vld [vmem:[%s5553 + $0x120] sm:$0xff]
  %v5591 = vld [vmem:[%s5553 + $0x128] sm:$0xff]
  %v5592 = vld [vmem:[%s5553 + $0x130] sm:$0xff]
  %v5593 = vld [vmem:[%s5553 + $0x138] sm:$0xff]
  %v5594 = vld [vmem:[%s5553 + $0x140] sm:$0xff]
  %v5595 = vld [vmem:[%s5553 + $0x148] sm:$0xff]
  %v5596 = vld [vmem:[%s5553 + $0x150] sm:$0xff]
  %v5597 = vld [vmem:[%s5553 + $0x158] sm:$0xff]
  %v5598 = vld [vmem:[%s5553 + $0x160] sm:$0xff]
  %v5599 = vld [vmem:[%s5553 + $0x168] sm:$0xff]
  %v5600 = vld [vmem:[%s5553 + $0x170] sm:$0xff]
  %v5601 = vld [vmem:[%s5553 + $0x178] sm:$0xff]
  %v5602 = vld [vmem:[%s5553 + $0x180] sm:$0xff]
  %v5603 = vld [vmem:[%s5553 + $0x188] sm:$0xff]
  %v5604 = vld [vmem:[%s5553 + $0x190] sm:$0xff]
  %v5605 = vld [vmem:[%s5553 + $0x198] sm:$0xff]
  %v5606 = vld [vmem:[%s5553 + $0x1a0] sm:$0xff]
  %v5607 = vld [vmem:[%s5553 + $0x1a8] sm:$0xff]
  %v5608 = vld [vmem:[%s5553 + $0x1b0] sm:$0xff]
  %v5609 = vld [vmem:[%s5553 + $0x1b8] sm:$0xff]
  %v5610 = vld [vmem:[%s5553 + $0x1c0] sm:$0x3f]
  %v5611 = vld [vmem:[%s5553 + $0x1c8] sm:$0x3f]
  %v5613 = vsel %vm4138, %v5522, 0
  %v5616 = vsel %vm4138, %v5524, 0
  %v5619 = vsel %vm4138, %v5526, 0
  %v5622 = vsel %vm4138, %v5528, 0
  %v5625 = vsel %vm4138, %v5530, 0
  %v5628 = vsel %vm4138, %v5532, 0
  %v5631 = vsel %vm4138, %v5534, 0
  %v5634 = vsel %vm4138, %v5536, 0
  %v5637 = vsel %vm4138, %v5538, 0
  %v5640 = vsel %vm4138, %v5540, 0
  %v5643 = vsel %vm4138, %v5542, 0
  %v5646 = vsel %vm4138, %v5544, 0
  %v5649 = vsel %vm4138, %v5546, 0
  %v5652 = vsel %vm4138, %v5548, 0
  %v5655 = vsel %vm4138, %v5550, 0
  %v5658 = vsel %vm4138, %v5552, 0
  %v5661 = vsel %vm4918, %v5610, 0
  %v5664 = vsel %vm4918, %v5611, 0
  %5666 = vmatprep.subr.mxu0 %v5555
  %5667 = vmatpush1.msra.mxu0 %v5554
  %5668 = vmatprep.subr.mxu0 %v5557
  %5669 = vmatpush1.msra.mxu0 %v5556
  %5670 = vmatprep.subr.mxu0 %v5559
  %5671 = vmatpush1.msra.mxu0 %v5558
  %5672 = vmatprep.subr.mxu0 %v5561
  %5673 = vmatpush1.msra.mxu0 %v5560
  %5674 = vmatprep.subr.mxu0 %v5563
  %5675 = vmatpush1.msra.mxu0 %v5562
  %5676 = vmatprep.subr.mxu0 %v5565
  %5677 = vmatpush1.msra.mxu0 %v5564
  %5678 = vmatprep.subr.mxu0 %v5567
  %5679 = vmatpush1.msra.mxu0 %v5566
  %5680 = vmatprep.subr.mxu0 %v5569
  %5681 = vmatpush1.msra.mxu0 %v5568
  %5682 = vmatprep.subr.mxu0 %v5571
  %5683 = vmatpush1.msra.mxu0 %v5570
  %5684 = vmatprep.subr.mxu0 %v5573
  %5685 = vmatpush1.msra.mxu0 %v5572
  %5686 = vmatprep.subr.mxu0 %v5575
  %5687 = vmatpush1.msra.mxu0 %v5574
  %5688 = vmatprep.subr.mxu0 %v5577
  %5689 = vmatpush1.msra.mxu0 %v5576
  %5690 = vmatprep.subr.mxu0 %v5579
  %5691 = vmatpush1.msra.mxu0 %v5578
  %5692 = vmatprep.subr.mxu0 %v5581
  %5693 = vmatpush1.msra.mxu0 %v5580
  %5694 = vmatprep.subr.mxu0 %v5583
  %5695 = vmatpush1.msra.mxu0 %v5582
  %5696 = vmatprep.subr.mxu0 %v5585
  %5697 = vmatpush1.msra.mxu0 %v5584
  %5698 = vmatprep.subr.mxu0 %v5587
  %5699 = vmatpush1.msra.mxu0 %v5586
  %5700 = vmatprep.subr.mxu0 %v5589
  %5701 = vmatpush1.msra.mxu0 %v5588
  %5702 = vmatprep.subr.mxu0 %v5591
  %5703 = vmatpush1.msra.mxu0 %v5590
  %5704 = vmatprep.subr.mxu0 %v5593
  %5705 = vmatpush1.msra.mxu0 %v5592
  %5706 = vmatprep.subr.mxu0 %v5595
  %5707 = vmatpush1.msra.mxu0 %v5594
  %5708 = vmatprep.subr.mxu0 %v5597
  %5709 = vmatpush1.msra.mxu0 %v5596
  %5710 = vmatprep.subr.mxu0 %v5599
  %5711 = vmatpush1.msra.mxu0 %v5598
  %5712 = vmatprep.subr.mxu0 %v5601
  %5713 = vmatpush1.msra.mxu0 %v5600
  %5714 = vmatprep.subr.mxu0 %v5603
  %5715 = vmatpush1.msra.mxu0 %v5602
  %5716 = vmatprep.subr.mxu0 %v5605
  %5717 = vmatpush1.msra.mxu0 %v5604
  %5718 = vmatprep.subr.mxu0 %v5607
  %5719 = vmatpush1.msra.mxu0 %v5606
  %5720 = vmatprep.subr.mxu0 %v5609
  %5721 = vmatpush1.msra.mxu0 %v5608
  %5722 = vmatprep.subr.mxu0 %v5664
  %5723 = vmatpush1.msra.mxu0 %v5661
  %5724 = vmatprep.subr.mxu0 0.0
  %5725 = vmatpush1.msra.mxu0 0.0
  %5726 = vmatprep.subr.mxu0 0.0
  %5727 = vmatpush1.msra.mxu0 0.0
  %5728 = vmatprep.subr.mxu0 0.0
  %5729 = vmatpush1.msra.mxu0 0.0
  %5730 = vmatprep.mubr.f32.mxu0 %v5613
  %5731 = vmatmul.mubr.f32.gmra.mrb[0].mxu0 %v5521
  %v5732 = vpop.f32.mrb[0].mxu0
  %v5733 = vadd.f32 0.0, %v5732
  %v5734 = vpop.f32.mrb[0].mxu0
  %v5735 = vadd.f32 0.0, %v5734
  %5736 = vmatprep.mubr.f32.mxu0 %v5616
  %5737 = vmatmul.mubr.f32.gmra.mrb[0].mxu0 %v5523
  %v5738 = vpop.f32.mrb[0].mxu0
  %v5739 = vadd.f32 0.0, %v5738
  %v5740 = vpop.f32.mrb[0].mxu0
  %v5741 = vadd.f32 0.0, %v5740
  %5742 = vmatprep.mubr.f32.mxu0 %v5619
  %5743 = vmatmul.mubr.f32.gmra.mrb[0].mxu0 %v5525
  %v5744 = vpop.f32.mrb[0].mxu0
  %v5745 = vadd.f32 0.0, %v5744
  %v5746 = vpop.f32.mrb[0].mxu0
  %v5747 = vadd.f32 0.0, %v5746
  %5748 = vmatprep.mubr.f32.mxu0 %v5622
  %5749 = vmatmul.mubr.f32.gmra.mrb[0].mxu0 %v5527
  %v5750 = vpop.f32.mrb[0].mxu0
  %v5751 = vadd.f32 0.0, %v5750
  %v5752 = vpop.f32.mrb[0].mxu0
  %v5753 = vadd.f32 0.0, %v5752
  %5754 = vmatprep.mubr.f32.mxu0 %v5625
  %5755 = vmatmul.mubr.f32.gmra.mrb[0].mxu0 %v5529
  %v5756 = vpop.f32.mrb[0].mxu0
  %v5757 = vadd.f32 0.0, %v5756
  %v5758 = vpop.f32.mrb[0].mxu0
  %v5759 = vadd.f32 0.0, %v5758
  %5760 = vmatprep.mubr.f32.mxu0 %v5628
  %5761 = vmatmul.mubr.f32.gmra.mrb[0].mxu0 %v5531
  %v5762 = vpop.f32.mrb[0].mxu0
  %v5763 = vadd.f32 0.0, %v5762
  %v5764 = vpop.f32.mrb[0].mxu0
  %v5765 = vadd.f32 0.0, %v5764
  %5766 = vmatprep.mubr.f32.mxu0 %v5631
  %5767 = vmatmul.mubr.f32.gmra.mrb[0].mxu0 %v5533
  %v5768 = vpop.f32.mrb[0].mxu0
  %v5769 = vadd.f32 0.0, %v5768
  %v5770 = vpop.f32.mrb[0].mxu0
  %v5771 = vadd.f32 0.0, %v5770
  %5772 = vmatprep.mubr.f32.mxu0 %v5634
  %5773 = vmatmul.mubr.f32.gmra.mrb[0].mxu0 %v5535
  %v5774 = vpop.f32.mrb[0].mxu0
  %v5775 = vadd.f32 0.0, %v5774
  %v5776 = vpop.f32.mrb[0].mxu0
  %v5777 = vadd.f32 0.0, %v5776
  %5778 = vmatprep.mubr.f32.mxu0 %v5637
  %5779 = vmatmul.mubr.f32.gmra.mrb[0].mxu0 %v5537
  %v5780 = vpop.f32.mrb[0].mxu0
  %v5781 = vadd.f32 0.0, %v5780
  %v5782 = vpop.f32.mrb[0].mxu0
  %v5783 = vadd.f32 0.0, %v5782
  %5784 = vmatprep.mubr.f32.mxu0 %v5640
  %5785 = vmatmul.mubr.f32.gmra.mrb[0].mxu0 %v5539
  %v5786 = vpop.f32.mrb[0].mxu0
  %v5787 = vadd.f32 0.0, %v5786
  %v5788 = vpop.f32.mrb[0].mxu0
  %v5789 = vadd.f32 0.0, %v5788
  %5790 = vmatprep.mubr.f32.mxu0 %v5643
  %5791 = vmatmul.mubr.f32.gmra.mrb[0].mxu0 %v5541
  %v5792 = vpop.f32.mrb[0].mxu0
  %v5793 = vadd.f32 0.0, %v5792
  %v5794 = vpop.f32.mrb[0].mxu0
  %v5795 = vadd.f32 0.0, %v5794
  %5796 = vmatprep.mubr.f32.mxu0 %v5646
  %5797 = vmatmul.mubr.f32.gmra.mrb[0].mxu0 %v5543
  %v5798 = vpop.f32.mrb[0].mxu0
  %v5799 = vadd.f32 0.0, %v5798
  %v5800 = vpop.f32.mrb[0].mxu0
  %v5801 = vadd.f32 0.0, %v5800
  %5802 = vmatprep.mubr.f32.mxu0 %v5649
  %5803 = vmatmul.mubr.f32.gmra.mrb[0].mxu0 %v5545
  %v5804 = vpop.f32.mrb[0].mxu0
  %v5805 = vadd.f32 0.0, %v5804
  %v5806 = vpop.f32.mrb[0].mxu0
  %v5807 = vadd.f32 0.0, %v5806
  %5808 = vmatprep.mubr.f32.mxu0 %v5652
  %5809 = vmatmul.mubr.f32.gmra.mrb[0].mxu0 %v5547
  %v5810 = vpop.f32.mrb[0].mxu0
  %v5811 = vadd.f32 0.0, %v5810
  %v5812 = vpop.f32.mrb[0].mxu0
  %v5813 = vadd.f32 0.0, %v5812
  %5814 = vmatprep.mubr.f32.mxu0 %v5655
  %5815 = vmatmul.mubr.f32.gmra.mrb[0].mxu0 %v5549
  %v5816 = vpop.f32.mrb[0].mxu0
  %v5817 = vadd.f32 0.0, %v5816
  %v5818 = vpop.f32.mrb[0].mxu0
  %v5819 = vadd.f32 0.0, %v5818
  %5820 = vmatprep.mubr.f32.mxu0 %v5658
  %5821 = vmatmul.mubr.f32.gmra.mrb[0].mxu0 %v5551
  %v5822 = vpop.f32.mrb[0].mxu0
  %v5823 = vadd.f32 0.0, %v5822
  %v5824 = vpop.f32.mrb[0].mxu0
  %v5825 = vadd.f32 0.0, %v5824
  %5826 = vdwg.mxu0
  %v5827 = vld [vmem:[#allocation4] sm:$0xff]
  %v5828 = vld [vmem:[#allocation4 + $0x8] sm:$0xff]
  %v5829 = vld [vmem:[#allocation4 + $0x10] sm:$0xff]
  %v5830 = vld [vmem:[#allocation4 + $0x18] sm:$0xff]
  %v5831 = vld [vmem:[#allocation4 + $0x20] sm:$0xff]
  %v5832 = vld [vmem:[#allocation4 + $0x28] sm:$0xff]
  %v5833 = vld [vmem:[#allocation4 + $0x30] sm:$0xff]
  %v5834 = vld [vmem:[#allocation4 + $0x38] sm:$0xff]
  %v5835 = vld [vmem:[#allocation4 + $0x40] sm:$0xff]
  %v5836 = vld [vmem:[#allocation4 + $0x48] sm:$0xff]
  %v5837 = vld [vmem:[#allocation4 + $0x50] sm:$0xff]
  %v5838 = vld [vmem:[#allocation4 + $0x58] sm:$0xff]
  %v5839 = vld [vmem:[#allocation4 + $0x60] sm:$0xff]
  %v5840 = vld [vmem:[#allocation4 + $0x68] sm:$0xff]
  %v5841 = vld [vmem:[#allocation4 + $0x70] sm:$0xff]
  %v5842 = vld [vmem:[#allocation4 + $0x78] sm:$0xff]
  %v5843 = vld [vmem:[#allocation4 + $0x80] sm:$0xff]
  %v5844 = vld [vmem:[#allocation4 + $0x88] sm:$0xff]
  %v5845 = vld [vmem:[#allocation4 + $0x90] sm:$0xff]
  %v5846 = vld [vmem:[#allocation4 + $0x98] sm:$0xff]
  %v5847 = vld [vmem:[#allocation4 + $0xa0] sm:$0xff]
  %v5848 = vld [vmem:[#allocation4 + $0xa8] sm:$0xff]
  %v5849 = vld [vmem:[#allocation4 + $0xb0] sm:$0xff]
  %v5850 = vld [vmem:[#allocation4 + $0xb8] sm:$0xff]
  %v5851 = vld [vmem:[#allocation4 + $0xc0] sm:$0xff]
  %v5852 = vld [vmem:[#allocation4 + $0xc8] sm:$0xff]
  %v5853 = vld [vmem:[#allocation4 + $0xd0] sm:$0xff]
  %v5854 = vld [vmem:[#allocation4 + $0xd8] sm:$0xff]
  %v5855 = vld [vmem:[#allocation4 + $0xe0] sm:$0xff]
  %v5856 = vld [vmem:[#allocation4 + $0xe8] sm:$0xff]
  %v5857 = vld [vmem:[#allocation4 + $0xf0] sm:$0xff]
  %v5858 = vld [vmem:[#allocation4 + $0xf8] sm:$0xff]
  %v5859 = vadd.f32 %v5827, %v5733
  %v5860 = vadd.f32 %v5828, %v5735
  %v5861 = vadd.f32 %v5829, %v5739
  %v5862 = vadd.f32 %v5830, %v5741
  %v5863 = vadd.f32 %v5831, %v5745
  %v5864 = vadd.f32 %v5832, %v5747
  %v5865 = vadd.f32 %v5833, %v5751
  %v5866 = vadd.f32 %v5834, %v5753
  %v5867 = vadd.f32 %v5835, %v5757
  %v5868 = vadd.f32 %v5836, %v5759
  %v5869 = vadd.f32 %v5837, %v5763
  %v5870 = vadd.f32 %v5838, %v5765
  %v5871 = vadd.f32 %v5839, %v5769
  %v5872 = vadd.f32 %v5840, %v5771
  %v5873 = vadd.f32 %v5841, %v5775
  %v5874 = vadd.f32 %v5842, %v5777
  %v5875 = vadd.f32 %v5843, %v5781
  %v5876 = vadd.f32 %v5844, %v5783
  %v5877 = vadd.f32 %v5845, %v5787
  %v5878 = vadd.f32 %v5846, %v5789
  %v5879 = vadd.f32 %v5847, %v5793
  %v5880 = vadd.f32 %v5848, %v5795
  %v5881 = vadd.f32 %v5849, %v5799
  %v5882 = vadd.f32 %v5850, %v5801
  %v5883 = vadd.f32 %v5851, %v5805
  %v5884 = vadd.f32 %v5852, %v5807
  %v5885 = vadd.f32 %v5853, %v5811
  %v5886 = vadd.f32 %v5854, %v5813
  %v5887 = vadd.f32 %v5855, %v5817
  %v5888 = vadd.f32 %v5856, %v5819
  %v5889 = vadd.f32 %v5857, %v5823
  %v5890 = vadd.f32 %v5858, %v5825
  %5891 = vst [vmem:[#allocation4] sm:$0xff] %v5859
  %5892 = vst.msk [vmem:[#allocation4 + $0x8] sm:$0xff] %vm5087, %v5860
  %5893 = vst [vmem:[#allocation4 + $0x10] sm:$0xff] %v5861
  %5894 = vst.msk [vmem:[#allocation4 + $0x18] sm:$0xff] %vm5087, %v5862
  %5895 = vst [vmem:[#allocation4 + $0x20] sm:$0xff] %v5863
  %5896 = vst.msk [vmem:[#allocation4 + $0x28] sm:$0xff] %vm5087, %v5864
  %5897 = vst [vmem:[#allocation4 + $0x30] sm:$0xff] %v5865
  %5898 = vst.msk [vmem:[#allocation4 + $0x38] sm:$0xff] %vm5087, %v5866
  %5899 = vst [vmem:[#allocation4 + $0x40] sm:$0xff] %v5867
  %5900 = vst.msk [vmem:[#allocation4 + $0x48] sm:$0xff] %vm5087, %v5868
  %5901 = vst [vmem:[#allocation4 + $0x50] sm:$0xff] %v5869
  %5902 = vst.msk [vmem:[#allocation4 + $0x58] sm:$0xff] %vm5087, %v5870
  %5903 = vst [vmem:[#allocation4 + $0x60] sm:$0xff] %v5871
  %5904 = vst.msk [vmem:[#allocation4 + $0x68] sm:$0xff] %vm5087, %v5872
  %5905 = vst [vmem:[#allocation4 + $0x70] sm:$0xff] %v5873
  %5906 = vst.msk [vmem:[#allocation4 + $0x78] sm:$0xff] %vm5087, %v5874
  %5907 = vst [vmem:[#allocation4 + $0x80] sm:$0xff] %v5875
  %5908 = vst.msk [vmem:[#allocation4 + $0x88] sm:$0xff] %vm5087, %v5876
  %5909 = vst [vmem:[#allocation4 + $0x90] sm:$0xff] %v5877
  %5910 = vst.msk [vmem:[#allocation4 + $0x98] sm:$0xff] %vm5087, %v5878
  %5911 = vst [vmem:[#allocation4 + $0xa0] sm:$0xff] %v5879
  %5912 = vst.msk [vmem:[#allocation4 + $0xa8] sm:$0xff] %vm5087, %v5880
  %5913 = vst [vmem:[#allocation4 + $0xb0] sm:$0xff] %v5881
  %5914 = vst.msk [vmem:[#allocation4 + $0xb8] sm:$0xff] %vm5087, %v5882
  %5915 = vst [vmem:[#allocation4 + $0xc0] sm:$0xff] %v5883
  %5916 = vst.msk [vmem:[#allocation4 + $0xc8] sm:$0xff] %vm5087, %v5884
  %5917 = vst [vmem:[#allocation4 + $0xd0] sm:$0xff] %v5885
  %5918 = vst.msk [vmem:[#allocation4 + $0xd8] sm:$0xff] %vm5087, %v5886
  %5919 = vst [vmem:[#allocation4 + $0xe0] sm:$0xff] %v5887
  %5920 = vst.msk [vmem:[#allocation4 + $0xe8] sm:$0xff] %vm5087, %v5888
  %5921 = vst [vmem:[#allocation4 + $0xf0] sm:$0xff] %v5889
  %5922 = vst.msk [vmem:[#allocation4 + $0xf8] sm:$0xff] %vm5087, %v5890
  %v5923 = vld [vmem:[#allocation3 + $0x60] sm:$0xff]
  %v5924 = vld [vmem:[#allocation3 + $0x68] sm:$0xff]
  %v5925 = vld [vmem:[#allocation3 + $0x70] sm:$0xff]
  %v5926 = vld [vmem:[#allocation3 + $0x78] sm:$0xff]
  %v5927 = vld [vmem:[#allocation3 + $0x80] sm:$0xff]
  %v5928 = vld [vmem:[#allocation3 + $0x88] sm:$0xff]
  %v5929 = vld [vmem:[#allocation3 + $0x90] sm:$0xff]
  %v5930 = vld [vmem:[#allocation3 + $0x98] sm:$0xff]
  %v5931 = vld [vmem:[#allocation3 + $0xa0] sm:$0xff]
  %v5932 = vld [vmem:[#allocation3 + $0xa8] sm:$0xff]
  %v5933 = vld [vmem:[#allocation3 + $0xb0] sm:$0xff]
  %v5934 = vld [vmem:[#allocation3 + $0xb8] sm:$0xff]
  %v5935 = vld [vmem:[#allocation3 + $0xc0] sm:$0xff]
  %v5936 = vld [vmem:[#allocation3 + $0xc8] sm:$0xff]
  %v5937 = vld [vmem:[#allocation3 + $0xd0] sm:$0xff]
  %v5938 = vld [vmem:[#allocation3 + $0xd8] sm:$0xff]
  %v5939 = vld [vmem:[#allocation3 + $0xe0] sm:$0xff]
  %v5940 = vld [vmem:[#allocation3 + $0xe8] sm:$0xff]
  %v5941 = vld [vmem:[#allocation3 + $0xf0] sm:$0xff]
  %v5942 = vld [vmem:[#allocation3 + $0xf8] sm:$0xff]
  %v5943 = vld [vmem:[#allocation3 + $0x100] sm:$0xff]
  %v5944 = vld [vmem:[#allocation3 + $0x108] sm:$0xff]
  %v5945 = vld [vmem:[#allocation3 + $0x110] sm:$0xff]
  %v5946 = vld [vmem:[#allocation3 + $0x118] sm:$0xff]
  %v5947 = vld [vmem:[#allocation3 + $0x120] sm:$0xff]
  %v5948 = vld [vmem:[#allocation3 + $0x128] sm:$0xff]
  %v5949 = vld [vmem:[#allocation3 + $0x130] sm:$0xff]
  %v5950 = vld [vmem:[#allocation3 + $0x138] sm:$0xff]
  %v5951 = vld [vmem:[#allocation3 + $0x140] sm:$0xff]
  %v5952 = vld [vmem:[#allocation3 + $0x148] sm:$0xff]
  %v5953 = vld [vmem:[#allocation3 + $0x150] sm:$0xff]
  %v5954 = vld [vmem:[#allocation3 + $0x158] sm:$0xff]
  %s5955 = scalar_lea.vmem %s3, 1392
  %v5956 = vld [vmem:[%s5955] sm:$0xff]
  %v5957 = vld [vmem:[%s5955 + $0x8] sm:$0xff]
  %v5958 = vld [vmem:[%s5955 + $0x10] sm:$0xff]
  %v5959 = vld [vmem:[%s5955 + $0x18] sm:$0xff]
  %v5960 = vld [vmem:[%s5955 + $0x20] sm:$0xff]
  %v5961 = vld [vmem:[%s5955 + $0x28] sm:$0xff]
  %v5962 = vld [vmem:[%s5955 + $0x30] sm:$0xff]
  %v5963 = vld [vmem:[%s5955 + $0x38] sm:$0xff]
  %v5964 = vld [vmem:[%s5955 + $0x40] sm:$0xff]
  %v5965 = vld [vmem:[%s5955 + $0x48] sm:$0xff]
  %v5966 = vld [vmem:[%s5955 + $0x50] sm:$0xff]
  %v5967 = vld [vmem:[%s5955 + $0x58] sm:$0xff]
  %v5968 = vld [vmem:[%s5955 + $0x60] sm:$0xff]
  %v5969 = vld [vmem:[%s5955 + $0x68] sm:$0xff]
  %v5970 = vld [vmem:[%s5955 + $0x70] sm:$0xff]
  %v5971 = vld [vmem:[%s5955 + $0x78] sm:$0xff]
  %v5972 = vld [vmem:[%s5955 + $0x80] sm:$0xff]
  %v5973 = vld [vmem:[%s5955 + $0x88] sm:$0xff]
  %v5974 = vld [vmem:[%s5955 + $0x90] sm:$0xff]
  %v5975 = vld [vmem:[%s5955 + $0x98] sm:$0xff]
  %v5976 = vld [vmem:[%s5955 + $0xa0] sm:$0xff]
  %v5977 = vld [vmem:[%s5955 + $0xa8] sm:$0xff]
  %v5978 = vld [vmem:[%s5955 + $0xb0] sm:$0xff]
  %v5979 = vld [vmem:[%s5955 + $0xb8] sm:$0xff]
  %v5980 = vld [vmem:[%s5955 + $0xc0] sm:$0xff]
  %v5981 = vld [vmem:[%s5955 + $0xc8] sm:$0xff]
  %v5982 = vld [vmem:[%s5955 + $0xd0] sm:$0xff]
  %v5983 = vld [vmem:[%s5955 + $0xd8] sm:$0xff]
  %v5984 = vld [vmem:[%s5955 + $0xe0] sm:$0xff]
  %v5985 = vld [vmem:[%s5955 + $0xe8] sm:$0xff]
  %v5986 = vld [vmem:[%s5955 + $0xf0] sm:$0xff]
  %v5987 = vld [vmem:[%s5955 + $0xf8] sm:$0xff]
  %v5988 = vld [vmem:[%s5955 + $0x100] sm:$0xff]
  %v5989 = vld [vmem:[%s5955 + $0x108] sm:$0xff]
  %v5990 = vld [vmem:[%s5955 + $0x110] sm:$0xff]
  %v5991 = vld [vmem:[%s5955 + $0x118] sm:$0xff]
  %v5992 = vld [vmem:[%s5955 + $0x120] sm:$0xff]
  %v5993 = vld [vmem:[%s5955 + $0x128] sm:$0xff]
  %v5994 = vld [vmem:[%s5955 + $0x130] sm:$0xff]
  %v5995 = vld [vmem:[%s5955 + $0x138] sm:$0xff]
  %v5996 = vld [vmem:[%s5955 + $0x140] sm:$0xff]
  %v5997 = vld [vmem:[%s5955 + $0x148] sm:$0xff]
  %v5998 = vld [vmem:[%s5955 + $0x150] sm:$0xff]
  %v5999 = vld [vmem:[%s5955 + $0x158] sm:$0xff]
  %v6000 = vld [vmem:[%s5955 + $0x160] sm:$0xff]
  %v6001 = vld [vmem:[%s5955 + $0x168] sm:$0xff]
  %v6002 = vld [vmem:[%s5955 + $0x170] sm:$0xff]
  %v6003 = vld [vmem:[%s5955 + $0x178] sm:$0xff]
  %v6004 = vld [vmem:[%s5955 + $0x180] sm:$0xff]
  %v6005 = vld [vmem:[%s5955 + $0x188] sm:$0xff]
  %v6006 = vld [vmem:[%s5955 + $0x190] sm:$0xff]
  %v6007 = vld [vmem:[%s5955 + $0x198] sm:$0xff]
  %v6008 = vld [vmem:[%s5955 + $0x1a0] sm:$0xff]
  %v6009 = vld [vmem:[%s5955 + $0x1a8] sm:$0xff]
  %v6010 = vld [vmem:[%s5955 + $0x1b0] sm:$0xff]
  %v6011 = vld [vmem:[%s5955 + $0x1b8] sm:$0xff]
  %v6012 = vld [vmem:[%s5955 + $0x1c0] sm:$0x3f]
  %v6013 = vld [vmem:[%s5955 + $0x1c8] sm:$0x3f]
  %v6015 = vsel %vm4138, %v5924, 0
  %v6018 = vsel %vm4138, %v5926, 0
  %v6021 = vsel %vm4138, %v5928, 0
  %v6024 = vsel %vm4138, %v5930, 0
  %v6027 = vsel %vm4138, %v5932, 0
  %v6030 = vsel %vm4138, %v5934, 0
  %v6033 = vsel %vm4138, %v5936, 0
  %v6036 = vsel %vm4138, %v5938, 0
  %v6039 = vsel %vm4138, %v5940, 0
  %v6042 = vsel %vm4138, %v5942, 0
  %v6045 = vsel %vm4138, %v5944, 0
  %v6048 = vsel %vm4138, %v5946, 0
  %v6051 = vsel %vm4138, %v5948, 0
  %v6054 = vsel %vm4138, %v5950, 0
  %v6057 = vsel %vm4138, %v5952, 0
  %v6060 = vsel %vm4138, %v5954, 0
  %v6063 = vsel %vm4918, %v6012, 0
  %v6066 = vsel %vm4918, %v6013, 0
  %6068 = vmatprep.subr.mxu0 %v5957
  %6069 = vmatpush1.msra.mxu0 %v5956
  %6070 = vmatprep.subr.mxu0 %v5959
  %6071 = vmatpush1.msra.mxu0 %v5958
  %6072 = vmatprep.subr.mxu0 %v5961
  %6073 = vmatpush1.msra.mxu0 %v5960
  %6074 = vmatprep.subr.mxu0 %v5963
  %6075 = vmatpush1.msra.mxu0 %v5962
  %6076 = vmatprep.subr.mxu0 %v5965
  %6077 = vmatpush1.msra.mxu0 %v5964
  %6078 = vmatprep.subr.mxu0 %v5967
  %6079 = vmatpush1.msra.mxu0 %v5966
  %6080 = vmatprep.subr.mxu0 %v5969
  %6081 = vmatpush1.msra.mxu0 %v5968
  %6082 = vmatprep.subr.mxu0 %v5971
  %6083 = vmatpush1.msra.mxu0 %v5970
  %6084 = vmatprep.subr.mxu0 %v5973
  %6085 = vmatpush1.msra.mxu0 %v5972
  %6086 = vmatprep.subr.mxu0 %v5975
  %6087 = vmatpush1.msra.mxu0 %v5974
  %6088 = vmatprep.subr.mxu0 %v5977
  %6089 = vmatpush1.msra.mxu0 %v5976
  %6090 = vmatprep.subr.mxu0 %v5979
  %6091 = vmatpush1.msra.mxu0 %v5978
  %6092 = vmatprep.subr.mxu0 %v5981
  %6093 = vmatpush1.msra.mxu0 %v5980
  %6094 = vmatprep.subr.mxu0 %v5983
  %6095 = vmatpush1.msra.mxu0 %v5982
  %6096 = vmatprep.subr.mxu0 %v5985
  %6097 = vmatpush1.msra.mxu0 %v5984
  %6098 = vmatprep.subr.mxu0 %v5987
  %6099 = vmatpush1.msra.mxu0 %v5986
  %6100 = vmatprep.subr.mxu0 %v5989
  %6101 = vmatpush1.msra.mxu0 %v5988
  %6102 = vmatprep.subr.mxu0 %v5991
  %6103 = vmatpush1.msra.mxu0 %v5990
  %6104 = vmatprep.subr.mxu0 %v5993
  %6105 = vmatpush1.msra.mxu0 %v5992
  %6106 = vmatprep.subr.mxu0 %v5995
  %6107 = vmatpush1.msra.mxu0 %v5994
  %6108 = vmatprep.subr.mxu0 %v5997
  %6109 = vmatpush1.msra.mxu0 %v5996
  %6110 = vmatprep.subr.mxu0 %v5999
  %6111 = vmatpush1.msra.mxu0 %v5998
  %6112 = vmatprep.subr.mxu0 %v6001
  %6113 = vmatpush1.msra.mxu0 %v6000
  %6114 = vmatprep.subr.mxu0 %v6003
  %6115 = vmatpush1.msra.mxu0 %v6002
  %6116 = vmatprep.subr.mxu0 %v6005
  %6117 = vmatpush1.msra.mxu0 %v6004
  %6118 = vmatprep.subr.mxu0 %v6007
  %6119 = vmatpush1.msra.mxu0 %v6006
  %6120 = vmatprep.subr.mxu0 %v6009
  %6121 = vmatpush1.msra.mxu0 %v6008
  %6122 = vmatprep.subr.mxu0 %v6011
  %6123 = vmatpush1.msra.mxu0 %v6010
  %6124 = vmatprep.subr.mxu0 %v6066
  %6125 = vmatpush1.msra.mxu0 %v6063
  %6126 = vmatprep.subr.mxu0 0.0
  %6127 = vmatpush1.msra.mxu0 0.0
  %6128 = vmatprep.subr.mxu0 0.0
  %6129 = vmatpush1.msra.mxu0 0.0
  %6130 = vmatprep.subr.mxu0 0.0
  %6131 = vmatpush1.msra.mxu0 0.0
  %6132 = vmatprep.mubr.f32.mxu0 %v6015
  %6133 = vmatmul.mubr.f32.gmra.mrb[0].mxu0 %v5923
  %v6134 = vpop.f32.mrb[0].mxu0
  %v6135 = vadd.f32 0.0, %v6134
  %v6136 = vpop.f32.mrb[0].mxu0
  %v6137 = vadd.f32 0.0, %v6136
  %6138 = vmatprep.mubr.f32.mxu0 %v6018
  %6139 = vmatmul.mubr.f32.gmra.mrb[0].mxu0 %v5925
  %v6140 = vpop.f32.mrb[0].mxu0
  %v6141 = vadd.f32 0.0, %v6140
  %v6142 = vpop.f32.mrb[0].mxu0
  %v6143 = vadd.f32 0.0, %v6142
  %6144 = vmatprep.mubr.f32.mxu0 %v6021
  %6145 = vmatmul.mubr.f32.gmra.mrb[0].mxu0 %v5927
  %v6146 = vpop.f32.mrb[0].mxu0
  %v6147 = vadd.f32 0.0, %v6146
  %v6148 = vpop.f32.mrb[0].mxu0
  %v6149 = vadd.f32 0.0, %v6148
  %6150 = vmatprep.mubr.f32.mxu0 %v6024
  %6151 = vmatmul.mubr.f32.gmra.mrb[0].mxu0 %v5929
  %v6152 = vpop.f32.mrb[0].mxu0
  %v6153 = vadd.f32 0.0, %v6152
  %v6154 = vpop.f32.mrb[0].mxu0
  %v6155 = vadd.f32 0.0, %v6154
  %6156 = vmatprep.mubr.f32.mxu0 %v6027
  %6157 = vmatmul.mubr.f32.gmra.mrb[0].mxu0 %v5931
  %v6158 = vpop.f32.mrb[0].mxu0
  %v6159 = vadd.f32 0.0, %v6158
  %v6160 = vpop.f32.mrb[0].mxu0
  %v6161 = vadd.f32 0.0, %v6160
  %6162 = vmatprep.mubr.f32.mxu0 %v6030
  %6163 = vmatmul.mubr.f32.gmra.mrb[0].mxu0 %v5933
  %v6164 = vpop.f32.mrb[0].mxu0
  %v6165 = vadd.f32 0.0, %v6164
  %v6166 = vpop.f32.mrb[0].mxu0
  %v6167 = vadd.f32 0.0, %v6166
  %6168 = vmatprep.mubr.f32.mxu0 %v6033
  %6169 = vmatmul.mubr.f32.gmra.mrb[0].mxu0 %v5935
  %v6170 = vpop.f32.mrb[0].mxu0
  %v6171 = vadd.f32 0.0, %v6170
  %v6172 = vpop.f32.mrb[0].mxu0
  %v6173 = vadd.f32 0.0, %v6172
  %6174 = vmatprep.mubr.f32.mxu0 %v6036
  %6175 = vmatmul.mubr.f32.gmra.mrb[0].mxu0 %v5937
  %v6176 = vpop.f32.mrb[0].mxu0
  %v6177 = vadd.f32 0.0, %v6176
  %v6178 = vpop.f32.mrb[0].mxu0
  %v6179 = vadd.f32 0.0, %v6178
  %6180 = vmatprep.mubr.f32.mxu0 %v6039
  %6181 = vmatmul.mubr.f32.gmra.mrb[0].mxu0 %v5939
  %v6182 = vpop.f32.mrb[0].mxu0
  %v6183 = vadd.f32 0.0, %v6182
  %v6184 = vpop.f32.mrb[0].mxu0
  %v6185 = vadd.f32 0.0, %v6184
  %6186 = vmatprep.mubr.f32.mxu0 %v6042
  %6187 = vmatmul.mubr.f32.gmra.mrb[0].mxu0 %v5941
  %v6188 = vpop.f32.mrb[0].mxu0
  %v6189 = vadd.f32 0.0, %v6188
  %v6190 = vpop.f32.mrb[0].mxu0
  %v6191 = vadd.f32 0.0, %v6190
  %6192 = vmatprep.mubr.f32.mxu0 %v6045
  %6193 = vmatmul.mubr.f32.gmra.mrb[0].mxu0 %v5943
  %v6194 = vpop.f32.mrb[0].mxu0
  %v6195 = vadd.f32 0.0, %v6194
  %v6196 = vpop.f32.mrb[0].mxu0
  %v6197 = vadd.f32 0.0, %v6196
  %6198 = vmatprep.mubr.f32.mxu0 %v6048
  %6199 = vmatmul.mubr.f32.gmra.mrb[0].mxu0 %v5945
  %v6200 = vpop.f32.mrb[0].mxu0
  %v6201 = vadd.f32 0.0, %v6200
  %v6202 = vpop.f32.mrb[0].mxu0
  %v6203 = vadd.f32 0.0, %v6202
  %6204 = vmatprep.mubr.f32.mxu0 %v6051
  %6205 = vmatmul.mubr.f32.gmra.mrb[0].mxu0 %v5947
  %v6206 = vpop.f32.mrb[0].mxu0
  %v6207 = vadd.f32 0.0, %v6206
  %v6208 = vpop.f32.mrb[0].mxu0
  %v6209 = vadd.f32 0.0, %v6208
  %6210 = vmatprep.mubr.f32.mxu0 %v6054
  %6211 = vmatmul.mubr.f32.gmra.mrb[0].mxu0 %v5949
  %v6212 = vpop.f32.mrb[0].mxu0
  %v6213 = vadd.f32 0.0, %v6212
  %v6214 = vpop.f32.mrb[0].mxu0
  %v6215 = vadd.f32 0.0, %v6214
  %6216 = vmatprep.mubr.f32.mxu0 %v6057
  %6217 = vmatmul.mubr.f32.gmra.mrb[0].mxu0 %v5951
  %v6218 = vpop.f32.mrb[0].mxu0
  %v6219 = vadd.f32 0.0, %v6218
  %v6220 = vpop.f32.mrb[0].mxu0
  %v6221 = vadd.f32 0.0, %v6220
  %6222 = vmatprep.mubr.f32.mxu0 %v6060
  %6223 = vmatmul.mubr.f32.gmra.mrb[0].mxu0 %v5953
  %v6224 = vpop.f32.mrb[0].mxu0
  %v6225 = vadd.f32 0.0, %v6224
  %v6226 = vpop.f32.mrb[0].mxu0
  %v6227 = vadd.f32 0.0, %v6226
  %6228 = vdwg.mxu0
  %v6229 = vld [vmem:[#allocation4] sm:$0xff]
  %v6230 = vld [vmem:[#allocation4 + $0x8] sm:$0xff]
  %v6231 = vld [vmem:[#allocation4 + $0x10] sm:$0xff]
  %v6232 = vld [vmem:[#allocation4 + $0x18] sm:$0xff]
  %v6233 = vld [vmem:[#allocation4 + $0x20] sm:$0xff]
  %v6234 = vld [vmem:[#allocation4 + $0x28] sm:$0xff]
  %v6235 = vld [vmem:[#allocation4 + $0x30] sm:$0xff]
  %v6236 = vld [vmem:[#allocation4 + $0x38] sm:$0xff]
  %v6237 = vld [vmem:[#allocation4 + $0x40] sm:$0xff]
  %v6238 = vld [vmem:[#allocation4 + $0x48] sm:$0xff]
  %v6239 = vld [vmem:[#allocation4 + $0x50] sm:$0xff]
  %v6240 = vld [vmem:[#allocation4 + $0x58] sm:$0xff]
  %v6241 = vld [vmem:[#allocation4 + $0x60] sm:$0xff]
  %v6242 = vld [vmem:[#allocation4 + $0x68] sm:$0xff]
  %v6243 = vld [vmem:[#allocation4 + $0x70] sm:$0xff]
  %v6244 = vld [vmem:[#allocation4 + $0x78] sm:$0xff]
  %v6245 = vld [vmem:[#allocation4 + $0x80] sm:$0xff]
  %v6246 = vld [vmem:[#allocation4 + $0x88] sm:$0xff]
  %v6247 = vld [vmem:[#allocation4 + $0x90] sm:$0xff]
  %v6248 = vld [vmem:[#allocation4 + $0x98] sm:$0xff]
  %v6249 = vld [vmem:[#allocation4 + $0xa0] sm:$0xff]
  %v6250 = vld [vmem:[#allocation4 + $0xa8] sm:$0xff]
  %v6251 = vld [vmem:[#allocation4 + $0xb0] sm:$0xff]
  %v6252 = vld [vmem:[#allocation4 + $0xb8] sm:$0xff]
  %v6253 = vld [vmem:[#allocation4 + $0xc0] sm:$0xff]
  %v6254 = vld [vmem:[#allocation4 + $0xc8] sm:$0xff]
  %v6255 = vld [vmem:[#allocation4 + $0xd0] sm:$0xff]
  %v6256 = vld [vmem:[#allocation4 + $0xd8] sm:$0xff]
  %v6257 = vld [vmem:[#allocation4 + $0xe0] sm:$0xff]
  %v6258 = vld [vmem:[#allocation4 + $0xe8] sm:$0xff]
  %v6259 = vld [vmem:[#allocation4 + $0xf0] sm:$0xff]
  %v6260 = vld [vmem:[#allocation4 + $0xf8] sm:$0xff]
  %v6261 = vadd.f32 %v6229, %v6135
  %v6262 = vadd.f32 %v6230, %v6137
  %v6263 = vadd.f32 %v6231, %v6141
  %v6264 = vadd.f32 %v6232, %v6143
  %v6265 = vadd.f32 %v6233, %v6147
  %v6266 = vadd.f32 %v6234, %v6149
  %v6267 = vadd.f32 %v6235, %v6153
  %v6268 = vadd.f32 %v6236, %v6155
  %v6269 = vadd.f32 %v6237, %v6159
  %v6270 = vadd.f32 %v6238, %v6161
  %v6271 = vadd.f32 %v6239, %v6165
  %v6272 = vadd.f32 %v6240, %v6167
  %v6273 = vadd.f32 %v6241, %v6171
  %v6274 = vadd.f32 %v6242, %v6173
  %v6275 = vadd.f32 %v6243, %v6177
  %v6276 = vadd.f32 %v6244, %v6179
  %v6277 = vadd.f32 %v6245, %v6183
  %v6278 = vadd.f32 %v6246, %v6185
  %v6279 = vadd.f32 %v6247, %v6189
  %v6280 = vadd.f32 %v6248, %v6191
  %v6281 = vadd.f32 %v6249, %v6195
  %v6282 = vadd.f32 %v6250, %v6197
  %v6283 = vadd.f32 %v6251, %v6201
  %v6284 = vadd.f32 %v6252, %v6203
  %v6285 = vadd.f32 %v6253, %v6207
  %v6286 = vadd.f32 %v6254, %v6209
  %v6287 = vadd.f32 %v6255, %v6213
  %v6288 = vadd.f32 %v6256, %v6215
  %v6289 = vadd.f32 %v6257, %v6219
  %v6290 = vadd.f32 %v6258, %v6221
  %v6291 = vadd.f32 %v6259, %v6225
  %v6292 = vadd.f32 %v6260, %v6227
  %6293 = vst [vmem:[#allocation4] sm:$0xff] %v6261
  %6294 = vst.msk [vmem:[#allocation4 + $0x8] sm:$0xff] %vm5087, %v6262
  %6295 = vst [vmem:[#allocation4 + $0x10] sm:$0xff] %v6263
  %6296 = vst.msk [vmem:[#allocation4 + $0x18] sm:$0xff] %vm5087, %v6264
  %6297 = vst [vmem:[#allocation4 + $0x20] sm:$0xff] %v6265
  %6298 = vst.msk [vmem:[#allocation4 + $0x28] sm:$0xff] %vm5087, %v6266
  %6299 = vst [vmem:[#allocation4 + $0x30] sm:$0xff] %v6267
  %6300 = vst.msk [vmem:[#allocation4 + $0x38] sm:$0xff] %vm5087, %v6268
  %6301 = vst [vmem:[#allocation4 + $0x40] sm:$0xff] %v6269
  %6302 = vst.msk [vmem:[#allocation4 + $0x48] sm:$0xff] %vm5087, %v6270
  %6303 = vst [vmem:[#allocation4 + $0x50] sm:$0xff] %v6271
  %6304 = vst.msk [vmem:[#allocation4 + $0x58] sm:$0xff] %vm5087, %v6272
  %6305 = vst [vmem:[#allocation4 + $0x60] sm:$0xff] %v6273
  %6306 = vst.msk [vmem:[#allocation4 + $0x68] sm:$0xff] %vm5087, %v6274
  %6307 = vst [vmem:[#allocation4 + $0x70] sm:$0xff] %v6275
  %6308 = vst.msk [vmem:[#allocation4 + $0x78] sm:$0xff] %vm5087, %v6276
  %6309 = vst [vmem:[#allocation4 + $0x80] sm:$0xff] %v6277
  %6310 = vst.msk [vmem:[#allocation4 + $0x88] sm:$0xff] %vm5087, %v6278
  %6311 = vst [vmem:[#allocation4 + $0x90] sm:$0xff] %v6279
  %6312 = vst.msk [vmem:[#allocation4 + $0x98] sm:$0xff] %vm5087, %v6280
  %6313 = vst [vmem:[#allocation4 + $0xa0] sm:$0xff] %v6281
  %6314 = vst.msk [vmem:[#allocation4 + $0xa8] sm:$0xff] %vm5087, %v6282
  %6315 = vst [vmem:[#allocation4 + $0xb0] sm:$0xff] %v6283
  %6316 = vst.msk [vmem:[#allocation4 + $0xb8] sm:$0xff] %vm5087, %v6284
  %6317 = vst [vmem:[#allocation4 + $0xc0] sm:$0xff] %v6285
  %6318 = vst.msk [vmem:[#allocation4 + $0xc8] sm:$0xff] %vm5087, %v6286
  %6319 = vst [vmem:[#allocation4 + $0xd0] sm:$0xff] %v6287
  %6320 = vst.msk [vmem:[#allocation4 + $0xd8] sm:$0xff] %vm5087, %v6288
  %6321 = vst [vmem:[#allocation4 + $0xe0] sm:$0xff] %v6289
  %6322 = vst.msk [vmem:[#allocation4 + $0xe8] sm:$0xff] %vm5087, %v6290
  %6323 = vst [vmem:[#allocation4 + $0xf0] sm:$0xff] %v6291
  %6324 = vst.msk [vmem:[#allocation4 + $0xf8] sm:$0xff] %vm5087, %v6292
  %v6325 = vld [vmem:[#allocation3 + $0x80] sm:$0xff]
  %v6326 = vld [vmem:[#allocation3 + $0x88] sm:$0xff]
  %v6327 = vld [vmem:[#allocation3 + $0x90] sm:$0xff]
  %v6328 = vld [vmem:[#allocation3 + $0x98] sm:$0xff]
  %v6329 = vld [vmem:[#allocation3 + $0xa0] sm:$0xff]
  %v6330 = vld [vmem:[#allocation3 + $0xa8] sm:$0xff]
  %v6331 = vld [vmem:[#allocation3 + $0xb0] sm:$0xff]
  %v6332 = vld [vmem:[#allocation3 + $0xb8] sm:$0xff]
  %v6333 = vld [vmem:[#allocation3 + $0xc0] sm:$0xff]
  %v6334 = vld [vmem:[#allocation3 + $0xc8] sm:$0xff]
  %v6335 = vld [vmem:[#allocation3 + $0xd0] sm:$0xff]
  %v6336 = vld [vmem:[#allocation3 + $0xd8] sm:$0xff]
  %v6337 = vld [vmem:[#allocation3 + $0xe0] sm:$0xff]
  %v6338 = vld [vmem:[#allocation3 + $0xe8] sm:$0xff]
  %v6339 = vld [vmem:[#allocation3 + $0xf0] sm:$0xff]
  %v6340 = vld [vmem:[#allocation3 + $0xf8] sm:$0xff]
  %v6341 = vld [vmem:[#allocation3 + $0x100] sm:$0xff]
  %v6342 = vld [vmem:[#allocation3 + $0x108] sm:$0xff]
  %v6343 = vld [vmem:[#allocation3 + $0x110] sm:$0xff]
  %v6344 = vld [vmem:[#allocation3 + $0x118] sm:$0xff]
  %v6345 = vld [vmem:[#allocation3 + $0x120] sm:$0xff]
  %v6346 = vld [vmem:[#allocation3 + $0x128] sm:$0xff]
  %v6347 = vld [vmem:[#allocation3 + $0x130] sm:$0xff]
  %v6348 = vld [vmem:[#allocation3 + $0x138] sm:$0xff]
  %v6349 = vld [vmem:[#allocation3 + $0x140] sm:$0xff]
  %v6350 = vld [vmem:[#allocation3 + $0x148] sm:$0xff]
  %v6351 = vld [vmem:[#allocation3 + $0x150] sm:$0xff]
  %v6352 = vld [vmem:[#allocation3 + $0x158] sm:$0xff]
  %v6353 = vld [vmem:[#allocation3 + $0x160] sm:$0xff]
  %v6354 = vld [vmem:[#allocation3 + $0x168] sm:$0xff]
  %v6355 = vld [vmem:[#allocation3 + $0x170] sm:$0xff]
  %v6356 = vld [vmem:[#allocation3 + $0x178] sm:$0xff]
  %s6357 = scalar_lea.vmem %s3, 1856
  %v6358 = vld [vmem:[%s6357] sm:$0xff]
  %v6359 = vld [vmem:[%s6357 + $0x8] sm:$0xff]
  %v6360 = vld [vmem:[%s6357 + $0x10] sm:$0xff]
  %v6361 = vld [vmem:[%s6357 + $0x18] sm:$0xff]
  %v6362 = vld [vmem:[%s6357 + $0x20] sm:$0xff]
  %v6363 = vld [vmem:[%s6357 + $0x28] sm:$0xff]
  %v6364 = vld [vmem:[%s6357 + $0x30] sm:$0xff]
  %v6365 = vld [vmem:[%s6357 + $0x38] sm:$0xff]
  %v6366 = vld [vmem:[%s6357 + $0x40] sm:$0xff]
  %v6367 = vld [vmem:[%s6357 + $0x48] sm:$0xff]
  %v6368 = vld [vmem:[%s6357 + $0x50] sm:$0xff]
  %v6369 = vld [vmem:[%s6357 + $0x58] sm:$0xff]
  %v6370 = vld [vmem:[%s6357 + $0x60] sm:$0xff]
  %v6371 = vld [vmem:[%s6357 + $0x68] sm:$0xff]
  %v6372 = vld [vmem:[%s6357 + $0x70] sm:$0xff]
  %v6373 = vld [vmem:[%s6357 + $0x78] sm:$0xff]
  %v6374 = vld [vmem:[%s6357 + $0x80] sm:$0xff]
  %v6375 = vld [vmem:[%s6357 + $0x88] sm:$0xff]
  %v6376 = vld [vmem:[%s6357 + $0x90] sm:$0xff]
  %v6377 = vld [vmem:[%s6357 + $0x98] sm:$0xff]
  %v6378 = vld [vmem:[%s6357 + $0xa0] sm:$0xff]
  %v6379 = vld [vmem:[%s6357 + $0xa8] sm:$0xff]
  %v6380 = vld [vmem:[%s6357 + $0xb0] sm:$0xff]
  %v6381 = vld [vmem:[%s6357 + $0xb8] sm:$0xff]
  %v6382 = vld [vmem:[%s6357 + $0xc0] sm:$0xff]
  %v6383 = vld [vmem:[%s6357 + $0xc8] sm:$0xff]
  %v6384 = vld [vmem:[%s6357 + $0xd0] sm:$0xff]
  %v6385 = vld [vmem:[%s6357 + $0xd8] sm:$0xff]
  %v6386 = vld [vmem:[%s6357 + $0xe0] sm:$0xff]
  %v6387 = vld [vmem:[%s6357 + $0xe8] sm:$0xff]
  %v6388 = vld [vmem:[%s6357 + $0xf0] sm:$0xff]
  %v6389 = vld [vmem:[%s6357 + $0xf8] sm:$0xff]
  %v6390 = vld [vmem:[%s6357 + $0x100] sm:$0xff]
  %v6391 = vld [vmem:[%s6357 + $0x108] sm:$0xff]
  %v6392 = vld [vmem:[%s6357 + $0x110] sm:$0xff]
  %v6393 = vld [vmem:[%s6357 + $0x118] sm:$0xff]
  %v6394 = vld [vmem:[%s6357 + $0x120] sm:$0xff]
  %v6395 = vld [vmem:[%s6357 + $0x128] sm:$0xff]
  %v6396 = vld [vmem:[%s6357 + $0x130] sm:$0xff]
  %v6397 = vld [vmem:[%s6357 + $0x138] sm:$0xff]
  %v6398 = vld [vmem:[%s6357 + $0x140] sm:$0xff]
  %v6399 = vld [vmem:[%s6357 + $0x148] sm:$0xff]
  %v6400 = vld [vmem:[%s6357 + $0x150] sm:$0xff]
  %v6401 = vld [vmem:[%s6357 + $0x158] sm:$0xff]
  %v6402 = vld [vmem:[%s6357 + $0x160] sm:$0xff]
  %v6403 = vld [vmem:[%s6357 + $0x168] sm:$0xff]
  %v6404 = vld [vmem:[%s6357 + $0x170] sm:$0xff]
  %v6405 = vld [vmem:[%s6357 + $0x178] sm:$0xff]
  %v6406 = vld [vmem:[%s6357 + $0x180] sm:$0xff]
  %v6407 = vld [vmem:[%s6357 + $0x188] sm:$0xff]
  %v6408 = vld [vmem:[%s6357 + $0x190] sm:$0xff]
  %v6409 = vld [vmem:[%s6357 + $0x198] sm:$0xff]
  %v6410 = vld [vmem:[%s6357 + $0x1a0] sm:$0xff]
  %v6411 = vld [vmem:[%s6357 + $0x1a8] sm:$0xff]
  %v6412 = vld [vmem:[%s6357 + $0x1b0] sm:$0xff]
  %v6413 = vld [vmem:[%s6357 + $0x1b8] sm:$0xff]
  %v6414 = vld [vmem:[%s6357 + $0x1c0] sm:$0x3f]
  %v6415 = vld [vmem:[%s6357 + $0x1c8] sm:$0x3f]
  %v6417 = vsel %vm4138, %v6326, 0
  %v6420 = vsel %vm4138, %v6328, 0
  %v6423 = vsel %vm4138, %v6330, 0
  %v6426 = vsel %vm4138, %v6332, 0
  %v6429 = vsel %vm4138, %v6334, 0
  %v6432 = vsel %vm4138, %v6336, 0
  %v6435 = vsel %vm4138, %v6338, 0
  %v6438 = vsel %vm4138, %v6340, 0
  %v6441 = vsel %vm4138, %v6342, 0
  %v6444 = vsel %vm4138, %v6344, 0
  %v6447 = vsel %vm4138, %v6346, 0
  %v6450 = vsel %vm4138, %v6348, 0
  %v6453 = vsel %vm4138, %v6350, 0
  %v6456 = vsel %vm4138, %v6352, 0
  %v6459 = vsel %vm4138, %v6354, 0
  %v6462 = vsel %vm4138, %v6356, 0
  %v6465 = vsel %vm4918, %v6414, 0
  %v6468 = vsel %vm4918, %v6415, 0
  %6470 = vmatprep.subr.mxu0 %v6359
  %6471 = vmatpush1.msra.mxu0 %v6358
  %6472 = vmatprep.subr.mxu0 %v6361
  %6473 = vmatpush1.msra.mxu0 %v6360
  %6474 = vmatprep.subr.mxu0 %v6363
  %6475 = vmatpush1.msra.mxu0 %v6362
  %6476 = vmatprep.subr.mxu0 %v6365
  %6477 = vmatpush1.msra.mxu0 %v6364
  %6478 = vmatprep.subr.mxu0 %v6367
  %6479 = vmatpush1.msra.mxu0 %v6366
  %6480 = vmatprep.subr.mxu0 %v6369
  %6481 = vmatpush1.msra.mxu0 %v6368
  %6482 = vmatprep.subr.mxu0 %v6371
  %6483 = vmatpush1.msra.mxu0 %v6370
  %6484 = vmatprep.subr.mxu0 %v6373
  %6485 = vmatpush1.msra.mxu0 %v6372
  %6486 = vmatprep.subr.mxu0 %v6375
  %6487 = vmatpush1.msra.mxu0 %v6374
  %6488 = vmatprep.subr.mxu0 %v6377
  %6489 = vmatpush1.msra.mxu0 %v6376
  %6490 = vmatprep.subr.mxu0 %v6379
  %6491 = vmatpush1.msra.mxu0 %v6378
  %6492 = vmatprep.subr.mxu0 %v6381
  %6493 = vmatpush1.msra.mxu0 %v6380
  %6494 = vmatprep.subr.mxu0 %v6383
  %6495 = vmatpush1.msra.mxu0 %v6382
  %6496 = vmatprep.subr.mxu0 %v6385
  %6497 = vmatpush1.msra.mxu0 %v6384
  %6498 = vmatprep.subr.mxu0 %v6387
  %6499 = vmatpush1.msra.mxu0 %v6386
  %6500 = vmatprep.subr.mxu0 %v6389
  %6501 = vmatpush1.msra.mxu0 %v6388
  %6502 = vmatprep.subr.mxu0 %v6391
  %6503 = vmatpush1.msra.mxu0 %v6390
  %6504 = vmatprep.subr.mxu0 %v6393
  %6505 = vmatpush1.msra.mxu0 %v6392
  %6506 = vmatprep.subr.mxu0 %v6395
  %6507 = vmatpush1.msra.mxu0 %v6394
  %6508 = vmatprep.subr.mxu0 %v6397
  %6509 = vmatpush1.msra.mxu0 %v6396
  %6510 = vmatprep.subr.mxu0 %v6399
  %6511 = vmatpush1.msra.mxu0 %v6398
  %6512 = vmatprep.subr.mxu0 %v6401
  %6513 = vmatpush1.msra.mxu0 %v6400
  %6514 = vmatprep.subr.mxu0 %v6403
  %6515 = vmatpush1.msra.mxu0 %v6402
  %6516 = vmatprep.subr.mxu0 %v6405
  %6517 = vmatpush1.msra.mxu0 %v6404
  %6518 = vmatprep.subr.mxu0 %v6407
  %6519 = vmatpush1.msra.mxu0 %v6406
  %6520 = vmatprep.subr.mxu0 %v6409
  %6521 = vmatpush1.msra.mxu0 %v6408
  %6522 = vmatprep.subr.mxu0 %v6411
  %6523 = vmatpush1.msra.mxu0 %v6410
  %6524 = vmatprep.subr.mxu0 %v6413
  %6525 = vmatpush1.msra.mxu0 %v6412
  %6526 = vmatprep.subr.mxu0 %v6468
  %6527 = vmatpush1.msra.mxu0 %v6465
  %6528 = vmatprep.subr.mxu0 0.0
  %6529 = vmatpush1.msra.mxu0 0.0
  %6530 = vmatprep.subr.mxu0 0.0
  %6531 = vmatpush1.msra.mxu0 0.0
  %6532 = vmatprep.subr.mxu0 0.0
  %6533 = vmatpush1.msra.mxu0 0.0
  %6534 = vmatprep.mubr.f32.mxu0 %v6417
  %6535 = vmatmul.mubr.f32.gmra.mrb[0].mxu0 %v6325
  %v6536 = vpop.f32.mrb[0].mxu0
  %v6537 = vadd.f32 0.0, %v6536
  %v6538 = vpop.f32.mrb[0].mxu0
  %v6539 = vadd.f32 0.0, %v6538
  %6540 = vmatprep.mubr.f32.mxu0 %v6420
  %6541 = vmatmul.mubr.f32.gmra.mrb[0].mxu0 %v6327
  %v6542 = vpop.f32.mrb[0].mxu0
  %v6543 = vadd.f32 0.0, %v6542
  %v6544 = vpop.f32.mrb[0].mxu0
  %v6545 = vadd.f32 0.0, %v6544
  %6546 = vmatprep.mubr.f32.mxu0 %v6423
  %6547 = vmatmul.mubr.f32.gmra.mrb[0].mxu0 %v6329
  %v6548 = vpop.f32.mrb[0].mxu0
  %v6549 = vadd.f32 0.0, %v6548
  %v6550 = vpop.f32.mrb[0].mxu0
  %v6551 = vadd.f32 0.0, %v6550
  %6552 = vmatprep.mubr.f32.mxu0 %v6426
  %6553 = vmatmul.mubr.f32.gmra.mrb[0].mxu0 %v6331
  %v6554 = vpop.f32.mrb[0].mxu0
  %v6555 = vadd.f32 0.0, %v6554
  %v6556 = vpop.f32.mrb[0].mxu0
  %v6557 = vadd.f32 0.0, %v6556
  %6558 = vmatprep.mubr.f32.mxu0 %v6429
  %6559 = vmatmul.mubr.f32.gmra.mrb[0].mxu0 %v6333
  %v6560 = vpop.f32.mrb[0].mxu0
  %v6561 = vadd.f32 0.0, %v6560
  %v6562 = vpop.f32.mrb[0].mxu0
  %v6563 = vadd.f32 0.0, %v6562
  %6564 = vmatprep.mubr.f32.mxu0 %v6432
  %6565 = vmatmul.mubr.f32.gmra.mrb[0].mxu0 %v6335
  %v6566 = vpop.f32.mrb[0].mxu0
  %v6567 = vadd.f32 0.0, %v6566
  %v6568 = vpop.f32.mrb[0].mxu0
  %v6569 = vadd.f32 0.0, %v6568
  %6570 = vmatprep.mubr.f32.mxu0 %v6435
  %6571 = vmatmul.mubr.f32.gmra.mrb[0].mxu0 %v6337
  %v6572 = vpop.f32.mrb[0].mxu0
  %v6573 = vadd.f32 0.0, %v6572
  %v6574 = vpop.f32.mrb[0].mxu0
  %v6575 = vadd.f32 0.0, %v6574
  %6576 = vmatprep.mubr.f32.mxu0 %v6438
  %6577 = vmatmul.mubr.f32.gmra.mrb[0].mxu0 %v6339
  %v6578 = vpop.f32.mrb[0].mxu0
  %v6579 = vadd.f32 0.0, %v6578
  %v6580 = vpop.f32.mrb[0].mxu0
  %v6581 = vadd.f32 0.0, %v6580
  %6582 = vmatprep.mubr.f32.mxu0 %v6441
  %6583 = vmatmul.mubr.f32.gmra.mrb[0].mxu0 %v6341
  %v6584 = vpop.f32.mrb[0].mxu0
  %v6585 = vadd.f32 0.0, %v6584
  %v6586 = vpop.f32.mrb[0].mxu0
  %v6587 = vadd.f32 0.0, %v6586
  %6588 = vmatprep.mubr.f32.mxu0 %v6444
  %6589 = vmatmul.mubr.f32.gmra.mrb[0].mxu0 %v6343
  %v6590 = vpop.f32.mrb[0].mxu0
  %v6591 = vadd.f32 0.0, %v6590
  %v6592 = vpop.f32.mrb[0].mxu0
  %v6593 = vadd.f32 0.0, %v6592
  %6594 = vmatprep.mubr.f32.mxu0 %v6447
  %6595 = vmatmul.mubr.f32.gmra.mrb[0].mxu0 %v6345
  %v6596 = vpop.f32.mrb[0].mxu0
  %v6597 = vadd.f32 0.0, %v6596
  %v6598 = vpop.f32.mrb[0].mxu0
  %v6599 = vadd.f32 0.0, %v6598
  %6600 = vmatprep.mubr.f32.mxu0 %v6450
  %6601 = vmatmul.mubr.f32.gmra.mrb[0].mxu0 %v6347
  %v6602 = vpop.f32.mrb[0].mxu0
  %v6603 = vadd.f32 0.0, %v6602
  %v6604 = vpop.f32.mrb[0].mxu0
  %v6605 = vadd.f32 0.0, %v6604
  %6606 = vmatprep.mubr.f32.mxu0 %v6453
  %6607 = vmatmul.mubr.f32.gmra.mrb[0].mxu0 %v6349
  %v6608 = vpop.f32.mrb[0].mxu0
  %v6609 = vadd.f32 0.0, %v6608
  %v6610 = vpop.f32.mrb[0].mxu0
  %v6611 = vadd.f32 0.0, %v6610
  %6612 = vmatprep.mubr.f32.mxu0 %v6456
  %6613 = vmatmul.mubr.f32.gmra.mrb[0].mxu0 %v6351
  %v6614 = vpop.f32.mrb[0].mxu0
  %v6615 = vadd.f32 0.0, %v6614
  %v6616 = vpop.f32.mrb[0].mxu0
  %v6617 = vadd.f32 0.0, %v6616
  %6618 = vmatprep.mubr.f32.mxu0 %v6459
  %6619 = vmatmul.mubr.f32.gmra.mrb[0].mxu0 %v6353
  %v6620 = vpop.f32.mrb[0].mxu0
  %v6621 = vadd.f32 0.0, %v6620
  %v6622 = vpop.f32.mrb[0].mxu0
  %v6623 = vadd.f32 0.0, %v6622
  %6624 = vmatprep.mubr.f32.mxu0 %v6462
  %6625 = vmatmul.mubr.f32.gmra.mrb[0].mxu0 %v6355
  %v6626 = vpop.f32.mrb[0].mxu0
  %v6627 = vadd.f32 0.0, %v6626
  %v6628 = vpop.f32.mrb[0].mxu0
  %v6629 = vadd.f32 0.0, %v6628
  %6630 = vdwg.mxu0
  %v6631 = vld [vmem:[#allocation4] sm:$0xff]
  %v6632 = vld [vmem:[#allocation4 + $0x8] sm:$0xff]
  %v6633 = vld [vmem:[#allocation4 + $0x10] sm:$0xff]
  %v6634 = vld [vmem:[#allocation4 + $0x18] sm:$0xff]
  %v6635 = vld [vmem:[#allocation4 + $0x20] sm:$0xff]
  %v6636 = vld [vmem:[#allocation4 + $0x28] sm:$0xff]
  %v6637 = vld [vmem:[#allocation4 + $0x30] sm:$0xff]
  %v6638 = vld [vmem:[#allocation4 + $0x38] sm:$0xff]
  %v6639 = vld [vmem:[#allocation4 + $0x40] sm:$0xff]
  %v6640 = vld [vmem:[#allocation4 + $0x48] sm:$0xff]
  %v6641 = vld [vmem:[#allocation4 + $0x50] sm:$0xff]
  %v6642 = vld [vmem:[#allocation4 + $0x58] sm:$0xff]
  %v6643 = vld [vmem:[#allocation4 + $0x60] sm:$0xff]
  %v6644 = vld [vmem:[#allocation4 + $0x68] sm:$0xff]
  %v6645 = vld [vmem:[#allocation4 + $0x70] sm:$0xff]
  %v6646 = vld [vmem:[#allocation4 + $0x78] sm:$0xff]
  %v6647 = vld [vmem:[#allocation4 + $0x80] sm:$0xff]
  %v6648 = vld [vmem:[#allocation4 + $0x88] sm:$0xff]
  %v6649 = vld [vmem:[#allocation4 + $0x90] sm:$0xff]
  %v6650 = vld [vmem:[#allocation4 + $0x98] sm:$0xff]
  %v6651 = vld [vmem:[#allocation4 + $0xa0] sm:$0xff]
  %v6652 = vld [vmem:[#allocation4 + $0xa8] sm:$0xff]
  %v6653 = vld [vmem:[#allocation4 + $0xb0] sm:$0xff]
  %v6654 = vld [vmem:[#allocation4 + $0xb8] sm:$0xff]
  %v6655 = vld [vmem:[#allocation4 + $0xc0] sm:$0xff]
  %v6656 = vld [vmem:[#allocation4 + $0xc8] sm:$0xff]
  %v6657 = vld [vmem:[#allocation4 + $0xd0] sm:$0xff]
  %v6658 = vld [vmem:[#allocation4 + $0xd8] sm:$0xff]
  %v6659 = vld [vmem:[#allocation4 + $0xe0] sm:$0xff]
  %v6660 = vld [vmem:[#allocation4 + $0xe8] sm:$0xff]
  %v6661 = vld [vmem:[#allocation4 + $0xf0] sm:$0xff]
  %v6662 = vld [vmem:[#allocation4 + $0xf8] sm:$0xff]
  %v6663 = vadd.f32 %v6631, %v6537
  %v6664 = vadd.f32 %v6632, %v6539
  %v6665 = vadd.f32 %v6633, %v6543
  %v6666 = vadd.f32 %v6634, %v6545
  %v6667 = vadd.f32 %v6635, %v6549
  %v6668 = vadd.f32 %v6636, %v6551
  %v6669 = vadd.f32 %v6637, %v6555
  %v6670 = vadd.f32 %v6638, %v6557
  %v6671 = vadd.f32 %v6639, %v6561
  %v6672 = vadd.f32 %v6640, %v6563
  %v6673 = vadd.f32 %v6641, %v6567
  %v6674 = vadd.f32 %v6642, %v6569
  %v6675 = vadd.f32 %v6643, %v6573
  %v6676 = vadd.f32 %v6644, %v6575
  %v6677 = vadd.f32 %v6645, %v6579
  %v6678 = vadd.f32 %v6646, %v6581
  %v6679 = vadd.f32 %v6647, %v6585
  %v6680 = vadd.f32 %v6648, %v6587
  %v6681 = vadd.f32 %v6649, %v6591
  %v6682 = vadd.f32 %v6650, %v6593
  %v6683 = vadd.f32 %v6651, %v6597
  %v6684 = vadd.f32 %v6652, %v6599
  %v6685 = vadd.f32 %v6653, %v6603
  %v6686 = vadd.f32 %v6654, %v6605
  %v6687 = vadd.f32 %v6655, %v6609
  %v6688 = vadd.f32 %v6656, %v6611
  %v6689 = vadd.f32 %v6657, %v6615
  %v6690 = vadd.f32 %v6658, %v6617
  %v6691 = vadd.f32 %v6659, %v6621
  %v6692 = vadd.f32 %v6660, %v6623
  %v6693 = vadd.f32 %v6661, %v6627
  %v6694 = vadd.f32 %v6662, %v6629
  %6695 = vst [vmem:[#allocation4] sm:$0xff] %v6663
  %6696 = vst.msk [vmem:[#allocation4 + $0x8] sm:$0xff] %vm5087, %v6664
  %6697 = vst [vmem:[#allocation4 + $0x10] sm:$0xff] %v6665
  %6698 = vst.msk [vmem:[#allocation4 + $0x18] sm:$0xff] %vm5087, %v6666
  %6699 = vst [vmem:[#allocation4 + $0x20] sm:$0xff] %v6667
  %6700 = vst.msk [vmem:[#allocation4 + $0x28] sm:$0xff] %vm5087, %v6668
  %6701 = vst [vmem:[#allocation4 + $0x30] sm:$0xff] %v6669
  %6702 = vst.msk [vmem:[#allocation4 + $0x38] sm:$0xff] %vm5087, %v6670
  %6703 = vst [vmem:[#allocation4 + $0x40] sm:$0xff] %v6671
  %6704 = vst.msk [vmem:[#allocation4 + $0x48] sm:$0xff] %vm5087, %v6672
  %6705 = vst [vmem:[#allocation4 + $0x50] sm:$0xff] %v6673
  %6706 = vst.msk [vmem:[#allocation4 + $0x58] sm:$0xff] %vm5087, %v6674
  %6707 = vst [vmem:[#allocation4 + $0x60] sm:$0xff] %v6675
  %6708 = vst.msk [vmem:[#allocation4 + $0x68] sm:$0xff] %vm5087, %v6676
  %6709 = vst [vmem:[#allocation4 + $0x70] sm:$0xff] %v6677
  %6710 = vst.msk [vmem:[#allocation4 + $0x78] sm:$0xff] %vm5087, %v6678
  %6711 = vst [vmem:[#allocation4 + $0x80] sm:$0xff] %v6679
  %6712 = vst.msk [vmem:[#allocation4 + $0x88] sm:$0xff] %vm5087, %v6680
  %6713 = vst [vmem:[#allocation4 + $0x90] sm:$0xff] %v6681
  %6714 = vst.msk [vmem:[#allocation4 + $0x98] sm:$0xff] %vm5087, %v6682
  %6715 = vst [vmem:[#allocation4 + $0xa0] sm:$0xff] %v6683
  %6716 = vst.msk [vmem:[#allocation4 + $0xa8] sm:$0xff] %vm5087, %v6684
  %6717 = vst [vmem:[#allocation4 + $0xb0] sm:$0xff] %v6685
  %6718 = vst.msk [vmem:[#allocation4 + $0xb8] sm:$0xff] %vm5087, %v6686
  %6719 = vst [vmem:[#allocation4 + $0xc0] sm:$0xff] %v6687
  %6720 = vst.msk [vmem:[#allocation4 + $0xc8] sm:$0xff] %vm5087, %v6688
  %6721 = vst [vmem:[#allocation4 + $0xd0] sm:$0xff] %v6689
  %6722 = vst.msk [vmem:[#allocation4 + $0xd8] sm:$0xff] %vm5087, %v6690
  %6723 = vst [vmem:[#allocation4 + $0xe0] sm:$0xff] %v6691
  %6724 = vst.msk [vmem:[#allocation4 + $0xe8] sm:$0xff] %vm5087, %v6692
  %6725 = vst [vmem:[#allocation4 + $0xf0] sm:$0xff] %v6693
  %6726 = vst.msk [vmem:[#allocation4 + $0xf8] sm:$0xff] %vm5087, %v6694
  %v6727 = vld [vmem:[#allocation4] sm:$0xff]
  %v6728 = vld [vmem:[#allocation4 + $0x8] sm:$0xff]
  %v6729 = vld [vmem:[#allocation4 + $0x10] sm:$0xff]
  %v6730 = vld [vmem:[#allocation4 + $0x18] sm:$0xff]
  %v6731 = vld [vmem:[#allocation4 + $0x20] sm:$0xff]
  %v6732 = vld [vmem:[#allocation4 + $0x28] sm:$0xff]
  %v6733 = vld [vmem:[#allocation4 + $0x30] sm:$0xff]
  %v6734 = vld [vmem:[#allocation4 + $0x38] sm:$0xff]
  %v6735 = vmax.f32 %v6727, %v6731
  %v6736 = vmax.f32 %v6728, %v6732
  %v6737 = vmax.f32 %v6729, %v6733
  %v6738 = vmax.f32 %v6730, %v6734
  %6743 = vrot.lane.b32.xlu0 %v6735, 108
  %v6744 = vpop.permute.xlu0 %6743
  %6745 = vrot.lane.b32.xlu0 %v6736, 108
  %v6746 = vpop.permute.xlu0 %6745
  %6747 = vrot.lane.b32.xlu0 %v6737, 108
  %v6748 = vpop.permute.xlu0 %6747
  %6749 = vrot.lane.b32.xlu0 %v6738, 108
  %v6750 = vpop.permute.xlu0 %6749
  %vm6751 = vcmask 883712
  %v6752 = vsel %vm6751, %v6744, %v6746
  %v6753 = vsel %vm6751, %v6748, %v6750
  %v6758 = vmax.f32 %v6735, %v6752
  %v6759 = vmax.f32 %v6736, %v6746
  %v6760 = vmax.f32 %v6737, %v6753
  %v6761 = vmax.f32 %v6738, %v6750
  %v6762 = vld [vmem:[%s4] sm:$0x3]
  %v6764 = vlaneseq
  %v6765 = vshrl.u32 %v6764, 7
  %v6766 = vsub.s32 0, %v6765
  %v6767 = vrot.slane %v6762, %v6766
  %v6768 = vlaneseq
  %v6769 = vshrl.u32 %v6768, 7
  %v6770 = vsub.s32 1, %v6769
  %v6771 = vrot.slane %v6762, %v6770
  %v6774 = vadd.f32 %v6758, %v6767
  %v6775 = vadd.f32 %v6759, %v6771
  %v6776 = vadd.f32 %v6760, %v6767
  %v6777 = vadd.f32 %v6761, %v6771
  %v6778 = vmax.f32 %v6774, 0.0
  %v6779 = vmax.f32 %v6775, 0.0
  %v6780 = vmax.f32 %v6776, 0.0
  %v6781 = vmax.f32 %v6777, 0.0
  %6782 = vst [vmem:[#allocation5] sm:$0xff] %v6778
  %vm6783 = vcmask 97280
  %6784 = vst.msk [vmem:[#allocation5 + $0x8] sm:$0xff] %vm6783, %v6779
  %6785 = vst [vmem:[#allocation5 + $0x10] sm:$0xff] %v6780
  %6786 = vst.msk [vmem:[#allocation5 + $0x18] sm:$0xff] %vm6783, %v6781
  %v6787 = vld [vmem:[#allocation4 + $0x40] sm:$0xff]
  %v6788 = vld [vmem:[#allocation4 + $0x48] sm:$0xff]
  %v6789 = vld [vmem:[#allocation4 + $0x50] sm:$0xff]
  %v6790 = vld [vmem:[#allocation4 + $0x58] sm:$0xff]
  %v6791 = vld [vmem:[#allocation4 + $0x60] sm:$0xff]
  %v6792 = vld [vmem:[#allocation4 + $0x68] sm:$0xff]
  %v6793 = vld [vmem:[#allocation4 + $0x70] sm:$0xff]
  %v6794 = vld [vmem:[#allocation4 + $0x78] sm:$0xff]
  %v6795 = vmax.f32 %v6787, %v6791
  %v6796 = vmax.f32 %v6788, %v6792
  %v6797 = vmax.f32 %v6789, %v6793
  %v6798 = vmax.f32 %v6790, %v6794
  %6803 = vrot.lane.b32.xlu0 %v6795, 108
  %v6804 = vpop.permute.xlu0 %6803
  %6805 = vrot.lane.b32.xlu0 %v6796, 108
  %v6806 = vpop.permute.xlu0 %6805
  %6807 = vrot.lane.b32.xlu0 %v6797, 108
  %v6808 = vpop.permute.xlu0 %6807
  %6809 = vrot.lane.b32.xlu0 %v6798, 108
  %v6810 = vpop.permute.xlu0 %6809
  %v6811 = vsel %vm6751, %v6804, %v6806
  %v6812 = vsel %vm6751, %v6808, %v6810
  %v6817 = vmax.f32 %v6795, %v6811
  %v6818 = vmax.f32 %v6796, %v6806
  %v6819 = vmax.f32 %v6797, %v6812
  %v6820 = vmax.f32 %v6798, %v6810
  %v6821 = vld [vmem:[%s4] sm:$0x3]
  %v6823 = vlaneseq
  %v6824 = vshrl.u32 %v6823, 7
  %v6825 = vsub.s32 0, %v6824
  %v6826 = vrot.slane %v6821, %v6825
  %v6827 = vlaneseq
  %v6828 = vshrl.u32 %v6827, 7
  %v6829 = vsub.s32 1, %v6828
  %v6830 = vrot.slane %v6821, %v6829
  %v6833 = vadd.f32 %v6817, %v6826
  %v6834 = vadd.f32 %v6818, %v6830
  %v6835 = vadd.f32 %v6819, %v6826
  %v6836 = vadd.f32 %v6820, %v6830
  %v6837 = vmax.f32 %v6833, 0.0
  %v6838 = vmax.f32 %v6834, 0.0
  %v6839 = vmax.f32 %v6835, 0.0
  %v6840 = vmax.f32 %v6836, 0.0
  %6841 = vst [vmem:[#allocation5 + $0x20] sm:$0xff] %v6837
  %6842 = vst.msk [vmem:[#allocation5 + $0x28] sm:$0xff] %vm6783, %v6838
  %6843 = vst [vmem:[#allocation5 + $0x30] sm:$0xff] %v6839
  %6844 = vst.msk [vmem:[#allocation5 + $0x38] sm:$0xff] %vm6783, %v6840
  %v6845 = vld [vmem:[#allocation4 + $0x80] sm:$0xff]
  %v6846 = vld [vmem:[#allocation4 + $0x88] sm:$0xff]
  %v6847 = vld [vmem:[#allocation4 + $0x90] sm:$0xff]
  %v6848 = vld [vmem:[#allocation4 + $0x98] sm:$0xff]
  %v6849 = vld [vmem:[#allocation4 + $0xa0] sm:$0xff]
  %v6850 = vld [vmem:[#allocation4 + $0xa8] sm:$0xff]
  %v6851 = vld [vmem:[#allocation4 + $0xb0] sm:$0xff]
  %v6852 = vld [vmem:[#allocation4 + $0xb8] sm:$0xff]
  %v6853 = vmax.f32 %v6845, %v6849
  %v6854 = vmax.f32 %v6846, %v6850
  %v6855 = vmax.f32 %v6847, %v6851
  %v6856 = vmax.f32 %v6848, %v6852
  %6861 = vrot.lane.b32.xlu0 %v6853, 108
  %v6862 = vpop.permute.xlu0 %6861
  %6863 = vrot.lane.b32.xlu0 %v6854, 108
  %v6864 = vpop.permute.xlu0 %6863
  %6865 = vrot.lane.b32.xlu0 %v6855, 108
  %v6866 = vpop.permute.xlu0 %6865
  %6867 = vrot.lane.b32.xlu0 %v6856, 108
  %v6868 = vpop.permute.xlu0 %6867
  %v6869 = vsel %vm6751, %v6862, %v6864
  %v6870 = vsel %vm6751, %v6866, %v6868
  %v6875 = vmax.f32 %v6853, %v6869
  %v6876 = vmax.f32 %v6854, %v6864
  %v6877 = vmax.f32 %v6855, %v6870
  %v6878 = vmax.f32 %v6856, %v6868
  %v6879 = vld [vmem:[%s4] sm:$0x3]
  %v6881 = vlaneseq
  %v6882 = vshrl.u32 %v6881, 7
  %v6883 = vsub.s32 0, %v6882
  %v6884 = vrot.slane %v6879, %v6883
  %v6885 = vlaneseq
  %v6886 = vshrl.u32 %v6885, 7
  %v6887 = vsub.s32 1, %v6886
  %v6888 = vrot.slane %v6879, %v6887
  %v6891 = vadd.f32 %v6875, %v6884
  %v6892 = vadd.f32 %v6876, %v6888
  %v6893 = vadd.f32 %v6877, %v6884
  %v6894 = vadd.f32 %v6878, %v6888
  %v6895 = vmax.f32 %v6891, 0.0
  %v6896 = vmax.f32 %v6892, 0.0
  %v6897 = vmax.f32 %v6893, 0.0
  %v6898 = vmax.f32 %v6894, 0.0
  %6899 = vst [vmem:[#allocation5 + $0x40] sm:$0xff] %v6895
  %6900 = vst.msk [vmem:[#allocation5 + $0x48] sm:$0xff] %vm6783, %v6896
  %6901 = vst [vmem:[#allocation5 + $0x50] sm:$0xff] %v6897
  %6902 = vst.msk [vmem:[#allocation5 + $0x58] sm:$0xff] %vm6783, %v6898
  %v6903 = vld [vmem:[#allocation4 + $0xc0] sm:$0xff]
  %v6904 = vld [vmem:[#allocation4 + $0xc8] sm:$0xff]
  %v6905 = vld [vmem:[#allocation4 + $0xd0] sm:$0xff]
  %v6906 = vld [vmem:[#allocation4 + $0xd8] sm:$0xff]
  %v6907 = vld [vmem:[#allocation4 + $0xe0] sm:$0xff]
  %v6908 = vld [vmem:[#allocation4 + $0xe8] sm:$0xff]
  %v6909 = vld [vmem:[#allocation4 + $0xf0] sm:$0xff]
  %v6910 = vld [vmem:[#allocation4 + $0xf8] sm:$0xff]
  %v6911 = vmax.f32 %v6903, %v6907
  %v6912 = vmax.f32 %v6904, %v6908
  %v6913 = vmax.f32 %v6905, %v6909
  %v6914 = vmax.f32 %v6906, %v6910
  %6919 = vrot.lane.b32.xlu0 %v6911, 108
  %v6920 = vpop.permute.xlu0 %6919
  %6921 = vrot.lane.b32.xlu0 %v6912, 108
  %v6922 = vpop.permute.xlu0 %6921
  %6923 = vrot.lane.b32.xlu0 %v6913, 108
  %v6924 = vpop.permute.xlu0 %6923
  %6925 = vrot.lane.b32.xlu0 %v6914, 108
  %v6926 = vpop.permute.xlu0 %6925
  %v6927 = vsel %vm6751, %v6920, %v6922
  %v6928 = vsel %vm6751, %v6924, %v6926
  %v6933 = vmax.f32 %v6911, %v6927
  %v6934 = vmax.f32 %v6912, %v6922
  %v6935 = vmax.f32 %v6913, %v6928
  %v6936 = vmax.f32 %v6914, %v6926
  %v6937 = vld [vmem:[%s4] sm:$0x3]
  %v6939 = vlaneseq
  %v6940 = vshrl.u32 %v6939, 7
  %v6941 = vsub.s32 0, %v6940
  %v6942 = vrot.slane %v6937, %v6941
  %v6943 = vlaneseq
  %v6944 = vshrl.u32 %v6943, 7
  %v6945 = vsub.s32 1, %v6944
  %v6946 = vrot.slane %v6937, %v6945
  %v6949 = vadd.f32 %v6933, %v6942
  %v6950 = vadd.f32 %v6934, %v6946
  %v6951 = vadd.f32 %v6935, %v6942
  %v6952 = vadd.f32 %v6936, %v6946
  %v6953 = vmax.f32 %v6949, 0.0
  %v6954 = vmax.f32 %v6950, 0.0
  %v6955 = vmax.f32 %v6951, 0.0
  %v6956 = vmax.f32 %v6952, 0.0
  %6957 = vst [vmem:[#allocation5 + $0x60] sm:$0xff] %v6953
  %6958 = vst.msk [vmem:[#allocation5 + $0x68] sm:$0xff] %vm6783, %v6954
  %6959 = vst [vmem:[#allocation5 + $0x70] sm:$0xff] %v6955
  %6960 = vst.msk [vmem:[#allocation5 + $0x78] sm:$0xff] %vm6783, %v6956
  %v6961 = vld [vmem:[%s6] sm:$0x1]
  %v6962 = vld [vmem:[#allocation5] sm:$0xff]
  %v6963 = vld [vmem:[#allocation5 + $0x8] sm:$0xff]
  %v6964 = vld [vmem:[#allocation5 + $0x10] sm:$0xff]
  %v6965 = vld [vmem:[#allocation5 + $0x18] sm:$0xff]
  %v6966 = vld [vmem:[%s5] sm:$0xff]
  %v6967 = vld [vmem:[%s5 + $0x8] sm:$0xff]
  %v6968 = vld [vmem:[%s5 + $0x10] sm:$0xff]
  %v6969 = vld [vmem:[%s5 + $0x18] sm:$0xff]
  %v6970 = vld [vmem:[%s5 + $0x20] sm:$0xff]
  %v6971 = vld [vmem:[%s5 + $0x28] sm:$0xff]
  %v6972 = vld [vmem:[%s5 + $0x30] sm:$0xff]
  %v6973 = vld [vmem:[%s5 + $0x38] sm:$0xff]
  %v6974 = vld [vmem:[%s5 + $0x40] sm:$0xff]
  %v6975 = vld [vmem:[%s5 + $0x48] sm:$0xff]
  %v6976 = vld [vmem:[%s5 + $0x50] sm:$0xff]
  %v6977 = vld [vmem:[%s5 + $0x58] sm:$0xff]
  %v6978 = vld [vmem:[%s5 + $0x60] sm:$0xff]
  %v6979 = vld [vmem:[%s5 + $0x68] sm:$0xff]
  %v6980 = vld [vmem:[%s5 + $0x70] sm:$0xff]
  %v6981 = vld [vmem:[%s5 + $0x78] sm:$0xff]
  %v6982 = vld [vmem:[%s5 + $0x80] sm:$0xff]
  %v6983 = vld [vmem:[%s5 + $0x88] sm:$0xf]
  %v6985 = vsel %vm6783, %v6963, 0
  %v6988 = vsel %vm6783, %v6965, 0
  %v6991 = vsel %vm233, %v6983, 0
  %6993 = vmatprep.subr.mxu0 0.0
  %6994 = vmatpush1.msra.mxu0 %v6966
  %6995 = vmatprep.subr.mxu0 0.0
  %6996 = vmatpush1.msra.mxu0 %v6967
  %6997 = vmatprep.subr.mxu0 0.0
  %6998 = vmatpush1.msra.mxu0 %v6968
  %6999 = vmatprep.subr.mxu0 0.0
  %7000 = vmatpush1.msra.mxu0 %v6969
  %7001 = vmatprep.subr.mxu0 0.0
  %7002 = vmatpush1.msra.mxu0 %v6970
  %7003 = vmatprep.subr.mxu0 0.0
  %7004 = vmatpush1.msra.mxu0 %v6971
  %7005 = vmatprep.subr.mxu0 0.0
  %7006 = vmatpush1.msra.mxu0 %v6972
  %7007 = vmatprep.subr.mxu0 0.0
  %7008 = vmatpush1.msra.mxu0 %v6973
  %7009 = vmatprep.subr.mxu0 0.0
  %7010 = vmatpush1.msra.mxu0 %v6974
  %7011 = vmatprep.subr.mxu0 0.0
  %7012 = vmatpush1.msra.mxu0 %v6975
  %7013 = vmatprep.subr.mxu0 0.0
  %7014 = vmatpush1.msra.mxu0 %v6976
  %7015 = vmatprep.subr.mxu0 0.0
  %7016 = vmatpush1.msra.mxu0 %v6977
  %7017 = vmatprep.subr.mxu0 0.0
  %7018 = vmatpush1.msra.mxu0 %v6978
  %7019 = vmatprep.subr.mxu0 0.0
  %7020 = vmatpush1.msra.mxu0 %v6979
  %7021 = vmatprep.subr.mxu0 0.0
  %7022 = vmatpush1.msra.mxu0 %v6980
  %7023 = vmatprep.subr.mxu0 0.0
  %7024 = vmatpush1.msra.mxu0 %v6981
  %7025 = vmatprep.subr.mxu0 0.0
  %7026 = vmatpush1.msra.mxu0 %v6982
  %7027 = vmatprep.subr.mxu0 0.0
  %7028 = vmatpush1.msra.mxu0 %v6991
  %7029 = vmatprep.subr.mxu0 0.0
  %7030 = vmatpush1.msra.mxu0 0.0
  %7031 = vmatprep.subr.mxu0 0.0
  %7032 = vmatpush1.msra.mxu0 0.0
  %7033 = vmatprep.subr.mxu0 0.0
  %7034 = vmatpush1.msra.mxu0 0.0
  %7035 = vmatprep.subr.mxu0 0.0
  %7036 = vmatpush1.msra.mxu0 0.0
  %7037 = vmatprep.subr.mxu0 0.0
  %7038 = vmatpush1.msra.mxu0 0.0
  %7039 = vmatprep.subr.mxu0 0.0
  %7040 = vmatpush1.msra.mxu0 0.0
  %7041 = vmatprep.subr.mxu0 0.0
  %7042 = vmatpush1.msra.mxu0 0.0
  %7043 = vmatprep.subr.mxu0 0.0
  %7044 = vmatpush1.msra.mxu0 0.0
  %7045 = vmatprep.subr.mxu0 0.0
  %7046 = vmatpush1.msra.mxu0 0.0
  %7047 = vmatprep.subr.mxu0 0.0
  %7048 = vmatpush1.msra.mxu0 0.0
  %7049 = vmatprep.subr.mxu0 0.0
  %7050 = vmatpush1.msra.mxu0 0.0
  %7051 = vmatprep.subr.mxu0 0.0
  %7052 = vmatpush1.msra.mxu0 0.0
  %7053 = vmatprep.subr.mxu0 0.0
  %7054 = vmatpush1.msra.mxu0 0.0
  %7055 = vmatprep.subr.mxu0 0.0
  %7056 = vmatpush1.msra.mxu0 0.0
  %7057 = vmatprep.mubr.f32.mxu0 %v6985
  %7058 = vmatmul.mubr.f32.gmra.mrb[0].mxu0 %v6962
  %v7059 = vpop.f32.mrb[0].mxu0
  %v7060 = vadd.f32 0.0, %v7059
  %v7061 = vpop.f32.mrb[0].mxu0
  %7062 = vmatprep.mubr.f32.mxu0 %v6988
  %7063 = vmatmul.mubr.f32.gmra.mrb[0].mxu0 %v6964
  %v7064 = vpop.f32.mrb[0].mxu0
  %v7065 = vadd.f32 0.0, %v7064
  %v7066 = vpop.f32.mrb[0].mxu0
  %7067 = vdwg.mxu0
  %v7069 = vlaneseq
  %v7070 = vshrl.u32 %v7069, 7
  %v7071 = vsub.s32 0, %v7070
  %v7072 = vrot.slane %v6961, %v7071
  %v7074 = vadd.f32 %v7072, %v7060
  %v7075 = vadd.f32 %v7072, %v7065
  %v7076 = vld [vmem:[#allocation5 + $0x20] sm:$0xff]
  %v7077 = vld [vmem:[#allocation5 + $0x28] sm:$0xff]
  %v7078 = vld [vmem:[#allocation5 + $0x30] sm:$0xff]
  %v7079 = vld [vmem:[#allocation5 + $0x38] sm:$0xff]
  %s7080 = scalar_lea.vmem %s5, 144
  %v7081 = vld [vmem:[%s7080] sm:$0xff]
  %v7082 = vld [vmem:[%s7080 + $0x8] sm:$0xff]
  %v7083 = vld [vmem:[%s7080 + $0x10] sm:$0xff]
  %v7084 = vld [vmem:[%s7080 + $0x18] sm:$0xff]
  %v7085 = vld [vmem:[%s7080 + $0x20] sm:$0xff]
  %v7086 = vld [vmem:[%s7080 + $0x28] sm:$0xff]
  %v7087 = vld [vmem:[%s7080 + $0x30] sm:$0xff]
  %v7088 = vld [vmem:[%s7080 + $0x38] sm:$0xff]
  %v7089 = vld [vmem:[%s7080 + $0x40] sm:$0xff]
  %v7090 = vld [vmem:[%s7080 + $0x48] sm:$0xff]
  %v7091 = vld [vmem:[%s7080 + $0x50] sm:$0xff]
  %v7092 = vld [vmem:[%s7080 + $0x58] sm:$0xff]
  %v7093 = vld [vmem:[%s7080 + $0x60] sm:$0xff]
  %v7094 = vld [vmem:[%s7080 + $0x68] sm:$0xff]
  %v7095 = vld [vmem:[%s7080 + $0x70] sm:$0xff]
  %v7096 = vld [vmem:[%s7080 + $0x78] sm:$0xff]
  %v7097 = vld [vmem:[%s7080 + $0x80] sm:$0xff]
  %v7098 = vld [vmem:[%s7080 + $0x88] sm:$0xf]
  %v7100 = vsel %vm6783, %v7077, 0
  %v7103 = vsel %vm6783, %v7079, 0
  %v7106 = vsel %vm233, %v7098, 0
  %7108 = vmatprep.subr.mxu0 0.0
  %7109 = vmatpush1.msra.mxu0 %v7081
  %7110 = vmatprep.subr.mxu0 0.0
  %7111 = vmatpush1.msra.mxu0 %v7082
  %7112 = vmatprep.subr.mxu0 0.0
  %7113 = vmatpush1.msra.mxu0 %v7083
  %7114 = vmatprep.subr.mxu0 0.0
  %7115 = vmatpush1.msra.mxu0 %v7084
  %7116 = vmatprep.subr.mxu0 0.0
  %7117 = vmatpush1.msra.mxu0 %v7085
  %7118 = vmatprep.subr.mxu0 0.0
  %7119 = vmatpush1.msra.mxu0 %v7086
  %7120 = vmatprep.subr.mxu0 0.0
  %7121 = vmatpush1.msra.mxu0 %v7087
  %7122 = vmatprep.subr.mxu0 0.0
  %7123 = vmatpush1.msra.mxu0 %v7088
  %7124 = vmatprep.subr.mxu0 0.0
  %7125 = vmatpush1.msra.mxu0 %v7089
  %7126 = vmatprep.subr.mxu0 0.0
  %7127 = vmatpush1.msra.mxu0 %v7090
  %7128 = vmatprep.subr.mxu0 0.0
  %7129 = vmatpush1.msra.mxu0 %v7091
  %7130 = vmatprep.subr.mxu0 0.0
  %7131 = vmatpush1.msra.mxu0 %v7092
  %7132 = vmatprep.subr.mxu0 0.0
  %7133 = vmatpush1.msra.mxu0 %v7093
  %7134 = vmatprep.subr.mxu0 0.0
  %7135 = vmatpush1.msra.mxu0 %v7094
  %7136 = vmatprep.subr.mxu0 0.0
  %7137 = vmatpush1.msra.mxu0 %v7095
  %7138 = vmatprep.subr.mxu0 0.0
  %7139 = vmatpush1.msra.mxu0 %v7096
  %7140 = vmatprep.subr.mxu0 0.0
  %7141 = vmatpush1.msra.mxu0 %v7097
  %7142 = vmatprep.subr.mxu0 0.0
  %7143 = vmatpush1.msra.mxu0 %v7106
  %7144 = vmatprep.subr.mxu0 0.0
  %7145 = vmatpush1.msra.mxu0 0.0
  %7146 = vmatprep.subr.mxu0 0.0
  %7147 = vmatpush1.msra.mxu0 0.0
  %7148 = vmatprep.subr.mxu0 0.0
  %7149 = vmatpush1.msra.mxu0 0.0
  %7150 = vmatprep.subr.mxu0 0.0
  %7151 = vmatpush1.msra.mxu0 0.0
  %7152 = vmatprep.subr.mxu0 0.0
  %7153 = vmatpush1.msra.mxu0 0.0
  %7154 = vmatprep.subr.mxu0 0.0
  %7155 = vmatpush1.msra.mxu0 0.0
  %7156 = vmatprep.subr.mxu0 0.0
  %7157 = vmatpush1.msra.mxu0 0.0
  %7158 = vmatprep.subr.mxu0 0.0
  %7159 = vmatpush1.msra.mxu0 0.0
  %7160 = vmatprep.subr.mxu0 0.0
  %7161 = vmatpush1.msra.mxu0 0.0
  %7162 = vmatprep.subr.mxu0 0.0
  %7163 = vmatpush1.msra.mxu0 0.0
  %7164 = vmatprep.subr.mxu0 0.0
  %7165 = vmatpush1.msra.mxu0 0.0
  %7166 = vmatprep.subr.mxu0 0.0
  %7167 = vmatpush1.msra.mxu0 0.0
  %7168 = vmatprep.subr.mxu0 0.0
  %7169 = vmatpush1.msra.mxu0 0.0
  %7170 = vmatprep.subr.mxu0 0.0
  %7171 = vmatpush1.msra.mxu0 0.0
  %7172 = vmatprep.mubr.f32.mxu0 %v7100
  %7173 = vmatmul.mubr.f32.gmra.mrb[0].mxu0 %v7076
  %v7174 = vpop.f32.mrb[0].mxu0
  %v7175 = vadd.f32 0.0, %v7174
  %v7176 = vpop.f32.mrb[0].mxu0
  %7177 = vmatprep.mubr.f32.mxu0 %v7103
  %7178 = vmatmul.mubr.f32.gmra.mrb[0].mxu0 %v7078
  %v7179 = vpop.f32.mrb[0].mxu0
  %v7180 = vadd.f32 0.0, %v7179
  %v7181 = vpop.f32.mrb[0].mxu0
  %7182 = vdwg.mxu0
  %v7183 = vadd.f32 %v7074, %v7175
  %v7184 = vadd.f32 %v7075, %v7180
  %v7185 = vld [vmem:[#allocation5 + $0x40] sm:$0xff]
  %v7186 = vld [vmem:[#allocation5 + $0x48] sm:$0xff]
  %v7187 = vld [vmem:[#allocation5 + $0x50] sm:$0xff]
  %v7188 = vld [vmem:[#allocation5 + $0x58] sm:$0xff]
  %s7189 = scalar_lea.vmem %s5, 288
  %v7190 = vld [vmem:[%s7189] sm:$0xff]
  %v7191 = vld [vmem:[%s7189 + $0x8] sm:$0xff]
  %v7192 = vld [vmem:[%s7189 + $0x10] sm:$0xff]
  %v7193 = vld [vmem:[%s7189 + $0x18] sm:$0xff]
  %v7194 = vld [vmem:[%s7189 + $0x20] sm:$0xff]
  %v7195 = vld [vmem:[%s7189 + $0x28] sm:$0xff]
  %v7196 = vld [vmem:[%s7189 + $0x30] sm:$0xff]
  %v7197 = vld [vmem:[%s7189 + $0x38] sm:$0xff]
  %v7198 = vld [vmem:[%s7189 + $0x40] sm:$0xff]
  %v7199 = vld [vmem:[%s7189 + $0x48] sm:$0xff]
  %v7200 = vld [vmem:[%s7189 + $0x50] sm:$0xff]
  %v7201 = vld [vmem:[%s7189 + $0x58] sm:$0xff]
  %v7202 = vld [vmem:[%s7189 + $0x60] sm:$0xff]
  %v7203 = vld [vmem:[%s7189 + $0x68] sm:$0xff]
  %v7204 = vld [vmem:[%s7189 + $0x70] sm:$0xff]
  %v7205 = vld [vmem:[%s7189 + $0x78] sm:$0xff]
  %v7206 = vld [vmem:[%s7189 + $0x80] sm:$0xff]
  %v7207 = vld [vmem:[%s7189 + $0x88] sm:$0xf]
  %v7209 = vsel %vm6783, %v7186, 0
  %v7212 = vsel %vm6783, %v7188, 0
  %v7215 = vsel %vm233, %v7207, 0
  %7217 = vmatprep.subr.mxu0 0.0
  %7218 = vmatpush1.msra.mxu0 %v7190
  %7219 = vmatprep.subr.mxu0 0.0
  %7220 = vmatpush1.msra.mxu0 %v7191
  %7221 = vmatprep.subr.mxu0 0.0
  %7222 = vmatpush1.msra.mxu0 %v7192
  %7223 = vmatprep.subr.mxu0 0.0
  %7224 = vmatpush1.msra.mxu0 %v7193
  %7225 = vmatprep.subr.mxu0 0.0
  %7226 = vmatpush1.msra.mxu0 %v7194
  %7227 = vmatprep.subr.mxu0 0.0
  %7228 = vmatpush1.msra.mxu0 %v7195
  %7229 = vmatprep.subr.mxu0 0.0
  %7230 = vmatpush1.msra.mxu0 %v7196
  %7231 = vmatprep.subr.mxu0 0.0
  %7232 = vmatpush1.msra.mxu0 %v7197
  %7233 = vmatprep.subr.mxu0 0.0
  %7234 = vmatpush1.msra.mxu0 %v7198
  %7235 = vmatprep.subr.mxu0 0.0
  %7236 = vmatpush1.msra.mxu0 %v7199
  %7237 = vmatprep.subr.mxu0 0.0
  %7238 = vmatpush1.msra.mxu0 %v7200
  %7239 = vmatprep.subr.mxu0 0.0
  %7240 = vmatpush1.msra.mxu0 %v7201
  %7241 = vmatprep.subr.mxu0 0.0
  %7242 = vmatpush1.msra.mxu0 %v7202
  %7243 = vmatprep.subr.mxu0 0.0
  %7244 = vmatpush1.msra.mxu0 %v7203
  %7245 = vmatprep.subr.mxu0 0.0
  %7246 = vmatpush1.msra.mxu0 %v7204
  %7247 = vmatprep.subr.mxu0 0.0
  %7248 = vmatpush1.msra.mxu0 %v7205
  %7249 = vmatprep.subr.mxu0 0.0
  %7250 = vmatpush1.msra.mxu0 %v7206
  %7251 = vmatprep.subr.mxu0 0.0
  %7252 = vmatpush1.msra.mxu0 %v7215
  %7253 = vmatprep.subr.mxu0 0.0
  %7254 = vmatpush1.msra.mxu0 0.0
  %7255 = vmatprep.subr.mxu0 0.0
  %7256 = vmatpush1.msra.mxu0 0.0
  %7257 = vmatprep.subr.mxu0 0.0
  %7258 = vmatpush1.msra.mxu0 0.0
  %7259 = vmatprep.subr.mxu0 0.0
  %7260 = vmatpush1.msra.mxu0 0.0
  %7261 = vmatprep.subr.mxu0 0.0
  %7262 = vmatpush1.msra.mxu0 0.0
  %7263 = vmatprep.subr.mxu0 0.0
  %7264 = vmatpush1.msra.mxu0 0.0
  %7265 = vmatprep.subr.mxu0 0.0
  %7266 = vmatpush1.msra.mxu0 0.0
  %7267 = vmatprep.subr.mxu0 0.0
  %7268 = vmatpush1.msra.mxu0 0.0
  %7269 = vmatprep.subr.mxu0 0.0
  %7270 = vmatpush1.msra.mxu0 0.0
  %7271 = vmatprep.subr.mxu0 0.0
  %7272 = vmatpush1.msra.mxu0 0.0
  %7273 = vmatprep.subr.mxu0 0.0
  %7274 = vmatpush1.msra.mxu0 0.0
  %7275 = vmatprep.subr.mxu0 0.0
  %7276 = vmatpush1.msra.mxu0 0.0
  %7277 = vmatprep.subr.mxu0 0.0
  %7278 = vmatpush1.msra.mxu0 0.0
  %7279 = vmatprep.subr.mxu0 0.0
  %7280 = vmatpush1.msra.mxu0 0.0
  %7281 = vmatprep.mubr.f32.mxu0 %v7209
  %7282 = vmatmul.mubr.f32.gmra.mrb[0].mxu0 %v7185
  %v7283 = vpop.f32.mrb[0].mxu0
  %v7284 = vadd.f32 0.0, %v7283
  %v7285 = vpop.f32.mrb[0].mxu0
  %7286 = vmatprep.mubr.f32.mxu0 %v7212
  %7287 = vmatmul.mubr.f32.gmra.mrb[0].mxu0 %v7187
  %v7288 = vpop.f32.mrb[0].mxu0
  %v7289 = vadd.f32 0.0, %v7288
  %v7290 = vpop.f32.mrb[0].mxu0
  %7291 = vdwg.mxu0
  %v7292 = vadd.f32 %v7183, %v7284
  %v7293 = vadd.f32 %v7184, %v7289
  %v7294 = vld [vmem:[#allocation5 + $0x60] sm:$0xff]
  %v7295 = vld [vmem:[#allocation5 + $0x68] sm:$0xff]
  %v7296 = vld [vmem:[#allocation5 + $0x70] sm:$0xff]
  %v7297 = vld [vmem:[#allocation5 + $0x78] sm:$0xff]
  %s7298 = scalar_lea.vmem %s5, 432
  %v7299 = vld [vmem:[%s7298] sm:$0xff]
  %v7300 = vld [vmem:[%s7298 + $0x8] sm:$0xff]
  %v7301 = vld [vmem:[%s7298 + $0x10] sm:$0xff]
  %v7302 = vld [vmem:[%s7298 + $0x18] sm:$0xff]
  %v7303 = vld [vmem:[%s7298 + $0x20] sm:$0xff]
  %v7304 = vld [vmem:[%s7298 + $0x28] sm:$0xff]
  %v7305 = vld [vmem:[%s7298 + $0x30] sm:$0xff]
  %v7306 = vld [vmem:[%s7298 + $0x38] sm:$0xff]
  %v7307 = vld [vmem:[%s7298 + $0x40] sm:$0xff]
  %v7308 = vld [vmem:[%s7298 + $0x48] sm:$0xff]
  %v7309 = vld [vmem:[%s7298 + $0x50] sm:$0xff]
  %v7310 = vld [vmem:[%s7298 + $0x58] sm:$0xff]
  %v7311 = vld [vmem:[%s7298 + $0x60] sm:$0xff]
  %v7312 = vld [vmem:[%s7298 + $0x68] sm:$0xff]
  %v7313 = vld [vmem:[%s7298 + $0x70] sm:$0xff]
  %v7314 = vld [vmem:[%s7298 + $0x78] sm:$0xff]
  %v7315 = vld [vmem:[%s7298 + $0x80] sm:$0xff]
  %v7316 = vld [vmem:[%s7298 + $0x88] sm:$0xf]
  %v7318 = vsel %vm6783, %v7295, 0
  %v7321 = vsel %vm6783, %v7297, 0
  %v7324 = vsel %vm233, %v7316, 0
  %7326 = vmatprep.subr.mxu0 0.0
  %7327 = vmatpush1.msra.mxu0 %v7299
  %7328 = vmatprep.subr.mxu0 0.0
  %7329 = vmatpush1.msra.mxu0 %v7300
  %7330 = vmatprep.subr.mxu0 0.0
  %7331 = vmatpush1.msra.mxu0 %v7301
  %7332 = vmatprep.subr.mxu0 0.0
  %7333 = vmatpush1.msra.mxu0 %v7302
  %7334 = vmatprep.subr.mxu0 0.0
  %7335 = vmatpush1.msra.mxu0 %v7303
  %7336 = vmatprep.subr.mxu0 0.0
  %7337 = vmatpush1.msra.mxu0 %v7304
  %7338 = vmatprep.subr.mxu0 0.0
  %7339 = vmatpush1.msra.mxu0 %v7305
  %7340 = vmatprep.subr.mxu0 0.0
  %7341 = vmatpush1.msra.mxu0 %v7306
  %7342 = vmatprep.subr.mxu0 0.0
  %7343 = vmatpush1.msra.mxu0 %v7307
  %7344 = vmatprep.subr.mxu0 0.0
  %7345 = vmatpush1.msra.mxu0 %v7308
  %7346 = vmatprep.subr.mxu0 0.0
  %7347 = vmatpush1.msra.mxu0 %v7309
  %7348 = vmatprep.subr.mxu0 0.0
  %7349 = vmatpush1.msra.mxu0 %v7310
  %7350 = vmatprep.subr.mxu0 0.0
  %7351 = vmatpush1.msra.mxu0 %v7311
  %7352 = vmatprep.subr.mxu0 0.0
  %7353 = vmatpush1.msra.mxu0 %v7312
  %7354 = vmatprep.subr.mxu0 0.0
  %7355 = vmatpush1.msra.mxu0 %v7313
  %7356 = vmatprep.subr.mxu0 0.0
  %7357 = vmatpush1.msra.mxu0 %v7314
  %7358 = vmatprep.subr.mxu0 0.0
  %7359 = vmatpush1.msra.mxu0 %v7315
  %7360 = vmatprep.subr.mxu0 0.0
  %7361 = vmatpush1.msra.mxu0 %v7324
  %7362 = vmatprep.subr.mxu0 0.0
  %7363 = vmatpush1.msra.mxu0 0.0
  %7364 = vmatprep.subr.mxu0 0.0
  %7365 = vmatpush1.msra.mxu0 0.0
  %7366 = vmatprep.subr.mxu0 0.0
  %7367 = vmatpush1.msra.mxu0 0.0
  %7368 = vmatprep.subr.mxu0 0.0
  %7369 = vmatpush1.msra.mxu0 0.0
  %7370 = vmatprep.subr.mxu0 0.0
  %7371 = vmatpush1.msra.mxu0 0.0
  %7372 = vmatprep.subr.mxu0 0.0
  %7373 = vmatpush1.msra.mxu0 0.0
  %7374 = vmatprep.subr.mxu0 0.0
  %7375 = vmatpush1.msra.mxu0 0.0
  %7376 = vmatprep.subr.mxu0 0.0
  %7377 = vmatpush1.msra.mxu0 0.0
  %7378 = vmatprep.subr.mxu0 0.0
  %7379 = vmatpush1.msra.mxu0 0.0
  %7380 = vmatprep.subr.mxu0 0.0
  %7381 = vmatpush1.msra.mxu0 0.0
  %7382 = vmatprep.subr.mxu0 0.0
  %7383 = vmatpush1.msra.mxu0 0.0
  %7384 = vmatprep.subr.mxu0 0.0
  %7385 = vmatpush1.msra.mxu0 0.0
  %7386 = vmatprep.subr.mxu0 0.0
  %7387 = vmatpush1.msra.mxu0 0.0
  %7388 = vmatprep.subr.mxu0 0.0
  %7389 = vmatpush1.msra.mxu0 0.0
  %7390 = vmatprep.mubr.f32.mxu0 %v7318
  %7391 = vmatmul.mubr.f32.gmra.mrb[0].mxu0 %v7294
  %v7392 = vpop.f32.mrb[0].mxu0
  %v7393 = vadd.f32 0.0, %v7392
  %v7394 = vpop.f32.mrb[0].mxu0
  %7395 = vmatprep.mubr.f32.mxu0 %v7321
  %7396 = vmatmul.mubr.f32.gmra.mrb[0].mxu0 %v7296
  %v7397 = vpop.f32.mrb[0].mxu0
  %v7398 = vadd.f32 0.0, %v7397
  %v7399 = vpop.f32.mrb[0].mxu0
  %7400 = vdwg.mxu0
  %v7401 = vadd.f32 %v7292, %v7393
  %v7402 = vadd.f32 %v7293, %v7398
  %v7403 = vmax.f32 %v7401, 0.0
  %v7404 = vmax.f32 %v7402, 0.0
  %v7405 = vld [vmem:[%s7] sm:$0xff]
  %v7406 = vld [vmem:[%s7 + $0x8] sm:$0xff]
  %v7407 = vld [vmem:[%s7 + $0x10] sm:$0xff]
  %v7408 = vld [vmem:[%s7 + $0x18] sm:$0xff]
  %v7409 = vld [vmem:[%s7 + $0x20] sm:$0xff]
  %v7410 = vld [vmem:[%s7 + $0x28] sm:$0xff]
  %v7411 = vld [vmem:[%s7 + $0x30] sm:$0x3]
  %v7412 = vld [vmem:[%s8] sm:$0x1]
  %v7414 = vlaneseq
  %v7415 = vshrl.u32 %v7414, 7
  %v7416 = vsub.s32 0, %v7415
  %v7417 = vrot.slane %v7412, %v7416
  %vm7419 = vcmask 408576
  %v7421 = vsel %vm7419, %v7403, 0
  %v7424 = vsel %vm7419, %v7404, 0
  %vm7426 = vcmask 1041408
  %v7428 = vsel %vm7426, %v7411, 0
  %7430 = vmatprep.subr.mxu0 0.0
  %7431 = vmatpush1.msra.mxu0 %v7405
  %7432 = vmatprep.subr.mxu0 0.0
  %7433 = vmatpush1.msra.mxu0 %v7406
  %7434 = vmatprep.subr.mxu0 0.0
  %7435 = vmatpush1.msra.mxu0 %v7407
  %7436 = vmatprep.subr.mxu0 0.0
  %7437 = vmatpush1.msra.mxu0 %v7408
  %7438 = vmatprep.subr.mxu0 0.0
  %7439 = vmatpush1.msra.mxu0 %v7409
  %7440 = vmatprep.subr.mxu0 0.0
  %7441 = vmatpush1.msra.mxu0 %v7410
  %7442 = vmatprep.subr.mxu0 0.0
  %7443 = vmatpush1.msra.mxu0 %v7428
  %7444 = vmatprep.subr.mxu0 0.0
  %7445 = vmatpush1.msra.mxu0 0.0
  %7446 = vmatprep.subr.mxu0 0.0
  %7447 = vmatpush1.msra.mxu0 0.0
  %7448 = vmatprep.subr.mxu0 0.0
  %7449 = vmatpush1.msra.mxu0 0.0
  %7450 = vmatprep.subr.mxu0 0.0
  %7451 = vmatpush1.msra.mxu0 0.0
  %7452 = vmatprep.subr.mxu0 0.0
  %7453 = vmatpush1.msra.mxu0 0.0
  %7454 = vmatprep.subr.mxu0 0.0
  %7455 = vmatpush1.msra.mxu0 0.0
  %7456 = vmatprep.subr.mxu0 0.0
  %7457 = vmatpush1.msra.mxu0 0.0
  %7458 = vmatprep.subr.mxu0 0.0
  %7459 = vmatpush1.msra.mxu0 0.0
  %7460 = vmatprep.subr.mxu0 0.0
  %7461 = vmatpush1.msra.mxu0 0.0
  %7462 = vmatprep.subr.mxu0 0.0
  %7463 = vmatpush1.msra.mxu0 0.0
  %7464 = vmatprep.subr.mxu0 0.0
  %7465 = vmatpush1.msra.mxu0 0.0
  %7466 = vmatprep.subr.mxu0 0.0
  %7467 = vmatpush1.msra.mxu0 0.0
  %7468 = vmatprep.subr.mxu0 0.0
  %7469 = vmatpush1.msra.mxu0 0.0
  %7470 = vmatprep.subr.mxu0 0.0
  %7471 = vmatpush1.msra.mxu0 0.0
  %7472 = vmatprep.subr.mxu0 0.0
  %7473 = vmatpush1.msra.mxu0 0.0
  %7474 = vmatprep.subr.mxu0 0.0
  %7475 = vmatpush1.msra.mxu0 0.0
  %7476 = vmatprep.subr.mxu0 0.0
  %7477 = vmatpush1.msra.mxu0 0.0
  %7478 = vmatprep.subr.mxu0 0.0
  %7479 = vmatpush1.msra.mxu0 0.0
  %7480 = vmatprep.subr.mxu0 0.0
  %7481 = vmatpush1.msra.mxu0 0.0
  %7482 = vmatprep.subr.mxu0 0.0
  %7483 = vmatpush1.msra.mxu0 0.0
  %7484 = vmatprep.subr.mxu0 0.0
  %7485 = vmatpush1.msra.mxu0 0.0
  %7486 = vmatprep.subr.mxu0 0.0
  %7487 = vmatpush1.msra.mxu0 0.0
  %7488 = vmatprep.subr.mxu0 0.0
  %7489 = vmatpush1.msra.mxu0 0.0
  %7490 = vmatprep.subr.mxu0 0.0
  %7491 = vmatpush1.msra.mxu0 0.0
  %7492 = vmatprep.subr.mxu0 0.0
  %7493 = vmatpush1.msra.mxu0 0.0
  %7494 = vmatprep.mubr.f32.mxu0 0.0
  %7495 = vmatmul.mubr.f32.gmra.mrb[0].mxu0 %v7421
  %v7496 = vpop.f32.mrb[0].mxu0
  %v7497 = vadd.f32 %v7417, %v7496
  %v7498 = vpop.f32.mrb[0].mxu0
  %7499 = vmatprep.mubr.f32.mxu0 0.0
  %7500 = vmatmul.mubr.f32.gmra.mrb[0].mxu0 %v7424
  %v7501 = vpop.f32.mrb[0].mxu0
  %v7502 = vadd.f32 %v7417, %v7501
  %v7503 = vpop.f32.mrb[0].mxu0
  %7504 = vdwg.mxu0
  %7505 = vmax.xlane.f32.xlu0 %v7497
  %v7506 = vpop.xlane.xlu0 %7505
  %7507 = vmax.xlane.f32.xlu0 %v7502
  %v7508 = vpop.xlane.xlu0 %7507
  %v7509 = vsub.f32 %v7497, %v7506
  %v7510 = vsub.f32 %v7502, %v7508
  %v7511 = vmul.f32 %v7509, 1.442695
  %v7512 = vpow.pop %v7511
  %v7513 = vmul.f32 %v7510, 1.442695
  %v7514 = vpow.pop %v7513
  %7515 = vadd.xlane.f32.xlu0 %v7512
  %v7516 = vpop.xlane.xlu0 %7515
  %7517 = vadd.xlane.f32.xlu0 %v7514
  %v7518 = vpop.xlane.xlu0 %7517
  %v7519 = vlog2.pop %v7516
  %v7520 = vmul.f32 %v7519, 0.6931472
  %v7521 = vlog2.pop %v7518
  %v7522 = vmul.f32 %v7521, 0.6931472
  %v7523 = vadd.f32 %v7520, %v7506
  %v7524 = vadd.f32 %v7522, %v7508
  %v7525 = vsub.f32 %v7497, %v7523
  %v7526 = vsub.f32 %v7502, %v7524
  %7527 = vst [vmem:[%s9] sm:$0xff] %v7525
  %7528 = vst [vmem:[%s9 + $0x8] sm:$0xff] %v7526
  // Predicated region
  $region38: #{net_forward.1} parent=0 // pred_check
    _
  $region39: #{net_forward.1} parent=0 // pred_check_branch
    %7530 = sbr.rel (0) target = $region41
  $region40: #{net_forward.1} parent=0 // pred_region
    _
  $region41: #{net_forward.1} parent=0 // pred_fallthru
    _
  // Predicated region
  $region42: #{net_forward.1} parent=0 // pred_check
    _
  $region43: #{net_forward.1} parent=0 // pred_check_branch
    %7532 = sbr.rel (0) target = $region45
  $region44: #{net_forward.1} parent=0 // pred_region
    _
  $region45: #{net_forward.1} parent=0 // pred_fallthru
    _

</llo_original>
